<compile_context>
chip_gen: v6e
topology: v6e:2x2x1
jax: 0.10.0
libtpu: 0.0.40
codegen_flags: <defaults>
</compile_context>

<pallas_src>
from functools import partial

import jax
import jax.numpy as jnp
from jax.experimental import pallas as pl
from jax.experimental.pallas import tpu as pltpu


# ----------------------------------------------------------------------------
# tiling helpers
# ----------------------------------------------------------------------------
def _row_tile(h, cap=64, even=False):
    """Largest divisor of h that is <= cap (optionally even); fallback h."""
    step = 2 if even else 1
    best = h
    for c in range(step, min(h, cap) + 1, step):
        if h % c == 0:
            best = c
    return best


def _row_block(m, cap=1024):
    """Largest divisor of m that is a multiple of 8 and <= cap; fallback m."""
    best = None
    d = 8
    while d <= min(m, cap):
        if m % d == 0:
            best = d
        d += 8
    return best if best is not None else m


# ----------------------------------------------------------------------------
# in-kernel building blocks
# ----------------------------------------------------------------------------
def _im2col_conv3x3(slab_ref, rows, w_ref, tile_i, n_tiles, *, TR, W):
    """Single-matmul 3x3 conv (pad=1) on an assembled row tile.

    rows:     (TR+2, W, C) f32  -- row 0 = halo above, row TR+1 = halo below
    slab_ref: (TR, W, 9*C) f32 VMEM scratch (im2col slab)
    w_ref:    (9*C, D) bf16     -- tap k = dy*3 + dx, flattened host-side
    Returns (TR*W, D) f32 (no bias).
    """
    C = rows.shape[-1]
    # zero the pad-ring halo rows when this tile touches the image boundary
    ridx = jax.lax.broadcasted_iota(jnp.int32, (TR + 2, 1, 1), 0)
    keep = jnp.logical_and(
        jnp.logical_or(ridx > 0, tile_i > 0),
        jnp.logical_or(ridx < TR + 1, tile_i < n_tiles - 1))
    rows = jnp.where(keep, rows, 0.0)
    # zero pad-ring columns (left / right)
    zc = jnp.zeros((TR + 2, 1, C), jnp.float32)
    roww = jnp.concatenate([zc, rows, zc], axis=1)          # (TR+2, W+2, C)
    # build the im2col slab: one lane-offset write per tap
    for dy in range(3):
        for dx in range(3):
            k = dy * 3 + dx
            slab_ref[:, :, k * C:(k + 1) * C] = roww[dy:dy + TR, dx:dx + W, :]
    slab = slab_ref[...].reshape(TR * W, 9 * C).astype(jnp.bfloat16)
    return jnp.dot(slab, w_ref[...], preferred_element_type=jnp.float32)


# ----------------------------------------------------------------------------
# kernels
# ----------------------------------------------------------------------------
def _conv2_conv3x3_kernel(main_ref, top_ref, bot_ref, w2_ref, b2_ref,
                          w1_ref, b1_ref, o_ref, slab_ref, *, TR, W):
    # x1 = conv1(conv2(bottleneck)): fused 1x1 then 3x3 (single im2col matmul)
    x = jnp.concatenate([top_ref[...], main_ref[...], bot_ref[...]], axis=0)
    Cin = x.shape[-1]
    Co = w2_ref.shape[-1]
    y = jnp.dot(x.reshape((TR + 2) * W, Cin).astype(jnp.bfloat16), w2_ref[...],
                preferred_element_type=jnp.float32) + b2_ref[...]
    rows = y.reshape(TR + 2, W, Co)                          # conv2 output rows
    acc = _im2col_conv3x3(slab_ref, rows, w1_ref, pl.program_id(1),
                          pl.num_programs(1), TR=TR, W=W)    # (TR*W, Co)
    o_ref[...] = (acc + b1_ref[...]).reshape(TR, W, Co)


def _conv3x3_add_up_relu_kernel(main_ref, top_ref, bot_ref, x1_ref,
                                w1_ref, b1_ref, o_ref, slab_ref, *, TR, W):
    # x3 = relu(conv1(jump) + nearest_upsample_x2(x1))
    rows = jnp.concatenate([top_ref[...], main_ref[...], bot_ref[...]], axis=0)
    acc = _im2col_conv3x3(slab_ref, rows, w1_ref, pl.program_id(1),
                          pl.num_programs(1), TR=TR, W=W)    # (TR*W, Co)
    Co = w1_ref.shape[-1]
    TRh, Wlo = TR // 2, W // 2
    x1 = x1_ref[...]                                         # (TRh, Wlo, Co)
    # in-register nearest x2 upsample: width then height (broadcast + merge)
    x1 = jnp.broadcast_to(x1[:, :, None, :], (TRh, Wlo, 2, Co)).reshape(TRh, W, Co)
    x1 = jnp.broadcast_to(x1[:, None, :, :], (TRh, 2, W, Co)).reshape(TR, W, Co)
    o_ref[...] = jnp.maximum(acc.reshape(TR, W, Co) + b1_ref[...] + x1, 0.0)


def _conv3x3_gate_proj_stats_kernel(main_ref, top_ref, bot_ref, jump_ref,
                                    w1_ref, b1_ref, w3_ref, b3_ref,
                                    o_ref, sum_ref, ssq_ref, slab_ref, *, TR, W):
    # y = (sigmoid(conv1(x3)) * jump) @ w3 + b3, plus BN partial statistics
    rows = jnp.concatenate([top_ref[...], main_ref[...], bot_ref[...]], axis=0)
    acc = _im2col_conv3x3(slab_ref, rows, w1_ref, pl.program_id(1),
                          pl.num_programs(1), TR=TR, W=W) + b1_ref[...]
    gate = pl.reciprocal(1.0 + jnp.exp(-acc), approx=True)   # sigmoid via EUP
    Co = w1_ref.shape[-1]
    gated = gate * jump_ref[...].reshape(TR * W, Co)
    y = (jnp.dot(gated.astype(jnp.bfloat16), w3_ref[...],
                 preferred_element_type=jnp.float32) + b3_ref[...])
    o_ref[...] = y
    sum_ref[...] = jnp.sum(y, axis=0, keepdims=True)
    ssq_ref[...] = jnp.sum(y * y, axis=0, keepdims=True)


def _scale_shift_relu_kernel(x_ref, s_ref, t_ref, o_ref):
    o_ref[...] = jnp.maximum(x_ref[...] * s_ref[...] + t_ref[...], 0.0)


# ----------------------------------------------------------------------------
# pallas wrappers
# ----------------------------------------------------------------------------
def _halo_specs(TR, W, C, H):
    """Main row-tile + 2 clamped single-row halo BlockSpecs (UNPADDED input)."""
    return [
        pl.BlockSpec((pl.Squeezed(), TR, W, C), lambda b, i: (b, i, 0, 0)),
        pl.BlockSpec((pl.Squeezed(), 1, W, C),
                     lambda b, i: (b, jnp.maximum(i * TR - 1, 0), 0, 0)),
        pl.BlockSpec((pl.Squeezed(), 1, W, C),
                     lambda b, i: (b, jnp.minimum(i * TR + TR, H - 1), 0, 0)),
    ]


def conv2_conv3x3(bottleneck, w2, b2, w1f, b1, row_tile_cap=64):
    """x1 = conv1(conv2(bottleneck)).  bottleneck: (B, H, W, Cin) -> (B, H, W, Co)."""
    B, H, W, Cin = bottleneck.shape
    Co = w2.shape[-1]
    TR = _row_tile(H, row_tile_cap)
    T = H // TR
    return pl.pallas_call(
        partial(_conv2_conv3x3_kernel, TR=TR, W=W),
        out_shape=jax.ShapeDtypeStruct((B, H, W, Co), jnp.float32),
        grid=(B, T),
        in_specs=_halo_specs(TR, W, Cin, H) + [
            pl.BlockSpec((Cin, Co), lambda b, i: (0, 0)),
            pl.BlockSpec((1, Co), lambda b, i: (0, 0)),
            pl.BlockSpec((9 * Co, Co), lambda b, i: (0, 0)),
            pl.BlockSpec((1, Co), lambda b, i: (0, 0)),
        ],
        out_specs=pl.BlockSpec((pl.Squeezed(), TR, W, Co),
                               lambda b, i: (b, i, 0, 0)),
        scratch_shapes=[pltpu.VMEM((TR, W, 9 * Co), jnp.float32)],
        compiler_params=pltpu.CompilerParams(
            dimension_semantics=("parallel", "parallel")),
    )(bottleneck, bottleneck, bottleneck, w2, b2, w1f, b1)


def conv3x3_add_up_relu(jump, x1, w1f, b1, row_tile_cap=64):
    """x3 = relu(conv1(jump) + nearest_x2(x1)).  jump: (B, H2, W2, Co)."""
    B, H2, W2, Co = jump.shape
    TR = _row_tile(H2, row_tile_cap, even=True)
    T = H2 // TR
    return pl.pallas_call(
        partial(_conv3x3_add_up_relu_kernel, TR=TR, W=W2),
        out_shape=jax.ShapeDtypeStruct((B, H2, W2, Co), jnp.float32),
        grid=(B, T),
        in_specs=_halo_specs(TR, W2, Co, H2) + [
            pl.BlockSpec((pl.Squeezed(), TR // 2, W2 // 2, Co),
                         lambda b, i: (b, i, 0, 0)),
            pl.BlockSpec((9 * Co, Co), lambda b, i: (0, 0)),
            pl.BlockSpec((1, Co), lambda b, i: (0, 0)),
        ],
        out_specs=pl.BlockSpec((pl.Squeezed(), TR, W2, Co),
                               lambda b, i: (b, i, 0, 0)),
        scratch_shapes=[pltpu.VMEM((TR, W2, 9 * Co), jnp.float32)],
        compiler_params=pltpu.CompilerParams(
            dimension_semantics=("parallel", "parallel")),
    )(jump, jump, jump, x1, w1f, b1)


def conv3x3_gate_project_stats(x3, jump, w1f, b1, w3, b3, row_tile_cap=64):
    """y = (sigmoid(conv1(x3)) * jump) @ w3 + b3, plus per-tile BN stats."""
    B, H2, W2, Co = x3.shape
    C2 = w3.shape[-1]
    TR = _row_tile(H2, row_tile_cap, even=True)
    T = H2 // TR
    M = B * H2 * W2
    nblk = B * T
    return pl.pallas_call(
        partial(_conv3x3_gate_proj_stats_kernel, TR=TR, W=W2),
        out_shape=(
            jax.ShapeDtypeStruct((M, C2), jnp.float32),
            jax.ShapeDtypeStruct((nblk, 1, C2), jnp.float32),
            jax.ShapeDtypeStruct((nblk, 1, C2), jnp.float32),
        ),
        grid=(B, T),
        in_specs=_halo_specs(TR, W2, Co, H2) + [
            pl.BlockSpec((pl.Squeezed(), TR, W2, Co), lambda b, i: (b, i, 0, 0)),
            pl.BlockSpec((9 * Co, Co), lambda b, i: (0, 0)),
            pl.BlockSpec((1, Co), lambda b, i: (0, 0)),
            pl.BlockSpec((Co, C2), lambda b, i: (0, 0)),
            pl.BlockSpec((1, C2), lambda b, i: (0, 0)),
        ],
        out_specs=(
            pl.BlockSpec((TR * W2, C2), lambda b, i: (b * T + i, 0)),
            pl.BlockSpec((pl.Squeezed(), 1, C2), lambda b, i: (b * T + i, 0, 0)),
            pl.BlockSpec((pl.Squeezed(), 1, C2), lambda b, i: (b * T + i, 0, 0)),
        ),
        scratch_shapes=[pltpu.VMEM((TR, W2, 9 * Co), jnp.float32)],
        compiler_params=pltpu.CompilerParams(
            dimension_semantics=("parallel", "parallel")),
    )(x3, x3, x3, jump, w1f, b1, w3, b3)


def batchnorm_relu(y_flat, sums, ssqs, gamma, beta, eps=1e-5):
    """Training-mode BatchNorm (batch stats from partial sums) + ReLU."""
    M, C2 = y_flat.shape
    n = jnp.float32(M)
    mean = jnp.sum(sums, axis=(0, 1)) / n                          # (C2,)
    var = jnp.maximum(jnp.sum(ssqs, axis=(0, 1)) / n - mean * mean, 0.0)
    scale = gamma.reshape(-1) * jax.lax.rsqrt(var + eps)           # (C2,)
    shift = beta.reshape(-1) - mean * scale                        # (C2,)

    # lane-dense view when possible (avoids masked vst for small C2)
    if (M * C2) % 128 == 0 and 128 % C2 == 0:
        rows, lane = (M * C2) // 128, 128
        x = y_flat.reshape(rows, lane)
        s = jnp.tile(scale.reshape(1, C2), (1, 128 // C2))
        t = jnp.tile(shift.reshape(1, C2), (1, 128 // C2))
    else:
        rows, lane = M, C2
        x, s, t = y_flat, scale.reshape(1, C2), shift.reshape(1, C2)

    TM = _row_block(rows, 1024)
    out = pl.pallas_call(
        _scale_shift_relu_kernel,
        out_shape=jax.ShapeDtypeStruct((rows, lane), jnp.float32),
        grid=(rows // TM,),
        in_specs=[
            pl.BlockSpec((TM, lane), lambda i: (i, 0)),
            pl.BlockSpec((1, lane), lambda i: (0, 0)),
            pl.BlockSpec((1, lane), lambda i: (0, 0)),
        ],
        out_specs=pl.BlockSpec((TM, lane), lambda i: (i, 0)),
        compiler_params=pltpu.CompilerParams(dimension_semantics=("parallel",)),
    )(x, s, t)
    return out.reshape(M, C2)


# ----------------------------------------------------------------------------
# full forward
# ----------------------------------------------------------------------------
def attention_gate_forward(bottleneck, jump, params):
    """bottleneck: (B, H, W, in_ch), jump: (B, 2H, 2W, out_ch) [NHWC]."""
    B, H, W, Cin = bottleneck.shape
    _, H2, W2, Co = jump.shape
    C2 = Co // 2

    # weights for the MXU: bf16 operands, f32 accumulation in-kernel
    w1f = params["w1"].reshape(9 * Co, Co).astype(jnp.bfloat16)   # shared conv1
    w2b = params["w2"].astype(jnp.bfloat16)
    w3b = params["w3"].astype(jnp.bfloat16)

    # x1 = conv1(conv2(bottleneck))  -- fused 1x1 + 3x3, single im2col matmul
    x1 = conv2_conv3x3(bottleneck, w2b, params["b2"], w1f, params["b1"])

    # x3 = relu(nearest_x2(x1) + conv1(jump))  -- upsample fused in-kernel
    x3 = conv3x3_add_up_relu(jump, x1, w1f, params["b1"])

    # y = conv3(sigmoid(conv1(x3)) * jump) + BN partial stats, all fused
    y, sums, ssqs = conv3x3_gate_project_stats(
        x3, jump, w1f, params["b1"], w3b, params["b3"])

    # BatchNorm2d (training-mode batch statistics) + ReLU (lane-dense tiles)
    out = batchnorm_relu(y, sums, ssqs, params["gamma"], params["beta"])
    return out.reshape(B, H2, W2, C2)


def init_params(key, in_ch, out_ch):
    ks = jax.random.split(key, 6)
    s = 0.1
    return dict(
        # conv1: 3x3, out_ch -> out_ch ; stored as (9, Cin, Cout), tap k = dy*3+dx
        w1=s * jax.random.normal(ks[0], (9, out_ch, out_ch), jnp.float32),
        b1=s * jax.random.normal(ks[1], (1, out_ch), jnp.float32),
        # conv2: 1x1, in_ch -> out_ch
        w2=s * jax.random.normal(ks[2], (in_ch, out_ch), jnp.float32),
        b2=s * jax.random.normal(ks[3], (1, out_ch), jnp.float32),
        # conv3: 1x1, out_ch -> out_ch // 2
        w3=s * jax.random.normal(ks[4], (out_ch, out_ch // 2), jnp.float32),
        b3=s * jax.random.normal(ks[5], (1, out_ch // 2), jnp.float32),
        # BatchNorm2d affine params (PyTorch defaults: weight=1, bias=0)
        gamma=jnp.ones((1, out_ch // 2), jnp.float32),
        beta=jnp.zeros((1, out_ch // 2), jnp.float32),
    )


if __name__ == "__main__":
    key = jax.random.PRNGKey(0)
    B, in_ch, out_ch, H, W = 2, 16, 32, 8, 8     # bottleneck 8x8, jump 16x16

    kb, kj, kp = jax.random.split(key, 3)
    bottleneck = jax.random.normal(kb, (B, H, W, in_ch), jnp.float32)
    jump = jax.random.normal(kj, (B, 2 * H, 2 * W, out_ch), jnp.float32)
    params = init_params(kp, in_ch, out_ch)

    fwd = jax.jit(attention_gate_forward)
    out = fwd(bottleneck, jump, params)
    jax.block_until_ready(out)

    assert out.shape == (B, 2 * H, 2 * W, out_ch // 2)
    assert bool(jnp.all(jnp.isfinite(out)))
    print("KERNEL_OK")
</pallas_src>

<mosaic_0001>
module attributes {stable_mosaic.version = 11 : i64} {
  func.func @_conv3x3_add_up_relu_kernel(%arg0: i32, %arg1: i32, %arg2: memref<1x16x16x32xf32, #tpu.memory_space<vmem>>, %arg3: memref<1x1x16x32xf32, #tpu.memory_space<vmem>>, %arg4: memref<1x1x16x32xf32, #tpu.memory_space<vmem>>, %arg5: memref<1x8x8x32xf32, #tpu.memory_space<vmem>>, %arg6: memref<288x32xbf16, #tpu.memory_space<vmem>>, %arg7: memref<1x32xf32, #tpu.memory_space<vmem>>, %arg8: memref<1x16x16x32xf32, #tpu.memory_space<vmem>>, %arg9: memref<16x16x288xf32, #tpu.memory_space<vmem>>) attributes {dimension_semantics = [#tpu.dimension_semantics<parallel>, #tpu.dimension_semantics<parallel>], iteration_bounds = array<i64: 2, 1>, scalar_prefetch = 0 : i64, scratch_operands = 1 : i64, tpu.core_type = #tpu.core_type<tc>, window_params = [{transform_indices = @transform_0, window_bounds = array<i64: 1, 16, 16, 32>}, {transform_indices = @transform_1, window_bounds = array<i64: 1, 1, 16, 32>}, {transform_indices = @transform_2, window_bounds = array<i64: 1, 1, 16, 32>}, {transform_indices = @transform_3, window_bounds = array<i64: 1, 8, 8, 32>}, {pipeline_mode = #tpu.pipeline_mode<synchronous>, transform_indices = @transform_4, window_bounds = array<i64: 288, 32>}, {pipeline_mode = #tpu.pipeline_mode<synchronous>, transform_indices = @transform_5, window_bounds = array<i64: 1, 32>}, {transform_indices = @transform_6, window_bounds = array<i64: 1, 16, 16, 32>}]} {
    %c0 = arith.constant 0 : index
    %c0_0 = arith.constant 0 : index
    %c0_1 = arith.constant 0 : index
    %c0_2 = arith.constant 0 : index
    %0 = vector.load %arg3[%c0, %c0_0, %c0_1, %c0_2] : memref<1x1x16x32xf32, #tpu.memory_space<vmem>>, vector<1x1x16x32xf32>
    %1 = vector.shape_cast %0 : vector<1x1x16x32xf32> to vector<1x16x32xf32>
    %c0_3 = arith.constant 0 : index
    %c0_4 = arith.constant 0 : index
    %c0_5 = arith.constant 0 : index
    %c0_6 = arith.constant 0 : index
    %2 = vector.load %arg2[%c0_3, %c0_4, %c0_5, %c0_6] : memref<1x16x16x32xf32, #tpu.memory_space<vmem>>, vector<1x16x16x32xf32>
    %3 = vector.shape_cast %2 : vector<1x16x16x32xf32> to vector<16x16x32xf32>
    %c0_7 = arith.constant 0 : index
    %c0_8 = arith.constant 0 : index
    %c0_9 = arith.constant 0 : index
    %c0_10 = arith.constant 0 : index
    %4 = vector.load %arg4[%c0_7, %c0_8, %c0_9, %c0_10] : memref<1x1x16x32xf32, #tpu.memory_space<vmem>>, vector<1x1x16x32xf32>
    %5 = vector.shape_cast %4 : vector<1x1x16x32xf32> to vector<1x16x32xf32>
    %6 = tpu.concatenate %1, %3, %5 in 0 : vector<1x16x32xf32>, vector<16x16x32xf32>, vector<1x16x32xf32> -> vector<18x16x32xf32>
    %7 = tpu.iota {dimensions = array<i32: 0>} : vector<18x1x1xi32>
    %c0_i32 = arith.constant 0 : i32
    %8 = vector.broadcast %c0_i32 : i32 to vector<18x1x1xi32>
    %9 = arith.cmpi sgt, %7, %8 : vector<18x1x1xi32>
    %c0_i32_11 = arith.constant 0 : i32
    %10 = arith.cmpi sgt, %arg1, %c0_i32_11 : i32
    %11 = vector.broadcast %10 : i1 to vector<18x1x1xi1>
    %12 = arith.ori %9, %11 : vector<18x1x1xi1>
    %c17_i32 = arith.constant 17 : i32
    %13 = vector.broadcast %c17_i32 : i32 to vector<18x1x1xi32>
    %14 = arith.cmpi slt, %7, %13 : vector<18x1x1xi32>
    %c0_i32_12 = arith.constant 0 : i32
    %15 = arith.cmpi slt, %arg1, %c0_i32_12 : i32
    %16 = vector.broadcast %15 : i1 to vector<18x1x1xi1>
    %17 = arith.ori %14, %16 : vector<18x1x1xi1>
    %18 = arith.andi %12, %17 : vector<18x1x1xi1>
    %cst = arith.constant 0.000000e+00 : f32
    %19 = vector.shape_cast %18 : vector<18x1x1xi1> to vector<18x1x1xi1>
    %20 = vector.broadcast %19 : vector<18x1x1xi1> to vector<18x16x32xi1>
    %21 = vector.broadcast %cst : f32 to vector<18x16x32xf32>
    %22 = arith.select %20, %6, %21 : vector<18x16x32xi1>, vector<18x16x32xf32>
    %cst_13 = arith.constant 0.000000e+00 : f32
    %23 = vector.broadcast %cst_13 : f32 to vector<18x1x32xf32>
    %24 = tpu.concatenate %23, %22, %23 in 1 : vector<18x1x32xf32>, vector<18x16x32xf32>, vector<18x1x32xf32> -> vector<18x18x32xf32>
    %25 = vector.extract_strided_slice %24 {offsets = [0, 0, 0], sizes = [16, 16, 32], strides = [1, 1, 1]} : vector<18x18x32xf32> to vector<16x16x32xf32>
    %c0_14 = arith.constant 0 : index
    %c0_15 = arith.constant 0 : index
    %c0_16 = arith.constant 0 : index
    %26 = vector.load %arg9[%c0_14, %c0_15, %c0_16] : memref<16x16x288xf32, #tpu.memory_space<vmem>>, vector<16x16x32xf32>
    tpu.vector_store %arg9[%c0_14, %c0_15, %c0_16], %25 {strides = array<i32>} : memref<16x16x288xf32, #tpu.memory_space<vmem>>, vector<16x16x32xf32>,
    %27 = vector.extract_strided_slice %24 {offsets = [0, 1, 0], sizes = [16, 16, 32], strides = [1, 1, 1]} : vector<18x18x32xf32> to vector<16x16x32xf32>
    %c0_17 = arith.constant 0 : index
    %c0_18 = arith.constant 0 : index
    %c32 = arith.constant 32 : index
    %28 = vector.load %arg9[%c0_17, %c0_18, %c32] : memref<16x16x288xf32, #tpu.memory_space<vmem>>, vector<16x16x32xf32>
    tpu.vector_store %arg9[%c0_17, %c0_18, %c32], %27 {strides = array<i32>} : memref<16x16x288xf32, #tpu.memory_space<vmem>>, vector<16x16x32xf32>,
    %29 = vector.extract_strided_slice %24 {offsets = [0, 2, 0], sizes = [16, 16, 32], strides = [1, 1, 1]} : vector<18x18x32xf32> to vector<16x16x32xf32>
    %c0_19 = arith.constant 0 : index
    %c0_20 = arith.constant 0 : index
    %c64 = arith.constant 64 : index
    %30 = vector.load %arg9[%c0_19, %c0_20, %c64] : memref<16x16x288xf32, #tpu.memory_space<vmem>>, vector<16x16x32xf32>
    tpu.vector_store %arg9[%c0_19, %c0_20, %c64], %29 {strides = array<i32>} : memref<16x16x288xf32, #tpu.memory_space<vmem>>, vector<16x16x32xf32>,
    %31 = vector.extract_strided_slice %24 {offsets = [1, 0, 0], sizes = [16, 16, 32], strides = [1, 1, 1]} : vector<18x18x32xf32> to vector<16x16x32xf32>
    %c0_21 = arith.constant 0 : index
    %c0_22 = arith.constant 0 : index
    %c96 = arith.constant 96 : index
    %32 = vector.load %arg9[%c0_21, %c0_22, %c96] : memref<16x16x288xf32, #tpu.memory_space<vmem>>, vector<16x16x32xf32>
    tpu.vector_store %arg9[%c0_21, %c0_22, %c96], %31 {strides = array<i32>} : memref<16x16x288xf32, #tpu.memory_space<vmem>>, vector<16x16x32xf32>,
    %33 = vector.extract_strided_slice %24 {offsets = [1, 1, 0], sizes = [16, 16, 32], strides = [1, 1, 1]} : vector<18x18x32xf32> to vector<16x16x32xf32>
    %c0_23 = arith.constant 0 : index
    %c0_24 = arith.constant 0 : index
    %c128 = arith.constant 128 : index
    %34 = vector.load %arg9[%c0_23, %c0_24, %c128] : memref<16x16x288xf32, #tpu.memory_space<vmem>>, vector<16x16x32xf32>
    tpu.vector_store %arg9[%c0_23, %c0_24, %c128], %33 {strides = array<i32>} : memref<16x16x288xf32, #tpu.memory_space<vmem>>, vector<16x16x32xf32>,
    %35 = vector.extract_strided_slice %24 {offsets = [1, 2, 0], sizes = [16, 16, 32], strides = [1, 1, 1]} : vector<18x18x32xf32> to vector<16x16x32xf32>
    %c0_25 = arith.constant 0 : index
    %c0_26 = arith.constant 0 : index
    %c160 = arith.constant 160 : index
    %36 = vector.load %arg9[%c0_25, %c0_26, %c160] : memref<16x16x288xf32, #tpu.memory_space<vmem>>, vector<16x16x32xf32>
    tpu.vector_store %arg9[%c0_25, %c0_26, %c160], %35 {strides = array<i32>} : memref<16x16x288xf32, #tpu.memory_space<vmem>>, vector<16x16x32xf32>,
    %37 = vector.extract_strided_slice %24 {offsets = [2, 0, 0], sizes = [16, 16, 32], strides = [1, 1, 1]} : vector<18x18x32xf32> to vector<16x16x32xf32>
    %c0_27 = arith.constant 0 : index
    %c0_28 = arith.constant 0 : index
    %c192 = arith.constant 192 : index
    %38 = vector.load %arg9[%c0_27, %c0_28, %c192] : memref<16x16x288xf32, #tpu.memory_space<vmem>>, vector<16x16x32xf32>
    tpu.vector_store %arg9[%c0_27, %c0_28, %c192], %37 {strides = array<i32>} : memref<16x16x288xf32, #tpu.memory_space<vmem>>, vector<16x16x32xf32>,
    %39 = vector.extract_strided_slice %24 {offsets = [2, 1, 0], sizes = [16, 16, 32], strides = [1, 1, 1]} : vector<18x18x32xf32> to vector<16x16x32xf32>
    %c0_29 = arith.constant 0 : index
    %c0_30 = arith.constant 0 : index
    %c224 = arith.constant 224 : index
    %40 = vector.load %arg9[%c0_29, %c0_30, %c224] : memref<16x16x288xf32, #tpu.memory_space<vmem>>, vector<16x16x32xf32>
    tpu.vector_store %arg9[%c0_29, %c0_30, %c224], %39 {strides = array<i32>} : memref<16x16x288xf32, #tpu.memory_space<vmem>>, vector<16x16x32xf32>,
    %41 = vector.extract_strided_slice %24 {offsets = [2, 2, 0], sizes = [16, 16, 32], strides = [1, 1, 1]} : vector<18x18x32xf32> to vector<16x16x32xf32>
    %c0_31 = arith.constant 0 : index
    %c0_32 = arith.constant 0 : index
    %c256 = arith.constant 256 : index
    %42 = vector.load %arg9[%c0_31, %c0_32, %c256] : memref<16x16x288xf32, #tpu.memory_space<vmem>>, vector<16x16x32xf32>
    tpu.vector_store %arg9[%c0_31, %c0_32, %c256], %41 {strides = array<i32>} : memref<16x16x288xf32, #tpu.memory_space<vmem>>, vector<16x16x32xf32>,
    %c0_33 = arith.constant 0 : index
    %c0_34 = arith.constant 0 : index
    %c0_35 = arith.constant 0 : index
    %43 = vector.load %arg9[%c0_33, %c0_34, %c0_35] : memref<16x16x288xf32, #tpu.memory_space<vmem>>, vector<16x16x288xf32>
    %44 = vector.shape_cast %43 : vector<16x16x288xf32> to vector<256x288xf32>
    %45 = arith.truncf %44 : vector<256x288xf32> to vector<256x288xbf16>
    %c0_36 = arith.constant 0 : index
    %c0_37 = arith.constant 0 : index
    %46 = vector.load %arg6[%c0_36, %c0_37] : memref<288x32xbf16, #tpu.memory_space<vmem>>, vector<288x32xbf16>
    %cst_38 = arith.constant dense<0.000000e+00> : vector<256x32xf32>
    %47 = tpu.matmul %45, %46, %cst_38 {dimension_numbers = #tpu.dot_dimension_numbers<[1], [0], [0], [1], [0, 0, 1, 1], [], []>} : vector<256x288xbf16>, vector<288x32xbf16>, vector<256x32xf32> -> vector<256x32xf32>
    %c0_39 = arith.constant 0 : index
    %c0_40 = arith.constant 0 : index
    %c0_41 = arith.constant 0 : index
    %c0_42 = arith.constant 0 : index
    %48 = vector.load %arg5[%c0_39, %c0_40, %c0_41, %c0_42] : memref<1x8x8x32xf32, #tpu.memory_space<vmem>>, vector<1x8x8x32xf32>
    %49 = vector.shape_cast %48 : vector<1x8x8x32xf32> to vector<8x8x32xf32>
    %50 = vector.shape_cast %49 : vector<8x8x32xf32> to vector<8x8x1x32xf32>
    %51 = vector.shape_cast %50 : vector<8x8x1x32xf32> to vector<8x8x1x32xf32>
    %52 = vector.broadcast %51 : vector<8x8x1x32xf32> to vector<8x8x2x32xf32>
    %53 = vector.shape_cast %52 : vector<8x8x2x32xf32> to vector<8x16x32xf32>
    %54 = vector.shape_cast %53 : vector<8x16x32xf32> to vector<8x1x16x32xf32>
    %55 = vector.shape_cast %54 : vector<8x1x16x32xf32> to vector<8x1x16x32xf32>
    %56 = vector.broadcast %55 : vector<8x1x16x32xf32> to vector<8x2x16x32xf32>
    %57 = vector.shape_cast %56 : vector<8x2x16x32xf32> to vector<16x16x32xf32>
    %58 = vector.shape_cast %47 : vector<256x32xf32> to vector<16x16x32xf32>
    %c0_43 = arith.constant 0 : index
    %c0_44 = arith.constant 0 : index
    %59 = vector.load %arg7[%c0_43, %c0_44] : memref<1x32xf32, #tpu.memory_space<vmem>>, vector<1x32xf32>
    %60 = vector.shape_cast %59 : vector<1x32xf32> to vector<1x1x32xf32>
    %61 = vector.broadcast %60 : vector<1x1x32xf32> to vector<16x16x32xf32>
    %62 = arith.addf %58, %61 : vector<16x16x32xf32>
    %63 = arith.addf %62, %57 : vector<16x16x32xf32>
    %cst_45 = arith.constant 0.000000e+00 : f32
    %64 = vector.broadcast %cst_45 : f32 to vector<16x16x32xf32>
    %65 = arith.maximumf %63, %64 : vector<16x16x32xf32>
    %c0_46 = arith.constant 0 : index
    %c0_47 = arith.constant 0 : index
    %c0_48 = arith.constant 0 : index
    %c0_49 = arith.constant 0 : index
    %66 = vector.load %arg8[%c0_46, %c0_47, %c0_48, %c0_49] : memref<1x16x16x32xf32, #tpu.memory_space<vmem>>, vector<1x16x16x32xf32>
    %67 = vector.shape_cast %66 : vector<1x16x16x32xf32> to vector<16x16x32xf32>
    %68 = vector.shape_cast %65 : vector<16x16x32xf32> to vector<1x16x16x32xf32>
    tpu.vector_store %arg8[%c0_46, %c0_47, %c0_48, %c0_49], %68 {strides = array<i32>} : memref<1x16x16x32xf32, #tpu.memory_space<vmem>>, vector<1x16x16x32xf32>,
    return
  }
  func.func @transform_0(%arg0: i32, %arg1: i32) -> (i32, i32, i32, i32) {
    %c0_i32 = arith.constant 0 : i32
    %c0_i32_0 = arith.constant 0 : i32
    %c0_i32_1 = arith.constant 0 : i32
    return %arg0, %arg1, %c0_i32, %c0_i32_0 : i32, i32, i32, i32
  }
  func.func @transform_1(%arg0: i32, %arg1: i32) -> (i32, i32, i32, i32) {
    %c16_i32 = arith.constant 16 : i32
    %0 = arith.muli %arg1, %c16_i32 : i32
    %c1_i32 = arith.constant 1 : i32
    %1 = arith.subi %0, %c1_i32 : i32
    %c0_i32 = arith.constant 0 : i32
    %2 = arith.maxsi %1, %c0_i32 : i32
    %c0_i32_0 = arith.constant 0 : i32
    %c0_i32_1 = arith.constant 0 : i32
    %c0_i32_2 = arith.constant 0 : i32
    return %arg0, %2, %c0_i32_0, %c0_i32_1 : i32, i32, i32, i32
  }
  func.func @transform_2(%arg0: i32, %arg1: i32) -> (i32, i32, i32, i32) {
    %c16_i32 = arith.constant 16 : i32
    %0 = arith.muli %arg1, %c16_i32 : i32
    %c16_i32_0 = arith.constant 16 : i32
    %1 = arith.addi %0, %c16_i32_0 : i32
    %c15_i32 = arith.constant 15 : i32
    %2 = arith.minsi %1, %c15_i32 : i32
    %c0_i32 = arith.constant 0 : i32
    %c0_i32_1 = arith.constant 0 : i32
    %c0_i32_2 = arith.constant 0 : i32
    return %arg0, %2, %c0_i32, %c0_i32_1 : i32, i32, i32, i32
  }
  func.func @transform_3(%arg0: i32, %arg1: i32) -> (i32, i32, i32, i32) {
    %c0_i32 = arith.constant 0 : i32
    %c0_i32_0 = arith.constant 0 : i32
    %c0_i32_1 = arith.constant 0 : i32
    return %arg0, %arg1, %c0_i32, %c0_i32_0 : i32, i32, i32, i32
  }
  func.func @transform_4(%arg0: i32, %arg1: i32) -> (i32, i32) {
    %c0_i32 = arith.constant 0 : i32
    %c0_i32_0 = arith.constant 0 : i32
    %c0_i32_1 = arith.constant 0 : i32
    return %c0_i32, %c0_i32_0 : i32, i32
  }
  func.func @transform_5(%arg0: i32, %arg1: i32) -> (i32, i32) {
    %c0_i32 = arith.constant 0 : i32
    %c0_i32_0 = arith.constant 0 : i32
    %c0_i32_1 = arith.constant 0 : i32
    return %c0_i32, %c0_i32_0 : i32, i32
  }
  func.func @transform_6(%arg0: i32, %arg1: i32) -> (i32, i32, i32, i32) {
    %c0_i32 = arith.constant 0 : i32
    %c0_i32_0 = arith.constant 0 : i32
    %c0_i32_1 = arith.constant 0 : i32
    return %arg0, %arg1, %c0_i32, %c0_i32_0 : i32, i32, i32, i32
  }
}

module attributes {stable_mosaic.version = 11 : i64} {
  func.func @_conv2_conv3x3_kernel(%arg0: i32, %arg1: i32, %arg2: memref<1x8x8x16xf32, #tpu.memory_space<vmem>>, %arg3: memref<1x1x8x16xf32, #tpu.memory_space<vmem>>, %arg4: memref<1x1x8x16xf32, #tpu.memory_space<vmem>>, %arg5: memref<16x32xbf16, #tpu.memory_space<vmem>>, %arg6: memref<1x32xf32, #tpu.memory_space<vmem>>, %arg7: memref<288x32xbf16, #tpu.memory_space<vmem>>, %arg8: memref<1x32xf32, #tpu.memory_space<vmem>>, %arg9: memref<1x8x8x32xf32, #tpu.memory_space<vmem>>, %arg10: memref<8x8x288xf32, #tpu.memory_space<vmem>>) attributes {dimension_semantics = [#tpu.dimension_semantics<parallel>, #tpu.dimension_semantics<parallel>], iteration_bounds = array<i64: 2, 1>, scalar_prefetch = 0 : i64, scratch_operands = 1 : i64, tpu.core_type = #tpu.core_type<tc>, window_params = [{transform_indices = @transform_0, window_bounds = array<i64: 1, 8, 8, 16>}, {transform_indices = @transform_1, window_bounds = array<i64: 1, 1, 8, 16>}, {transform_indices = @transform_2, window_bounds = array<i64: 1, 1, 8, 16>}, {pipeline_mode = #tpu.pipeline_mode<synchronous>, transform_indices = @transform_3, window_bounds = array<i64: 16, 32>}, {pipeline_mode = #tpu.pipeline_mode<synchronous>, transform_indices = @transform_4, window_bounds = array<i64: 1, 32>}, {pipeline_mode = #tpu.pipeline_mode<synchronous>, transform_indices = @transform_5, window_bounds = array<i64: 288, 32>}, {pipeline_mode = #tpu.pipeline_mode<synchronous>, transform_indices = @transform_6, window_bounds = array<i64: 1, 32>}, {transform_indices = @transform_7, window_bounds = array<i64: 1, 8, 8, 32>}]} {
    %c0 = arith.constant 0 : index
    %c0_0 = arith.constant 0 : index
    %c0_1 = arith.constant 0 : index
    %c0_2 = arith.constant 0 : index
    %0 = vector.load %arg3[%c0, %c0_0, %c0_1, %c0_2] : memref<1x1x8x16xf32, #tpu.memory_space<vmem>>, vector<1x1x8x16xf32>
    %1 = vector.shape_cast %0 : vector<1x1x8x16xf32> to vector<1x8x16xf32>
    %c0_3 = arith.constant 0 : index
    %c0_4 = arith.constant 0 : index
    %c0_5 = arith.constant 0 : index
    %c0_6 = arith.constant 0 : index
    %2 = vector.load %arg2[%c0_3, %c0_4, %c0_5, %c0_6] : memref<1x8x8x16xf32, #tpu.memory_space<vmem>>, vector<1x8x8x16xf32>
    %3 = vector.shape_cast %2 : vector<1x8x8x16xf32> to vector<8x8x16xf32>
    %c0_7 = arith.constant 0 : index
    %c0_8 = arith.constant 0 : index
    %c0_9 = arith.constant 0 : index
    %c0_10 = arith.constant 0 : index
    %4 = vector.load %arg4[%c0_7, %c0_8, %c0_9, %c0_10] : memref<1x1x8x16xf32, #tpu.memory_space<vmem>>, vector<1x1x8x16xf32>
    %5 = vector.shape_cast %4 : vector<1x1x8x16xf32> to vector<1x8x16xf32>
    %6 = tpu.concatenate %1, %3, %5 in 0 : vector<1x8x16xf32>, vector<8x8x16xf32>, vector<1x8x16xf32> -> vector<10x8x16xf32>
    %7 = vector.shape_cast %6 : vector<10x8x16xf32> to vector<80x16xf32>
    %8 = arith.truncf %7 : vector<80x16xf32> to vector<80x16xbf16>
    %c0_11 = arith.constant 0 : index
    %c0_12 = arith.constant 0 : index
    %9 = vector.load %arg5[%c0_11, %c0_12] : memref<16x32xbf16, #tpu.memory_space<vmem>>, vector<16x32xbf16>
    %cst = arith.constant dense<0.000000e+00> : vector<80x32xf32>
    %10 = tpu.matmul %8, %9, %cst {dimension_numbers = #tpu.dot_dimension_numbers<[1], [0], [0], [1], [0, 0, 1, 1], [], []>} : vector<80x16xbf16>, vector<16x32xbf16>, vector<80x32xf32> -> vector<80x32xf32>
    %c0_13 = arith.constant 0 : index
    %c0_14 = arith.constant 0 : index
    %11 = vector.load %arg6[%c0_13, %c0_14] : memref<1x32xf32, #tpu.memory_space<vmem>>, vector<1x32xf32>
    %12 = vector.broadcast %11 : vector<1x32xf32> to vector<80x32xf32>
    %13 = arith.addf %10, %12 : vector<80x32xf32>
    %14 = vector.shape_cast %13 : vector<80x32xf32> to vector<10x8x32xf32>
    %15 = tpu.iota {dimensions = array<i32: 0>} : vector<10x1x1xi32>
    %c0_i32 = arith.constant 0 : i32
    %16 = vector.broadcast %c0_i32 : i32 to vector<10x1x1xi32>
    %17 = arith.cmpi sgt, %15, %16 : vector<10x1x1xi32>
    %c0_i32_15 = arith.constant 0 : i32
    %18 = arith.cmpi sgt, %arg1, %c0_i32_15 : i32
    %19 = vector.broadcast %18 : i1 to vector<10x1x1xi1>
    %20 = arith.ori %17, %19 : vector<10x1x1xi1>
    %c9_i32 = arith.constant 9 : i32
    %21 = vector.broadcast %c9_i32 : i32 to vector<10x1x1xi32>
    %22 = arith.cmpi slt, %15, %21 : vector<10x1x1xi32>
    %c0_i32_16 = arith.constant 0 : i32
    %23 = arith.cmpi slt, %arg1, %c0_i32_16 : i32
    %24 = vector.broadcast %23 : i1 to vector<10x1x1xi1>
    %25 = arith.ori %22, %24 : vector<10x1x1xi1>
    %26 = arith.andi %20, %25 : vector<10x1x1xi1>
    %cst_17 = arith.constant 0.000000e+00 : f32
    %27 = vector.shape_cast %26 : vector<10x1x1xi1> to vector<10x1x1xi1>
    %28 = vector.broadcast %27 : vector<10x1x1xi1> to vector<10x8x32xi1>
    %29 = vector.broadcast %cst_17 : f32 to vector<10x8x32xf32>
    %30 = arith.select %28, %14, %29 : vector<10x8x32xi1>, vector<10x8x32xf32>
    %cst_18 = arith.constant 0.000000e+00 : f32
    %31 = vector.broadcast %cst_18 : f32 to vector<10x1x32xf32>
    %32 = tpu.concatenate %31, %30, %31 in 1 : vector<10x1x32xf32>, vector<10x8x32xf32>, vector<10x1x32xf32> -> vector<10x10x32xf32>
    %33 = vector.extract_strided_slice %32 {offsets = [0, 0, 0], sizes = [8, 8, 32], strides = [1, 1, 1]} : vector<10x10x32xf32> to vector<8x8x32xf32>
    %c0_19 = arith.constant 0 : index
    %c0_20 = arith.constant 0 : index
    %c0_21 = arith.constant 0 : index
    %34 = vector.load %arg10[%c0_19, %c0_20, %c0_21] : memref<8x8x288xf32, #tpu.memory_space<vmem>>, vector<8x8x32xf32>
    tpu.vector_store %arg10[%c0_19, %c0_20, %c0_21], %33 {strides = array<i32>} : memref<8x8x288xf32, #tpu.memory_space<vmem>>, vector<8x8x32xf32>,
    %35 = vector.extract_strided_slice %32 {offsets = [0, 1, 0], sizes = [8, 8, 32], strides = [1, 1, 1]} : vector<10x10x32xf32> to vector<8x8x32xf32>
    %c0_22 = arith.constant 0 : index
    %c0_23 = arith.constant 0 : index
    %c32 = arith.constant 32 : index
    %36 = vector.load %arg10[%c0_22, %c0_23, %c32] : memref<8x8x288xf32, #tpu.memory_space<vmem>>, vector<8x8x32xf32>
    tpu.vector_store %arg10[%c0_22, %c0_23, %c32], %35 {strides = array<i32>} : memref<8x8x288xf32, #tpu.memory_space<vmem>>, vector<8x8x32xf32>,
    %37 = vector.extract_strided_slice %32 {offsets = [0, 2, 0], sizes = [8, 8, 32], strides = [1, 1, 1]} : vector<10x10x32xf32> to vector<8x8x32xf32>
    %c0_24 = arith.constant 0 : index
    %c0_25 = arith.constant 0 : index
    %c64 = arith.constant 64 : index
    %38 = vector.load %arg10[%c0_24, %c0_25, %c64] : memref<8x8x288xf32, #tpu.memory_space<vmem>>, vector<8x8x32xf32>
    tpu.vector_store %arg10[%c0_24, %c0_25, %c64], %37 {strides = array<i32>} : memref<8x8x288xf32, #tpu.memory_space<vmem>>, vector<8x8x32xf32>,
    %39 = vector.extract_strided_slice %32 {offsets = [1, 0, 0], sizes = [8, 8, 32], strides = [1, 1, 1]} : vector<10x10x32xf32> to vector<8x8x32xf32>
    %c0_26 = arith.constant 0 : index
    %c0_27 = arith.constant 0 : index
    %c96 = arith.constant 96 : index
    %40 = vector.load %arg10[%c0_26, %c0_27, %c96] : memref<8x8x288xf32, #tpu.memory_space<vmem>>, vector<8x8x32xf32>
    tpu.vector_store %arg10[%c0_26, %c0_27, %c96], %39 {strides = array<i32>} : memref<8x8x288xf32, #tpu.memory_space<vmem>>, vector<8x8x32xf32>,
    %41 = vector.extract_strided_slice %32 {offsets = [1, 1, 0], sizes = [8, 8, 32], strides = [1, 1, 1]} : vector<10x10x32xf32> to vector<8x8x32xf32>
    %c0_28 = arith.constant 0 : index
    %c0_29 = arith.constant 0 : index
    %c128 = arith.constant 128 : index
    %42 = vector.load %arg10[%c0_28, %c0_29, %c128] : memref<8x8x288xf32, #tpu.memory_space<vmem>>, vector<8x8x32xf32>
    tpu.vector_store %arg10[%c0_28, %c0_29, %c128], %41 {strides = array<i32>} : memref<8x8x288xf32, #tpu.memory_space<vmem>>, vector<8x8x32xf32>,
    %43 = vector.extract_strided_slice %32 {offsets = [1, 2, 0], sizes = [8, 8, 32], strides = [1, 1, 1]} : vector<10x10x32xf32> to vector<8x8x32xf32>
    %c0_30 = arith.constant 0 : index
    %c0_31 = arith.constant 0 : index
    %c160 = arith.constant 160 : index
    %44 = vector.load %arg10[%c0_30, %c0_31, %c160] : memref<8x8x288xf32, #tpu.memory_space<vmem>>, vector<8x8x32xf32>
    tpu.vector_store %arg10[%c0_30, %c0_31, %c160], %43 {strides = array<i32>} : memref<8x8x288xf32, #tpu.memory_space<vmem>>, vector<8x8x32xf32>,
    %45 = vector.extract_strided_slice %32 {offsets = [2, 0, 0], sizes = [8, 8, 32], strides = [1, 1, 1]} : vector<10x10x32xf32> to vector<8x8x32xf32>
    %c0_32 = arith.constant 0 : index
    %c0_33 = arith.constant 0 : index
    %c192 = arith.constant 192 : index
    %46 = vector.load %arg10[%c0_32, %c0_33, %c192] : memref<8x8x288xf32, #tpu.memory_space<vmem>>, vector<8x8x32xf32>
    tpu.vector_store %arg10[%c0_32, %c0_33, %c192], %45 {strides = array<i32>} : memref<8x8x288xf32, #tpu.memory_space<vmem>>, vector<8x8x32xf32>,
    %47 = vector.extract_strided_slice %32 {offsets = [2, 1, 0], sizes = [8, 8, 32], strides = [1, 1, 1]} : vector<10x10x32xf32> to vector<8x8x32xf32>
    %c0_34 = arith.constant 0 : index
    %c0_35 = arith.constant 0 : index
    %c224 = arith.constant 224 : index
    %48 = vector.load %arg10[%c0_34, %c0_35, %c224] : memref<8x8x288xf32, #tpu.memory_space<vmem>>, vector<8x8x32xf32>
    tpu.vector_store %arg10[%c0_34, %c0_35, %c224], %47 {strides = array<i32>} : memref<8x8x288xf32, #tpu.memory_space<vmem>>, vector<8x8x32xf32>,
    %49 = vector.extract_strided_slice %32 {offsets = [2, 2, 0], sizes = [8, 8, 32], strides = [1, 1, 1]} : vector<10x10x32xf32> to vector<8x8x32xf32>
    %c0_36 = arith.constant 0 : index
    %c0_37 = arith.constant 0 : index
    %c256 = arith.constant 256 : index
    %50 = vector.load %arg10[%c0_36, %c0_37, %c256] : memref<8x8x288xf32, #tpu.memory_space<vmem>>, vector<8x8x32xf32>
    tpu.vector_store %arg10[%c0_36, %c0_37, %c256], %49 {strides = array<i32>} : memref<8x8x288xf32, #tpu.memory_space<vmem>>, vector<8x8x32xf32>,
    %c0_38 = arith.constant 0 : index
    %c0_39 = arith.constant 0 : index
    %c0_40 = arith.constant 0 : index
    %51 = vector.load %arg10[%c0_38, %c0_39, %c0_40] : memref<8x8x288xf32, #tpu.memory_space<vmem>>, vector<8x8x288xf32>
    %52 = vector.shape_cast %51 : vector<8x8x288xf32> to vector<64x288xf32>
    %53 = arith.truncf %52 : vector<64x288xf32> to vector<64x288xbf16>
    %c0_41 = arith.constant 0 : index
    %c0_42 = arith.constant 0 : index
    %54 = vector.load %arg7[%c0_41, %c0_42] : memref<288x32xbf16, #tpu.memory_space<vmem>>, vector<288x32xbf16>
    %cst_43 = arith.constant dense<0.000000e+00> : vector<64x32xf32>
    %55 = tpu.matmul %53, %54, %cst_43 {dimension_numbers = #tpu.dot_dimension_numbers<[1], [0], [0], [1], [0, 0, 1, 1], [], []>} : vector<64x288xbf16>, vector<288x32xbf16>, vector<64x32xf32> -> vector<64x32xf32>
    %c0_44 = arith.constant 0 : index
    %c0_45 = arith.constant 0 : index
    %56 = vector.load %arg8[%c0_44, %c0_45] : memref<1x32xf32, #tpu.memory_space<vmem>>, vector<1x32xf32>
    %57 = vector.broadcast %56 : vector<1x32xf32> to vector<64x32xf32>
    %58 = arith.addf %55, %57 : vector<64x32xf32>
    %59 = vector.shape_cast %58 : vector<64x32xf32> to vector<8x8x32xf32>
    %c0_46 = arith.constant 0 : index
    %c0_47 = arith.constant 0 : index
    %c0_48 = arith.constant 0 : index
    %c0_49 = arith.constant 0 : index
    %60 = vector.load %arg9[%c0_46, %c0_47, %c0_48, %c0_49] : memref<1x8x8x32xf32, #tpu.memory_space<vmem>>, vector<1x8x8x32xf32>
    %61 = vector.shape_cast %60 : vector<1x8x8x32xf32> to vector<8x8x32xf32>
    %62 = vector.shape_cast %59 : vector<8x8x32xf32> to vector<1x8x8x32xf32>
    tpu.vector_store %arg9[%c0_46, %c0_47, %c0_48, %c0_49], %62 {strides = array<i32>} : memref<1x8x8x32xf32, #tpu.memory_space<vmem>>, vector<1x8x8x32xf32>,
    return
  }
  func.func @transform_0(%arg0: i32, %arg1: i32) -> (i32, i32, i32, i32) {
    %c0_i32 = arith.constant 0 : i32
    %c0_i32_0 = arith.constant 0 : i32
    %c0_i32_1 = arith.constant 0 : i32
    return %arg0, %arg1, %c0_i32, %c0_i32_0 : i32, i32, i32, i32
  }
  func.func @transform_1(%arg0: i32, %arg1: i32) -> (i32, i32, i32, i32) {
    %c8_i32 = arith.constant 8 : i32
    %0 = arith.muli %arg1, %c8_i32 : i32
    %c1_i32 = arith.constant 1 : i32
    %1 = arith.subi %0, %c1_i32 : i32
    %c0_i32 = arith.constant 0 : i32
    %2 = arith.maxsi %1, %c0_i32 : i32
    %c0_i32_0 = arith.constant 0 : i32
    %c0_i32_1 = arith.constant 0 : i32
    %c0_i32_2 = arith.constant 0 : i32
    return %arg0, %2, %c0_i32_0, %c0_i32_1 : i32, i32, i32, i32
  }
  func.func @transform_2(%arg0: i32, %arg1: i32) -> (i32, i32, i32, i32) {
    %c8_i32 = arith.constant 8 : i32
    %0 = arith.muli %arg1, %c8_i32 : i32
    %c8_i32_0 = arith.constant 8 : i32
    %1 = arith.addi %0, %c8_i32_0 : i32
    %c7_i32 = arith.constant 7 : i32
    %2 = arith.minsi %1, %c7_i32 : i32
    %c0_i32 = arith.constant 0 : i32
    %c0_i32_1 = arith.constant 0 : i32
    %c0_i32_2 = arith.constant 0 : i32
    return %arg0, %2, %c0_i32, %c0_i32_1 : i32, i32, i32, i32
  }
  func.func @transform_3(%arg0: i32, %arg1: i32) -> (i32, i32) {
    %c0_i32 = arith.constant 0 : i32
    %c0_i32_0 = arith.constant 0 : i32
    %c0_i32_1 = arith.constant 0 : i32
    return %c0_i32, %c0_i32_0 : i32, i32
  }
  func.func @transform_4(%arg0: i32, %arg1: i32) -> (i32, i32) {
    %c0_i32 = arith.constant 0 : i32
    %c0_i32_0 = arith.constant 0 : i32
    %c0_i32_1 = arith.constant 0 : i32
    return %c0_i32, %c0_i32_0 : i32, i32
  }
  func.func @transform_5(%arg0: i32, %arg1: i32) -> (i32, i32) {
    %c0_i32 = arith.constant 0 : i32
    %c0_i32_0 = arith.constant 0 : i32
    %c0_i32_1 = arith.constant 0 : i32
    return %c0_i32, %c0_i32_0 : i32, i32
  }
  func.func @transform_6(%arg0: i32, %arg1: i32) -> (i32, i32) {
    %c0_i32 = arith.constant 0 : i32
    %c0_i32_0 = arith.constant 0 : i32
    %c0_i32_1 = arith.constant 0 : i32
    return %c0_i32, %c0_i32_0 : i32, i32
  }
  func.func @transform_7(%arg0: i32, %arg1: i32) -> (i32, i32, i32, i32) {
    %c0_i32 = arith.constant 0 : i32
    %c0_i32_0 = arith.constant 0 : i32
    %c0_i32_1 = arith.constant 0 : i32
    return %arg0, %arg1, %c0_i32, %c0_i32_0 : i32, i32, i32, i32
  }
}

module attributes {stable_mosaic.version = 11 : i64} {
  func.func @_conv3x3_gate_proj_stats_kernel(%arg0: i32, %arg1: i32, %arg2: memref<1x16x16x32xf32, #tpu.memory_space<vmem>>, %arg3: memref<1x1x16x32xf32, #tpu.memory_space<vmem>>, %arg4: memref<1x1x16x32xf32, #tpu.memory_space<vmem>>, %arg5: memref<1x16x16x32xf32, #tpu.memory_space<vmem>>, %arg6: memref<288x32xbf16, #tpu.memory_space<vmem>>, %arg7: memref<1x32xf32, #tpu.memory_space<vmem>>, %arg8: memref<32x16xbf16, #tpu.memory_space<vmem>>, %arg9: memref<1x16xf32, #tpu.memory_space<vmem>>, %arg10: memref<256x16xf32, #tpu.memory_space<vmem>>, %arg11: memref<1x1x16xf32, #tpu.memory_space<vmem>>, %arg12: memref<1x1x16xf32, #tpu.memory_space<vmem>>, %arg13: memref<16x16x288xf32, #tpu.memory_space<vmem>>) attributes {dimension_semantics = [#tpu.dimension_semantics<parallel>, #tpu.dimension_semantics<parallel>], iteration_bounds = array<i64: 2, 1>, scalar_prefetch = 0 : i64, scratch_operands = 1 : i64, tpu.core_type = #tpu.core_type<tc>, window_params = [{transform_indices = @transform_0, window_bounds = array<i64: 1, 16, 16, 32>}, {transform_indices = @transform_1, window_bounds = array<i64: 1, 1, 16, 32>}, {transform_indices = @transform_2, window_bounds = array<i64: 1, 1, 16, 32>}, {transform_indices = @transform_3, window_bounds = array<i64: 1, 16, 16, 32>}, {pipeline_mode = #tpu.pipeline_mode<synchronous>, transform_indices = @transform_4, window_bounds = array<i64: 288, 32>}, {pipeline_mode = #tpu.pipeline_mode<synchronous>, transform_indices = @transform_5, window_bounds = array<i64: 1, 32>}, {pipeline_mode = #tpu.pipeline_mode<synchronous>, transform_indices = @transform_6, window_bounds = array<i64: 32, 16>}, {pipeline_mode = #tpu.pipeline_mode<synchronous>, transform_indices = @transform_7, window_bounds = array<i64: 1, 16>}, {transform_indices = @transform_8, window_bounds = array<i64: 256, 16>}, {transform_indices = @transform_9, window_bounds = array<i64: 1, 1, 16>}, {transform_indices = @transform_10, window_bounds = array<i64: 1, 1, 16>}]} {
    %c0 = arith.constant 0 : index
    %c0_0 = arith.constant 0 : index
    %c0_1 = arith.constant 0 : index
    %c0_2 = arith.constant 0 : index
    %0 = vector.load %arg3[%c0, %c0_0, %c0_1, %c0_2] : memref<1x1x16x32xf32, #tpu.memory_space<vmem>>, vector<1x1x16x32xf32>
    %1 = vector.shape_cast %0 : vector<1x1x16x32xf32> to vector<1x16x32xf32>
    %c0_3 = arith.constant 0 : index
    %c0_4 = arith.constant 0 : index
    %c0_5 = arith.constant 0 : index
    %c0_6 = arith.constant 0 : index
    %2 = vector.load %arg2[%c0_3, %c0_4, %c0_5, %c0_6] : memref<1x16x16x32xf32, #tpu.memory_space<vmem>>, vector<1x16x16x32xf32>
    %3 = vector.shape_cast %2 : vector<1x16x16x32xf32> to vector<16x16x32xf32>
    %c0_7 = arith.constant 0 : index
    %c0_8 = arith.constant 0 : index
    %c0_9 = arith.constant 0 : index
    %c0_10 = arith.constant 0 : index
    %4 = vector.load %arg4[%c0_7, %c0_8, %c0_9, %c0_10] : memref<1x1x16x32xf32, #tpu.memory_space<vmem>>, vector<1x1x16x32xf32>
    %5 = vector.shape_cast %4 : vector<1x1x16x32xf32> to vector<1x16x32xf32>
    %6 = tpu.concatenate %1, %3, %5 in 0 : vector<1x16x32xf32>, vector<16x16x32xf32>, vector<1x16x32xf32> -> vector<18x16x32xf32>
    %7 = tpu.iota {dimensions = array<i32: 0>} : vector<18x1x1xi32>
    %c0_i32 = arith.constant 0 : i32
    %8 = vector.broadcast %c0_i32 : i32 to vector<18x1x1xi32>
    %9 = arith.cmpi sgt, %7, %8 : vector<18x1x1xi32>
    %c0_i32_11 = arith.constant 0 : i32
    %10 = arith.cmpi sgt, %arg1, %c0_i32_11 : i32
    %11 = vector.broadcast %10 : i1 to vector<18x1x1xi1>
    %12 = arith.ori %9, %11 : vector<18x1x1xi1>
    %c17_i32 = arith.constant 17 : i32
    %13 = vector.broadcast %c17_i32 : i32 to vector<18x1x1xi32>
    %14 = arith.cmpi slt, %7, %13 : vector<18x1x1xi32>
    %c0_i32_12 = arith.constant 0 : i32
    %15 = arith.cmpi slt, %arg1, %c0_i32_12 : i32
    %16 = vector.broadcast %15 : i1 to vector<18x1x1xi1>
    %17 = arith.ori %14, %16 : vector<18x1x1xi1>
    %18 = arith.andi %12, %17 : vector<18x1x1xi1>
    %cst = arith.constant 0.000000e+00 : f32
    %19 = vector.shape_cast %18 : vector<18x1x1xi1> to vector<18x1x1xi1>
    %20 = vector.broadcast %19 : vector<18x1x1xi1> to vector<18x16x32xi1>
    %21 = vector.broadcast %cst : f32 to vector<18x16x32xf32>
    %22 = arith.select %20, %6, %21 : vector<18x16x32xi1>, vector<18x16x32xf32>
    %cst_13 = arith.constant 0.000000e+00 : f32
    %23 = vector.broadcast %cst_13 : f32 to vector<18x1x32xf32>
    %24 = tpu.concatenate %23, %22, %23 in 1 : vector<18x1x32xf32>, vector<18x16x32xf32>, vector<18x1x32xf32> -> vector<18x18x32xf32>
    %25 = vector.extract_strided_slice %24 {offsets = [0, 0, 0], sizes = [16, 16, 32], strides = [1, 1, 1]} : vector<18x18x32xf32> to vector<16x16x32xf32>
    %c0_14 = arith.constant 0 : index
    %c0_15 = arith.constant 0 : index
    %c0_16 = arith.constant 0 : index
    %26 = vector.load %arg13[%c0_14, %c0_15, %c0_16] : memref<16x16x288xf32, #tpu.memory_space<vmem>>, vector<16x16x32xf32>
    tpu.vector_store %arg13[%c0_14, %c0_15, %c0_16], %25 {strides = array<i32>} : memref<16x16x288xf32, #tpu.memory_space<vmem>>, vector<16x16x32xf32>,
    %27 = vector.extract_strided_slice %24 {offsets = [0, 1, 0], sizes = [16, 16, 32], strides = [1, 1, 1]} : vector<18x18x32xf32> to vector<16x16x32xf32>
    %c0_17 = arith.constant 0 : index
    %c0_18 = arith.constant 0 : index
    %c32 = arith.constant 32 : index
    %28 = vector.load %arg13[%c0_17, %c0_18, %c32] : memref<16x16x288xf32, #tpu.memory_space<vmem>>, vector<16x16x32xf32>
    tpu.vector_store %arg13[%c0_17, %c0_18, %c32], %27 {strides = array<i32>} : memref<16x16x288xf32, #tpu.memory_space<vmem>>, vector<16x16x32xf32>,
    %29 = vector.extract_strided_slice %24 {offsets = [0, 2, 0], sizes = [16, 16, 32], strides = [1, 1, 1]} : vector<18x18x32xf32> to vector<16x16x32xf32>
    %c0_19 = arith.constant 0 : index
    %c0_20 = arith.constant 0 : index
    %c64 = arith.constant 64 : index
    %30 = vector.load %arg13[%c0_19, %c0_20, %c64] : memref<16x16x288xf32, #tpu.memory_space<vmem>>, vector<16x16x32xf32>
    tpu.vector_store %arg13[%c0_19, %c0_20, %c64], %29 {strides = array<i32>} : memref<16x16x288xf32, #tpu.memory_space<vmem>>, vector<16x16x32xf32>,
    %31 = vector.extract_strided_slice %24 {offsets = [1, 0, 0], sizes = [16, 16, 32], strides = [1, 1, 1]} : vector<18x18x32xf32> to vector<16x16x32xf32>
    %c0_21 = arith.constant 0 : index
    %c0_22 = arith.constant 0 : index
    %c96 = arith.constant 96 : index
    %32 = vector.load %arg13[%c0_21, %c0_22, %c96] : memref<16x16x288xf32, #tpu.memory_space<vmem>>, vector<16x16x32xf32>
    tpu.vector_store %arg13[%c0_21, %c0_22, %c96], %31 {strides = array<i32>} : memref<16x16x288xf32, #tpu.memory_space<vmem>>, vector<16x16x32xf32>,
    %33 = vector.extract_strided_slice %24 {offsets = [1, 1, 0], sizes = [16, 16, 32], strides = [1, 1, 1]} : vector<18x18x32xf32> to vector<16x16x32xf32>
    %c0_23 = arith.constant 0 : index
    %c0_24 = arith.constant 0 : index
    %c128 = arith.constant 128 : index
    %34 = vector.load %arg13[%c0_23, %c0_24, %c128] : memref<16x16x288xf32, #tpu.memory_space<vmem>>, vector<16x16x32xf32>
    tpu.vector_store %arg13[%c0_23, %c0_24, %c128], %33 {strides = array<i32>} : memref<16x16x288xf32, #tpu.memory_space<vmem>>, vector<16x16x32xf32>,
    %35 = vector.extract_strided_slice %24 {offsets = [1, 2, 0], sizes = [16, 16, 32], strides = [1, 1, 1]} : vector<18x18x32xf32> to vector<16x16x32xf32>
    %c0_25 = arith.constant 0 : index
    %c0_26 = arith.constant 0 : index
    %c160 = arith.constant 160 : index
    %36 = vector.load %arg13[%c0_25, %c0_26, %c160] : memref<16x16x288xf32, #tpu.memory_space<vmem>>, vector<16x16x32xf32>
    tpu.vector_store %arg13[%c0_25, %c0_26, %c160], %35 {strides = array<i32>} : memref<16x16x288xf32, #tpu.memory_space<vmem>>, vector<16x16x32xf32>,
    %37 = vector.extract_strided_slice %24 {offsets = [2, 0, 0], sizes = [16, 16, 32], strides = [1, 1, 1]} : vector<18x18x32xf32> to vector<16x16x32xf32>
    %c0_27 = arith.constant 0 : index
    %c0_28 = arith.constant 0 : index
    %c192 = arith.constant 192 : index
    %38 = vector.load %arg13[%c0_27, %c0_28, %c192] : memref<16x16x288xf32, #tpu.memory_space<vmem>>, vector<16x16x32xf32>
    tpu.vector_store %arg13[%c0_27, %c0_28, %c192], %37 {strides = array<i32>} : memref<16x16x288xf32, #tpu.memory_space<vmem>>, vector<16x16x32xf32>,
    %39 = vector.extract_strided_slice %24 {offsets = [2, 1, 0], sizes = [16, 16, 32], strides = [1, 1, 1]} : vector<18x18x32xf32> to vector<16x16x32xf32>
    %c0_29 = arith.constant 0 : index
    %c0_30 = arith.constant 0 : index
    %c224 = arith.constant 224 : index
    %40 = vector.load %arg13[%c0_29, %c0_30, %c224] : memref<16x16x288xf32, #tpu.memory_space<vmem>>, vector<16x16x32xf32>
    tpu.vector_store %arg13[%c0_29, %c0_30, %c224], %39 {strides = array<i32>} : memref<16x16x288xf32, #tpu.memory_space<vmem>>, vector<16x16x32xf32>,
    %41 = vector.extract_strided_slice %24 {offsets = [2, 2, 0], sizes = [16, 16, 32], strides = [1, 1, 1]} : vector<18x18x32xf32> to vector<16x16x32xf32>
    %c0_31 = arith.constant 0 : index
    %c0_32 = arith.constant 0 : index
    %c256 = arith.constant 256 : index
    %42 = vector.load %arg13[%c0_31, %c0_32, %c256] : memref<16x16x288xf32, #tpu.memory_space<vmem>>, vector<16x16x32xf32>
    tpu.vector_store %arg13[%c0_31, %c0_32, %c256], %41 {strides = array<i32>} : memref<16x16x288xf32, #tpu.memory_space<vmem>>, vector<16x16x32xf32>,
    %c0_33 = arith.constant 0 : index
    %c0_34 = arith.constant 0 : index
    %c0_35 = arith.constant 0 : index
    %43 = vector.load %arg13[%c0_33, %c0_34, %c0_35] : memref<16x16x288xf32, #tpu.memory_space<vmem>>, vector<16x16x288xf32>
    %44 = vector.shape_cast %43 : vector<16x16x288xf32> to vector<256x288xf32>
    %45 = arith.truncf %44 : vector<256x288xf32> to vector<256x288xbf16>
    %c0_36 = arith.constant 0 : index
    %c0_37 = arith.constant 0 : index
    %46 = vector.load %arg6[%c0_36, %c0_37] : memref<288x32xbf16, #tpu.memory_space<vmem>>, vector<288x32xbf16>
    %cst_38 = arith.constant dense<0.000000e+00> : vector<256x32xf32>
    %47 = tpu.matmul %45, %46, %cst_38 {dimension_numbers = #tpu.dot_dimension_numbers<[1], [0], [0], [1], [0, 0, 1, 1], [], []>} : vector<256x288xbf16>, vector<288x32xbf16>, vector<256x32xf32> -> vector<256x32xf32>
    %c0_39 = arith.constant 0 : index
    %c0_40 = arith.constant 0 : index
    %48 = vector.load %arg7[%c0_39, %c0_40] : memref<1x32xf32, #tpu.memory_space<vmem>>, vector<1x32xf32>
    %49 = vector.broadcast %48 : vector<1x32xf32> to vector<256x32xf32>
    %50 = arith.addf %47, %49 : vector<256x32xf32>
    %cst_41 = arith.constant 0.000000e+00 : f32
    %51 = vector.broadcast %cst_41 : f32 to vector<256x32xf32>
    %52 = arith.subf %51, %50 : vector<256x32xf32>
    %53 = math.exp %52 : vector<256x32xf32>
    %cst_42 = arith.constant 1.000000e+00 : f32
    %54 = vector.broadcast %cst_42 : f32 to vector<256x32xf32>
    %55 = arith.addf %54, %53 : vector<256x32xf32>
    %56 = tpu.reciprocal %55 {approx = true} : vector<256x32xf32> -> vector<256x32xf32>
    %c0_43 = arith.constant 0 : index
    %c0_44 = arith.constant 0 : index
    %c0_45 = arith.constant 0 : index
    %c0_46 = arith.constant 0 : index
    %57 = vector.load %arg5[%c0_43, %c0_44, %c0_45, %c0_46] : memref<1x16x16x32xf32, #tpu.memory_space<vmem>>, vector<1x16x16x32xf32>
    %58 = vector.shape_cast %57 : vector<1x16x16x32xf32> to vector<16x16x32xf32>
    %59 = vector.shape_cast %58 : vector<16x16x32xf32> to vector<256x32xf32>
    %60 = arith.mulf %56, %59 : vector<256x32xf32>
    %61 = arith.truncf %60 : vector<256x32xf32> to vector<256x32xbf16>
    %c0_47 = arith.constant 0 : index
    %c0_48 = arith.constant 0 : index
    %62 = vector.load %arg8[%c0_47, %c0_48] : memref<32x16xbf16, #tpu.memory_space<vmem>>, vector<32x16xbf16>
    %cst_49 = arith.constant dense<0.000000e+00> : vector<256x16xf32>
    %63 = tpu.matmul %61, %62, %cst_49 {dimension_numbers = #tpu.dot_dimension_numbers<[1], [0], [0], [1], [0, 0, 1, 1], [], []>} : vector<256x32xbf16>, vector<32x16xbf16>, vector<256x16xf32> -> vector<256x16xf32>
    %c0_50 = arith.constant 0 : index
    %c0_51 = arith.constant 0 : index
    %64 = vector.load %arg9[%c0_50, %c0_51] : memref<1x16xf32, #tpu.memory_space<vmem>>, vector<1x16xf32>
    %65 = vector.broadcast %64 : vector<1x16xf32> to vector<256x16xf32>
    %66 = arith.addf %63, %65 : vector<256x16xf32>
    %c0_52 = arith.constant 0 : index
    %c0_53 = arith.constant 0 : index
    %67 = vector.load %arg10[%c0_52, %c0_53] : memref<256x16xf32, #tpu.memory_space<vmem>>, vector<256x16xf32>
    tpu.vector_store %arg10[%c0_52, %c0_53], %66 {strides = array<i32>} : memref<256x16xf32, #tpu.memory_space<vmem>>, vector<256x16xf32>,
    %cst_54 = arith.constant dense<0.000000e+00> : vector<16xf32>
    %68 = vector.multi_reduction <add>, %66, %cst_54 [0] : vector<256x16xf32> to vector<16xf32>
    %69 = vector.shape_cast %68 : vector<16xf32> to vector<1x16xf32>
    %c0_55 = arith.constant 0 : index
    %c0_56 = arith.constant 0 : index
    %c0_57 = arith.constant 0 : index
    %70 = vector.load %arg11[%c0_55, %c0_56, %c0_57] : memref<1x1x16xf32, #tpu.memory_space<vmem>>, vector<1x1x16xf32>
    %71 = vector.shape_cast %70 : vector<1x1x16xf32> to vector<1x16xf32>
    %72 = vector.shape_cast %69 : vector<1x16xf32> to vector<1x1x16xf32>
    tpu.vector_store %arg11[%c0_55, %c0_56, %c0_57], %72 {strides = array<i32>} : memref<1x1x16xf32, #tpu.memory_space<vmem>>, vector<1x1x16xf32>,
    %73 = arith.mulf %66, %66 : vector<256x16xf32>
    %cst_58 = arith.constant dense<0.000000e+00> : vector<16xf32>
    %74 = vector.multi_reduction <add>, %73, %cst_58 [0] : vector<256x16xf32> to vector<16xf32>
    %75 = vector.shape_cast %74 : vector<16xf32> to vector<1x16xf32>
    %c0_59 = arith.constant 0 : index
    %c0_60 = arith.constant 0 : index
    %c0_61 = arith.constant 0 : index
    %76 = vector.load %arg12[%c0_59, %c0_60, %c0_61] : memref<1x1x16xf32, #tpu.memory_space<vmem>>, vector<1x1x16xf32>
    %77 = vector.shape_cast %76 : vector<1x1x16xf32> to vector<1x16xf32>
    %78 = vector.shape_cast %75 : vector<1x16xf32> to vector<1x1x16xf32>
    tpu.vector_store %arg12[%c0_59, %c0_60, %c0_61], %78 {strides = array<i32>} : memref<1x1x16xf32, #tpu.memory_space<vmem>>, vector<1x1x16xf32>,
    return
  }
  func.func @transform_0(%arg0: i32, %arg1: i32) -> (i32, i32, i32, i32) {
    %c0_i32 = arith.constant 0 : i32
    %c0_i32_0 = arith.constant 0 : i32
    %c0_i32_1 = arith.constant 0 : i32
    return %arg0, %arg1, %c0_i32, %c0_i32_0 : i32, i32, i32, i32
  }
  func.func @transform_1(%arg0: i32, %arg1: i32) -> (i32, i32, i32, i32) {
    %c16_i32 = arith.constant 16 : i32
    %0 = arith.muli %arg1, %c16_i32 : i32
    %c1_i32 = arith.constant 1 : i32
    %1 = arith.subi %0, %c1_i32 : i32
    %c0_i32 = arith.constant 0 : i32
    %2 = arith.maxsi %1, %c0_i32 : i32
    %c0_i32_0 = arith.constant 0 : i32
    %c0_i32_1 = arith.constant 0 : i32
    %c0_i32_2 = arith.constant 0 : i32
    return %arg0, %2, %c0_i32_0, %c0_i32_1 : i32, i32, i32, i32
  }
  func.func @transform_2(%arg0: i32, %arg1: i32) -> (i32, i32, i32, i32) {
    %c16_i32 = arith.constant 16 : i32
    %0 = arith.muli %arg1, %c16_i32 : i32
    %c16_i32_0 = arith.constant 16 : i32
    %1 = arith.addi %0, %c16_i32_0 : i32
    %c15_i32 = arith.constant 15 : i32
    %2 = arith.minsi %1, %c15_i32 : i32
    %c0_i32 = arith.constant 0 : i32
    %c0_i32_1 = arith.constant 0 : i32
    %c0_i32_2 = arith.constant 0 : i32
    return %arg0, %2, %c0_i32, %c0_i32_1 : i32, i32, i32, i32
  }
  func.func @transform_3(%arg0: i32, %arg1: i32) -> (i32, i32, i32, i32) {
    %c0_i32 = arith.constant 0 : i32
    %c0_i32_0 = arith.constant 0 : i32
    %c0_i32_1 = arith.constant 0 : i32
    return %arg0, %arg1, %c0_i32, %c0_i32_0 : i32, i32, i32, i32
  }
  func.func @transform_4(%arg0: i32, %arg1: i32) -> (i32, i32) {
    %c0_i32 = arith.constant 0 : i32
    %c0_i32_0 = arith.constant 0 : i32
    %c0_i32_1 = arith.constant 0 : i32
    return %c0_i32, %c0_i32_0 : i32, i32
  }
  func.func @transform_5(%arg0: i32, %arg1: i32) -> (i32, i32) {
    %c0_i32 = arith.constant 0 : i32
    %c0_i32_0 = arith.constant 0 : i32
    %c0_i32_1 = arith.constant 0 : i32
    return %c0_i32, %c0_i32_0 : i32, i32
  }
  func.func @transform_6(%arg0: i32, %arg1: i32) -> (i32, i32) {
    %c0_i32 = arith.constant 0 : i32
    %c0_i32_0 = arith.constant 0 : i32
    %c0_i32_1 = arith.constant 0 : i32
    return %c0_i32, %c0_i32_0 : i32, i32
  }
  func.func @transform_7(%arg0: i32, %arg1: i32) -> (i32, i32) {
    %c0_i32 = arith.constant 0 : i32
    %c0_i32_0 = arith.constant 0 : i32
    %c0_i32_1 = arith.constant 0 : i32
    return %c0_i32, %c0_i32_0 : i32, i32
  }
  func.func @transform_8(%arg0: i32, %arg1: i32) -> (i32, i32) {
    %c1_i32 = arith.constant 1 : i32
    %0 = arith.muli %arg0, %c1_i32 : i32
    %1 = arith.addi %0, %arg1 : i32
    %c0_i32 = arith.constant 0 : i32
    %c0_i32_0 = arith.constant 0 : i32
    return %1, %c0_i32 : i32, i32
  }
  func.func @transform_9(%arg0: i32, %arg1: i32) -> (i32, i32, i32) {
    %c1_i32 = arith.constant 1 : i32
    %0 = arith.muli %arg0, %c1_i32 : i32
    %1 = arith.addi %0, %arg1 : i32
    %c0_i32 = arith.constant 0 : i32
    %c0_i32_0 = arith.constant 0 : i32
    %c0_i32_1 = arith.constant 0 : i32
    return %1, %c0_i32, %c0_i32_0 : i32, i32, i32
  }
  func.func @transform_10(%arg0: i32, %arg1: i32) -> (i32, i32, i32) {
    %c1_i32 = arith.constant 1 : i32
    %0 = arith.muli %arg0, %c1_i32 : i32
    %1 = arith.addi %0, %arg1 : i32
    %c0_i32 = arith.constant 0 : i32
    %c0_i32_0 = arith.constant 0 : i32
    %c0_i32_1 = arith.constant 0 : i32
    return %1, %c0_i32, %c0_i32_0 : i32, i32, i32
  }
}

module attributes {stable_mosaic.version = 11 : i64} {
  func.func @_scale_shift_relu_kernel(%arg0: i32, %arg1: memref<64x128xf32, #tpu.memory_space<vmem>>, %arg2: memref<1x128xf32, #tpu.memory_space<vmem>>, %arg3: memref<1x128xf32, #tpu.memory_space<vmem>>, %arg4: memref<64x128xf32, #tpu.memory_space<vmem>>) attributes {dimension_semantics = [#tpu.dimension_semantics<parallel>], iteration_bounds = array<i64: 1>, scalar_prefetch = 0 : i64, scratch_operands = 0 : i64, tpu.core_type = #tpu.core_type<tc>, window_params = [{transform_indices = @transform_0, window_bounds = array<i64: 64, 128>}, {pipeline_mode = #tpu.pipeline_mode<synchronous>, transform_indices = @transform_1, window_bounds = array<i64: 1, 128>}, {pipeline_mode = #tpu.pipeline_mode<synchronous>, transform_indices = @transform_2, window_bounds = array<i64: 1, 128>}, {transform_indices = @transform_3, window_bounds = array<i64: 64, 128>}]} {
    %c0 = arith.constant 0 : index
    %c0_0 = arith.constant 0 : index
    %0 = vector.load %arg1[%c0, %c0_0] : memref<64x128xf32, #tpu.memory_space<vmem>>, vector<64x128xf32>
    %c0_1 = arith.constant 0 : index
    %c0_2 = arith.constant 0 : index
    %1 = vector.load %arg2[%c0_1, %c0_2] : memref<1x128xf32, #tpu.memory_space<vmem>>, vector<1x128xf32>
    %2 = vector.broadcast %1 : vector<1x128xf32> to vector<64x128xf32>
    %3 = arith.mulf %0, %2 : vector<64x128xf32>
    %c0_3 = arith.constant 0 : index
    %c0_4 = arith.constant 0 : index
    %4 = vector.load %arg3[%c0_3, %c0_4] : memref<1x128xf32, #tpu.memory_space<vmem>>, vector<1x128xf32>
    %5 = vector.broadcast %4 : vector<1x128xf32> to vector<64x128xf32>
    %6 = arith.addf %3, %5 : vector<64x128xf32>
    %cst = arith.constant 0.000000e+00 : f32
    %7 = vector.broadcast %cst : f32 to vector<64x128xf32>
    %8 = arith.maximumf %6, %7 : vector<64x128xf32>
    %c0_5 = arith.constant 0 : index
    %c0_6 = arith.constant 0 : index
    %9 = vector.load %arg4[%c0_5, %c0_6] : memref<64x128xf32, #tpu.memory_space<vmem>>, vector<64x128xf32>
    tpu.vector_store %arg4[%c0_5, %c0_6], %8 {strides = array<i32>} : memref<64x128xf32, #tpu.memory_space<vmem>>, vector<64x128xf32>,
    return
  }
  func.func @transform_0(%arg0: i32) -> (i32, i32) {
    %c0_i32 = arith.constant 0 : i32
    %c0_i32_0 = arith.constant 0 : i32
    return %arg0, %c0_i32 : i32, i32
  }
  func.func @transform_1(%arg0: i32) -> (i32, i32) {
    %c0_i32 = arith.constant 0 : i32
    %c0_i32_0 = arith.constant 0 : i32
    %c0_i32_1 = arith.constant 0 : i32
    return %c0_i32, %c0_i32_0 : i32, i32
  }
  func.func @transform_2(%arg0: i32) -> (i32, i32) {
    %c0_i32 = arith.constant 0 : i32
    %c0_i32_0 = arith.constant 0 : i32
    %c0_i32_1 = arith.constant 0 : i32
    return %c0_i32, %c0_i32_0 : i32, i32
  }
  func.func @transform_3(%arg0: i32) -> (i32, i32) {
    %c0_i32 = arith.constant 0 : i32
    %c0_i32_0 = arith.constant 0 : i32
    return %arg0, %c0_i32 : i32, i32
  }
}

</mosaic_0001>

<llo_original>
// kernel: attention_gate_forward.7
$region0: #{attention_gate_forward.7}
  #allocation0 [shape = 'u32[]', space=smem, size = 0x4, offset = 0x4, fixed_abs, tag = 'smem constant byte address 0x4 - core index']
  #allocation1 [shape = 'u32[144,128]{1,0:T(1,128)}', space=vmem, size = 0x12000, scoped, tag = 'internal scratch']
  %s0 = inlined_call_operand.vmem [shape: f32[64,128], index: 0, kind: input, shape index: {}]
  %s1 = inlined_call_operand.vmem [shape: f32[1,128], index: 1, kind: input, shape index: {}]
  %s2 = inlined_call_operand.vmem [shape: f32[1,128], index: 2, kind: input, shape index: {}]
  %s3 = inlined_call_operand.vmem [shape: f32[64,128], index: 3, kind: output, shape index: {}]
  %s4 = sld [smem:[#allocation0]]
  $region22: #{attention_gate_forward.7} parent=0
    _
  %s6 = ssub.s32 1, %s4
  %s7 = scalar_select 0, %s6, %s4
  // Predicated region
  $region2: #{attention_gate_forward.7} parent=0 // pred_check
    _
  $region3: #{attention_gate_forward.7} parent=0 // pred_check_branch
    %9 = sbr.rel (0) target = $region5
  $region4: #{attention_gate_forward.7} parent=0 // pred_region
    _
  $region5: #{attention_gate_forward.7} parent=0 // pred_fallthru
    _
  // Predicated region
  $region6: #{attention_gate_forward.7} parent=0 // pred_check
    _
  $region7: #{attention_gate_forward.7} parent=0 // pred_check_branch
    %11 = sbr.rel (0) target = $region9
  $region8: #{attention_gate_forward.7} parent=0 // pred_region
    _
  $region9: #{attention_gate_forward.7} parent=0 // pred_fallthru
    _
  // Predicated region
  $region10: #{attention_gate_forward.7} parent=0 // pred_check
    _
  $region11: #{attention_gate_forward.7} parent=0 // pred_check_branch
    %13 = sbr.rel (0) target = $region13
  $region12: #{attention_gate_forward.7} parent=0 // pred_region
    _
  $region13: #{attention_gate_forward.7} parent=0 // pred_fallthru
    _
  %v14 = vld [vmem:[%s0] sm:$0xff]
  %v15 = vld [vmem:[%s0 + $0x8] sm:$0xff]
  %v16 = vld [vmem:[%s0 + $0x10] sm:$0xff]
  %v17 = vld [vmem:[%s0 + $0x18] sm:$0xff]
  %v18 = vld [vmem:[%s0 + $0x20] sm:$0xff]
  %v19 = vld [vmem:[%s0 + $0x28] sm:$0xff]
  %v20 = vld [vmem:[%s0 + $0x30] sm:$0xff]
  %v21 = vld [vmem:[%s0 + $0x38] sm:$0xff]
  %v22 = vld [vmem:[%s1] sm:$0x1]
  %v24 = vlaneseq
  %v25 = vshrl.u32 %v24, 7
  %v26 = vsub.s32 0, %v25
  %v27 = vrot.slane %v22, %v26
  %v29 = vmul.f32 %v14, %v27
  %v30 = vmul.f32 %v15, %v27
  %v31 = vmul.f32 %v16, %v27
  %v32 = vmul.f32 %v17, %v27
  %v33 = vmul.f32 %v18, %v27
  %v34 = vmul.f32 %v19, %v27
  %v35 = vmul.f32 %v20, %v27
  %v36 = vmul.f32 %v21, %v27
  %v37 = vld [vmem:[%s2] sm:$0x1]
  %v39 = vlaneseq
  %v40 = vshrl.u32 %v39, 7
  %v41 = vsub.s32 0, %v40
  %v42 = vrot.slane %v37, %v41
  %v44 = vadd.f32 %v29, %v42
  %v45 = vadd.f32 %v30, %v42
  %v46 = vadd.f32 %v31, %v42
  %v47 = vadd.f32 %v32, %v42
  %v48 = vadd.f32 %v33, %v42
  %v49 = vadd.f32 %v34, %v42
  %v50 = vadd.f32 %v35, %v42
  %v51 = vadd.f32 %v36, %v42
  %v52 = vmax.f32 %v44, 0.0
  %v53 = vmax.f32 %v45, 0.0
  %v54 = vmax.f32 %v46, 0.0
  %v55 = vmax.f32 %v47, 0.0
  %v56 = vmax.f32 %v48, 0.0
  %v57 = vmax.f32 %v49, 0.0
  %v58 = vmax.f32 %v50, 0.0
  %v59 = vmax.f32 %v51, 0.0
  %60 = vst [vmem:[%s3] sm:$0xff] %v52
  %61 = vst [vmem:[%s3 + $0x8] sm:$0xff] %v53
  %62 = vst [vmem:[%s3 + $0x10] sm:$0xff] %v54
  %63 = vst [vmem:[%s3 + $0x18] sm:$0xff] %v55
  %64 = vst [vmem:[%s3 + $0x20] sm:$0xff] %v56
  %65 = vst [vmem:[%s3 + $0x28] sm:$0xff] %v57
  %66 = vst [vmem:[%s3 + $0x30] sm:$0xff] %v58
  %67 = vst [vmem:[%s3 + $0x38] sm:$0xff] %v59
  // Predicated region
  $region14: #{attention_gate_forward.7} parent=0 // pred_check
    _
  $region15: #{attention_gate_forward.7} parent=0 // pred_check_branch
    %69 = sbr.rel (0) target = $region17
  $region16: #{attention_gate_forward.7} parent=0 // pred_region
    _
  $region17: #{attention_gate_forward.7} parent=0 // pred_fallthru
    _
  // Predicated region
  $region18: #{attention_gate_forward.7} parent=0 // pred_check
    _
  $region19: #{attention_gate_forward.7} parent=0 // pred_check_branch
    %71 = sbr.rel (0) target = $region21
  $region20: #{attention_gate_forward.7} parent=0 // pred_region
    _
  $region21: #{attention_gate_forward.7} parent=0 // pred_fallthru
    _

// kernel: attention_gate_forward.4
$region0: #{attention_gate_forward.4}
  #allocation0 [shape = 'u32[]', space=smem, size = 0x4, offset = 0x4, fixed_abs, tag = 'smem constant byte address 0x4 - core index']
  #allocation1 [shape = 'u32[144,128]{1,0:T(1,128)}', space=vmem, size = 0x12000, scoped, tag = 'internal scratch']
  #allocation2 [shape = 'f32[8,8,288]{2,1,0:T(8,128)}', space=vmem, size = 0x18000, scoped, tag = 'scratch operand']
  %s0 = inlined_call_operand.vmem [shape: f32[2,8,8,16], index: 0, kind: input, shape index: {}, may-alias: {0,1,2}]
  %s1 = inlined_call_operand.vmem [shape: f32[2,8,8,16], index: 1, kind: input, shape index: {}, may-alias: {0,1,2}]
  %s2 = inlined_call_operand.vmem [shape: f32[2,8,8,16], index: 2, kind: input, shape index: {}, may-alias: {0,1,2}]
  %s3 = inlined_call_operand.vmem [shape: bf16[16,32], index: 3, kind: input, shape index: {}]
  %s4 = inlined_call_operand.vmem [shape: f32[1,32], index: 4, kind: input, shape index: {}]
  %s5 = inlined_call_operand.vmem [shape: bf16[288,32], index: 5, kind: input, shape index: {}]
  %s6 = inlined_call_operand.vmem [shape: f32[1,32], index: 6, kind: input, shape index: {}]
  %s7 = inlined_call_operand.vmem [shape: f32[2,8,8,32], index: 7, kind: output, shape index: {}]
  %s8 = sld [smem:[#allocation0]]
  $region61: #{attention_gate_forward.4} parent=0
    _
  %s10 = ssub.s32 1, %s8
  %s11 = scalar_select 0, %s10, %s8
  loop: start=0, step=1, limit=4
  $region2: #{attention_gate_forward.4} parent=0 // loop_pre_header
    _
  $region3: #{attention_gate_forward.4} parent=0 // loop_header
    %s13 = sphi 0, %s17
    %p14 = scmp.ge.s32.totalorder %s13, 4
    %s20 = sphi 0, %s32
    %s21 = sphi 0, %s28
    %s22 = sphi 0, %s20
    %s23 = sphi 0, %s21
    %s24 = sphi 0, %s22
    %s25 = sphi 0, %s23
    %s37 = sphi 0, %s39
    %s40 = sphi 0, %s37
    %s41 = sphi 0, %s40
    %s57 = sphi 0, %s41
    %s73 = sphi 0, %s75
    %s76 = sphi 0, %s73
    %s77 = sphi 0, %s76
    %s93 = sphi 0, %s77
    %s109 = sphi 0, %s111
    %s112 = sphi 0, %s109
    %s113 = sphi 0, %s112
    %s129 = sphi 0, %s113
    %s133 = sphi 0, %s133
    %s135 = sphi 0, %s133
    %s136 = sphi 0, %s135
    %s150 = sphi 0, %s136
    %s154 = sphi 0, %s154
    %s156 = sphi 0, %s154
    %s157 = sphi 0, %s156
    %s171 = sphi 0, %s157
    %s175 = sphi 0, %s175
    %s177 = sphi 0, %s175
    %s178 = sphi 0, %s177
    %s192 = sphi 0, %s178
    %s196 = sphi 0, %s196
    %s198 = sphi 0, %s196
    %s199 = sphi 0, %s198
    %s213 = sphi 0, %s199
    %s221 = sphi 0, %s223
    %s224 = sphi 0, %s221
    %s225 = sphi 0, %s224
    %s241 = sphi 0, %s225
  $region4: #{attention_gate_forward.4} parent=0 // loop_header_branch
    %16 = sbr.rel (%p14) target = $region8
  $region5: #{attention_gate_forward.4} parent=0 // loop_body
    %s18 = ssub.s32 %s13, 1
    %s19 = ssub.s32 %s13, 2
    %s26 = sadd.s32 1, %s21
    %p27 = scmp.ge.s32.totalorder %s26, 1
    %s28 = scalar_select %p27, 0, %s26
    %s29 = sadd.s32 1, %s20
    %s30 = scalar_select %p27, %s29, %s20
    %p31 = scmp.ge.s32.totalorder %s30, 2
    %s32 = scalar_select %p31, 0, %s30
    %s33 = ssub.s32 %s20, %s32
    %s34 = ssub.s32 %s21, %s28
    %s35 = sor.u32 %s33, %s34
    %p36 = scmp.eq.s32.totalorder %s35, 0
    %s38 = sadd.s32 %s37, 1
    %s39 = scalar_select %p36, %s37, %s38
    %p42 = pneg %p36
    %p43 = scmp.eq.s32.totalorder %s13, 1
    %p44 = por %p42, %p43
    %p45 = scmp.ne.s32.totalorder %s37, %s40
    %p46 = scmp.eq.s32.totalorder %s13, 0
    %p47 = por %p45, %p46
    %p48 = scmp.ne.s32.totalorder %s37, %s40
    %p49 = scmp.eq.s32.totalorder %s18, 1
    %p50 = por %p48, %p49
    %p51 = scmp.ne.s32.totalorder %s40, %s41
    %p52 = scmp.eq.s32.totalorder %s18, 0
    %p53 = por %p51, %p52
    %p54 = scmp.ne.s32.totalorder %s40, %s41
    %p55 = scmp.eq.s32.totalorder %s19, 1
    %p56 = por %p54, %p55
    %p58 = scmp.ne.s32.totalorder %s41, %s57
    %p59 = scmp.eq.s32.totalorder %s19, 0
    %p60 = por %p58, %p59
    %s61 = smul.u32 %s21, 8
    %s62 = ssub.s32 %s61, 1
    %p63 = scmp.gt.s32.totalorder %s62, 0
    %s64 = scalar_select %p63, %s62, 0
    %s65 = smul.u32 %s28, 8
    %s66 = ssub.s32 %s65, 1
    %p67 = scmp.gt.s32.totalorder %s66, 0
    %s68 = scalar_select %p67, %s66, 0
    %s69 = ssub.s32 %s20, %s32
    %s70 = ssub.s32 %s64, %s68
    %s71 = sor.u32 %s69, %s70
    %p72 = scmp.eq.s32.totalorder %s71, 0
    %s74 = sadd.s32 %s73, 1
    %s75 = scalar_select %p72, %s73, %s74
    %p78 = pneg %p72
    %p79 = scmp.eq.s32.totalorder %s13, 1
    %p80 = por %p78, %p79
    %p81 = scmp.ne.s32.totalorder %s73, %s76
    %p82 = scmp.eq.s32.totalorder %s13, 0
    %p83 = por %p81, %p82
    %p84 = scmp.ne.s32.totalorder %s73, %s76
    %p85 = scmp.eq.s32.totalorder %s18, 1
    %p86 = por %p84, %p85
    %p87 = scmp.ne.s32.totalorder %s76, %s77
    %p88 = scmp.eq.s32.totalorder %s18, 0
    %p89 = por %p87, %p88
    %p90 = scmp.ne.s32.totalorder %s76, %s77
    %p91 = scmp.eq.s32.totalorder %s19, 1
    %p92 = por %p90, %p91
    %p94 = scmp.ne.s32.totalorder %s77, %s93
    %p95 = scmp.eq.s32.totalorder %s19, 0
    %p96 = por %p94, %p95
    %s97 = smul.u32 %s21, 8
    %s98 = sadd.s32 %s97, 8
    %p99 = scmp.lt.s32.totalorder %s98, 7
    %s100 = scalar_select %p99, %s98, 7
    %s101 = smul.u32 %s28, 8
    %s102 = sadd.s32 %s101, 8
    %p103 = scmp.lt.s32.totalorder %s102, 7
    %s104 = scalar_select %p103, %s102, 7
    %s105 = ssub.s32 %s20, %s32
    %s106 = ssub.s32 %s100, %s104
    %s107 = sor.u32 %s105, %s106
    %p108 = scmp.eq.s32.totalorder %s107, 0
    %s110 = sadd.s32 %s109, 1
    %s111 = scalar_select %p108, %s109, %s110
    %p114 = pneg %p108
    %p115 = scmp.eq.s32.totalorder %s13, 1
    %p116 = por %p114, %p115
    %p117 = scmp.ne.s32.totalorder %s109, %s112
    %p118 = scmp.eq.s32.totalorder %s13, 0
    %p119 = por %p117, %p118
    %p120 = scmp.ne.s32.totalorder %s109, %s112
    %p121 = scmp.eq.s32.totalorder %s18, 1
    %p122 = por %p120, %p121
    %p123 = scmp.ne.s32.totalorder %s112, %s113
    %p124 = scmp.eq.s32.totalorder %s18, 0
    %p125 = por %p123, %p124
    %p126 = scmp.ne.s32.totalorder %s112, %s113
    %p127 = scmp.eq.s32.totalorder %s19, 1
    %p128 = por %p126, %p127
    %p130 = scmp.ne.s32.totalorder %s113, %s129
    %p131 = scmp.eq.s32.totalorder %s19, 0
    %p132 = por %p130, %p131
    %s134 = sadd.s32 %s133, 1
    %p137 = scmp.eq.s32.totalorder %s13, 1
    %p138 = scmp.ne.s32.totalorder %s133, %s135
    %p139 = scmp.eq.s32.totalorder %s13, 0
    %p140 = por %p138, %p139
    %p141 = scmp.ne.s32.totalorder %s133, %s135
    %p142 = scmp.eq.s32.totalorder %s18, 1
    %p143 = por %p141, %p142
    %p144 = scmp.ne.s32.totalorder %s135, %s136
    %p145 = scmp.eq.s32.totalorder %s18, 0
    %p146 = por %p144, %p145
    %p147 = scmp.ne.s32.totalorder %s135, %s136
    %p148 = scmp.eq.s32.totalorder %s19, 1
    %p149 = por %p147, %p148
    %p151 = scmp.ne.s32.totalorder %s136, %s150
    %p152 = scmp.eq.s32.totalorder %s19, 0
    %p153 = por %p151, %p152
    %s155 = sadd.s32 %s154, 1
    %p158 = scmp.eq.s32.totalorder %s13, 1
    %p159 = scmp.ne.s32.totalorder %s154, %s156
    %p160 = scmp.eq.s32.totalorder %s13, 0
    %p161 = por %p159, %p160
    %p162 = scmp.ne.s32.totalorder %s154, %s156
    %p163 = scmp.eq.s32.totalorder %s18, 1
    %p164 = por %p162, %p163
    %p165 = scmp.ne.s32.totalorder %s156, %s157
    %p166 = scmp.eq.s32.totalorder %s18, 0
    %p167 = por %p165, %p166
    %p168 = scmp.ne.s32.totalorder %s156, %s157
    %p169 = scmp.eq.s32.totalorder %s19, 1
    %p170 = por %p168, %p169
    %p172 = scmp.ne.s32.totalorder %s157, %s171
    %p173 = scmp.eq.s32.totalorder %s19, 0
    %p174 = por %p172, %p173
    %s176 = sadd.s32 %s175, 1
    %p179 = scmp.eq.s32.totalorder %s13, 1
    %p180 = scmp.ne.s32.totalorder %s175, %s177
    %p181 = scmp.eq.s32.totalorder %s13, 0
    %p182 = por %p180, %p181
    %p183 = scmp.ne.s32.totalorder %s175, %s177
    %p184 = scmp.eq.s32.totalorder %s18, 1
    %p185 = por %p183, %p184
    %p186 = scmp.ne.s32.totalorder %s177, %s178
    %p187 = scmp.eq.s32.totalorder %s18, 0
    %p188 = por %p186, %p187
    %p189 = scmp.ne.s32.totalorder %s177, %s178
    %p190 = scmp.eq.s32.totalorder %s19, 1
    %p191 = por %p189, %p190
    %p193 = scmp.ne.s32.totalorder %s178, %s192
    %p194 = scmp.eq.s32.totalorder %s19, 0
    %p195 = por %p193, %p194
    %s197 = sadd.s32 %s196, 1
    %p200 = scmp.eq.s32.totalorder %s13, 1
    %p201 = scmp.ne.s32.totalorder %s196, %s198
    %p202 = scmp.eq.s32.totalorder %s13, 0
    %p203 = por %p201, %p202
    %p204 = scmp.ne.s32.totalorder %s196, %s198
    %p205 = scmp.eq.s32.totalorder %s18, 1
    %p206 = por %p204, %p205
    %p207 = scmp.ne.s32.totalorder %s198, %s199
    %p208 = scmp.eq.s32.totalorder %s18, 0
    %p209 = por %p207, %p208
    %p210 = scmp.ne.s32.totalorder %s198, %s199
    %p211 = scmp.eq.s32.totalorder %s19, 1
    %p212 = por %p210, %p211
    %p214 = scmp.ne.s32.totalorder %s199, %s213
    %p215 = scmp.eq.s32.totalorder %s19, 0
    %p216 = por %p214, %p215
    %s217 = ssub.s32 %s20, %s32
    %s218 = ssub.s32 %s21, %s28
    %s219 = sor.u32 %s217, %s218
    %p220 = scmp.eq.s32.totalorder %s219, 0
    %s222 = sadd.s32 %s221, 1
    %s223 = scalar_select %p220, %s221, %s222
    %p226 = pneg %p220
    %p227 = scmp.eq.s32.totalorder %s13, 1
    %p228 = por %p226, %p227
    %p229 = scmp.ne.s32.totalorder %s221, %s224
    %p230 = scmp.eq.s32.totalorder %s13, 0
    %p231 = por %p229, %p230
    %p232 = scmp.ne.s32.totalorder %s221, %s224
    %p233 = scmp.eq.s32.totalorder %s18, 1
    %p234 = por %p232, %p233
    %p235 = scmp.ne.s32.totalorder %s224, %s225
    %p236 = scmp.eq.s32.totalorder %s18, 0
    %p237 = por %p235, %p236
    %p238 = scmp.ne.s32.totalorder %s224, %s225
    %p239 = scmp.eq.s32.totalorder %s19, 1
    %p240 = por %p238, %p239
    %p242 = scmp.ne.s32.totalorder %s225, %s241
    %p243 = scmp.eq.s32.totalorder %s19, 0
    %p244 = por %p242, %p243
    %p245 = scmp.le.s32.totalorder 1, %s13
    %p246 = scmp.lt.s32.totalorder %s13, 3
    %p247 = pnand %p245, %p246
    %p248 = pneg %p247
    // Predicated region
    $region9: #{attention_gate_forward.4} parent=5 // pred_check
      _
    $region10: #{attention_gate_forward.4} parent=5 // pred_check_branch
      %250 = sbr.rel (%p247) target = $region12
    $region11: #{attention_gate_forward.4} parent=5 // pred_region
      %s251 = ssub.s32 %s13, 1
      // Predicated region
      $region13: #{attention_gate_forward.4} parent=11 // pred_check
        %p252 = pneg %p146
      $region14: #{attention_gate_forward.4} parent=11 // pred_check_branch
        %254 = sbr.rel (%p252) target = $region16
      $region15: #{attention_gate_forward.4} parent=11 // pred_region
        _
      $region16: #{attention_gate_forward.4} parent=11 // pred_fallthru
        _
      // Predicated region
      $region17: #{attention_gate_forward.4} parent=11 // pred_check
        %p255 = pneg %p167
      $region18: #{attention_gate_forward.4} parent=11 // pred_check_branch
        %257 = sbr.rel (%p255) target = $region20
      $region19: #{attention_gate_forward.4} parent=11 // pred_region
        _
      $region20: #{attention_gate_forward.4} parent=11 // pred_fallthru
        _
      // Predicated region
      $region21: #{attention_gate_forward.4} parent=11 // pred_check
        %p258 = pneg %p188
      $region22: #{attention_gate_forward.4} parent=11 // pred_check_branch
        %260 = sbr.rel (%p258) target = $region24
      $region23: #{attention_gate_forward.4} parent=11 // pred_region
        _
      $region24: #{attention_gate_forward.4} parent=11 // pred_fallthru
        _
      // Predicated region
      $region25: #{attention_gate_forward.4} parent=11 // pred_check
        %p261 = pneg %p209
      $region26: #{attention_gate_forward.4} parent=11 // pred_check_branch
        %263 = sbr.rel (%p261) target = $region28
      $region27: #{attention_gate_forward.4} parent=11 // pred_region
        _
      $region28: #{attention_gate_forward.4} parent=11 // pred_fallthru
        _
    $region12: #{attention_gate_forward.4} parent=5 // pred_fallthru
      _
    %p264 = scmp.lt.s32.totalorder %s13, 2
    // Predicated region
    $region29: #{attention_gate_forward.4} parent=5 // pred_check
      %p265 = pneg %p264
    $region30: #{attention_gate_forward.4} parent=5 // pred_check_branch
      %267 = sbr.rel (%p265) target = $region32
    $region31: #{attention_gate_forward.4} parent=5 // pred_region
      // Predicated region
      $region33: #{attention_gate_forward.4} parent=31 // pred_check
        %p268 = pneg %p47
      $region34: #{attention_gate_forward.4} parent=31 // pred_check_branch
        %270 = sbr.rel (%p268) target = $region36
      $region35: #{attention_gate_forward.4} parent=31 // pred_region
        %s271 = smul.u32 8, %s21
        %p272 = scmp.lt.s32.totalorder %s20, 1
        %s273 = scalar_select %p272, %s20, 1
        %p274 = scmp.lt.s32.totalorder %s271, 7
        %s275 = scalar_select %p274, %s271, 7
        %s276 = smul.addr %s273, 8
        %s277 = sadd.s32 %s275, %s276
        %s278 = smul.addr %s277, 8
        %s279 = scalar_lea.vmem %s0, %s278
        %s280 = smul.u32 8, %s21
      $region36: #{attention_gate_forward.4} parent=31 // pred_fallthru
        _
      // Predicated region
      $region37: #{attention_gate_forward.4} parent=31 // pred_check
        %p281 = pneg %p83
      $region38: #{attention_gate_forward.4} parent=31 // pred_check_branch
        %283 = sbr.rel (%p281) target = $region40
      $region39: #{attention_gate_forward.4} parent=31 // pred_region
        %s284 = smul.u32 %s21, 8
        %s285 = ssub.s32 %s284, 1
        %p286 = scmp.gt.s32.totalorder %s285, 0
        %s287 = scalar_select %p286, %s285, 0
        %p288 = scmp.lt.s32.totalorder %s20, 1
        %s289 = scalar_select %p288, %s20, 1
        %p290 = scmp.lt.s32.totalorder %s287, 7
        %s291 = scalar_select %p290, %s287, 7
        %s292 = smul.addr %s289, 8
        %s293 = sadd.s32 %s291, %s292
        %s294 = smul.addr %s293, 8
        %s295 = scalar_lea.vmem %s1, %s294
        %s296 = smul.u32 %s21, 8
        %s297 = ssub.s32 %s296, 1
        %p298 = scmp.gt.s32.totalorder %s297, 0
        %s299 = scalar_select %p298, %s297, 0
      $region40: #{attention_gate_forward.4} parent=31 // pred_fallthru
        _
      // Predicated region
      $region41: #{attention_gate_forward.4} parent=31 // pred_check
        %p300 = pneg %p119
      $region42: #{attention_gate_forward.4} parent=31 // pred_check_branch
        %302 = sbr.rel (%p300) target = $region44
      $region43: #{attention_gate_forward.4} parent=31 // pred_region
        %s303 = smul.u32 %s21, 8
        %s304 = sadd.s32 %s303, 8
        %p305 = scmp.lt.s32.totalorder %s304, 7
        %s306 = scalar_select %p305, %s304, 7
        %p307 = scmp.lt.s32.totalorder %s20, 1
        %s308 = scalar_select %p307, %s20, 1
        %p309 = scmp.lt.s32.totalorder %s306, 7
        %s310 = scalar_select %p309, %s306, 7
        %s311 = smul.addr %s308, 8
        %s312 = sadd.s32 %s310, %s311
        %s313 = smul.addr %s312, 8
        %s314 = scalar_lea.vmem %s2, %s313
        %s315 = smul.u32 %s21, 8
        %s316 = sadd.s32 %s315, 8
        %p317 = scmp.lt.s32.totalorder %s316, 7
        %s318 = scalar_select %p317, %s316, 7
      $region44: #{attention_gate_forward.4} parent=31 // pred_fallthru
        _
    $region32: #{attention_gate_forward.4} parent=5 // pred_fallthru
      _
    %p319 = scmp.le.s32.totalorder 1, %s13
    %p320 = scmp.lt.s32.totalorder %s13, 3
    %p321 = pnand %p319, %p320
    %p322 = pneg %p321
    // Predicated region
    $region45: #{attention_gate_forward.4} parent=5 // pred_check
      _
    $region46: #{attention_gate_forward.4} parent=5 // pred_check_branch
      %324 = sbr.rel (%p321) target = $region48
    $region47: #{attention_gate_forward.4} parent=5 // pred_region
      %s325 = ssub.s32 %s13, 1
      %s326 = smul.u32 8, %s23
      %p327 = scmp.lt.s32.totalorder %s22, 1
      %s328 = scalar_select %p327, %s22, 1
      %p329 = scmp.lt.s32.totalorder %s326, 7
      %s330 = scalar_select %p329, %s326, 7
      %s331 = smul.addr %s328, 8
      %s332 = sadd.s32 %s330, %s331
      %s333 = smul.addr %s332, 8
      %s334 = scalar_lea.vmem %s0, %s333
      %p335 = pneg %p53
      %p336 = pneg %p50
      %s337 = smul.u32 %s23, 8
      %s338 = ssub.s32 %s337, 1
      %p339 = scmp.gt.s32.totalorder %s338, 0
      %s340 = scalar_select %p339, %s338, 0
      %p341 = scmp.lt.s32.totalorder %s22, 1
      %s342 = scalar_select %p341, %s22, 1
      %p343 = scmp.lt.s32.totalorder %s340, 7
      %s344 = scalar_select %p343, %s340, 7
      %s345 = smul.addr %s342, 8
      %s346 = sadd.s32 %s344, %s345
      %s347 = smul.addr %s346, 8
      %s348 = scalar_lea.vmem %s1, %s347
      %p349 = pneg %p89
      %p350 = pneg %p86
      %s351 = smul.u32 %s23, 8
      %s352 = sadd.s32 %s351, 8
      %p353 = scmp.lt.s32.totalorder %s352, 7
      %s354 = scalar_select %p353, %s352, 7
      %p355 = scmp.lt.s32.totalorder %s22, 1
      %s356 = scalar_select %p355, %s22, 1
      %p357 = scmp.lt.s32.totalorder %s354, 7
      %s358 = scalar_select %p357, %s354, 7
      %s359 = smul.addr %s356, 8
      %s360 = sadd.s32 %s358, %s359
      %s361 = smul.addr %s360, 8
      %s362 = scalar_lea.vmem %s2, %s361
      %p363 = pneg %p125
      %p364 = pneg %p122
      %p365 = pneg %p146
      %p366 = pneg %p143
      %p367 = pneg %p167
      %p368 = pneg %p164
      %p369 = pneg %p188
      %p370 = pneg %p185
      %p371 = pneg %p209
      %p372 = pneg %p206
      %p373 = pneg %p237
      %p374 = pneg %p234
      %s375 = smul.u32 8, %s23
      %p376 = scmp.lt.s32.totalorder %s22, 1
      %s377 = scalar_select %p376, %s22, 1
      %p378 = scmp.lt.s32.totalorder %s375, 7
      %s379 = scalar_select %p378, %s375, 7
      %s380 = smul.addr %s377, 8
      %s381 = sadd.s32 %s379, %s380
      %s382 = smul.addr %s381, 8
      %s383 = scalar_lea.vmem %s7, %s382
      %s384 = smul.u32 8, %s23
      %p385 = scmp.lt.s32.totalorder %s22, 1
      %s386 = scalar_select %p385, %s22, 1
      %p387 = scmp.lt.s32.totalorder %s384, 7
      %s388 = scalar_select %p387, %s384, 7
      %s389 = smul.addr %s386, 8
      %s390 = sadd.s32 %s388, %s389
      %s391 = smul.addr %s390, 8
      %s392 = scalar_lea.vmem %s0, %s391
      %s393 = smul.u32 8, %s23
      %s394 = smul.u32 %s23, 8
      %s395 = ssub.s32 %s394, 1
      %p396 = scmp.gt.s32.totalorder %s395, 0
      %s397 = scalar_select %p396, %s395, 0
      %p398 = scmp.lt.s32.totalorder %s22, 1
      %s399 = scalar_select %p398, %s22, 1
      %p400 = scmp.lt.s32.totalorder %s397, 7
      %s401 = scalar_select %p400, %s397, 7
      %s402 = smul.addr %s399, 8
      %s403 = sadd.s32 %s401, %s402
      %s404 = smul.addr %s403, 8
      %s405 = scalar_lea.vmem %s1, %s404
      %s406 = smul.u32 %s23, 8
      %s407 = ssub.s32 %s406, 1
      %p408 = scmp.gt.s32.totalorder %s407, 0
      %s409 = scalar_select %p408, %s407, 0
      %s410 = smul.u32 %s23, 8
      %s411 = sadd.s32 %s410, 8
      %p412 = scmp.lt.s32.totalorder %s411, 7
      %s413 = scalar_select %p412, %s411, 7
      %p414 = scmp.lt.s32.totalorder %s22, 1
      %s415 = scalar_select %p414, %s22, 1
      %p416 = scmp.lt.s32.totalorder %s413, 7
      %s417 = scalar_select %p416, %s413, 7
      %s418 = smul.addr %s415, 8
      %s419 = sadd.s32 %s417, %s418
      %s420 = smul.addr %s419, 8
      %s421 = scalar_lea.vmem %s2, %s420
      %s422 = smul.u32 %s23, 8
      %s423 = sadd.s32 %s422, 8
      %p424 = scmp.lt.s32.totalorder %s423, 7
      %s425 = scalar_select %p424, %s423, 7
      %s426 = smul.u32 8, %s23
      %p427 = scmp.lt.s32.totalorder %s22, 1
      %s428 = scalar_select %p427, %s22, 1
      %p429 = scmp.lt.s32.totalorder %s426, 7
      %s430 = scalar_select %p429, %s426, 7
      %s431 = smul.addr %s428, 8
      %s432 = sadd.s32 %s430, %s431
      %s433 = smul.addr %s432, 8
      %s434 = scalar_lea.vmem %s7, %s433
      %s435 = smul.u32 8, %s23
      %v437 = vld [vmem:[%s405] sm:$0xff]
      %v438 = vld [vmem:[%s392] sm:$0xff]
      %v439 = vld [vmem:[%s392 + $0x8] sm:$0xff]
      %v440 = vld [vmem:[%s392 + $0x10] sm:$0xff]
      %v441 = vld [vmem:[%s392 + $0x18] sm:$0xff]
      %v442 = vld [vmem:[%s392 + $0x20] sm:$0xff]
      %v443 = vld [vmem:[%s392 + $0x28] sm:$0xff]
      %v444 = vld [vmem:[%s392 + $0x30] sm:$0xff]
      %v445 = vld [vmem:[%s392 + $0x38] sm:$0xff]
      %v446 = vld [vmem:[%s421] sm:$0xff]
      %v447 = vpack.c.bf16 %v438, %v437
      %v448 = vpack.c.bf16 %v440, %v439
      %v449 = vpack.c.bf16 %v442, %v441
      %v450 = vpack.c.bf16 %v444, %v443
      %v451 = vpack.c.bf16 %v446, %v445
      %v452 = vld [vmem:[%s3] sm:$0xf]
      %v453 = vld [vmem:[%s3 + $0x4] sm:$0xf]
      %v454 = vld [vmem:[%s4] sm:$0x1]
      %v456 = vlaneseq
      %v457 = vshrl.u32 %v456, 7
      %v458 = vsub.s32 0, %v457
      %v459 = vrot.slane %v454, %v458
      %v463 = vunpack.c.l.b16 %v452
      %v464 = vunpack.c.l.b16 %v453
      %v465 = vpack.c.b16 %v464, %v463
      %vm467 = vcmask 130048
      %v469 = vsel %vm467, %v447, 0
      %v472 = vsel %vm467, %v448, 0
      %v475 = vsel %vm467, %v449, 0
      %v478 = vsel %vm467, %v450, 0
      %v481 = vsel %vm467, %v451, 0
      %483 = vmatprep.subr.bf16.mxu0 0
      %484 = vmatpush1.bf16.msra.mxu0 0
      %485 = vmatprep.subr.bf16.mxu0 0
      %486 = vmatpush1.bf16.msra.mxu0 0
      %487 = vmatprep.subr.bf16.mxu0 0
      %488 = vmatpush1.bf16.msra.mxu0 0
      %489 = vmatprep.subr.bf16.mxu0 0
      %490 = vmatpush1.bf16.msra.mxu0 0
      %491 = vmatprep.subr.bf16.mxu0 0
      %492 = vmatpush1.bf16.msra.mxu0 0
      %493 = vmatprep.subr.bf16.mxu0 0
      %494 = vmatpush1.bf16.msra.mxu0 0
      %495 = vmatprep.subr.bf16.mxu0 0
      %496 = vmatpush1.bf16.msra.mxu0 0
      %497 = vmatprep.subr.bf16.mxu0 0
      %498 = vmatpush1.bf16.msra.mxu0 %v465
      %499 = vmatprep.subr.bf16.mxu0 0
      %500 = vmatpush2.bf16.msra.mxu0 0
      %501 = vmatprep.subr.bf16.mxu0 0
      %502 = vmatpush2.bf16.msra.mxu0 0
      %503 = vmatprep.subr.bf16.mxu0 0
      %504 = vmatpush2.bf16.msra.mxu0 0
      %505 = vmatprep.subr.bf16.mxu0 0
      %506 = vmatpush2.bf16.msra.mxu0 0
      %507 = vmatprep.subr.bf16.mxu0 0
      %508 = vmatpush2.bf16.msra.mxu0 0
      %509 = vmatprep.subr.bf16.mxu0 0
      %510 = vmatpush2.bf16.msra.mxu0 0
      %511 = vmatprep.subr.bf16.mxu0 0
      %512 = vmatpush2.bf16.msra.mxu0 0
      %513 = vmatprep.subr.bf16.mxu0 0
      %514 = vmatpush2.bf16.msra.mxu0 0
      %515 = vmatprep.mubr.bf16.mxu0 0
      %516 = vmatmul.mubr.bf16.gmra.mxu0 %v469
      %v517 = vpop.f32.mrf.mxu0
      %v518 = vadd.f32 %v459, %v517
      %v519 = vpop.f32.mrf.mxu0
      %v520 = vpop.f32.mrf.mxu0
      %v521 = vadd.f32 %v459, %v520
      %v522 = vpop.f32.mrf.mxu0
      %523 = vmatprep.mubr.bf16.mxu0 0
      %524 = vmatmul.mubr.bf16.gmra.mxu0 %v472
      %v525 = vpop.f32.mrf.mxu0
      %v526 = vadd.f32 %v459, %v525
      %v527 = vpop.f32.mrf.mxu0
      %v528 = vpop.f32.mrf.mxu0
      %v529 = vadd.f32 %v459, %v528
      %v530 = vpop.f32.mrf.mxu0
      %531 = vmatprep.mubr.bf16.mxu0 0
      %532 = vmatmul.mubr.bf16.gmra.mxu0 %v475
      %v533 = vpop.f32.mrf.mxu0
      %v534 = vadd.f32 %v459, %v533
      %v535 = vpop.f32.mrf.mxu0
      %v536 = vpop.f32.mrf.mxu0
      %v537 = vadd.f32 %v459, %v536
      %v538 = vpop.f32.mrf.mxu0
      %539 = vmatprep.mubr.bf16.mxu0 0
      %540 = vmatmul.mubr.bf16.gmra.mxu0 %v478
      %v541 = vpop.f32.mrf.mxu0
      %v542 = vadd.f32 %v459, %v541
      %v543 = vpop.f32.mrf.mxu0
      %v544 = vpop.f32.mrf.mxu0
      %v545 = vadd.f32 %v459, %v544
      %v546 = vpop.f32.mrf.mxu0
      %547 = vmatprep.mubr.bf16.mxu0 0
      %548 = vmatmul.mubr.bf16.gmra.mxu0 %v481
      %v549 = vpop.f32.mrf.mxu0
      %v550 = vadd.f32 %v459, %v549
      %v551 = vpop.f32.mrf.mxu0
      %v552 = vpop.f32.mrf.mxu0
      %v553 = vadd.f32 %v459, %v552
      %v554 = vpop.f32.mrf.mxu0
      %555 = vdwg.mxu0
      %p556 = scmp.gt.s32.totalorder %s23, 0
      %s557 = scalar_select %p556, 1, 0
      %v558 = vstv %s557
      %vm559 = vcmp.eq.s32.totalorder %v558, 1
      %p560 = scmp.lt.s32.totalorder %s23, 0
      %s561 = scalar_select %p560, 1, 0
      %v562 = vstv %s561
      %vm563 = vcmp.eq.s32.totalorder %v562, 1
      %v564 = vsel %vm559, 1, 0
      %v565 = vsel %vm563, 1, 0
      %vm566 = vcmp.eq.s32.totalorder %v564, 1
      %vm567 = vcmp.eq.s32.totalorder %v565, 1
      %v568 = vsel %vm566, %v518, 0.0
      %v569 = vsel 1, %v521, 0.0
      %v570 = vsel 1, %v526, 0.0
      %v571 = vsel 1, %v529, 0.0
      %v572 = vsel 1, %v534, 0.0
      %v573 = vsel 1, %v537, 0.0
      %v574 = vsel 1, %v542, 0.0
      %v575 = vsel 1, %v545, 0.0
      %v576 = vsel 1, %v550, 0.0
      %v577 = vsel %vm567, %v553, 0.0
      %v588 = vrot.slane %v568, 7
      %v589 = vrot.slane %v569, 7
      %v590 = vrot.slane %v570, 7
      %v591 = vrot.slane %v571, 7
      %v592 = vrot.slane %v572, 7
      %v593 = vrot.slane %v573, 7
      %v594 = vrot.slane %v574, 7
      %v595 = vrot.slane %v575, 7
      %v596 = vrot.slane %v576, 7
      %v597 = vrot.slane %v577, 7
      %vm608 = vcmask 1040384
      %v609 = vsel %vm608, 0.0, %v588
      %v610 = vsel %vm608, 0.0, %v589
      %v611 = vsel %vm608, 0.0, %v590
      %v612 = vsel %vm608, 0.0, %v591
      %v613 = vsel %vm608, 0.0, %v592
      %v614 = vsel %vm608, 0.0, %v593
      %v615 = vsel %vm608, 0.0, %v594
      %v616 = vsel %vm608, 0.0, %v595
      %v617 = vsel %vm608, 0.0, %v596
      %v618 = vsel %vm608, 0.0, %v597
      %v619 = vsel %vm608, %v588, 0.0
      %v620 = vsel %vm608, %v589, 0.0
      %v621 = vsel %vm608, %v590, 0.0
      %v622 = vsel %vm608, %v591, 0.0
      %v623 = vsel %vm608, %v592, 0.0
      %v624 = vsel %vm608, %v593, 0.0
      %v625 = vsel %vm608, %v594, 0.0
      %v626 = vsel %vm608, %v595, 0.0
      %v627 = vsel %vm608, %v596, 0.0
      %v628 = vsel %vm608, %v597, 0.0
      %vm629 = vcmask 261120
      %630 = vst.msk [vmem:[#allocation2] sm:$0xff] %vm629, %v609
      %631 = vst.msk [vmem:[#allocation2 + $0x18] sm:$0xff] %vm629, %v610
      %632 = vst.msk [vmem:[#allocation2 + $0x30] sm:$0xff] %vm629, %v611
      %633 = vst.msk [vmem:[#allocation2 + $0x48] sm:$0xff] %vm629, %v612
      %634 = vst.msk [vmem:[#allocation2 + $0x60] sm:$0xff] %vm629, %v613
      %635 = vst.msk [vmem:[#allocation2 + $0x78] sm:$0xff] %vm629, %v614
      %636 = vst.msk [vmem:[#allocation2 + $0x90] sm:$0xff] %vm629, %v615
      %637 = vst.msk [vmem:[#allocation2 + $0xa8] sm:$0xff] %vm629, %v616
      %vm654 = vcmask 1046528
      %v655 = vrot.slane %v609, 1
      %v656 = vrot.slane %v619, 1
      %v657 = vsel %vm654, %v655, %v656
      %v658 = vrot.slane %v610, 1
      %v659 = vrot.slane %v620, 1
      %v660 = vsel %vm654, %v658, %v659
      %v661 = vrot.slane %v611, 1
      %v662 = vrot.slane %v621, 1
      %v663 = vsel %vm654, %v661, %v662
      %v664 = vrot.slane %v612, 1
      %v665 = vrot.slane %v622, 1
      %v666 = vsel %vm654, %v664, %v665
      %v667 = vrot.slane %v613, 1
      %v668 = vrot.slane %v623, 1
      %v669 = vsel %vm654, %v667, %v668
      %v670 = vrot.slane %v614, 1
      %v671 = vrot.slane %v624, 1
      %v672 = vsel %vm654, %v670, %v671
      %v673 = vrot.slane %v615, 1
      %v674 = vrot.slane %v625, 1
      %v675 = vsel %vm654, %v673, %v674
      %v676 = vrot.slane %v616, 1
      %v677 = vrot.slane %v626, 1
      %v678 = vsel %vm654, %v676, %v677
      %679 = vrot.lane.b32.xlu0 %v657, 32
      %v680 = vpop.permute.xlu0 %679
      %681 = vrot.lane.b32.xlu0 %v660, 32
      %v682 = vpop.permute.xlu0 %681
      %683 = vrot.lane.b32.xlu0 %v663, 32
      %v684 = vpop.permute.xlu0 %683
      %685 = vrot.lane.b32.xlu0 %v666, 32
      %v686 = vpop.permute.xlu0 %685
      %687 = vrot.lane.b32.xlu0 %v669, 32
      %v688 = vpop.permute.xlu0 %687
      %689 = vrot.lane.b32.xlu0 %v672, 32
      %v690 = vpop.permute.xlu0 %689
      %691 = vrot.lane.b32.xlu0 %v675, 32
      %v692 = vpop.permute.xlu0 %691
      %693 = vrot.lane.b32.xlu0 %v678, 32
      %v694 = vpop.permute.xlu0 %693
      %vm703 = vcmask 523520
      %704 = vst.msk [vmem:[#allocation2] sm:$0xff] %vm703, %v680
      %705 = vst.msk [vmem:[#allocation2 + $0x18] sm:$0xff] %vm703, %v682
      %706 = vst.msk [vmem:[#allocation2 + $0x30] sm:$0xff] %vm703, %v684
      %707 = vst.msk [vmem:[#allocation2 + $0x48] sm:$0xff] %vm703, %v686
      %708 = vst.msk [vmem:[#allocation2 + $0x60] sm:$0xff] %vm703, %v688
      %709 = vst.msk [vmem:[#allocation2 + $0x78] sm:$0xff] %vm703, %v690
      %710 = vst.msk [vmem:[#allocation2 + $0x90] sm:$0xff] %vm703, %v692
      %711 = vst.msk [vmem:[#allocation2 + $0xa8] sm:$0xff] %vm703, %v694
      %vm712 = vcmask 1045504
      %v713 = vrot.slane %v609, 2
      %v714 = vrot.slane %v619, 2
      %v715 = vsel %vm712, %v713, %v714
      %v716 = vrot.slane %v610, 2
      %v717 = vrot.slane %v620, 2
      %v718 = vsel %vm712, %v716, %v717
      %v719 = vrot.slane %v611, 2
      %v720 = vrot.slane %v621, 2
      %v721 = vsel %vm712, %v719, %v720
      %v722 = vrot.slane %v612, 2
      %v723 = vrot.slane %v622, 2
      %v724 = vsel %vm712, %v722, %v723
      %v725 = vrot.slane %v613, 2
      %v726 = vrot.slane %v623, 2
      %v727 = vsel %vm712, %v725, %v726
      %v728 = vrot.slane %v614, 2
      %v729 = vrot.slane %v624, 2
      %v730 = vsel %vm712, %v728, %v729
      %v731 = vrot.slane %v615, 2
      %v732 = vrot.slane %v625, 2
      %v733 = vsel %vm712, %v731, %v732
      %v734 = vrot.slane %v616, 2
      %v735 = vrot.slane %v626, 2
      %v736 = vsel %vm712, %v734, %v735
      %737 = vrot.lane.b32.xlu0 %v715, 64
      %v738 = vpop.permute.xlu0 %737
      %739 = vrot.lane.b32.xlu0 %v718, 64
      %v740 = vpop.permute.xlu0 %739
      %741 = vrot.lane.b32.xlu0 %v721, 64
      %v742 = vpop.permute.xlu0 %741
      %743 = vrot.lane.b32.xlu0 %v724, 64
      %v744 = vpop.permute.xlu0 %743
      %745 = vrot.lane.b32.xlu0 %v727, 64
      %v746 = vpop.permute.xlu0 %745
      %747 = vrot.lane.b32.xlu0 %v730, 64
      %v748 = vpop.permute.xlu0 %747
      %749 = vrot.lane.b32.xlu0 %v733, 64
      %v750 = vpop.permute.xlu0 %749
      %751 = vrot.lane.b32.xlu0 %v736, 64
      %v752 = vpop.permute.xlu0 %751
      %vm761 = vcmask 785920
      %762 = vst.msk [vmem:[#allocation2] sm:$0xff] %vm761, %v738
      %763 = vst.msk [vmem:[#allocation2 + $0x18] sm:$0xff] %vm761, %v740
      %764 = vst.msk [vmem:[#allocation2 + $0x30] sm:$0xff] %vm761, %v742
      %765 = vst.msk [vmem:[#allocation2 + $0x48] sm:$0xff] %vm761, %v744
      %766 = vst.msk [vmem:[#allocation2 + $0x60] sm:$0xff] %vm761, %v746
      %767 = vst.msk [vmem:[#allocation2 + $0x78] sm:$0xff] %vm761, %v748
      %768 = vst.msk [vmem:[#allocation2 + $0x90] sm:$0xff] %vm761, %v750
      %769 = vst.msk [vmem:[#allocation2 + $0xa8] sm:$0xff] %vm761, %v752
      %771 = vrot.lane.b32.xlu0 %v610, 96
      %v772 = vpop.permute.xlu0 %771
      %773 = vrot.lane.b32.xlu0 %v611, 96
      %v774 = vpop.permute.xlu0 %773
      %775 = vrot.lane.b32.xlu0 %v612, 96
      %v776 = vpop.permute.xlu0 %775
      %777 = vrot.lane.b32.xlu0 %v613, 96
      %v778 = vpop.permute.xlu0 %777
      %779 = vrot.lane.b32.xlu0 %v614, 96
      %v780 = vpop.permute.xlu0 %779
      %781 = vrot.lane.b32.xlu0 %v615, 96
      %v782 = vpop.permute.xlu0 %781
      %783 = vrot.lane.b32.xlu0 %v616, 96
      %v784 = vpop.permute.xlu0 %783
      %785 = vrot.lane.b32.xlu0 %v617, 96
      %v786 = vpop.permute.xlu0 %785
      %vm795 = vcmask 1048320
      %796 = vst.msk [vmem:[#allocation2] sm:$0xff] %vm795, %v772
      %797 = vst.msk [vmem:[#allocation2 + $0x18] sm:$0xff] %vm795, %v774
      %798 = vst.msk [vmem:[#allocation2 + $0x30] sm:$0xff] %vm795, %v776
      %799 = vst.msk [vmem:[#allocation2 + $0x48] sm:$0xff] %vm795, %v778
      %800 = vst.msk [vmem:[#allocation2 + $0x60] sm:$0xff] %vm795, %v780
      %801 = vst.msk [vmem:[#allocation2 + $0x78] sm:$0xff] %vm795, %v782
      %802 = vst.msk [vmem:[#allocation2 + $0x90] sm:$0xff] %vm795, %v784
      %803 = vst.msk [vmem:[#allocation2 + $0xa8] sm:$0xff] %vm795, %v786
      %v805 = vrot.slane %v617, 1
      %v806 = vrot.slane %v627, 1
      %v807 = vsel %vm654, %v805, %v806
      %816 = vst.msk [vmem:[#allocation2 + $0x8] sm:$0xff] %vm629, %v660
      %817 = vst.msk [vmem:[#allocation2 + $0x20] sm:$0xff] %vm629, %v663
      %818 = vst.msk [vmem:[#allocation2 + $0x38] sm:$0xff] %vm629, %v666
      %819 = vst.msk [vmem:[#allocation2 + $0x50] sm:$0xff] %vm629, %v669
      %820 = vst.msk [vmem:[#allocation2 + $0x68] sm:$0xff] %vm629, %v672
      %821 = vst.msk [vmem:[#allocation2 + $0x80] sm:$0xff] %vm629, %v675
      %822 = vst.msk [vmem:[#allocation2 + $0x98] sm:$0xff] %vm629, %v678
      %823 = vst.msk [vmem:[#allocation2 + $0xb0] sm:$0xff] %vm629, %v807
      %v824 = vrot.slane %v617, 2
      %v825 = vrot.slane %v627, 2
      %v826 = vsel %vm712, %v824, %v825
      %827 = vrot.lane.b32.xlu0 %v718, 32
      %v828 = vpop.permute.xlu0 %827
      %829 = vrot.lane.b32.xlu0 %v721, 32
      %v830 = vpop.permute.xlu0 %829
      %831 = vrot.lane.b32.xlu0 %v724, 32
      %v832 = vpop.permute.xlu0 %831
      %833 = vrot.lane.b32.xlu0 %v727, 32
      %v834 = vpop.permute.xlu0 %833
      %835 = vrot.lane.b32.xlu0 %v730, 32
      %v836 = vpop.permute.xlu0 %835
      %837 = vrot.lane.b32.xlu0 %v733, 32
      %v838 = vpop.permute.xlu0 %837
      %839 = vrot.lane.b32.xlu0 %v736, 32
      %v840 = vpop.permute.xlu0 %839
      %841 = vrot.lane.b32.xlu0 %v826, 32
      %v842 = vpop.permute.xlu0 %841
      %851 = vst.msk [vmem:[#allocation2 + $0x8] sm:$0xff] %vm703, %v828
      %852 = vst.msk [vmem:[#allocation2 + $0x20] sm:$0xff] %vm703, %v830
      %853 = vst.msk [vmem:[#allocation2 + $0x38] sm:$0xff] %vm703, %v832
      %854 = vst.msk [vmem:[#allocation2 + $0x50] sm:$0xff] %vm703, %v834
      %855 = vst.msk [vmem:[#allocation2 + $0x68] sm:$0xff] %vm703, %v836
      %856 = vst.msk [vmem:[#allocation2 + $0x80] sm:$0xff] %vm703, %v838
      %857 = vst.msk [vmem:[#allocation2 + $0x98] sm:$0xff] %vm703, %v840
      %858 = vst.msk [vmem:[#allocation2 + $0xb0] sm:$0xff] %vm703, %v842
      %860 = vrot.lane.b32.xlu0 %v611, 64
      %v861 = vpop.permute.xlu0 %860
      %862 = vrot.lane.b32.xlu0 %v612, 64
      %v863 = vpop.permute.xlu0 %862
      %864 = vrot.lane.b32.xlu0 %v613, 64
      %v865 = vpop.permute.xlu0 %864
      %866 = vrot.lane.b32.xlu0 %v614, 64
      %v867 = vpop.permute.xlu0 %866
      %868 = vrot.lane.b32.xlu0 %v615, 64
      %v869 = vpop.permute.xlu0 %868
      %870 = vrot.lane.b32.xlu0 %v616, 64
      %v871 = vpop.permute.xlu0 %870
      %872 = vrot.lane.b32.xlu0 %v617, 64
      %v873 = vpop.permute.xlu0 %872
      %874 = vrot.lane.b32.xlu0 %v618, 64
      %v875 = vpop.permute.xlu0 %874
      %884 = vst.msk [vmem:[#allocation2 + $0x8] sm:$0xff] %vm761, %v861
      %885 = vst.msk [vmem:[#allocation2 + $0x20] sm:$0xff] %vm761, %v863
      %886 = vst.msk [vmem:[#allocation2 + $0x38] sm:$0xff] %vm761, %v865
      %887 = vst.msk [vmem:[#allocation2 + $0x50] sm:$0xff] %vm761, %v867
      %888 = vst.msk [vmem:[#allocation2 + $0x68] sm:$0xff] %vm761, %v869
      %889 = vst.msk [vmem:[#allocation2 + $0x80] sm:$0xff] %vm761, %v871
      %890 = vst.msk [vmem:[#allocation2 + $0x98] sm:$0xff] %vm761, %v873
      %891 = vst.msk [vmem:[#allocation2 + $0xb0] sm:$0xff] %vm761, %v875
      %v893 = vrot.slane %v618, 1
      %v894 = vrot.slane %v628, 1
      %v895 = vsel %vm654, %v893, %v894
      %896 = vrot.lane.b32.xlu0 %v663, 96
      %v897 = vpop.permute.xlu0 %896
      %898 = vrot.lane.b32.xlu0 %v666, 96
      %v899 = vpop.permute.xlu0 %898
      %900 = vrot.lane.b32.xlu0 %v669, 96
      %v901 = vpop.permute.xlu0 %900
      %902 = vrot.lane.b32.xlu0 %v672, 96
      %v903 = vpop.permute.xlu0 %902
      %904 = vrot.lane.b32.xlu0 %v675, 96
      %v905 = vpop.permute.xlu0 %904
      %906 = vrot.lane.b32.xlu0 %v678, 96
      %v907 = vpop.permute.xlu0 %906
      %908 = vrot.lane.b32.xlu0 %v807, 96
      %v909 = vpop.permute.xlu0 %908
      %910 = vrot.lane.b32.xlu0 %v895, 96
      %v911 = vpop.permute.xlu0 %910
      %920 = vst.msk [vmem:[#allocation2 + $0x8] sm:$0xff] %vm795, %v897
      %921 = vst.msk [vmem:[#allocation2 + $0x20] sm:$0xff] %vm795, %v899
      %922 = vst.msk [vmem:[#allocation2 + $0x38] sm:$0xff] %vm795, %v901
      %923 = vst.msk [vmem:[#allocation2 + $0x50] sm:$0xff] %vm795, %v903
      %924 = vst.msk [vmem:[#allocation2 + $0x68] sm:$0xff] %vm795, %v905
      %925 = vst.msk [vmem:[#allocation2 + $0x80] sm:$0xff] %vm795, %v907
      %926 = vst.msk [vmem:[#allocation2 + $0x98] sm:$0xff] %vm795, %v909
      %927 = vst.msk [vmem:[#allocation2 + $0xb0] sm:$0xff] %vm795, %v911
      %v928 = vrot.slane %v618, 2
      %v929 = vrot.slane %v628, 2
      %v930 = vsel %vm712, %v928, %v929
      %939 = vst.msk [vmem:[#allocation2 + $0x10] sm:$0xff] %vm629, %v721
      %940 = vst.msk [vmem:[#allocation2 + $0x28] sm:$0xff] %vm629, %v724
      %941 = vst.msk [vmem:[#allocation2 + $0x40] sm:$0xff] %vm629, %v727
      %942 = vst.msk [vmem:[#allocation2 + $0x58] sm:$0xff] %vm629, %v730
      %943 = vst.msk [vmem:[#allocation2 + $0x70] sm:$0xff] %vm629, %v733
      %944 = vst.msk [vmem:[#allocation2 + $0x88] sm:$0xff] %vm629, %v736
      %945 = vst.msk [vmem:[#allocation2 + $0xa0] sm:$0xff] %vm629, %v826
      %946 = vst.msk [vmem:[#allocation2 + $0xb8] sm:$0xff] %vm629, %v930
      %v947 = vld [vmem:[#allocation2] sm:$0xff]
      %v948 = vld [vmem:[#allocation2 + $0x8] sm:$0xff]
      %v949 = vld [vmem:[#allocation2 + $0x10] sm:$0xff]
      %v950 = vld [vmem:[#allocation2 + $0x18] sm:$0xff]
      %v951 = vld [vmem:[#allocation2 + $0x20] sm:$0xff]
      %v952 = vld [vmem:[#allocation2 + $0x28] sm:$0xff]
      %v953 = vld [vmem:[#allocation2 + $0x30] sm:$0xff]
      %v954 = vld [vmem:[#allocation2 + $0x38] sm:$0xff]
      %v955 = vld [vmem:[#allocation2 + $0x40] sm:$0xff]
      %v956 = vld [vmem:[#allocation2 + $0x48] sm:$0xff]
      %v957 = vld [vmem:[#allocation2 + $0x50] sm:$0xff]
      %v958 = vld [vmem:[#allocation2 + $0x58] sm:$0xff]
      %v959 = vld [vmem:[#allocation2 + $0x60] sm:$0xff]
      %v960 = vld [vmem:[#allocation2 + $0x68] sm:$0xff]
      %v961 = vld [vmem:[#allocation2 + $0x70] sm:$0xff]
      %v962 = vld [vmem:[#allocation2 + $0x78] sm:$0xff]
      %v963 = vld [vmem:[#allocation2 + $0x80] sm:$0xff]
      %v964 = vld [vmem:[#allocation2 + $0x88] sm:$0xff]
      %v965 = vld [vmem:[#allocation2 + $0x90] sm:$0xff]
      %v966 = vld [vmem:[#allocation2 + $0x98] sm:$0xff]
      %v967 = vld [vmem:[#allocation2 + $0xa0] sm:$0xff]
      %v968 = vld [vmem:[#allocation2 + $0xa8] sm:$0xff]
      %v969 = vld [vmem:[#allocation2 + $0xb0] sm:$0xff]
      %v970 = vld [vmem:[#allocation2 + $0xb8] sm:$0xff]
      %v971 = vpack.c.bf16 %v950, %v947
      %v972 = vpack.c.bf16 %v951, %v948
      %v973 = vpack.c.bf16 %v952, %v949
      %v974 = vpack.c.bf16 %v956, %v953
      %v975 = vpack.c.bf16 %v957, %v954
      %v976 = vpack.c.bf16 %v958, %v955
      %v977 = vpack.c.bf16 %v962, %v959
      %v978 = vpack.c.bf16 %v963, %v960
      %v979 = vpack.c.bf16 %v964, %v961
      %v980 = vpack.c.bf16 %v968, %v965
      %v981 = vpack.c.bf16 %v969, %v966
      %v982 = vpack.c.bf16 %v970, %v967
      %v983 = vld [vmem:[%s5] sm:$0xf]
      %v984 = vld [vmem:[%s5 + $0x4] sm:$0xf]
      %v985 = vld [vmem:[%s5 + $0x8] sm:$0xf]
      %v986 = vld [vmem:[%s5 + $0xc] sm:$0xf]
      %v987 = vld [vmem:[%s5 + $0x10] sm:$0xf]
      %v988 = vld [vmem:[%s5 + $0x14] sm:$0xf]
      %v989 = vld [vmem:[%s5 + $0x18] sm:$0xf]
      %v990 = vld [vmem:[%s5 + $0x1c] sm:$0xf]
      %v991 = vld [vmem:[%s5 + $0x20] sm:$0xf]
      %v992 = vld [vmem:[%s5 + $0x24] sm:$0xf]
      %v993 = vld [vmem:[%s5 + $0x28] sm:$0xf]
      %v994 = vld [vmem:[%s5 + $0x2c] sm:$0xf]
      %v995 = vld [vmem:[%s5 + $0x30] sm:$0xf]
      %v996 = vld [vmem:[%s5 + $0x34] sm:$0xf]
      %v997 = vld [vmem:[%s5 + $0x38] sm:$0xf]
      %v998 = vld [vmem:[%s5 + $0x3c] sm:$0xf]
      %v999 = vld [vmem:[%s5 + $0x40] sm:$0xf]
      %v1000 = vld [vmem:[%s5 + $0x44] sm:$0xf]
      %v1001 = vld [vmem:[%s5 + $0x48] sm:$0xf]
      %v1002 = vld [vmem:[%s5 + $0x4c] sm:$0xf]
      %v1003 = vld [vmem:[%s5 + $0x50] sm:$0xf]
      %v1004 = vld [vmem:[%s5 + $0x54] sm:$0xf]
      %v1005 = vld [vmem:[%s5 + $0x58] sm:$0xf]
      %v1006 = vld [vmem:[%s5 + $0x5c] sm:$0xf]
      %v1007 = vld [vmem:[%s5 + $0x60] sm:$0xf]
      %v1008 = vld [vmem:[%s5 + $0x64] sm:$0xf]
      %v1009 = vld [vmem:[%s5 + $0x68] sm:$0xf]
      %v1010 = vld [vmem:[%s5 + $0x6c] sm:$0xf]
      %v1011 = vld [vmem:[%s5 + $0x70] sm:$0xf]
      %v1012 = vld [vmem:[%s5 + $0x74] sm:$0xf]
      %v1013 = vld [vmem:[%s5 + $0x78] sm:$0xf]
      %v1014 = vld [vmem:[%s5 + $0x7c] sm:$0xf]
      %v1015 = vld [vmem:[%s5 + $0x80] sm:$0xf]
      %v1016 = vld [vmem:[%s5 + $0x84] sm:$0xf]
      %v1017 = vld [vmem:[%s5 + $0x88] sm:$0xf]
      %v1018 = vld [vmem:[%s5 + $0x8c] sm:$0xf]
      %v1019 = vld [vmem:[%s6] sm:$0x1]
      %v1021 = vlaneseq
      %v1022 = vshrl.u32 %v1021, 7
      %v1023 = vsub.s32 0, %v1022
      %v1024 = vrot.slane %v1019, %v1023
      %v1062 = vunpack.c.l.b16 %v983
      %v1063 = vunpack.c.l.b16 %v984
      %v1064 = vunpack.c.l.b16 %v985
      %v1065 = vunpack.c.l.b16 %v986
      %v1066 = vunpack.c.l.b16 %v987
      %v1067 = vunpack.c.l.b16 %v988
      %v1068 = vunpack.c.l.b16 %v989
      %v1069 = vunpack.c.l.b16 %v990
      %v1070 = vunpack.c.l.b16 %v991
      %v1071 = vunpack.c.l.b16 %v992
      %v1072 = vunpack.c.l.b16 %v993
      %v1073 = vunpack.c.l.b16 %v994
      %v1074 = vunpack.c.l.b16 %v995
      %v1075 = vunpack.c.l.b16 %v996
      %v1076 = vunpack.c.l.b16 %v997
      %v1077 = vunpack.c.l.b16 %v998
      %v1078 = vunpack.c.l.b16 %v999
      %v1079 = vunpack.c.l.b16 %v1000
      %v1080 = vunpack.c.l.b16 %v1001
      %v1081 = vunpack.c.l.b16 %v1002
      %v1082 = vunpack.c.l.b16 %v1003
      %v1083 = vunpack.c.l.b16 %v1004
      %v1084 = vunpack.c.l.b16 %v1005
      %v1085 = vunpack.c.l.b16 %v1006
      %v1086 = vunpack.c.l.b16 %v1007
      %v1087 = vunpack.c.l.b16 %v1008
      %v1088 = vunpack.c.l.b16 %v1009
      %v1089 = vunpack.c.l.b16 %v1010
      %v1090 = vunpack.c.l.b16 %v1011
      %v1091 = vunpack.c.l.b16 %v1012
      %v1092 = vunpack.c.l.b16 %v1013
      %v1093 = vunpack.c.l.b16 %v1014
      %v1094 = vunpack.c.l.b16 %v1015
      %v1095 = vunpack.c.l.b16 %v1016
      %v1096 = vunpack.c.l.b16 %v1017
      %v1097 = vunpack.c.l.b16 %v1018
      %v1098 = vpack.c.b16 %v1063, %v1062
      %v1099 = vpack.c.b16 %v1065, %v1064
      %v1100 = vpack.c.b16 %v1067, %v1066
      %v1101 = vpack.c.b16 %v1069, %v1068
      %v1102 = vpack.c.b16 %v1071, %v1070
      %v1103 = vpack.c.b16 %v1073, %v1072
      %v1104 = vpack.c.b16 %v1075, %v1074
      %v1105 = vpack.c.b16 %v1077, %v1076
      %v1106 = vpack.c.b16 %v1079, %v1078
      %v1107 = vpack.c.b16 %v1081, %v1080
      %v1108 = vpack.c.b16 %v1083, %v1082
      %v1109 = vpack.c.b16 %v1085, %v1084
      %v1110 = vpack.c.b16 %v1087, %v1086
      %v1111 = vpack.c.b16 %v1089, %v1088
      %v1112 = vpack.c.b16 %v1091, %v1090
      %v1113 = vpack.c.b16 %v1093, %v1092
      %v1114 = vpack.c.b16 %v1095, %v1094
      %v1115 = vpack.c.b16 %v1097, %v1096
      %v1135 = vsel %vm629, %v973, 0
      %v1138 = vsel %vm629, %v976, 0
      %v1141 = vsel %vm629, %v979, 0
      %v1144 = vsel %vm629, %v982, 0
      %1146 = vmatprep.subr.bf16.mxu0 0
      %1147 = vmatpush1.bf16.msra.mxu0 %v1105
      %1148 = vmatprep.subr.bf16.mxu0 0
      %1149 = vmatpush1.bf16.msra.mxu0 %v1104
      %1150 = vmatprep.subr.bf16.mxu0 0
      %1151 = vmatpush1.bf16.msra.mxu0 %v1103
      %1152 = vmatprep.subr.bf16.mxu0 0
      %1153 = vmatpush1.bf16.msra.mxu0 %v1102
      %1154 = vmatprep.subr.bf16.mxu0 0
      %1155 = vmatpush1.bf16.msra.mxu0 %v1101
      %1156 = vmatprep.subr.bf16.mxu0 0
      %1157 = vmatpush1.bf16.msra.mxu0 %v1100
      %1158 = vmatprep.subr.bf16.mxu0 0
      %1159 = vmatpush1.bf16.msra.mxu0 %v1099
      %1160 = vmatprep.subr.bf16.mxu0 0
      %1161 = vmatpush1.bf16.msra.mxu0 %v1098
      %1162 = vmatprep.subr.bf16.mxu0 0
      %1163 = vmatpush2.bf16.msra.mxu0 %v1113
      %1164 = vmatprep.subr.bf16.mxu0 0
      %1165 = vmatpush2.bf16.msra.mxu0 %v1112
      %1166 = vmatprep.subr.bf16.mxu0 0
      %1167 = vmatpush2.bf16.msra.mxu0 %v1111
      %1168 = vmatprep.subr.bf16.mxu0 0
      %1169 = vmatpush2.bf16.msra.mxu0 %v1110
      %1170 = vmatprep.subr.bf16.mxu0 0
      %1171 = vmatpush2.bf16.msra.mxu0 %v1109
      %1172 = vmatprep.subr.bf16.mxu0 0
      %1173 = vmatpush2.bf16.msra.mxu0 %v1108
      %1174 = vmatprep.subr.bf16.mxu0 0
      %1175 = vmatpush2.bf16.msra.mxu0 %v1107
      %1176 = vmatprep.subr.bf16.mxu0 0
      %1177 = vmatpush2.bf16.msra.mxu0 %v1106
      %1178 = vmatprep.mubr.bf16.mxu0 %v972
      %1179 = vmatmul.mubr.bf16.gmra.mxu0 %v971
      %v1180 = vpop.f32.mrf.mxu0
      %v1181 = vadd.f32 %v1024, %v1180
      %v1182 = vpop.f32.mrf.mxu0
      %v1183 = vpop.f32.mrf.mxu0
      %v1184 = vadd.f32 %v1024, %v1183
      %v1185 = vpop.f32.mrf.mxu0
      %1186 = vmatprep.mubr.bf16.mxu0 %v975
      %1187 = vmatmul.mubr.bf16.gmra.mxu0 %v974
      %v1188 = vpop.f32.mrf.mxu0
      %v1189 = vadd.f32 %v1024, %v1188
      %v1190 = vpop.f32.mrf.mxu0
      %v1191 = vpop.f32.mrf.mxu0
      %v1192 = vadd.f32 %v1024, %v1191
      %v1193 = vpop.f32.mrf.mxu0
      %1194 = vmatprep.mubr.bf16.mxu0 %v978
      %1195 = vmatmul.mubr.bf16.gmra.mxu0 %v977
      %v1196 = vpop.f32.mrf.mxu0
      %v1197 = vadd.f32 %v1024, %v1196
      %v1198 = vpop.f32.mrf.mxu0
      %v1199 = vpop.f32.mrf.mxu0
      %v1200 = vadd.f32 %v1024, %v1199
      %v1201 = vpop.f32.mrf.mxu0
      %1202 = vmatprep.mubr.bf16.mxu0 %v981
      %1203 = vmatmul.mubr.bf16.gmra.mxu0 %v980
      %v1204 = vpop.f32.mrf.mxu0
      %v1205 = vadd.f32 %v1024, %v1204
      %v1206 = vpop.f32.mrf.mxu0
      %v1207 = vpop.f32.mrf.mxu0
      %v1208 = vadd.f32 %v1024, %v1207
      %v1209 = vpop.f32.mrf.mxu0
      %1210 = vdwg.mxu0
      %1211 = vmatprep.subr.bf16.mxu0 0
      %1212 = vmatpush1.bf16.msra.mxu0 0
      %1213 = vmatprep.subr.bf16.mxu0 0
      %1214 = vmatpush1.bf16.msra.mxu0 0
      %1215 = vmatprep.subr.bf16.mxu0 0
      %1216 = vmatpush1.bf16.msra.mxu0 0
      %1217 = vmatprep.subr.bf16.mxu0 0
      %1218 = vmatpush1.bf16.msra.mxu0 0
      %1219 = vmatprep.subr.bf16.mxu0 0
      %1220 = vmatpush1.bf16.msra.mxu0 0
      %1221 = vmatprep.subr.bf16.mxu0 0
      %1222 = vmatpush1.bf16.msra.mxu0 0
      %1223 = vmatprep.subr.bf16.mxu0 0
      %1224 = vmatpush1.bf16.msra.mxu0 %v1115
      %1225 = vmatprep.subr.bf16.mxu0 0
      %1226 = vmatpush1.bf16.msra.mxu0 %v1114
      %1227 = vmatprep.subr.bf16.mxu0 0
      %1228 = vmatpush2.bf16.msra.mxu0 0
      %1229 = vmatprep.subr.bf16.mxu0 0
      %1230 = vmatpush2.bf16.msra.mxu0 0
      %1231 = vmatprep.subr.bf16.mxu0 0
      %1232 = vmatpush2.bf16.msra.mxu0 0
      %1233 = vmatprep.subr.bf16.mxu0 0
      %1234 = vmatpush2.bf16.msra.mxu0 0
      %1235 = vmatprep.subr.bf16.mxu0 0
      %1236 = vmatpush2.bf16.msra.mxu0 0
      %1237 = vmatprep.subr.bf16.mxu0 0
      %1238 = vmatpush2.bf16.msra.mxu0 0
      %1239 = vmatprep.subr.bf16.mxu0 0
      %1240 = vmatpush2.bf16.msra.mxu0 0
      %1241 = vmatprep.subr.bf16.mxu0 0
      %1242 = vmatpush2.bf16.msra.mxu0 0
      %1243 = vmatprep.mubr.bf16.mxu0 0
      %1244 = vmatmul.mubr.bf16.gmra.mxu0 %v1135
      %v1245 = vpop.f32.mrf.mxu0
      %v1246 = vadd.f32 %v1181, %v1245
      %v1247 = vpop.f32.mrf.mxu0
      %v1248 = vpop.f32.mrf.mxu0
      %v1249 = vadd.f32 %v1184, %v1248
      %v1250 = vpop.f32.mrf.mxu0
      %1251 = vmatprep.mubr.bf16.mxu0 0
      %1252 = vmatmul.mubr.bf16.gmra.mxu0 %v1138
      %v1253 = vpop.f32.mrf.mxu0
      %v1254 = vadd.f32 %v1189, %v1253
      %v1255 = vpop.f32.mrf.mxu0
      %v1256 = vpop.f32.mrf.mxu0
      %v1257 = vadd.f32 %v1192, %v1256
      %v1258 = vpop.f32.mrf.mxu0
      %1259 = vmatprep.mubr.bf16.mxu0 0
      %1260 = vmatmul.mubr.bf16.gmra.mxu0 %v1141
      %v1261 = vpop.f32.mrf.mxu0
      %v1262 = vadd.f32 %v1197, %v1261
      %v1263 = vpop.f32.mrf.mxu0
      %v1264 = vpop.f32.mrf.mxu0
      %v1265 = vadd.f32 %v1200, %v1264
      %v1266 = vpop.f32.mrf.mxu0
      %1267 = vmatprep.mubr.bf16.mxu0 0
      %1268 = vmatmul.mubr.bf16.gmra.mxu0 %v1144
      %v1269 = vpop.f32.mrf.mxu0
      %v1270 = vadd.f32 %v1205, %v1269
      %v1271 = vpop.f32.mrf.mxu0
      %v1272 = vpop.f32.mrf.mxu0
      %v1273 = vadd.f32 %v1208, %v1272
      %v1274 = vpop.f32.mrf.mxu0
      %1275 = vdwg.mxu0
      %1276 = vst.msk [vmem:[%s434] sm:$0xff] %vm629, %v1246
      %1277 = vst.msk [vmem:[%s434 + $0x8] sm:$0xff] %vm629, %v1249
      %1278 = vst.msk [vmem:[%s434 + $0x10] sm:$0xff] %vm629, %v1254
      %1279 = vst.msk [vmem:[%s434 + $0x18] sm:$0xff] %vm629, %v1257
      %1280 = vst.msk [vmem:[%s434 + $0x20] sm:$0xff] %vm629, %v1262
      %1281 = vst.msk [vmem:[%s434 + $0x28] sm:$0xff] %vm629, %v1265
      %1282 = vst.msk [vmem:[%s434 + $0x30] sm:$0xff] %vm629, %v1270
      %1283 = vst.msk [vmem:[%s434 + $0x38] sm:$0xff] %vm629, %v1273
      %s1284 = smul.u32 8, %s23
      %p1285 = scmp.lt.s32.totalorder %s22, 1
      %s1286 = scalar_select %p1285, %s22, 1
      %p1287 = scmp.lt.s32.totalorder %s1284, 7
      %s1288 = scalar_select %p1287, %s1284, 7
      %s1289 = smul.addr %s1286, 8
      %s1290 = sadd.s32 %s1288, %s1289
      %s1291 = smul.addr %s1290, 8
      %s1292 = scalar_lea.vmem %s7, %s1291
      // Predicated region
      $region49: #{attention_gate_forward.4} parent=47 // pred_check
        %p1293 = pneg %p234
      $region50: #{attention_gate_forward.4} parent=47 // pred_check_branch
        %1295 = sbr.rel (%p1293) target = $region52
      $region51: #{attention_gate_forward.4} parent=47 // pred_region
        %s1296 = smul.u32 8, %s23
      $region52: #{attention_gate_forward.4} parent=47 // pred_fallthru
        _
    $region48: #{attention_gate_forward.4} parent=5 // pred_fallthru
      _
    %p1297 = scmp.le.s32.totalorder 2, %s13
    // Predicated region
    $region53: #{attention_gate_forward.4} parent=5 // pred_check
      %p1298 = pneg %p1297
    $region54: #{attention_gate_forward.4} parent=5 // pred_check_branch
      %1300 = sbr.rel (%p1298) target = $region56
    $region55: #{attention_gate_forward.4} parent=5 // pred_region
      %s1301 = ssub.s32 %s13, 2
      // Predicated region
      $region57: #{attention_gate_forward.4} parent=55 // pred_check
        %p1302 = pneg %p240
      $region58: #{attention_gate_forward.4} parent=55 // pred_check_branch
        %1304 = sbr.rel (%p1302) target = $region60
      $region59: #{attention_gate_forward.4} parent=55 // pred_region
        %s1305 = smul.u32 8, %s25
        %p1306 = scmp.lt.s32.totalorder %s24, 1
        %s1307 = scalar_select %p1306, %s24, 1
        %p1308 = scmp.lt.s32.totalorder %s1305, 7
        %s1309 = scalar_select %p1308, %s1305, 7
        %s1310 = smul.addr %s1307, 8
        %s1311 = sadd.s32 %s1309, %s1310
        %s1312 = smul.addr %s1311, 8
        %s1313 = scalar_lea.vmem %s7, %s1312
      $region60: #{attention_gate_forward.4} parent=55 // pred_fallthru
        _
    $region56: #{attention_gate_forward.4} parent=5 // pred_fallthru
      _
  $region6: #{attention_gate_forward.4} parent=0 // loop_footer
    %s17 = sadd.s32 1, %s13
  $region7: #{attention_gate_forward.4} parent=0 // loop_footer_branch
    %12 = sbr.rel target = $region3
  $region8: #{attention_gate_forward.4} parent=0 // loop_exit
    _

// kernel: attention_gate_forward.6
$region0: #{attention_gate_forward.6}
  #allocation0 [shape = 'u32[]', space=smem, size = 0x4, offset = 0x4, fixed_abs, tag = 'smem constant byte address 0x4 - core index']
  #allocation1 [shape = 'u32[144,128]{1,0:T(1,128)}', space=vmem, size = 0x12000, scoped, tag = 'internal scratch']
  #allocation2 [shape = 'f32[16,16,288]{2,1,0:T(8,128)}', space=vmem, size = 0x60000, scoped, tag = 'scratch operand']
  %s0 = inlined_call_operand.vmem [shape: f32[2,16,16,32], index: 0, kind: input, shape index: {}, may-alias: {0,1,2}]
  %s1 = inlined_call_operand.vmem [shape: f32[2,16,16,32], index: 1, kind: input, shape index: {}, may-alias: {0,1,2}]
  %s2 = inlined_call_operand.vmem [shape: f32[2,16,16,32], index: 2, kind: input, shape index: {}, may-alias: {0,1,2}]
  %s3 = inlined_call_operand.vmem [shape: f32[2,16,16,32], index: 3, kind: input, shape index: {}]
  %s4 = inlined_call_operand.vmem [shape: bf16[288,32], index: 4, kind: input, shape index: {}]
  %s5 = inlined_call_operand.vmem [shape: f32[1,32], index: 5, kind: input, shape index: {}]
  %s6 = inlined_call_operand.vmem [shape: bf16[32,16], index: 6, kind: input, shape index: {}]
  %s7 = inlined_call_operand.vmem [shape: f32[1,16], index: 7, kind: input, shape index: {}]
  %s8 = inlined_call_operand.vmem [shape: f32[512,16], index: 8, kind: output, shape index: {0}]
  %s9 = inlined_call_operand.vmem [shape: f32[2,1,16], index: 9, kind: output, shape index: {1}]
  %s10 = inlined_call_operand.vmem [shape: f32[2,1,16], index: 10, kind: output, shape index: {2}]
  %11 = xla_tuple %s8, %s9, %s10
  %s12 = sld [smem:[#allocation0]]
  $region81: #{attention_gate_forward.6} parent=0
    _
  %s14 = ssub.s32 1, %s12
  %s15 = scalar_select 0, %s14, %s12
  loop: start=0, step=1, limit=4
  $region2: #{attention_gate_forward.6} parent=0 // loop_pre_header
    _
  $region3: #{attention_gate_forward.6} parent=0 // loop_header
    %s17 = sphi 0, %s21
    %p18 = scmp.ge.s32.totalorder %s17, 4
    %s24 = sphi 0, %s36
    %s25 = sphi 0, %s32
    %s26 = sphi 0, %s24
    %s27 = sphi 0, %s25
    %s28 = sphi 0, %s26
    %s29 = sphi 0, %s27
    %s41 = sphi 0, %s43
    %s44 = sphi 0, %s41
    %s45 = sphi 0, %s44
    %s61 = sphi 0, %s45
    %s77 = sphi 0, %s79
    %s80 = sphi 0, %s77
    %s81 = sphi 0, %s80
    %s97 = sphi 0, %s81
    %s113 = sphi 0, %s115
    %s116 = sphi 0, %s113
    %s117 = sphi 0, %s116
    %s133 = sphi 0, %s117
    %s141 = sphi 0, %s143
    %s144 = sphi 0, %s141
    %s145 = sphi 0, %s144
    %s161 = sphi 0, %s145
    %s165 = sphi 0, %s165
    %s167 = sphi 0, %s165
    %s168 = sphi 0, %s167
    %s182 = sphi 0, %s168
    %s186 = sphi 0, %s186
    %s188 = sphi 0, %s186
    %s189 = sphi 0, %s188
    %s203 = sphi 0, %s189
    %s207 = sphi 0, %s207
    %s209 = sphi 0, %s207
    %s210 = sphi 0, %s209
    %s224 = sphi 0, %s210
    %s228 = sphi 0, %s228
    %s230 = sphi 0, %s228
    %s231 = sphi 0, %s230
    %s245 = sphi 0, %s231
    %s253 = sphi 0, %s255
    %s256 = sphi 0, %s253
    %s257 = sphi 0, %s256
    %s273 = sphi 0, %s257
    %s281 = sphi 0, %s283
    %s284 = sphi 0, %s281
    %s285 = sphi 0, %s284
    %s301 = sphi 0, %s285
    %s309 = sphi 0, %s311
    %s312 = sphi 0, %s309
    %s313 = sphi 0, %s312
    %s329 = sphi 0, %s313
  $region4: #{attention_gate_forward.6} parent=0 // loop_header_branch
    %20 = sbr.rel (%p18) target = $region8
  $region5: #{attention_gate_forward.6} parent=0 // loop_body
    %s22 = ssub.s32 %s17, 1
    %s23 = ssub.s32 %s17, 2
    %s30 = sadd.s32 1, %s25
    %p31 = scmp.ge.s32.totalorder %s30, 1
    %s32 = scalar_select %p31, 0, %s30
    %s33 = sadd.s32 1, %s24
    %s34 = scalar_select %p31, %s33, %s24
    %p35 = scmp.ge.s32.totalorder %s34, 2
    %s36 = scalar_select %p35, 0, %s34
    %s37 = ssub.s32 %s24, %s36
    %s38 = ssub.s32 %s25, %s32
    %s39 = sor.u32 %s37, %s38
    %p40 = scmp.eq.s32.totalorder %s39, 0
    %s42 = sadd.s32 %s41, 1
    %s43 = scalar_select %p40, %s41, %s42
    %p46 = pneg %p40
    %p47 = scmp.eq.s32.totalorder %s17, 1
    %p48 = por %p46, %p47
    %p49 = scmp.ne.s32.totalorder %s41, %s44
    %p50 = scmp.eq.s32.totalorder %s17, 0
    %p51 = por %p49, %p50
    %p52 = scmp.ne.s32.totalorder %s41, %s44
    %p53 = scmp.eq.s32.totalorder %s22, 1
    %p54 = por %p52, %p53
    %p55 = scmp.ne.s32.totalorder %s44, %s45
    %p56 = scmp.eq.s32.totalorder %s22, 0
    %p57 = por %p55, %p56
    %p58 = scmp.ne.s32.totalorder %s44, %s45
    %p59 = scmp.eq.s32.totalorder %s23, 1
    %p60 = por %p58, %p59
    %p62 = scmp.ne.s32.totalorder %s45, %s61
    %p63 = scmp.eq.s32.totalorder %s23, 0
    %p64 = por %p62, %p63
    %s65 = smul.u32 %s25, 16
    %s66 = ssub.s32 %s65, 1
    %p67 = scmp.gt.s32.totalorder %s66, 0
    %s68 = scalar_select %p67, %s66, 0
    %s69 = smul.u32 %s32, 16
    %s70 = ssub.s32 %s69, 1
    %p71 = scmp.gt.s32.totalorder %s70, 0
    %s72 = scalar_select %p71, %s70, 0
    %s73 = ssub.s32 %s24, %s36
    %s74 = ssub.s32 %s68, %s72
    %s75 = sor.u32 %s73, %s74
    %p76 = scmp.eq.s32.totalorder %s75, 0
    %s78 = sadd.s32 %s77, 1
    %s79 = scalar_select %p76, %s77, %s78
    %p82 = pneg %p76
    %p83 = scmp.eq.s32.totalorder %s17, 1
    %p84 = por %p82, %p83
    %p85 = scmp.ne.s32.totalorder %s77, %s80
    %p86 = scmp.eq.s32.totalorder %s17, 0
    %p87 = por %p85, %p86
    %p88 = scmp.ne.s32.totalorder %s77, %s80
    %p89 = scmp.eq.s32.totalorder %s22, 1
    %p90 = por %p88, %p89
    %p91 = scmp.ne.s32.totalorder %s80, %s81
    %p92 = scmp.eq.s32.totalorder %s22, 0
    %p93 = por %p91, %p92
    %p94 = scmp.ne.s32.totalorder %s80, %s81
    %p95 = scmp.eq.s32.totalorder %s23, 1
    %p96 = por %p94, %p95
    %p98 = scmp.ne.s32.totalorder %s81, %s97
    %p99 = scmp.eq.s32.totalorder %s23, 0
    %p100 = por %p98, %p99
    %s101 = smul.u32 %s25, 16
    %s102 = sadd.s32 %s101, 16
    %p103 = scmp.lt.s32.totalorder %s102, 15
    %s104 = scalar_select %p103, %s102, 15
    %s105 = smul.u32 %s32, 16
    %s106 = sadd.s32 %s105, 16
    %p107 = scmp.lt.s32.totalorder %s106, 15
    %s108 = scalar_select %p107, %s106, 15
    %s109 = ssub.s32 %s24, %s36
    %s110 = ssub.s32 %s104, %s108
    %s111 = sor.u32 %s109, %s110
    %p112 = scmp.eq.s32.totalorder %s111, 0
    %s114 = sadd.s32 %s113, 1
    %s115 = scalar_select %p112, %s113, %s114
    %p118 = pneg %p112
    %p119 = scmp.eq.s32.totalorder %s17, 1
    %p120 = por %p118, %p119
    %p121 = scmp.ne.s32.totalorder %s113, %s116
    %p122 = scmp.eq.s32.totalorder %s17, 0
    %p123 = por %p121, %p122
    %p124 = scmp.ne.s32.totalorder %s113, %s116
    %p125 = scmp.eq.s32.totalorder %s22, 1
    %p126 = por %p124, %p125
    %p127 = scmp.ne.s32.totalorder %s116, %s117
    %p128 = scmp.eq.s32.totalorder %s22, 0
    %p129 = por %p127, %p128
    %p130 = scmp.ne.s32.totalorder %s116, %s117
    %p131 = scmp.eq.s32.totalorder %s23, 1
    %p132 = por %p130, %p131
    %p134 = scmp.ne.s32.totalorder %s117, %s133
    %p135 = scmp.eq.s32.totalorder %s23, 0
    %p136 = por %p134, %p135
    %s137 = ssub.s32 %s24, %s36
    %s138 = ssub.s32 %s25, %s32
    %s139 = sor.u32 %s137, %s138
    %p140 = scmp.eq.s32.totalorder %s139, 0
    %s142 = sadd.s32 %s141, 1
    %s143 = scalar_select %p140, %s141, %s142
    %p146 = pneg %p140
    %p147 = scmp.eq.s32.totalorder %s17, 1
    %p148 = por %p146, %p147
    %p149 = scmp.ne.s32.totalorder %s141, %s144
    %p150 = scmp.eq.s32.totalorder %s17, 0
    %p151 = por %p149, %p150
    %p152 = scmp.ne.s32.totalorder %s141, %s144
    %p153 = scmp.eq.s32.totalorder %s22, 1
    %p154 = por %p152, %p153
    %p155 = scmp.ne.s32.totalorder %s144, %s145
    %p156 = scmp.eq.s32.totalorder %s22, 0
    %p157 = por %p155, %p156
    %p158 = scmp.ne.s32.totalorder %s144, %s145
    %p159 = scmp.eq.s32.totalorder %s23, 1
    %p160 = por %p158, %p159
    %p162 = scmp.ne.s32.totalorder %s145, %s161
    %p163 = scmp.eq.s32.totalorder %s23, 0
    %p164 = por %p162, %p163
    %s166 = sadd.s32 %s165, 1
    %p169 = scmp.eq.s32.totalorder %s17, 1
    %p170 = scmp.ne.s32.totalorder %s165, %s167
    %p171 = scmp.eq.s32.totalorder %s17, 0
    %p172 = por %p170, %p171
    %p173 = scmp.ne.s32.totalorder %s165, %s167
    %p174 = scmp.eq.s32.totalorder %s22, 1
    %p175 = por %p173, %p174
    %p176 = scmp.ne.s32.totalorder %s167, %s168
    %p177 = scmp.eq.s32.totalorder %s22, 0
    %p178 = por %p176, %p177
    %p179 = scmp.ne.s32.totalorder %s167, %s168
    %p180 = scmp.eq.s32.totalorder %s23, 1
    %p181 = por %p179, %p180
    %p183 = scmp.ne.s32.totalorder %s168, %s182
    %p184 = scmp.eq.s32.totalorder %s23, 0
    %p185 = por %p183, %p184
    %s187 = sadd.s32 %s186, 1
    %p190 = scmp.eq.s32.totalorder %s17, 1
    %p191 = scmp.ne.s32.totalorder %s186, %s188
    %p192 = scmp.eq.s32.totalorder %s17, 0
    %p193 = por %p191, %p192
    %p194 = scmp.ne.s32.totalorder %s186, %s188
    %p195 = scmp.eq.s32.totalorder %s22, 1
    %p196 = por %p194, %p195
    %p197 = scmp.ne.s32.totalorder %s188, %s189
    %p198 = scmp.eq.s32.totalorder %s22, 0
    %p199 = por %p197, %p198
    %p200 = scmp.ne.s32.totalorder %s188, %s189
    %p201 = scmp.eq.s32.totalorder %s23, 1
    %p202 = por %p200, %p201
    %p204 = scmp.ne.s32.totalorder %s189, %s203
    %p205 = scmp.eq.s32.totalorder %s23, 0
    %p206 = por %p204, %p205
    %s208 = sadd.s32 %s207, 1
    %p211 = scmp.eq.s32.totalorder %s17, 1
    %p212 = scmp.ne.s32.totalorder %s207, %s209
    %p213 = scmp.eq.s32.totalorder %s17, 0
    %p214 = por %p212, %p213
    %p215 = scmp.ne.s32.totalorder %s207, %s209
    %p216 = scmp.eq.s32.totalorder %s22, 1
    %p217 = por %p215, %p216
    %p218 = scmp.ne.s32.totalorder %s209, %s210
    %p219 = scmp.eq.s32.totalorder %s22, 0
    %p220 = por %p218, %p219
    %p221 = scmp.ne.s32.totalorder %s209, %s210
    %p222 = scmp.eq.s32.totalorder %s23, 1
    %p223 = por %p221, %p222
    %p225 = scmp.ne.s32.totalorder %s210, %s224
    %p226 = scmp.eq.s32.totalorder %s23, 0
    %p227 = por %p225, %p226
    %s229 = sadd.s32 %s228, 1
    %p232 = scmp.eq.s32.totalorder %s17, 1
    %p233 = scmp.ne.s32.totalorder %s228, %s230
    %p234 = scmp.eq.s32.totalorder %s17, 0
    %p235 = por %p233, %p234
    %p236 = scmp.ne.s32.totalorder %s228, %s230
    %p237 = scmp.eq.s32.totalorder %s22, 1
    %p238 = por %p236, %p237
    %p239 = scmp.ne.s32.totalorder %s230, %s231
    %p240 = scmp.eq.s32.totalorder %s22, 0
    %p241 = por %p239, %p240
    %p242 = scmp.ne.s32.totalorder %s230, %s231
    %p243 = scmp.eq.s32.totalorder %s23, 1
    %p244 = por %p242, %p243
    %p246 = scmp.ne.s32.totalorder %s231, %s245
    %p247 = scmp.eq.s32.totalorder %s23, 0
    %p248 = por %p246, %p247
    %s249 = sadd.s32 %s24, %s25
    %s250 = sadd.s32 %s36, %s32
    %s251 = ssub.s32 %s249, %s250
    %p252 = scmp.eq.s32.totalorder %s251, 0
    %s254 = sadd.s32 %s253, 1
    %s255 = scalar_select %p252, %s253, %s254
    %p258 = pneg %p252
    %p259 = scmp.eq.s32.totalorder %s17, 1
    %p260 = por %p258, %p259
    %p261 = scmp.ne.s32.totalorder %s253, %s256
    %p262 = scmp.eq.s32.totalorder %s17, 0
    %p263 = por %p261, %p262
    %p264 = scmp.ne.s32.totalorder %s253, %s256
    %p265 = scmp.eq.s32.totalorder %s22, 1
    %p266 = por %p264, %p265
    %p267 = scmp.ne.s32.totalorder %s256, %s257
    %p268 = scmp.eq.s32.totalorder %s22, 0
    %p269 = por %p267, %p268
    %p270 = scmp.ne.s32.totalorder %s256, %s257
    %p271 = scmp.eq.s32.totalorder %s23, 1
    %p272 = por %p270, %p271
    %p274 = scmp.ne.s32.totalorder %s257, %s273
    %p275 = scmp.eq.s32.totalorder %s23, 0
    %p276 = por %p274, %p275
    %s277 = sadd.s32 %s24, %s25
    %s278 = sadd.s32 %s36, %s32
    %s279 = ssub.s32 %s277, %s278
    %p280 = scmp.eq.s32.totalorder %s279, 0
    %s282 = sadd.s32 %s281, 1
    %s283 = scalar_select %p280, %s281, %s282
    %p286 = pneg %p280
    %p287 = scmp.eq.s32.totalorder %s17, 1
    %p288 = por %p286, %p287
    %p289 = scmp.ne.s32.totalorder %s281, %s284
    %p290 = scmp.eq.s32.totalorder %s17, 0
    %p291 = por %p289, %p290
    %p292 = scmp.ne.s32.totalorder %s281, %s284
    %p293 = scmp.eq.s32.totalorder %s22, 1
    %p294 = por %p292, %p293
    %p295 = scmp.ne.s32.totalorder %s284, %s285
    %p296 = scmp.eq.s32.totalorder %s22, 0
    %p297 = por %p295, %p296
    %p298 = scmp.ne.s32.totalorder %s284, %s285
    %p299 = scmp.eq.s32.totalorder %s23, 1
    %p300 = por %p298, %p299
    %p302 = scmp.ne.s32.totalorder %s285, %s301
    %p303 = scmp.eq.s32.totalorder %s23, 0
    %p304 = por %p302, %p303
    %s305 = sadd.s32 %s24, %s25
    %s306 = sadd.s32 %s36, %s32
    %s307 = ssub.s32 %s305, %s306
    %p308 = scmp.eq.s32.totalorder %s307, 0
    %s310 = sadd.s32 %s309, 1
    %s311 = scalar_select %p308, %s309, %s310
    %p314 = pneg %p308
    %p315 = scmp.eq.s32.totalorder %s17, 1
    %p316 = por %p314, %p315
    %p317 = scmp.ne.s32.totalorder %s309, %s312
    %p318 = scmp.eq.s32.totalorder %s17, 0
    %p319 = por %p317, %p318
    %p320 = scmp.ne.s32.totalorder %s309, %s312
    %p321 = scmp.eq.s32.totalorder %s22, 1
    %p322 = por %p320, %p321
    %p323 = scmp.ne.s32.totalorder %s312, %s313
    %p324 = scmp.eq.s32.totalorder %s22, 0
    %p325 = por %p323, %p324
    %p326 = scmp.ne.s32.totalorder %s312, %s313
    %p327 = scmp.eq.s32.totalorder %s23, 1
    %p328 = por %p326, %p327
    %p330 = scmp.ne.s32.totalorder %s313, %s329
    %p331 = scmp.eq.s32.totalorder %s23, 0
    %p332 = por %p330, %p331
    %p333 = scmp.le.s32.totalorder 1, %s17
    %p334 = scmp.lt.s32.totalorder %s17, 3
    %p335 = pnand %p333, %p334
    %p336 = pneg %p335
    // Predicated region
    $region9: #{attention_gate_forward.6} parent=5 // pred_check
      _
    $region10: #{attention_gate_forward.6} parent=5 // pred_check_branch
      %338 = sbr.rel (%p335) target = $region12
    $region11: #{attention_gate_forward.6} parent=5 // pred_region
      %s339 = ssub.s32 %s17, 1
      // Predicated region
      $region13: #{attention_gate_forward.6} parent=11 // pred_check
        %p340 = pneg %p178
      $region14: #{attention_gate_forward.6} parent=11 // pred_check_branch
        %342 = sbr.rel (%p340) target = $region16
      $region15: #{attention_gate_forward.6} parent=11 // pred_region
        _
      $region16: #{attention_gate_forward.6} parent=11 // pred_fallthru
        _
      // Predicated region
      $region17: #{attention_gate_forward.6} parent=11 // pred_check
        %p343 = pneg %p199
      $region18: #{attention_gate_forward.6} parent=11 // pred_check_branch
        %345 = sbr.rel (%p343) target = $region20
      $region19: #{attention_gate_forward.6} parent=11 // pred_region
        _
      $region20: #{attention_gate_forward.6} parent=11 // pred_fallthru
        _
      // Predicated region
      $region21: #{attention_gate_forward.6} parent=11 // pred_check
        %p346 = pneg %p220
      $region22: #{attention_gate_forward.6} parent=11 // pred_check_branch
        %348 = sbr.rel (%p346) target = $region24
      $region23: #{attention_gate_forward.6} parent=11 // pred_region
        _
      $region24: #{attention_gate_forward.6} parent=11 // pred_fallthru
        _
      // Predicated region
      $region25: #{attention_gate_forward.6} parent=11 // pred_check
        %p349 = pneg %p241
      $region26: #{attention_gate_forward.6} parent=11 // pred_check_branch
        %351 = sbr.rel (%p349) target = $region28
      $region27: #{attention_gate_forward.6} parent=11 // pred_region
        _
      $region28: #{attention_gate_forward.6} parent=11 // pred_fallthru
        _
    $region12: #{attention_gate_forward.6} parent=5 // pred_fallthru
      _
    %p352 = scmp.lt.s32.totalorder %s17, 2
    // Predicated region
    $region29: #{attention_gate_forward.6} parent=5 // pred_check
      %p353 = pneg %p352
    $region30: #{attention_gate_forward.6} parent=5 // pred_check_branch
      %355 = sbr.rel (%p353) target = $region32
    $region31: #{attention_gate_forward.6} parent=5 // pred_region
      // Predicated region
      $region33: #{attention_gate_forward.6} parent=31 // pred_check
        %p356 = pneg %p51
      $region34: #{attention_gate_forward.6} parent=31 // pred_check_branch
        %358 = sbr.rel (%p356) target = $region36
      $region35: #{attention_gate_forward.6} parent=31 // pred_region
        %s359 = smul.u32 16, %s25
        %p360 = scmp.lt.s32.totalorder %s24, 1
        %s361 = scalar_select %p360, %s24, 1
        %p362 = scmp.lt.s32.totalorder %s359, 15
        %s363 = scalar_select %p362, %s359, 15
        %s364 = smul.addr %s363, 2
        %s365 = smul.addr %s361, 32
        %s366 = sadd.s32 %s364, %s365
        %s367 = smul.addr %s366, 8
        %s368 = scalar_lea.vmem %s0, %s367
        %s369 = smul.u32 16, %s25
      $region36: #{attention_gate_forward.6} parent=31 // pred_fallthru
        _
      // Predicated region
      $region37: #{attention_gate_forward.6} parent=31 // pred_check
        %p370 = pneg %p87
      $region38: #{attention_gate_forward.6} parent=31 // pred_check_branch
        %372 = sbr.rel (%p370) target = $region40
      $region39: #{attention_gate_forward.6} parent=31 // pred_region
        %s373 = smul.u32 %s25, 16
        %s374 = ssub.s32 %s373, 1
        %p375 = scmp.gt.s32.totalorder %s374, 0
        %s376 = scalar_select %p375, %s374, 0
        %p377 = scmp.lt.s32.totalorder %s24, 1
        %s378 = scalar_select %p377, %s24, 1
        %p379 = scmp.lt.s32.totalorder %s376, 15
        %s380 = scalar_select %p379, %s376, 15
        %s381 = smul.addr %s380, 2
        %s382 = smul.addr %s378, 32
        %s383 = sadd.s32 %s381, %s382
        %s384 = smul.addr %s383, 8
        %s385 = scalar_lea.vmem %s1, %s384
        %s386 = smul.u32 %s25, 16
        %s387 = ssub.s32 %s386, 1
        %p388 = scmp.gt.s32.totalorder %s387, 0
        %s389 = scalar_select %p388, %s387, 0
      $region40: #{attention_gate_forward.6} parent=31 // pred_fallthru
        _
      // Predicated region
      $region41: #{attention_gate_forward.6} parent=31 // pred_check
        %p390 = pneg %p123
      $region42: #{attention_gate_forward.6} parent=31 // pred_check_branch
        %392 = sbr.rel (%p390) target = $region44
      $region43: #{attention_gate_forward.6} parent=31 // pred_region
        %s393 = smul.u32 %s25, 16
        %s394 = sadd.s32 %s393, 16
        %p395 = scmp.lt.s32.totalorder %s394, 15
        %s396 = scalar_select %p395, %s394, 15
        %p397 = scmp.lt.s32.totalorder %s24, 1
        %s398 = scalar_select %p397, %s24, 1
        %p399 = scmp.lt.s32.totalorder %s396, 15
        %s400 = scalar_select %p399, %s396, 15
        %s401 = smul.addr %s400, 2
        %s402 = smul.addr %s398, 32
        %s403 = sadd.s32 %s401, %s402
        %s404 = smul.addr %s403, 8
        %s405 = scalar_lea.vmem %s2, %s404
        %s406 = smul.u32 %s25, 16
        %s407 = sadd.s32 %s406, 16
        %p408 = scmp.lt.s32.totalorder %s407, 15
        %s409 = scalar_select %p408, %s407, 15
      $region44: #{attention_gate_forward.6} parent=31 // pred_fallthru
        _
      // Predicated region
      $region45: #{attention_gate_forward.6} parent=31 // pred_check
        %p410 = pneg %p151
      $region46: #{attention_gate_forward.6} parent=31 // pred_check_branch
        %412 = sbr.rel (%p410) target = $region48
      $region47: #{attention_gate_forward.6} parent=31 // pred_region
        %s413 = smul.u32 16, %s25
        %p414 = scmp.lt.s32.totalorder %s24, 1
        %s415 = scalar_select %p414, %s24, 1
        %p416 = scmp.lt.s32.totalorder %s413, 15
        %s417 = scalar_select %p416, %s413, 15
        %s418 = smul.addr %s417, 2
        %s419 = smul.addr %s415, 32
        %s420 = sadd.s32 %s418, %s419
        %s421 = smul.addr %s420, 8
        %s422 = scalar_lea.vmem %s3, %s421
        %s423 = smul.u32 16, %s25
      $region48: #{attention_gate_forward.6} parent=31 // pred_fallthru
        _
    $region32: #{attention_gate_forward.6} parent=5 // pred_fallthru
      _
    %p424 = scmp.le.s32.totalorder 1, %s17
    %p425 = scmp.lt.s32.totalorder %s17, 3
    %p426 = pnand %p424, %p425
    %p427 = pneg %p426
    // Predicated region
    $region49: #{attention_gate_forward.6} parent=5 // pred_check
      _
    $region50: #{attention_gate_forward.6} parent=5 // pred_check_branch
      %429 = sbr.rel (%p426) target = $region52
    $region51: #{attention_gate_forward.6} parent=5 // pred_region
      %s430 = ssub.s32 %s17, 1
      %s431 = smul.u32 16, %s27
      %p432 = scmp.lt.s32.totalorder %s26, 1
      %s433 = scalar_select %p432, %s26, 1
      %p434 = scmp.lt.s32.totalorder %s431, 15
      %s435 = scalar_select %p434, %s431, 15
      %s436 = smul.addr %s435, 2
      %s437 = smul.addr %s433, 32
      %s438 = sadd.s32 %s436, %s437
      %s439 = smul.addr %s438, 8
      %s440 = scalar_lea.vmem %s0, %s439
      %p441 = pneg %p57
      %p442 = pneg %p54
      %s443 = smul.u32 %s27, 16
      %s444 = ssub.s32 %s443, 1
      %p445 = scmp.gt.s32.totalorder %s444, 0
      %s446 = scalar_select %p445, %s444, 0
      %p447 = scmp.lt.s32.totalorder %s26, 1
      %s448 = scalar_select %p447, %s26, 1
      %p449 = scmp.lt.s32.totalorder %s446, 15
      %s450 = scalar_select %p449, %s446, 15
      %s451 = smul.addr %s450, 2
      %s452 = smul.addr %s448, 32
      %s453 = sadd.s32 %s451, %s452
      %s454 = smul.addr %s453, 8
      %s455 = scalar_lea.vmem %s1, %s454
      %p456 = pneg %p93
      %p457 = pneg %p90
      %s458 = smul.u32 %s27, 16
      %s459 = sadd.s32 %s458, 16
      %p460 = scmp.lt.s32.totalorder %s459, 15
      %s461 = scalar_select %p460, %s459, 15
      %p462 = scmp.lt.s32.totalorder %s26, 1
      %s463 = scalar_select %p462, %s26, 1
      %p464 = scmp.lt.s32.totalorder %s461, 15
      %s465 = scalar_select %p464, %s461, 15
      %s466 = smul.addr %s465, 2
      %s467 = smul.addr %s463, 32
      %s468 = sadd.s32 %s466, %s467
      %s469 = smul.addr %s468, 8
      %s470 = scalar_lea.vmem %s2, %s469
      %p471 = pneg %p129
      %p472 = pneg %p126
      %s473 = smul.u32 16, %s27
      %p474 = scmp.lt.s32.totalorder %s26, 1
      %s475 = scalar_select %p474, %s26, 1
      %p476 = scmp.lt.s32.totalorder %s473, 15
      %s477 = scalar_select %p476, %s473, 15
      %s478 = smul.addr %s477, 2
      %s479 = smul.addr %s475, 32
      %s480 = sadd.s32 %s478, %s479
      %s481 = smul.addr %s480, 8
      %s482 = scalar_lea.vmem %s3, %s481
      %p483 = pneg %p157
      %p484 = pneg %p154
      %p485 = pneg %p178
      %p486 = pneg %p175
      %p487 = pneg %p199
      %p488 = pneg %p196
      %p489 = pneg %p220
      %p490 = pneg %p217
      %p491 = pneg %p241
      %p492 = pneg %p238
      %p493 = pneg %p269
      %p494 = pneg %p266
      %s495 = sadd.s32 %s26, %s27
      %s496 = smul.u32 32, %s495
      %p497 = scmp.lt.s32.totalorder %s496, 63
      %s498 = scalar_select %p497, %s496, 63
      %s499 = smul.addr %s498, 8
      %s500 = scalar_lea.vmem %s8, %s499
      %p501 = pneg %p297
      %p502 = pneg %p294
      %s503 = sadd.s32 %s26, %s27
      %p504 = scmp.lt.s32.totalorder %s503, 1
      %s505 = scalar_select %p504, %s503, 1
      %s506 = scalar_lea.vmem %s9, %s505
      %p507 = pneg %p325
      %p508 = pneg %p322
      %s509 = sadd.s32 %s26, %s27
      %p510 = scmp.lt.s32.totalorder %s509, 1
      %s511 = scalar_select %p510, %s509, 1
      %s512 = scalar_lea.vmem %s10, %s511
      %s513 = smul.u32 16, %s27
      %p514 = scmp.lt.s32.totalorder %s26, 1
      %s515 = scalar_select %p514, %s26, 1
      %p516 = scmp.lt.s32.totalorder %s513, 15
      %s517 = scalar_select %p516, %s513, 15
      %s518 = smul.addr %s517, 2
      %s519 = smul.addr %s515, 32
      %s520 = sadd.s32 %s518, %s519
      %s521 = smul.addr %s520, 8
      %s522 = scalar_lea.vmem %s0, %s521
      %s523 = smul.u32 16, %s27
      %s524 = smul.u32 %s27, 16
      %s525 = ssub.s32 %s524, 1
      %p526 = scmp.gt.s32.totalorder %s525, 0
      %s527 = scalar_select %p526, %s525, 0
      %p528 = scmp.lt.s32.totalorder %s26, 1
      %s529 = scalar_select %p528, %s26, 1
      %p530 = scmp.lt.s32.totalorder %s527, 15
      %s531 = scalar_select %p530, %s527, 15
      %s532 = smul.addr %s531, 2
      %s533 = smul.addr %s529, 32
      %s534 = sadd.s32 %s532, %s533
      %s535 = smul.addr %s534, 8
      %s536 = scalar_lea.vmem %s1, %s535
      %s537 = smul.u32 %s27, 16
      %s538 = ssub.s32 %s537, 1
      %p539 = scmp.gt.s32.totalorder %s538, 0
      %s540 = scalar_select %p539, %s538, 0
      %s541 = smul.u32 %s27, 16
      %s542 = sadd.s32 %s541, 16
      %p543 = scmp.lt.s32.totalorder %s542, 15
      %s544 = scalar_select %p543, %s542, 15
      %p545 = scmp.lt.s32.totalorder %s26, 1
      %s546 = scalar_select %p545, %s26, 1
      %p547 = scmp.lt.s32.totalorder %s544, 15
      %s548 = scalar_select %p547, %s544, 15
      %s549 = smul.addr %s548, 2
      %s550 = smul.addr %s546, 32
      %s551 = sadd.s32 %s549, %s550
      %s552 = smul.addr %s551, 8
      %s553 = scalar_lea.vmem %s2, %s552
      %s554 = smul.u32 %s27, 16
      %s555 = sadd.s32 %s554, 16
      %p556 = scmp.lt.s32.totalorder %s555, 15
      %s557 = scalar_select %p556, %s555, 15
      %s558 = smul.u32 16, %s27
      %p559 = scmp.lt.s32.totalorder %s26, 1
      %s560 = scalar_select %p559, %s26, 1
      %p561 = scmp.lt.s32.totalorder %s558, 15
      %s562 = scalar_select %p561, %s558, 15
      %s563 = smul.addr %s562, 2
      %s564 = smul.addr %s560, 32
      %s565 = sadd.s32 %s563, %s564
      %s566 = smul.addr %s565, 8
      %s567 = scalar_lea.vmem %s3, %s566
      %s568 = smul.u32 16, %s27
      %s569 = sadd.s32 %s26, %s27
      %s570 = smul.u32 32, %s569
      %p571 = scmp.lt.s32.totalorder %s570, 63
      %s572 = scalar_select %p571, %s570, 63
      %s573 = smul.addr %s572, 8
      %s574 = scalar_lea.vmem %s8, %s573
      %s575 = sadd.s32 %s26, %s27
      %s576 = smul.u32 32, %s575
      %s577 = sadd.s32 %s26, %s27
      %p578 = scmp.lt.s32.totalorder %s577, 1
      %s579 = scalar_select %p578, %s577, 1
      %s580 = scalar_lea.vmem %s9, %s579
      %s581 = sadd.s32 %s26, %s27
      %s582 = sadd.s32 %s26, %s27
      %p583 = scmp.lt.s32.totalorder %s582, 1
      %s584 = scalar_select %p583, %s582, 1
      %s585 = scalar_lea.vmem %s10, %s584
      %s586 = sadd.s32 %s26, %s27
      %v588 = vld [vmem:[%s536] sm:$0xff]
      %v589 = vld [vmem:[%s536 + $0x8] sm:$0xff]
      %v590 = vld [vmem:[%s522] sm:$0xff]
      %v591 = vld [vmem:[%s522 + $0x8] sm:$0xff]
      %v592 = vld [vmem:[%s522 + $0x10] sm:$0xff]
      %v593 = vld [vmem:[%s522 + $0x18] sm:$0xff]
      %v594 = vld [vmem:[%s522 + $0x20] sm:$0xff]
      %v595 = vld [vmem:[%s522 + $0x28] sm:$0xff]
      %v596 = vld [vmem:[%s522 + $0x30] sm:$0xff]
      %v597 = vld [vmem:[%s522 + $0x38] sm:$0xff]
      %v598 = vld [vmem:[%s522 + $0x40] sm:$0xff]
      %v599 = vld [vmem:[%s522 + $0x48] sm:$0xff]
      %v600 = vld [vmem:[%s522 + $0x50] sm:$0xff]
      %v601 = vld [vmem:[%s522 + $0x58] sm:$0xff]
      %v602 = vld [vmem:[%s522 + $0x60] sm:$0xff]
      %v603 = vld [vmem:[%s522 + $0x68] sm:$0xff]
      %v604 = vld [vmem:[%s522 + $0x70] sm:$0xff]
      %v605 = vld [vmem:[%s522 + $0x78] sm:$0xff]
      %v606 = vld [vmem:[%s522 + $0x80] sm:$0xff]
      %v607 = vld [vmem:[%s522 + $0x88] sm:$0xff]
      %v608 = vld [vmem:[%s522 + $0x90] sm:$0xff]
      %v609 = vld [vmem:[%s522 + $0x98] sm:$0xff]
      %v610 = vld [vmem:[%s522 + $0xa0] sm:$0xff]
      %v611 = vld [vmem:[%s522 + $0xa8] sm:$0xff]
      %v612 = vld [vmem:[%s522 + $0xb0] sm:$0xff]
      %v613 = vld [vmem:[%s522 + $0xb8] sm:$0xff]
      %v614 = vld [vmem:[%s522 + $0xc0] sm:$0xff]
      %v615 = vld [vmem:[%s522 + $0xc8] sm:$0xff]
      %v616 = vld [vmem:[%s522 + $0xd0] sm:$0xff]
      %v617 = vld [vmem:[%s522 + $0xd8] sm:$0xff]
      %v618 = vld [vmem:[%s522 + $0xe0] sm:$0xff]
      %v619 = vld [vmem:[%s522 + $0xe8] sm:$0xff]
      %v620 = vld [vmem:[%s522 + $0xf0] sm:$0xff]
      %v621 = vld [vmem:[%s522 + $0xf8] sm:$0xff]
      %v622 = vld [vmem:[%s553] sm:$0xff]
      %v623 = vld [vmem:[%s553 + $0x8] sm:$0xff]
      %p624 = scmp.gt.s32.totalorder %s27, 0
      %s625 = scalar_select %p624, 1, 0
      %v626 = vstv %s625
      %vm627 = vcmp.eq.s32.totalorder %v626, 1
      %p628 = scmp.lt.s32.totalorder %s27, 0
      %s629 = scalar_select %p628, 1, 0
      %v630 = vstv %s629
      %vm631 = vcmp.eq.s32.totalorder %v630, 1
      %v632 = vsel %vm627, 1, 0
      %v633 = vsel %vm631, 1, 0
      %vm634 = vcmp.eq.s32.totalorder %v632, 1
      %vm635 = vcmp.eq.s32.totalorder %v633, 1
      %v636 = vsel %vm634, %v588, 0.0
      %v637 = vsel %vm634, %v589, 0.0
      %v638 = vsel 1, %v590, 0.0
      %v639 = vsel 1, %v591, 0.0
      %v640 = vsel 1, %v592, 0.0
      %v641 = vsel 1, %v593, 0.0
      %v642 = vsel 1, %v594, 0.0
      %v643 = vsel 1, %v595, 0.0
      %v644 = vsel 1, %v596, 0.0
      %v645 = vsel 1, %v597, 0.0
      %v646 = vsel 1, %v598, 0.0
      %v647 = vsel 1, %v599, 0.0
      %v648 = vsel 1, %v600, 0.0
      %v649 = vsel 1, %v601, 0.0
      %v650 = vsel 1, %v602, 0.0
      %v651 = vsel 1, %v603, 0.0
      %v652 = vsel 1, %v604, 0.0
      %v653 = vsel 1, %v605, 0.0
      %v654 = vsel 1, %v606, 0.0
      %v655 = vsel 1, %v607, 0.0
      %v656 = vsel 1, %v608, 0.0
      %v657 = vsel 1, %v609, 0.0
      %v658 = vsel 1, %v610, 0.0
      %v659 = vsel 1, %v611, 0.0
      %v660 = vsel 1, %v612, 0.0
      %v661 = vsel 1, %v613, 0.0
      %v662 = vsel 1, %v614, 0.0
      %v663 = vsel 1, %v615, 0.0
      %v664 = vsel 1, %v616, 0.0
      %v665 = vsel 1, %v617, 0.0
      %v666 = vsel 1, %v618, 0.0
      %v667 = vsel 1, %v619, 0.0
      %v668 = vsel 1, %v620, 0.0
      %v669 = vsel 1, %v621, 0.0
      %v670 = vsel %vm635, %v622, 0.0
      %v671 = vsel %vm635, %v623, 0.0
      %vm708 = vcmask 1040384
      %v709 = vrot.slane %v636, 7
      %v710 = vrot.slane %v637, 7
      %v711 = vsel %vm708, %v709, %v710
      %v712 = vrot.slane %v638, 7
      %v713 = vrot.slane %v639, 7
      %v714 = vsel %vm708, %v712, %v713
      %v715 = vrot.slane %v640, 7
      %v716 = vrot.slane %v641, 7
      %v717 = vsel %vm708, %v715, %v716
      %v718 = vrot.slane %v642, 7
      %v719 = vrot.slane %v643, 7
      %v720 = vsel %vm708, %v718, %v719
      %v721 = vrot.slane %v644, 7
      %v722 = vrot.slane %v645, 7
      %v723 = vsel %vm708, %v721, %v722
      %v724 = vrot.slane %v646, 7
      %v725 = vrot.slane %v647, 7
      %v726 = vsel %vm708, %v724, %v725
      %v727 = vrot.slane %v648, 7
      %v728 = vrot.slane %v649, 7
      %v729 = vsel %vm708, %v727, %v728
      %v730 = vrot.slane %v650, 7
      %v731 = vrot.slane %v651, 7
      %v732 = vsel %vm708, %v730, %v731
      %v733 = vrot.slane %v652, 7
      %v734 = vrot.slane %v653, 7
      %v735 = vsel %vm708, %v733, %v734
      %v736 = vrot.slane %v654, 7
      %v737 = vrot.slane %v655, 7
      %v738 = vsel %vm708, %v736, %v737
      %v739 = vrot.slane %v656, 7
      %v740 = vrot.slane %v657, 7
      %v741 = vsel %vm708, %v739, %v740
      %v742 = vrot.slane %v658, 7
      %v743 = vrot.slane %v659, 7
      %v744 = vsel %vm708, %v742, %v743
      %v745 = vrot.slane %v660, 7
      %v746 = vrot.slane %v661, 7
      %v747 = vsel %vm708, %v745, %v746
      %v748 = vrot.slane %v662, 7
      %v749 = vrot.slane %v663, 7
      %v750 = vsel %vm708, %v748, %v749
      %v751 = vrot.slane %v664, 7
      %v752 = vrot.slane %v665, 7
      %v753 = vsel %vm708, %v751, %v752
      %v754 = vrot.slane %v666, 7
      %v755 = vrot.slane %v667, 7
      %v756 = vsel %vm708, %v754, %v755
      %v757 = vrot.slane %v668, 7
      %v758 = vrot.slane %v669, 7
      %v759 = vsel %vm708, %v757, %v758
      %v760 = vrot.slane %v670, 7
      %v761 = vrot.slane %v671, 7
      %v762 = vsel %vm708, %v760, %v761
      %v815 = vsel %vm708, 0.0, %v709
      %v816 = vsel %vm708, 0.0, %v712
      %v817 = vsel %vm708, 0.0, %v715
      %v818 = vsel %vm708, 0.0, %v718
      %v819 = vsel %vm708, 0.0, %v721
      %v820 = vsel %vm708, 0.0, %v724
      %v821 = vsel %vm708, 0.0, %v727
      %v822 = vsel %vm708, 0.0, %v730
      %v823 = vsel %vm708, 0.0, %v733
      %v824 = vsel %vm708, 0.0, %v736
      %v825 = vsel %vm708, 0.0, %v739
      %v826 = vsel %vm708, 0.0, %v742
      %v827 = vsel %vm708, 0.0, %v745
      %v828 = vsel %vm708, 0.0, %v748
      %v829 = vsel %vm708, 0.0, %v751
      %v830 = vsel %vm708, 0.0, %v754
      %v831 = vsel %vm708, 0.0, %v757
      %v832 = vsel %vm708, 0.0, %v760
      %v833 = vsel %vm708, %v710, 0.0
      %v834 = vsel %vm708, %v713, 0.0
      %v835 = vsel %vm708, %v716, 0.0
      %v836 = vsel %vm708, %v719, 0.0
      %v837 = vsel %vm708, %v722, 0.0
      %v838 = vsel %vm708, %v725, 0.0
      %v839 = vsel %vm708, %v728, 0.0
      %v840 = vsel %vm708, %v731, 0.0
      %v841 = vsel %vm708, %v734, 0.0
      %v842 = vsel %vm708, %v737, 0.0
      %v843 = vsel %vm708, %v740, 0.0
      %v844 = vsel %vm708, %v743, 0.0
      %v845 = vsel %vm708, %v746, 0.0
      %v846 = vsel %vm708, %v749, 0.0
      %v847 = vsel %vm708, %v752, 0.0
      %v848 = vsel %vm708, %v755, 0.0
      %v849 = vsel %vm708, %v758, 0.0
      %v850 = vsel %vm708, %v761, 0.0
      %vm851 = vcmask 261120
      %852 = vst.msk [vmem:[#allocation2] sm:$0xff] %vm851, %v815
      %853 = vst.msk [vmem:[#allocation2 + $0x18] sm:$0xff] %vm851, %v711
      %854 = vst.msk [vmem:[#allocation2 + $0x30] sm:$0xff] %vm851, %v816
      %855 = vst.msk [vmem:[#allocation2 + $0x48] sm:$0xff] %vm851, %v714
      %856 = vst.msk [vmem:[#allocation2 + $0x60] sm:$0xff] %vm851, %v817
      %857 = vst.msk [vmem:[#allocation2 + $0x78] sm:$0xff] %vm851, %v717
      %858 = vst.msk [vmem:[#allocation2 + $0x90] sm:$0xff] %vm851, %v818
      %859 = vst.msk [vmem:[#allocation2 + $0xa8] sm:$0xff] %vm851, %v720
      %860 = vst.msk [vmem:[#allocation2 + $0xc0] sm:$0xff] %vm851, %v819
      %861 = vst.msk [vmem:[#allocation2 + $0xd8] sm:$0xff] %vm851, %v723
      %862 = vst.msk [vmem:[#allocation2 + $0xf0] sm:$0xff] %vm851, %v820
      %863 = vst.msk [vmem:[#allocation2 + $0x108] sm:$0xff] %vm851, %v726
      %864 = vst.msk [vmem:[#allocation2 + $0x120] sm:$0xff] %vm851, %v821
      %865 = vst.msk [vmem:[#allocation2 + $0x138] sm:$0xff] %vm851, %v729
      %866 = vst.msk [vmem:[#allocation2 + $0x150] sm:$0xff] %vm851, %v822
      %867 = vst.msk [vmem:[#allocation2 + $0x168] sm:$0xff] %vm851, %v732
      %868 = vst.msk [vmem:[#allocation2 + $0x180] sm:$0xff] %vm851, %v823
      %869 = vst.msk [vmem:[#allocation2 + $0x198] sm:$0xff] %vm851, %v735
      %870 = vst.msk [vmem:[#allocation2 + $0x1b0] sm:$0xff] %vm851, %v824
      %871 = vst.msk [vmem:[#allocation2 + $0x1c8] sm:$0xff] %vm851, %v738
      %872 = vst.msk [vmem:[#allocation2 + $0x1e0] sm:$0xff] %vm851, %v825
      %873 = vst.msk [vmem:[#allocation2 + $0x1f8] sm:$0xff] %vm851, %v741
      %874 = vst.msk [vmem:[#allocation2 + $0x210] sm:$0xff] %vm851, %v826
      %875 = vst.msk [vmem:[#allocation2 + $0x228] sm:$0xff] %vm851, %v744
      %876 = vst.msk [vmem:[#allocation2 + $0x240] sm:$0xff] %vm851, %v827
      %877 = vst.msk [vmem:[#allocation2 + $0x258] sm:$0xff] %vm851, %v747
      %878 = vst.msk [vmem:[#allocation2 + $0x270] sm:$0xff] %vm851, %v828
      %879 = vst.msk [vmem:[#allocation2 + $0x288] sm:$0xff] %vm851, %v750
      %880 = vst.msk [vmem:[#allocation2 + $0x2a0] sm:$0xff] %vm851, %v829
      %881 = vst.msk [vmem:[#allocation2 + $0x2b8] sm:$0xff] %vm851, %v753
      %882 = vst.msk [vmem:[#allocation2 + $0x2d0] sm:$0xff] %vm851, %v830
      %883 = vst.msk [vmem:[#allocation2 + $0x2e8] sm:$0xff] %vm851, %v756
      %vm916 = vcmask 1046528
      %v917 = vrot.slane %v815, 1
      %v918 = vrot.slane %v711, 1
      %v919 = vsel %vm916, %v917, %v918
      %v920 = vrot.slane %v833, 1
      %v921 = vsel %vm916, %v918, %v920
      %v922 = vrot.slane %v816, 1
      %v923 = vrot.slane %v714, 1
      %v924 = vsel %vm916, %v922, %v923
      %v925 = vrot.slane %v834, 1
      %v926 = vsel %vm916, %v923, %v925
      %v927 = vrot.slane %v817, 1
      %v928 = vrot.slane %v717, 1
      %v929 = vsel %vm916, %v927, %v928
      %v930 = vrot.slane %v835, 1
      %v931 = vsel %vm916, %v928, %v930
      %v932 = vrot.slane %v818, 1
      %v933 = vrot.slane %v720, 1
      %v934 = vsel %vm916, %v932, %v933
      %v935 = vrot.slane %v836, 1
      %v936 = vsel %vm916, %v933, %v935
      %v937 = vrot.slane %v819, 1
      %v938 = vrot.slane %v723, 1
      %v939 = vsel %vm916, %v937, %v938
      %v940 = vrot.slane %v837, 1
      %v941 = vsel %vm916, %v938, %v940
      %v942 = vrot.slane %v820, 1
      %v943 = vrot.slane %v726, 1
      %v944 = vsel %vm916, %v942, %v943
      %v945 = vrot.slane %v838, 1
      %v946 = vsel %vm916, %v943, %v945
      %v947 = vrot.slane %v821, 1
      %v948 = vrot.slane %v729, 1
      %v949 = vsel %vm916, %v947, %v948
      %v950 = vrot.slane %v839, 1
      %v951 = vsel %vm916, %v948, %v950
      %v952 = vrot.slane %v822, 1
      %v953 = vrot.slane %v732, 1
      %v954 = vsel %vm916, %v952, %v953
      %v955 = vrot.slane %v840, 1
      %v956 = vsel %vm916, %v953, %v955
      %v957 = vrot.slane %v823, 1
      %v958 = vrot.slane %v735, 1
      %v959 = vsel %vm916, %v957, %v958
      %v960 = vrot.slane %v841, 1
      %v961 = vsel %vm916, %v958, %v960
      %v962 = vrot.slane %v824, 1
      %v963 = vrot.slane %v738, 1
      %v964 = vsel %vm916, %v962, %v963
      %v965 = vrot.slane %v842, 1
      %v966 = vsel %vm916, %v963, %v965
      %v967 = vrot.slane %v825, 1
      %v968 = vrot.slane %v741, 1
      %v969 = vsel %vm916, %v967, %v968
      %v970 = vrot.slane %v843, 1
      %v971 = vsel %vm916, %v968, %v970
      %v972 = vrot.slane %v826, 1
      %v973 = vrot.slane %v744, 1
      %v974 = vsel %vm916, %v972, %v973
      %v975 = vrot.slane %v844, 1
      %v976 = vsel %vm916, %v973, %v975
      %v977 = vrot.slane %v827, 1
      %v978 = vrot.slane %v747, 1
      %v979 = vsel %vm916, %v977, %v978
      %v980 = vrot.slane %v845, 1
      %v981 = vsel %vm916, %v978, %v980
      %v982 = vrot.slane %v828, 1
      %v983 = vrot.slane %v750, 1
      %v984 = vsel %vm916, %v982, %v983
      %v985 = vrot.slane %v846, 1
      %v986 = vsel %vm916, %v983, %v985
      %v987 = vrot.slane %v829, 1
      %v988 = vrot.slane %v753, 1
      %v989 = vsel %vm916, %v987, %v988
      %v990 = vrot.slane %v847, 1
      %v991 = vsel %vm916, %v988, %v990
      %v992 = vrot.slane %v830, 1
      %v993 = vrot.slane %v756, 1
      %v994 = vsel %vm916, %v992, %v993
      %v995 = vrot.slane %v848, 1
      %v996 = vsel %vm916, %v993, %v995
      %997 = vrot.lane.b32.xlu0 %v919, 32
      %v998 = vpop.permute.xlu0 %997
      %999 = vrot.lane.b32.xlu0 %v921, 32
      %v1000 = vpop.permute.xlu0 %999
      %1001 = vrot.lane.b32.xlu0 %v924, 32
      %v1002 = vpop.permute.xlu0 %1001
      %1003 = vrot.lane.b32.xlu0 %v926, 32
      %v1004 = vpop.permute.xlu0 %1003
      %1005 = vrot.lane.b32.xlu0 %v929, 32
      %v1006 = vpop.permute.xlu0 %1005
      %1007 = vrot.lane.b32.xlu0 %v931, 32
      %v1008 = vpop.permute.xlu0 %1007
      %1009 = vrot.lane.b32.xlu0 %v934, 32
      %v1010 = vpop.permute.xlu0 %1009
      %1011 = vrot.lane.b32.xlu0 %v936, 32
      %v1012 = vpop.permute.xlu0 %1011
      %1013 = vrot.lane.b32.xlu0 %v939, 32
      %v1014 = vpop.permute.xlu0 %1013
      %1015 = vrot.lane.b32.xlu0 %v941, 32
      %v1016 = vpop.permute.xlu0 %1015
      %1017 = vrot.lane.b32.xlu0 %v944, 32
      %v1018 = vpop.permute.xlu0 %1017
      %1019 = vrot.lane.b32.xlu0 %v946, 32
      %v1020 = vpop.permute.xlu0 %1019
      %1021 = vrot.lane.b32.xlu0 %v949, 32
      %v1022 = vpop.permute.xlu0 %1021
      %1023 = vrot.lane.b32.xlu0 %v951, 32
      %v1024 = vpop.permute.xlu0 %1023
      %1025 = vrot.lane.b32.xlu0 %v954, 32
      %v1026 = vpop.permute.xlu0 %1025
      %1027 = vrot.lane.b32.xlu0 %v956, 32
      %v1028 = vpop.permute.xlu0 %1027
      %1029 = vrot.lane.b32.xlu0 %v959, 32
      %v1030 = vpop.permute.xlu0 %1029
      %1031 = vrot.lane.b32.xlu0 %v961, 32
      %v1032 = vpop.permute.xlu0 %1031
      %1033 = vrot.lane.b32.xlu0 %v964, 32
      %v1034 = vpop.permute.xlu0 %1033
      %1035 = vrot.lane.b32.xlu0 %v966, 32
      %v1036 = vpop.permute.xlu0 %1035
      %1037 = vrot.lane.b32.xlu0 %v969, 32
      %v1038 = vpop.permute.xlu0 %1037
      %1039 = vrot.lane.b32.xlu0 %v971, 32
      %v1040 = vpop.permute.xlu0 %1039
      %1041 = vrot.lane.b32.xlu0 %v974, 32
      %v1042 = vpop.permute.xlu0 %1041
      %1043 = vrot.lane.b32.xlu0 %v976, 32
      %v1044 = vpop.permute.xlu0 %1043
      %1045 = vrot.lane.b32.xlu0 %v979, 32
      %v1046 = vpop.permute.xlu0 %1045
      %1047 = vrot.lane.b32.xlu0 %v981, 32
      %v1048 = vpop.permute.xlu0 %1047
      %1049 = vrot.lane.b32.xlu0 %v984, 32
      %v1050 = vpop.permute.xlu0 %1049
      %1051 = vrot.lane.b32.xlu0 %v986, 32
      %v1052 = vpop.permute.xlu0 %1051
      %1053 = vrot.lane.b32.xlu0 %v989, 32
      %v1054 = vpop.permute.xlu0 %1053
      %1055 = vrot.lane.b32.xlu0 %v991, 32
      %v1056 = vpop.permute.xlu0 %1055
      %1057 = vrot.lane.b32.xlu0 %v994, 32
      %v1058 = vpop.permute.xlu0 %1057
      %1059 = vrot.lane.b32.xlu0 %v996, 32
      %v1060 = vpop.permute.xlu0 %1059
      %vm1093 = vcmask 523520
      %1094 = vst.msk [vmem:[#allocation2] sm:$0xff] %vm1093, %v998
      %1095 = vst.msk [vmem:[#allocation2 + $0x18] sm:$0xff] %vm1093, %v1000
      %1096 = vst.msk [vmem:[#allocation2 + $0x30] sm:$0xff] %vm1093, %v1002
      %1097 = vst.msk [vmem:[#allocation2 + $0x48] sm:$0xff] %vm1093, %v1004
      %1098 = vst.msk [vmem:[#allocation2 + $0x60] sm:$0xff] %vm1093, %v1006
      %1099 = vst.msk [vmem:[#allocation2 + $0x78] sm:$0xff] %vm1093, %v1008
      %1100 = vst.msk [vmem:[#allocation2 + $0x90] sm:$0xff] %vm1093, %v1010
      %1101 = vst.msk [vmem:[#allocation2 + $0xa8] sm:$0xff] %vm1093, %v1012
      %1102 = vst.msk [vmem:[#allocation2 + $0xc0] sm:$0xff] %vm1093, %v1014
      %1103 = vst.msk [vmem:[#allocation2 + $0xd8] sm:$0xff] %vm1093, %v1016
      %1104 = vst.msk [vmem:[#allocation2 + $0xf0] sm:$0xff] %vm1093, %v1018
      %1105 = vst.msk [vmem:[#allocation2 + $0x108] sm:$0xff] %vm1093, %v1020
      %1106 = vst.msk [vmem:[#allocation2 + $0x120] sm:$0xff] %vm1093, %v1022
      %1107 = vst.msk [vmem:[#allocation2 + $0x138] sm:$0xff] %vm1093, %v1024
      %1108 = vst.msk [vmem:[#allocation2 + $0x150] sm:$0xff] %vm1093, %v1026
      %1109 = vst.msk [vmem:[#allocation2 + $0x168] sm:$0xff] %vm1093, %v1028
      %1110 = vst.msk [vmem:[#allocation2 + $0x180] sm:$0xff] %vm1093, %v1030
      %1111 = vst.msk [vmem:[#allocation2 + $0x198] sm:$0xff] %vm1093, %v1032
      %1112 = vst.msk [vmem:[#allocation2 + $0x1b0] sm:$0xff] %vm1093, %v1034
      %1113 = vst.msk [vmem:[#allocation2 + $0x1c8] sm:$0xff] %vm1093, %v1036
      %1114 = vst.msk [vmem:[#allocation2 + $0x1e0] sm:$0xff] %vm1093, %v1038
      %1115 = vst.msk [vmem:[#allocation2 + $0x1f8] sm:$0xff] %vm1093, %v1040
      %1116 = vst.msk [vmem:[#allocation2 + $0x210] sm:$0xff] %vm1093, %v1042
      %1117 = vst.msk [vmem:[#allocation2 + $0x228] sm:$0xff] %vm1093, %v1044
      %1118 = vst.msk [vmem:[#allocation2 + $0x240] sm:$0xff] %vm1093, %v1046
      %1119 = vst.msk [vmem:[#allocation2 + $0x258] sm:$0xff] %vm1093, %v1048
      %1120 = vst.msk [vmem:[#allocation2 + $0x270] sm:$0xff] %vm1093, %v1050
      %1121 = vst.msk [vmem:[#allocation2 + $0x288] sm:$0xff] %vm1093, %v1052
      %1122 = vst.msk [vmem:[#allocation2 + $0x2a0] sm:$0xff] %vm1093, %v1054
      %1123 = vst.msk [vmem:[#allocation2 + $0x2b8] sm:$0xff] %vm1093, %v1056
      %1124 = vst.msk [vmem:[#allocation2 + $0x2d0] sm:$0xff] %vm1093, %v1058
      %1125 = vst.msk [vmem:[#allocation2 + $0x2e8] sm:$0xff] %vm1093, %v1060
      %vm1126 = vcmask 1045504
      %v1127 = vrot.slane %v815, 2
      %v1128 = vrot.slane %v711, 2
      %v1129 = vsel %vm1126, %v1127, %v1128
      %v1130 = vrot.slane %v833, 2
      %v1131 = vsel %vm1126, %v1128, %v1130
      %v1132 = vrot.slane %v816, 2
      %v1133 = vrot.slane %v714, 2
      %v1134 = vsel %vm1126, %v1132, %v1133
      %v1135 = vrot.slane %v834, 2
      %v1136 = vsel %vm1126, %v1133, %v1135
      %v1137 = vrot.slane %v817, 2
      %v1138 = vrot.slane %v717, 2
      %v1139 = vsel %vm1126, %v1137, %v1138
      %v1140 = vrot.slane %v835, 2
      %v1141 = vsel %vm1126, %v1138, %v1140
      %v1142 = vrot.slane %v818, 2
      %v1143 = vrot.slane %v720, 2
      %v1144 = vsel %vm1126, %v1142, %v1143
      %v1145 = vrot.slane %v836, 2
      %v1146 = vsel %vm1126, %v1143, %v1145
      %v1147 = vrot.slane %v819, 2
      %v1148 = vrot.slane %v723, 2
      %v1149 = vsel %vm1126, %v1147, %v1148
      %v1150 = vrot.slane %v837, 2
      %v1151 = vsel %vm1126, %v1148, %v1150
      %v1152 = vrot.slane %v820, 2
      %v1153 = vrot.slane %v726, 2
      %v1154 = vsel %vm1126, %v1152, %v1153
      %v1155 = vrot.slane %v838, 2
      %v1156 = vsel %vm1126, %v1153, %v1155
      %v1157 = vrot.slane %v821, 2
      %v1158 = vrot.slane %v729, 2
      %v1159 = vsel %vm1126, %v1157, %v1158
      %v1160 = vrot.slane %v839, 2
      %v1161 = vsel %vm1126, %v1158, %v1160
      %v1162 = vrot.slane %v822, 2
      %v1163 = vrot.slane %v732, 2
      %v1164 = vsel %vm1126, %v1162, %v1163
      %v1165 = vrot.slane %v840, 2
      %v1166 = vsel %vm1126, %v1163, %v1165
      %v1167 = vrot.slane %v823, 2
      %v1168 = vrot.slane %v735, 2
      %v1169 = vsel %vm1126, %v1167, %v1168
      %v1170 = vrot.slane %v841, 2
      %v1171 = vsel %vm1126, %v1168, %v1170
      %v1172 = vrot.slane %v824, 2
      %v1173 = vrot.slane %v738, 2
      %v1174 = vsel %vm1126, %v1172, %v1173
      %v1175 = vrot.slane %v842, 2
      %v1176 = vsel %vm1126, %v1173, %v1175
      %v1177 = vrot.slane %v825, 2
      %v1178 = vrot.slane %v741, 2
      %v1179 = vsel %vm1126, %v1177, %v1178
      %v1180 = vrot.slane %v843, 2
      %v1181 = vsel %vm1126, %v1178, %v1180
      %v1182 = vrot.slane %v826, 2
      %v1183 = vrot.slane %v744, 2
      %v1184 = vsel %vm1126, %v1182, %v1183
      %v1185 = vrot.slane %v844, 2
      %v1186 = vsel %vm1126, %v1183, %v1185
      %v1187 = vrot.slane %v827, 2
      %v1188 = vrot.slane %v747, 2
      %v1189 = vsel %vm1126, %v1187, %v1188
      %v1190 = vrot.slane %v845, 2
      %v1191 = vsel %vm1126, %v1188, %v1190
      %v1192 = vrot.slane %v828, 2
      %v1193 = vrot.slane %v750, 2
      %v1194 = vsel %vm1126, %v1192, %v1193
      %v1195 = vrot.slane %v846, 2
      %v1196 = vsel %vm1126, %v1193, %v1195
      %v1197 = vrot.slane %v829, 2
      %v1198 = vrot.slane %v753, 2
      %v1199 = vsel %vm1126, %v1197, %v1198
      %v1200 = vrot.slane %v847, 2
      %v1201 = vsel %vm1126, %v1198, %v1200
      %v1202 = vrot.slane %v830, 2
      %v1203 = vrot.slane %v756, 2
      %v1204 = vsel %vm1126, %v1202, %v1203
      %v1205 = vrot.slane %v848, 2
      %v1206 = vsel %vm1126, %v1203, %v1205
      %1207 = vrot.lane.b32.xlu0 %v1129, 64
      %v1208 = vpop.permute.xlu0 %1207
      %1209 = vrot.lane.b32.xlu0 %v1131, 64
      %v1210 = vpop.permute.xlu0 %1209
      %1211 = vrot.lane.b32.xlu0 %v1134, 64
      %v1212 = vpop.permute.xlu0 %1211
      %1213 = vrot.lane.b32.xlu0 %v1136, 64
      %v1214 = vpop.permute.xlu0 %1213
      %1215 = vrot.lane.b32.xlu0 %v1139, 64
      %v1216 = vpop.permute.xlu0 %1215
      %1217 = vrot.lane.b32.xlu0 %v1141, 64
      %v1218 = vpop.permute.xlu0 %1217
      %1219 = vrot.lane.b32.xlu0 %v1144, 64
      %v1220 = vpop.permute.xlu0 %1219
      %1221 = vrot.lane.b32.xlu0 %v1146, 64
      %v1222 = vpop.permute.xlu0 %1221
      %1223 = vrot.lane.b32.xlu0 %v1149, 64
      %v1224 = vpop.permute.xlu0 %1223
      %1225 = vrot.lane.b32.xlu0 %v1151, 64
      %v1226 = vpop.permute.xlu0 %1225
      %1227 = vrot.lane.b32.xlu0 %v1154, 64
      %v1228 = vpop.permute.xlu0 %1227
      %1229 = vrot.lane.b32.xlu0 %v1156, 64
      %v1230 = vpop.permute.xlu0 %1229
      %1231 = vrot.lane.b32.xlu0 %v1159, 64
      %v1232 = vpop.permute.xlu0 %1231
      %1233 = vrot.lane.b32.xlu0 %v1161, 64
      %v1234 = vpop.permute.xlu0 %1233
      %1235 = vrot.lane.b32.xlu0 %v1164, 64
      %v1236 = vpop.permute.xlu0 %1235
      %1237 = vrot.lane.b32.xlu0 %v1166, 64
      %v1238 = vpop.permute.xlu0 %1237
      %1239 = vrot.lane.b32.xlu0 %v1169, 64
      %v1240 = vpop.permute.xlu0 %1239
      %1241 = vrot.lane.b32.xlu0 %v1171, 64
      %v1242 = vpop.permute.xlu0 %1241
      %1243 = vrot.lane.b32.xlu0 %v1174, 64
      %v1244 = vpop.permute.xlu0 %1243
      %1245 = vrot.lane.b32.xlu0 %v1176, 64
      %v1246 = vpop.permute.xlu0 %1245
      %1247 = vrot.lane.b32.xlu0 %v1179, 64
      %v1248 = vpop.permute.xlu0 %1247
      %1249 = vrot.lane.b32.xlu0 %v1181, 64
      %v1250 = vpop.permute.xlu0 %1249
      %1251 = vrot.lane.b32.xlu0 %v1184, 64
      %v1252 = vpop.permute.xlu0 %1251
      %1253 = vrot.lane.b32.xlu0 %v1186, 64
      %v1254 = vpop.permute.xlu0 %1253
      %1255 = vrot.lane.b32.xlu0 %v1189, 64
      %v1256 = vpop.permute.xlu0 %1255
      %1257 = vrot.lane.b32.xlu0 %v1191, 64
      %v1258 = vpop.permute.xlu0 %1257
      %1259 = vrot.lane.b32.xlu0 %v1194, 64
      %v1260 = vpop.permute.xlu0 %1259
      %1261 = vrot.lane.b32.xlu0 %v1196, 64
      %v1262 = vpop.permute.xlu0 %1261
      %1263 = vrot.lane.b32.xlu0 %v1199, 64
      %v1264 = vpop.permute.xlu0 %1263
      %1265 = vrot.lane.b32.xlu0 %v1201, 64
      %v1266 = vpop.permute.xlu0 %1265
      %1267 = vrot.lane.b32.xlu0 %v1204, 64
      %v1268 = vpop.permute.xlu0 %1267
      %1269 = vrot.lane.b32.xlu0 %v1206, 64
      %v1270 = vpop.permute.xlu0 %1269
      %vm1303 = vcmask 785920
      %1304 = vst.msk [vmem:[#allocation2] sm:$0xff] %vm1303, %v1208
      %1305 = vst.msk [vmem:[#allocation2 + $0x18] sm:$0xff] %vm1303, %v1210
      %1306 = vst.msk [vmem:[#allocation2 + $0x30] sm:$0xff] %vm1303, %v1212
      %1307 = vst.msk [vmem:[#allocation2 + $0x48] sm:$0xff] %vm1303, %v1214
      %1308 = vst.msk [vmem:[#allocation2 + $0x60] sm:$0xff] %vm1303, %v1216
      %1309 = vst.msk [vmem:[#allocation2 + $0x78] sm:$0xff] %vm1303, %v1218
      %1310 = vst.msk [vmem:[#allocation2 + $0x90] sm:$0xff] %vm1303, %v1220
      %1311 = vst.msk [vmem:[#allocation2 + $0xa8] sm:$0xff] %vm1303, %v1222
      %1312 = vst.msk [vmem:[#allocation2 + $0xc0] sm:$0xff] %vm1303, %v1224
      %1313 = vst.msk [vmem:[#allocation2 + $0xd8] sm:$0xff] %vm1303, %v1226
      %1314 = vst.msk [vmem:[#allocation2 + $0xf0] sm:$0xff] %vm1303, %v1228
      %1315 = vst.msk [vmem:[#allocation2 + $0x108] sm:$0xff] %vm1303, %v1230
      %1316 = vst.msk [vmem:[#allocation2 + $0x120] sm:$0xff] %vm1303, %v1232
      %1317 = vst.msk [vmem:[#allocation2 + $0x138] sm:$0xff] %vm1303, %v1234
      %1318 = vst.msk [vmem:[#allocation2 + $0x150] sm:$0xff] %vm1303, %v1236
      %1319 = vst.msk [vmem:[#allocation2 + $0x168] sm:$0xff] %vm1303, %v1238
      %1320 = vst.msk [vmem:[#allocation2 + $0x180] sm:$0xff] %vm1303, %v1240
      %1321 = vst.msk [vmem:[#allocation2 + $0x198] sm:$0xff] %vm1303, %v1242
      %1322 = vst.msk [vmem:[#allocation2 + $0x1b0] sm:$0xff] %vm1303, %v1244
      %1323 = vst.msk [vmem:[#allocation2 + $0x1c8] sm:$0xff] %vm1303, %v1246
      %1324 = vst.msk [vmem:[#allocation2 + $0x1e0] sm:$0xff] %vm1303, %v1248
      %1325 = vst.msk [vmem:[#allocation2 + $0x1f8] sm:$0xff] %vm1303, %v1250
      %1326 = vst.msk [vmem:[#allocation2 + $0x210] sm:$0xff] %vm1303, %v1252
      %1327 = vst.msk [vmem:[#allocation2 + $0x228] sm:$0xff] %vm1303, %v1254
      %1328 = vst.msk [vmem:[#allocation2 + $0x240] sm:$0xff] %vm1303, %v1256
      %1329 = vst.msk [vmem:[#allocation2 + $0x258] sm:$0xff] %vm1303, %v1258
      %1330 = vst.msk [vmem:[#allocation2 + $0x270] sm:$0xff] %vm1303, %v1260
      %1331 = vst.msk [vmem:[#allocation2 + $0x288] sm:$0xff] %vm1303, %v1262
      %1332 = vst.msk [vmem:[#allocation2 + $0x2a0] sm:$0xff] %vm1303, %v1264
      %1333 = vst.msk [vmem:[#allocation2 + $0x2b8] sm:$0xff] %vm1303, %v1266
      %1334 = vst.msk [vmem:[#allocation2 + $0x2d0] sm:$0xff] %vm1303, %v1268
      %1335 = vst.msk [vmem:[#allocation2 + $0x2e8] sm:$0xff] %vm1303, %v1270
      %1337 = vrot.lane.b32.xlu0 %v816, 96
      %v1338 = vpop.permute.xlu0 %1337
      %1339 = vrot.lane.b32.xlu0 %v714, 96
      %v1340 = vpop.permute.xlu0 %1339
      %1341 = vrot.lane.b32.xlu0 %v817, 96
      %v1342 = vpop.permute.xlu0 %1341
      %1343 = vrot.lane.b32.xlu0 %v717, 96
      %v1344 = vpop.permute.xlu0 %1343
      %1345 = vrot.lane.b32.xlu0 %v818, 96
      %v1346 = vpop.permute.xlu0 %1345
      %1347 = vrot.lane.b32.xlu0 %v720, 96
      %v1348 = vpop.permute.xlu0 %1347
      %1349 = vrot.lane.b32.xlu0 %v819, 96
      %v1350 = vpop.permute.xlu0 %1349
      %1351 = vrot.lane.b32.xlu0 %v723, 96
      %v1352 = vpop.permute.xlu0 %1351
      %1353 = vrot.lane.b32.xlu0 %v820, 96
      %v1354 = vpop.permute.xlu0 %1353
      %1355 = vrot.lane.b32.xlu0 %v726, 96
      %v1356 = vpop.permute.xlu0 %1355
      %1357 = vrot.lane.b32.xlu0 %v821, 96
      %v1358 = vpop.permute.xlu0 %1357
      %1359 = vrot.lane.b32.xlu0 %v729, 96
      %v1360 = vpop.permute.xlu0 %1359
      %1361 = vrot.lane.b32.xlu0 %v822, 96
      %v1362 = vpop.permute.xlu0 %1361
      %1363 = vrot.lane.b32.xlu0 %v732, 96
      %v1364 = vpop.permute.xlu0 %1363
      %1365 = vrot.lane.b32.xlu0 %v823, 96
      %v1366 = vpop.permute.xlu0 %1365
      %1367 = vrot.lane.b32.xlu0 %v735, 96
      %v1368 = vpop.permute.xlu0 %1367
      %1369 = vrot.lane.b32.xlu0 %v824, 96
      %v1370 = vpop.permute.xlu0 %1369
      %1371 = vrot.lane.b32.xlu0 %v738, 96
      %v1372 = vpop.permute.xlu0 %1371
      %1373 = vrot.lane.b32.xlu0 %v825, 96
      %v1374 = vpop.permute.xlu0 %1373
      %1375 = vrot.lane.b32.xlu0 %v741, 96
      %v1376 = vpop.permute.xlu0 %1375
      %1377 = vrot.lane.b32.xlu0 %v826, 96
      %v1378 = vpop.permute.xlu0 %1377
      %1379 = vrot.lane.b32.xlu0 %v744, 96
      %v1380 = vpop.permute.xlu0 %1379
      %1381 = vrot.lane.b32.xlu0 %v827, 96
      %v1382 = vpop.permute.xlu0 %1381
      %1383 = vrot.lane.b32.xlu0 %v747, 96
      %v1384 = vpop.permute.xlu0 %1383
      %1385 = vrot.lane.b32.xlu0 %v828, 96
      %v1386 = vpop.permute.xlu0 %1385
      %1387 = vrot.lane.b32.xlu0 %v750, 96
      %v1388 = vpop.permute.xlu0 %1387
      %1389 = vrot.lane.b32.xlu0 %v829, 96
      %v1390 = vpop.permute.xlu0 %1389
      %1391 = vrot.lane.b32.xlu0 %v753, 96
      %v1392 = vpop.permute.xlu0 %1391
      %1393 = vrot.lane.b32.xlu0 %v830, 96
      %v1394 = vpop.permute.xlu0 %1393
      %1395 = vrot.lane.b32.xlu0 %v756, 96
      %v1396 = vpop.permute.xlu0 %1395
      %1397 = vrot.lane.b32.xlu0 %v831, 96
      %v1398 = vpop.permute.xlu0 %1397
      %1399 = vrot.lane.b32.xlu0 %v759, 96
      %v1400 = vpop.permute.xlu0 %1399
      %vm1433 = vcmask 1048320
      %1434 = vst.msk [vmem:[#allocation2] sm:$0xff] %vm1433, %v1338
      %1435 = vst.msk [vmem:[#allocation2 + $0x18] sm:$0xff] %vm1433, %v1340
      %1436 = vst.msk [vmem:[#allocation2 + $0x30] sm:$0xff] %vm1433, %v1342
      %1437 = vst.msk [vmem:[#allocation2 + $0x48] sm:$0xff] %vm1433, %v1344
      %1438 = vst.msk [vmem:[#allocation2 + $0x60] sm:$0xff] %vm1433, %v1346
      %1439 = vst.msk [vmem:[#allocation2 + $0x78] sm:$0xff] %vm1433, %v1348
      %1440 = vst.msk [vmem:[#allocation2 + $0x90] sm:$0xff] %vm1433, %v1350
      %1441 = vst.msk [vmem:[#allocation2 + $0xa8] sm:$0xff] %vm1433, %v1352
      %1442 = vst.msk [vmem:[#allocation2 + $0xc0] sm:$0xff] %vm1433, %v1354
      %1443 = vst.msk [vmem:[#allocation2 + $0xd8] sm:$0xff] %vm1433, %v1356
      %1444 = vst.msk [vmem:[#allocation2 + $0xf0] sm:$0xff] %vm1433, %v1358
      %1445 = vst.msk [vmem:[#allocation2 + $0x108] sm:$0xff] %vm1433, %v1360
      %1446 = vst.msk [vmem:[#allocation2 + $0x120] sm:$0xff] %vm1433, %v1362
      %1447 = vst.msk [vmem:[#allocation2 + $0x138] sm:$0xff] %vm1433, %v1364
      %1448 = vst.msk [vmem:[#allocation2 + $0x150] sm:$0xff] %vm1433, %v1366
      %1449 = vst.msk [vmem:[#allocation2 + $0x168] sm:$0xff] %vm1433, %v1368
      %1450 = vst.msk [vmem:[#allocation2 + $0x180] sm:$0xff] %vm1433, %v1370
      %1451 = vst.msk [vmem:[#allocation2 + $0x198] sm:$0xff] %vm1433, %v1372
      %1452 = vst.msk [vmem:[#allocation2 + $0x1b0] sm:$0xff] %vm1433, %v1374
      %1453 = vst.msk [vmem:[#allocation2 + $0x1c8] sm:$0xff] %vm1433, %v1376
      %1454 = vst.msk [vmem:[#allocation2 + $0x1e0] sm:$0xff] %vm1433, %v1378
      %1455 = vst.msk [vmem:[#allocation2 + $0x1f8] sm:$0xff] %vm1433, %v1380
      %1456 = vst.msk [vmem:[#allocation2 + $0x210] sm:$0xff] %vm1433, %v1382
      %1457 = vst.msk [vmem:[#allocation2 + $0x228] sm:$0xff] %vm1433, %v1384
      %1458 = vst.msk [vmem:[#allocation2 + $0x240] sm:$0xff] %vm1433, %v1386
      %1459 = vst.msk [vmem:[#allocation2 + $0x258] sm:$0xff] %vm1433, %v1388
      %1460 = vst.msk [vmem:[#allocation2 + $0x270] sm:$0xff] %vm1433, %v1390
      %1461 = vst.msk [vmem:[#allocation2 + $0x288] sm:$0xff] %vm1433, %v1392
      %1462 = vst.msk [vmem:[#allocation2 + $0x2a0] sm:$0xff] %vm1433, %v1394
      %1463 = vst.msk [vmem:[#allocation2 + $0x2b8] sm:$0xff] %vm1433, %v1396
      %1464 = vst.msk [vmem:[#allocation2 + $0x2d0] sm:$0xff] %vm1433, %v1398
      %1465 = vst.msk [vmem:[#allocation2 + $0x2e8] sm:$0xff] %vm1433, %v1400
      %v1467 = vrot.slane %v831, 1
      %v1468 = vrot.slane %v759, 1
      %v1469 = vsel %vm916, %v1467, %v1468
      %v1470 = vrot.slane %v849, 1
      %v1471 = vsel %vm916, %v1468, %v1470
      %1504 = vst.msk [vmem:[#allocation2 + $0x8] sm:$0xff] %vm851, %v924
      %1505 = vst.msk [vmem:[#allocation2 + $0x20] sm:$0xff] %vm851, %v926
      %1506 = vst.msk [vmem:[#allocation2 + $0x38] sm:$0xff] %vm851, %v929
      %1507 = vst.msk [vmem:[#allocation2 + $0x50] sm:$0xff] %vm851, %v931
      %1508 = vst.msk [vmem:[#allocation2 + $0x68] sm:$0xff] %vm851, %v934
      %1509 = vst.msk [vmem:[#allocation2 + $0x80] sm:$0xff] %vm851, %v936
      %1510 = vst.msk [vmem:[#allocation2 + $0x98] sm:$0xff] %vm851, %v939
      %1511 = vst.msk [vmem:[#allocation2 + $0xb0] sm:$0xff] %vm851, %v941
      %1512 = vst.msk [vmem:[#allocation2 + $0xc8] sm:$0xff] %vm851, %v944
      %1513 = vst.msk [vmem:[#allocation2 + $0xe0] sm:$0xff] %vm851, %v946
      %1514 = vst.msk [vmem:[#allocation2 + $0xf8] sm:$0xff] %vm851, %v949
      %1515 = vst.msk [vmem:[#allocation2 + $0x110] sm:$0xff] %vm851, %v951
      %1516 = vst.msk [vmem:[#allocation2 + $0x128] sm:$0xff] %vm851, %v954
      %1517 = vst.msk [vmem:[#allocation2 + $0x140] sm:$0xff] %vm851, %v956
      %1518 = vst.msk [vmem:[#allocation2 + $0x158] sm:$0xff] %vm851, %v959
      %1519 = vst.msk [vmem:[#allocation2 + $0x170] sm:$0xff] %vm851, %v961
      %1520 = vst.msk [vmem:[#allocation2 + $0x188] sm:$0xff] %vm851, %v964
      %1521 = vst.msk [vmem:[#allocation2 + $0x1a0] sm:$0xff] %vm851, %v966
      %1522 = vst.msk [vmem:[#allocation2 + $0x1b8] sm:$0xff] %vm851, %v969
      %1523 = vst.msk [vmem:[#allocation2 + $0x1d0] sm:$0xff] %vm851, %v971
      %1524 = vst.msk [vmem:[#allocation2 + $0x1e8] sm:$0xff] %vm851, %v974
      %1525 = vst.msk [vmem:[#allocation2 + $0x200] sm:$0xff] %vm851, %v976
      %1526 = vst.msk [vmem:[#allocation2 + $0x218] sm:$0xff] %vm851, %v979
      %1527 = vst.msk [vmem:[#allocation2 + $0x230] sm:$0xff] %vm851, %v981
      %1528 = vst.msk [vmem:[#allocation2 + $0x248] sm:$0xff] %vm851, %v984
      %1529 = vst.msk [vmem:[#allocation2 + $0x260] sm:$0xff] %vm851, %v986
      %1530 = vst.msk [vmem:[#allocation2 + $0x278] sm:$0xff] %vm851, %v989
      %1531 = vst.msk [vmem:[#allocation2 + $0x290] sm:$0xff] %vm851, %v991
      %1532 = vst.msk [vmem:[#allocation2 + $0x2a8] sm:$0xff] %vm851, %v994
      %1533 = vst.msk [vmem:[#allocation2 + $0x2c0] sm:$0xff] %vm851, %v996
      %1534 = vst.msk [vmem:[#allocation2 + $0x2d8] sm:$0xff] %vm851, %v1469
      %1535 = vst.msk [vmem:[#allocation2 + $0x2f0] sm:$0xff] %vm851, %v1471
      %v1536 = vrot.slane %v831, 2
      %v1537 = vrot.slane %v759, 2
      %v1538 = vsel %vm1126, %v1536, %v1537
      %v1539 = vrot.slane %v849, 2
      %v1540 = vsel %vm1126, %v1537, %v1539
      %1541 = vrot.lane.b32.xlu0 %v1134, 32
      %v1542 = vpop.permute.xlu0 %1541
      %1543 = vrot.lane.b32.xlu0 %v1136, 32
      %v1544 = vpop.permute.xlu0 %1543
      %1545 = vrot.lane.b32.xlu0 %v1139, 32
      %v1546 = vpop.permute.xlu0 %1545
      %1547 = vrot.lane.b32.xlu0 %v1141, 32
      %v1548 = vpop.permute.xlu0 %1547
      %1549 = vrot.lane.b32.xlu0 %v1144, 32
      %v1550 = vpop.permute.xlu0 %1549
      %1551 = vrot.lane.b32.xlu0 %v1146, 32
      %v1552 = vpop.permute.xlu0 %1551
      %1553 = vrot.lane.b32.xlu0 %v1149, 32
      %v1554 = vpop.permute.xlu0 %1553
      %1555 = vrot.lane.b32.xlu0 %v1151, 32
      %v1556 = vpop.permute.xlu0 %1555
      %1557 = vrot.lane.b32.xlu0 %v1154, 32
      %v1558 = vpop.permute.xlu0 %1557
      %1559 = vrot.lane.b32.xlu0 %v1156, 32
      %v1560 = vpop.permute.xlu0 %1559
      %1561 = vrot.lane.b32.xlu0 %v1159, 32
      %v1562 = vpop.permute.xlu0 %1561
      %1563 = vrot.lane.b32.xlu0 %v1161, 32
      %v1564 = vpop.permute.xlu0 %1563
      %1565 = vrot.lane.b32.xlu0 %v1164, 32
      %v1566 = vpop.permute.xlu0 %1565
      %1567 = vrot.lane.b32.xlu0 %v1166, 32
      %v1568 = vpop.permute.xlu0 %1567
      %1569 = vrot.lane.b32.xlu0 %v1169, 32
      %v1570 = vpop.permute.xlu0 %1569
      %1571 = vrot.lane.b32.xlu0 %v1171, 32
      %v1572 = vpop.permute.xlu0 %1571
      %1573 = vrot.lane.b32.xlu0 %v1174, 32
      %v1574 = vpop.permute.xlu0 %1573
      %1575 = vrot.lane.b32.xlu0 %v1176, 32
      %v1576 = vpop.permute.xlu0 %1575
      %1577 = vrot.lane.b32.xlu0 %v1179, 32
      %v1578 = vpop.permute.xlu0 %1577
      %1579 = vrot.lane.b32.xlu0 %v1181, 32
      %v1580 = vpop.permute.xlu0 %1579
      %1581 = vrot.lane.b32.xlu0 %v1184, 32
      %v1582 = vpop.permute.xlu0 %1581
      %1583 = vrot.lane.b32.xlu0 %v1186, 32
      %v1584 = vpop.permute.xlu0 %1583
      %1585 = vrot.lane.b32.xlu0 %v1189, 32
      %v1586 = vpop.permute.xlu0 %1585
      %1587 = vrot.lane.b32.xlu0 %v1191, 32
      %v1588 = vpop.permute.xlu0 %1587
      %1589 = vrot.lane.b32.xlu0 %v1194, 32
      %v1590 = vpop.permute.xlu0 %1589
      %1591 = vrot.lane.b32.xlu0 %v1196, 32
      %v1592 = vpop.permute.xlu0 %1591
      %1593 = vrot.lane.b32.xlu0 %v1199, 32
      %v1594 = vpop.permute.xlu0 %1593
      %1595 = vrot.lane.b32.xlu0 %v1201, 32
      %v1596 = vpop.permute.xlu0 %1595
      %1597 = vrot.lane.b32.xlu0 %v1204, 32
      %v1598 = vpop.permute.xlu0 %1597
      %1599 = vrot.lane.b32.xlu0 %v1206, 32
      %v1600 = vpop.permute.xlu0 %1599
      %1601 = vrot.lane.b32.xlu0 %v1538, 32
      %v1602 = vpop.permute.xlu0 %1601
      %1603 = vrot.lane.b32.xlu0 %v1540, 32
      %v1604 = vpop.permute.xlu0 %1603
      %1637 = vst.msk [vmem:[#allocation2 + $0x8] sm:$0xff] %vm1093, %v1542
      %1638 = vst.msk [vmem:[#allocation2 + $0x20] sm:$0xff] %vm1093, %v1544
      %1639 = vst.msk [vmem:[#allocation2 + $0x38] sm:$0xff] %vm1093, %v1546
      %1640 = vst.msk [vmem:[#allocation2 + $0x50] sm:$0xff] %vm1093, %v1548
      %1641 = vst.msk [vmem:[#allocation2 + $0x68] sm:$0xff] %vm1093, %v1550
      %1642 = vst.msk [vmem:[#allocation2 + $0x80] sm:$0xff] %vm1093, %v1552
      %1643 = vst.msk [vmem:[#allocation2 + $0x98] sm:$0xff] %vm1093, %v1554
      %1644 = vst.msk [vmem:[#allocation2 + $0xb0] sm:$0xff] %vm1093, %v1556
      %1645 = vst.msk [vmem:[#allocation2 + $0xc8] sm:$0xff] %vm1093, %v1558
      %1646 = vst.msk [vmem:[#allocation2 + $0xe0] sm:$0xff] %vm1093, %v1560
      %1647 = vst.msk [vmem:[#allocation2 + $0xf8] sm:$0xff] %vm1093, %v1562
      %1648 = vst.msk [vmem:[#allocation2 + $0x110] sm:$0xff] %vm1093, %v1564
      %1649 = vst.msk [vmem:[#allocation2 + $0x128] sm:$0xff] %vm1093, %v1566
      %1650 = vst.msk [vmem:[#allocation2 + $0x140] sm:$0xff] %vm1093, %v1568
      %1651 = vst.msk [vmem:[#allocation2 + $0x158] sm:$0xff] %vm1093, %v1570
      %1652 = vst.msk [vmem:[#allocation2 + $0x170] sm:$0xff] %vm1093, %v1572
      %1653 = vst.msk [vmem:[#allocation2 + $0x188] sm:$0xff] %vm1093, %v1574
      %1654 = vst.msk [vmem:[#allocation2 + $0x1a0] sm:$0xff] %vm1093, %v1576
      %1655 = vst.msk [vmem:[#allocation2 + $0x1b8] sm:$0xff] %vm1093, %v1578
      %1656 = vst.msk [vmem:[#allocation2 + $0x1d0] sm:$0xff] %vm1093, %v1580
      %1657 = vst.msk [vmem:[#allocation2 + $0x1e8] sm:$0xff] %vm1093, %v1582
      %1658 = vst.msk [vmem:[#allocation2 + $0x200] sm:$0xff] %vm1093, %v1584
      %1659 = vst.msk [vmem:[#allocation2 + $0x218] sm:$0xff] %vm1093, %v1586
      %1660 = vst.msk [vmem:[#allocation2 + $0x230] sm:$0xff] %vm1093, %v1588
      %1661 = vst.msk [vmem:[#allocation2 + $0x248] sm:$0xff] %vm1093, %v1590
      %1662 = vst.msk [vmem:[#allocation2 + $0x260] sm:$0xff] %vm1093, %v1592
      %1663 = vst.msk [vmem:[#allocation2 + $0x278] sm:$0xff] %vm1093, %v1594
      %1664 = vst.msk [vmem:[#allocation2 + $0x290] sm:$0xff] %vm1093, %v1596
      %1665 = vst.msk [vmem:[#allocation2 + $0x2a8] sm:$0xff] %vm1093, %v1598
      %1666 = vst.msk [vmem:[#allocation2 + $0x2c0] sm:$0xff] %vm1093, %v1600
      %1667 = vst.msk [vmem:[#allocation2 + $0x2d8] sm:$0xff] %vm1093, %v1602
      %1668 = vst.msk [vmem:[#allocation2 + $0x2f0] sm:$0xff] %vm1093, %v1604
      %1670 = vrot.lane.b32.xlu0 %v817, 64
      %v1671 = vpop.permute.xlu0 %1670
      %1672 = vrot.lane.b32.xlu0 %v717, 64
      %v1673 = vpop.permute.xlu0 %1672
      %1674 = vrot.lane.b32.xlu0 %v818, 64
      %v1675 = vpop.permute.xlu0 %1674
      %1676 = vrot.lane.b32.xlu0 %v720, 64
      %v1677 = vpop.permute.xlu0 %1676
      %1678 = vrot.lane.b32.xlu0 %v819, 64
      %v1679 = vpop.permute.xlu0 %1678
      %1680 = vrot.lane.b32.xlu0 %v723, 64
      %v1681 = vpop.permute.xlu0 %1680
      %1682 = vrot.lane.b32.xlu0 %v820, 64
      %v1683 = vpop.permute.xlu0 %1682
      %1684 = vrot.lane.b32.xlu0 %v726, 64
      %v1685 = vpop.permute.xlu0 %1684
      %1686 = vrot.lane.b32.xlu0 %v821, 64
      %v1687 = vpop.permute.xlu0 %1686
      %1688 = vrot.lane.b32.xlu0 %v729, 64
      %v1689 = vpop.permute.xlu0 %1688
      %1690 = vrot.lane.b32.xlu0 %v822, 64
      %v1691 = vpop.permute.xlu0 %1690
      %1692 = vrot.lane.b32.xlu0 %v732, 64
      %v1693 = vpop.permute.xlu0 %1692
      %1694 = vrot.lane.b32.xlu0 %v823, 64
      %v1695 = vpop.permute.xlu0 %1694
      %1696 = vrot.lane.b32.xlu0 %v735, 64
      %v1697 = vpop.permute.xlu0 %1696
      %1698 = vrot.lane.b32.xlu0 %v824, 64
      %v1699 = vpop.permute.xlu0 %1698
      %1700 = vrot.lane.b32.xlu0 %v738, 64
      %v1701 = vpop.permute.xlu0 %1700
      %1702 = vrot.lane.b32.xlu0 %v825, 64
      %v1703 = vpop.permute.xlu0 %1702
      %1704 = vrot.lane.b32.xlu0 %v741, 64
      %v1705 = vpop.permute.xlu0 %1704
      %1706 = vrot.lane.b32.xlu0 %v826, 64
      %v1707 = vpop.permute.xlu0 %1706
      %1708 = vrot.lane.b32.xlu0 %v744, 64
      %v1709 = vpop.permute.xlu0 %1708
      %1710 = vrot.lane.b32.xlu0 %v827, 64
      %v1711 = vpop.permute.xlu0 %1710
      %1712 = vrot.lane.b32.xlu0 %v747, 64
      %v1713 = vpop.permute.xlu0 %1712
      %1714 = vrot.lane.b32.xlu0 %v828, 64
      %v1715 = vpop.permute.xlu0 %1714
      %1716 = vrot.lane.b32.xlu0 %v750, 64
      %v1717 = vpop.permute.xlu0 %1716
      %1718 = vrot.lane.b32.xlu0 %v829, 64
      %v1719 = vpop.permute.xlu0 %1718
      %1720 = vrot.lane.b32.xlu0 %v753, 64
      %v1721 = vpop.permute.xlu0 %1720
      %1722 = vrot.lane.b32.xlu0 %v830, 64
      %v1723 = vpop.permute.xlu0 %1722
      %1724 = vrot.lane.b32.xlu0 %v756, 64
      %v1725 = vpop.permute.xlu0 %1724
      %1726 = vrot.lane.b32.xlu0 %v831, 64
      %v1727 = vpop.permute.xlu0 %1726
      %1728 = vrot.lane.b32.xlu0 %v759, 64
      %v1729 = vpop.permute.xlu0 %1728
      %1730 = vrot.lane.b32.xlu0 %v832, 64
      %v1731 = vpop.permute.xlu0 %1730
      %1732 = vrot.lane.b32.xlu0 %v762, 64
      %v1733 = vpop.permute.xlu0 %1732
      %1766 = vst.msk [vmem:[#allocation2 + $0x8] sm:$0xff] %vm1303, %v1671
      %1767 = vst.msk [vmem:[#allocation2 + $0x20] sm:$0xff] %vm1303, %v1673
      %1768 = vst.msk [vmem:[#allocation2 + $0x38] sm:$0xff] %vm1303, %v1675
      %1769 = vst.msk [vmem:[#allocation2 + $0x50] sm:$0xff] %vm1303, %v1677
      %1770 = vst.msk [vmem:[#allocation2 + $0x68] sm:$0xff] %vm1303, %v1679
      %1771 = vst.msk [vmem:[#allocation2 + $0x80] sm:$0xff] %vm1303, %v1681
      %1772 = vst.msk [vmem:[#allocation2 + $0x98] sm:$0xff] %vm1303, %v1683
      %1773 = vst.msk [vmem:[#allocation2 + $0xb0] sm:$0xff] %vm1303, %v1685
      %1774 = vst.msk [vmem:[#allocation2 + $0xc8] sm:$0xff] %vm1303, %v1687
      %1775 = vst.msk [vmem:[#allocation2 + $0xe0] sm:$0xff] %vm1303, %v1689
      %1776 = vst.msk [vmem:[#allocation2 + $0xf8] sm:$0xff] %vm1303, %v1691
      %1777 = vst.msk [vmem:[#allocation2 + $0x110] sm:$0xff] %vm1303, %v1693
      %1778 = vst.msk [vmem:[#allocation2 + $0x128] sm:$0xff] %vm1303, %v1695
      %1779 = vst.msk [vmem:[#allocation2 + $0x140] sm:$0xff] %vm1303, %v1697
      %1780 = vst.msk [vmem:[#allocation2 + $0x158] sm:$0xff] %vm1303, %v1699
      %1781 = vst.msk [vmem:[#allocation2 + $0x170] sm:$0xff] %vm1303, %v1701
      %1782 = vst.msk [vmem:[#allocation2 + $0x188] sm:$0xff] %vm1303, %v1703
      %1783 = vst.msk [vmem:[#allocation2 + $0x1a0] sm:$0xff] %vm1303, %v1705
      %1784 = vst.msk [vmem:[#allocation2 + $0x1b8] sm:$0xff] %vm1303, %v1707
      %1785 = vst.msk [vmem:[#allocation2 + $0x1d0] sm:$0xff] %vm1303, %v1709
      %1786 = vst.msk [vmem:[#allocation2 + $0x1e8] sm:$0xff] %vm1303, %v1711
      %1787 = vst.msk [vmem:[#allocation2 + $0x200] sm:$0xff] %vm1303, %v1713
      %1788 = vst.msk [vmem:[#allocation2 + $0x218] sm:$0xff] %vm1303, %v1715
      %1789 = vst.msk [vmem:[#allocation2 + $0x230] sm:$0xff] %vm1303, %v1717
      %1790 = vst.msk [vmem:[#allocation2 + $0x248] sm:$0xff] %vm1303, %v1719
      %1791 = vst.msk [vmem:[#allocation2 + $0x260] sm:$0xff] %vm1303, %v1721
      %1792 = vst.msk [vmem:[#allocation2 + $0x278] sm:$0xff] %vm1303, %v1723
      %1793 = vst.msk [vmem:[#allocation2 + $0x290] sm:$0xff] %vm1303, %v1725
      %1794 = vst.msk [vmem:[#allocation2 + $0x2a8] sm:$0xff] %vm1303, %v1727
      %1795 = vst.msk [vmem:[#allocation2 + $0x2c0] sm:$0xff] %vm1303, %v1729
      %1796 = vst.msk [vmem:[#allocation2 + $0x2d8] sm:$0xff] %vm1303, %v1731
      %1797 = vst.msk [vmem:[#allocation2 + $0x2f0] sm:$0xff] %vm1303, %v1733
      %v1799 = vrot.slane %v832, 1
      %v1800 = vrot.slane %v762, 1
      %v1801 = vsel %vm916, %v1799, %v1800
      %v1802 = vrot.slane %v850, 1
      %v1803 = vsel %vm916, %v1800, %v1802
      %1804 = vrot.lane.b32.xlu0 %v929, 96
      %v1805 = vpop.permute.xlu0 %1804
      %1806 = vrot.lane.b32.xlu0 %v931, 96
      %v1807 = vpop.permute.xlu0 %1806
      %1808 = vrot.lane.b32.xlu0 %v934, 96
      %v1809 = vpop.permute.xlu0 %1808
      %1810 = vrot.lane.b32.xlu0 %v936, 96
      %v1811 = vpop.permute.xlu0 %1810
      %1812 = vrot.lane.b32.xlu0 %v939, 96
      %v1813 = vpop.permute.xlu0 %1812
      %1814 = vrot.lane.b32.xlu0 %v941, 96
      %v1815 = vpop.permute.xlu0 %1814
      %1816 = vrot.lane.b32.xlu0 %v944, 96
      %v1817 = vpop.permute.xlu0 %1816
      %1818 = vrot.lane.b32.xlu0 %v946, 96
      %v1819 = vpop.permute.xlu0 %1818
      %1820 = vrot.lane.b32.xlu0 %v949, 96
      %v1821 = vpop.permute.xlu0 %1820
      %1822 = vrot.lane.b32.xlu0 %v951, 96
      %v1823 = vpop.permute.xlu0 %1822
      %1824 = vrot.lane.b32.xlu0 %v954, 96
      %v1825 = vpop.permute.xlu0 %1824
      %1826 = vrot.lane.b32.xlu0 %v956, 96
      %v1827 = vpop.permute.xlu0 %1826
      %1828 = vrot.lane.b32.xlu0 %v959, 96
      %v1829 = vpop.permute.xlu0 %1828
      %1830 = vrot.lane.b32.xlu0 %v961, 96
      %v1831 = vpop.permute.xlu0 %1830
      %1832 = vrot.lane.b32.xlu0 %v964, 96
      %v1833 = vpop.permute.xlu0 %1832
      %1834 = vrot.lane.b32.xlu0 %v966, 96
      %v1835 = vpop.permute.xlu0 %1834
      %1836 = vrot.lane.b32.xlu0 %v969, 96
      %v1837 = vpop.permute.xlu0 %1836
      %1838 = vrot.lane.b32.xlu0 %v971, 96
      %v1839 = vpop.permute.xlu0 %1838
      %1840 = vrot.lane.b32.xlu0 %v974, 96
      %v1841 = vpop.permute.xlu0 %1840
      %1842 = vrot.lane.b32.xlu0 %v976, 96
      %v1843 = vpop.permute.xlu0 %1842
      %1844 = vrot.lane.b32.xlu0 %v979, 96
      %v1845 = vpop.permute.xlu0 %1844
      %1846 = vrot.lane.b32.xlu0 %v981, 96
      %v1847 = vpop.permute.xlu0 %1846
      %1848 = vrot.lane.b32.xlu0 %v984, 96
      %v1849 = vpop.permute.xlu0 %1848
      %1850 = vrot.lane.b32.xlu0 %v986, 96
      %v1851 = vpop.permute.xlu0 %1850
      %1852 = vrot.lane.b32.xlu0 %v989, 96
      %v1853 = vpop.permute.xlu0 %1852
      %1854 = vrot.lane.b32.xlu0 %v991, 96
      %v1855 = vpop.permute.xlu0 %1854
      %1856 = vrot.lane.b32.xlu0 %v994, 96
      %v1857 = vpop.permute.xlu0 %1856
      %1858 = vrot.lane.b32.xlu0 %v996, 96
      %v1859 = vpop.permute.xlu0 %1858
      %1860 = vrot.lane.b32.xlu0 %v1469, 96
      %v1861 = vpop.permute.xlu0 %1860
      %1862 = vrot.lane.b32.xlu0 %v1471, 96
      %v1863 = vpop.permute.xlu0 %1862
      %1864 = vrot.lane.b32.xlu0 %v1801, 96
      %v1865 = vpop.permute.xlu0 %1864
      %1866 = vrot.lane.b32.xlu0 %v1803, 96
      %v1867 = vpop.permute.xlu0 %1866
      %1900 = vst.msk [vmem:[#allocation2 + $0x8] sm:$0xff] %vm1433, %v1805
      %1901 = vst.msk [vmem:[#allocation2 + $0x20] sm:$0xff] %vm1433, %v1807
      %1902 = vst.msk [vmem:[#allocation2 + $0x38] sm:$0xff] %vm1433, %v1809
      %1903 = vst.msk [vmem:[#allocation2 + $0x50] sm:$0xff] %vm1433, %v1811
      %1904 = vst.msk [vmem:[#allocation2 + $0x68] sm:$0xff] %vm1433, %v1813
      %1905 = vst.msk [vmem:[#allocation2 + $0x80] sm:$0xff] %vm1433, %v1815
      %1906 = vst.msk [vmem:[#allocation2 + $0x98] sm:$0xff] %vm1433, %v1817
      %1907 = vst.msk [vmem:[#allocation2 + $0xb0] sm:$0xff] %vm1433, %v1819
      %1908 = vst.msk [vmem:[#allocation2 + $0xc8] sm:$0xff] %vm1433, %v1821
      %1909 = vst.msk [vmem:[#allocation2 + $0xe0] sm:$0xff] %vm1433, %v1823
      %1910 = vst.msk [vmem:[#allocation2 + $0xf8] sm:$0xff] %vm1433, %v1825
      %1911 = vst.msk [vmem:[#allocation2 + $0x110] sm:$0xff] %vm1433, %v1827
      %1912 = vst.msk [vmem:[#allocation2 + $0x128] sm:$0xff] %vm1433, %v1829
      %1913 = vst.msk [vmem:[#allocation2 + $0x140] sm:$0xff] %vm1433, %v1831
      %1914 = vst.msk [vmem:[#allocation2 + $0x158] sm:$0xff] %vm1433, %v1833
      %1915 = vst.msk [vmem:[#allocation2 + $0x170] sm:$0xff] %vm1433, %v1835
      %1916 = vst.msk [vmem:[#allocation2 + $0x188] sm:$0xff] %vm1433, %v1837
      %1917 = vst.msk [vmem:[#allocation2 + $0x1a0] sm:$0xff] %vm1433, %v1839
      %1918 = vst.msk [vmem:[#allocation2 + $0x1b8] sm:$0xff] %vm1433, %v1841
      %1919 = vst.msk [vmem:[#allocation2 + $0x1d0] sm:$0xff] %vm1433, %v1843
      %1920 = vst.msk [vmem:[#allocation2 + $0x1e8] sm:$0xff] %vm1433, %v1845
      %1921 = vst.msk [vmem:[#allocation2 + $0x200] sm:$0xff] %vm1433, %v1847
      %1922 = vst.msk [vmem:[#allocation2 + $0x218] sm:$0xff] %vm1433, %v1849
      %1923 = vst.msk [vmem:[#allocation2 + $0x230] sm:$0xff] %vm1433, %v1851
      %1924 = vst.msk [vmem:[#allocation2 + $0x248] sm:$0xff] %vm1433, %v1853
      %1925 = vst.msk [vmem:[#allocation2 + $0x260] sm:$0xff] %vm1433, %v1855
      %1926 = vst.msk [vmem:[#allocation2 + $0x278] sm:$0xff] %vm1433, %v1857
      %1927 = vst.msk [vmem:[#allocation2 + $0x290] sm:$0xff] %vm1433, %v1859
      %1928 = vst.msk [vmem:[#allocation2 + $0x2a8] sm:$0xff] %vm1433, %v1861
      %1929 = vst.msk [vmem:[#allocation2 + $0x2c0] sm:$0xff] %vm1433, %v1863
      %1930 = vst.msk [vmem:[#allocation2 + $0x2d8] sm:$0xff] %vm1433, %v1865
      %1931 = vst.msk [vmem:[#allocation2 + $0x2f0] sm:$0xff] %vm1433, %v1867
      %v1932 = vrot.slane %v832, 2
      %v1933 = vrot.slane %v762, 2
      %v1934 = vsel %vm1126, %v1932, %v1933
      %v1935 = vrot.slane %v850, 2
      %v1936 = vsel %vm1126, %v1933, %v1935
      %1969 = vst.msk [vmem:[#allocation2 + $0x10] sm:$0xff] %vm851, %v1139
      %1970 = vst.msk [vmem:[#allocation2 + $0x28] sm:$0xff] %vm851, %v1141
      %1971 = vst.msk [vmem:[#allocation2 + $0x40] sm:$0xff] %vm851, %v1144
      %1972 = vst.msk [vmem:[#allocation2 + $0x58] sm:$0xff] %vm851, %v1146
      %1973 = vst.msk [vmem:[#allocation2 + $0x70] sm:$0xff] %vm851, %v1149
      %1974 = vst.msk [vmem:[#allocation2 + $0x88] sm:$0xff] %vm851, %v1151
      %1975 = vst.msk [vmem:[#allocation2 + $0xa0] sm:$0xff] %vm851, %v1154
      %1976 = vst.msk [vmem:[#allocation2 + $0xb8] sm:$0xff] %vm851, %v1156
      %1977 = vst.msk [vmem:[#allocation2 + $0xd0] sm:$0xff] %vm851, %v1159
      %1978 = vst.msk [vmem:[#allocation2 + $0xe8] sm:$0xff] %vm851, %v1161
      %1979 = vst.msk [vmem:[#allocation2 + $0x100] sm:$0xff] %vm851, %v1164
      %1980 = vst.msk [vmem:[#allocation2 + $0x118] sm:$0xff] %vm851, %v1166
      %1981 = vst.msk [vmem:[#allocation2 + $0x130] sm:$0xff] %vm851, %v1169
      %1982 = vst.msk [vmem:[#allocation2 + $0x148] sm:$0xff] %vm851, %v1171
      %1983 = vst.msk [vmem:[#allocation2 + $0x160] sm:$0xff] %vm851, %v1174
      %1984 = vst.msk [vmem:[#allocation2 + $0x178] sm:$0xff] %vm851, %v1176
      %1985 = vst.msk [vmem:[#allocation2 + $0x190] sm:$0xff] %vm851, %v1179
      %1986 = vst.msk [vmem:[#allocation2 + $0x1a8] sm:$0xff] %vm851, %v1181
      %1987 = vst.msk [vmem:[#allocation2 + $0x1c0] sm:$0xff] %vm851, %v1184
      %1988 = vst.msk [vmem:[#allocation2 + $0x1d8] sm:$0xff] %vm851, %v1186
      %1989 = vst.msk [vmem:[#allocation2 + $0x1f0] sm:$0xff] %vm851, %v1189
      %1990 = vst.msk [vmem:[#allocation2 + $0x208] sm:$0xff] %vm851, %v1191
      %1991 = vst.msk [vmem:[#allocation2 + $0x220] sm:$0xff] %vm851, %v1194
      %1992 = vst.msk [vmem:[#allocation2 + $0x238] sm:$0xff] %vm851, %v1196
      %1993 = vst.msk [vmem:[#allocation2 + $0x250] sm:$0xff] %vm851, %v1199
      %1994 = vst.msk [vmem:[#allocation2 + $0x268] sm:$0xff] %vm851, %v1201
      %1995 = vst.msk [vmem:[#allocation2 + $0x280] sm:$0xff] %vm851, %v1204
      %1996 = vst.msk [vmem:[#allocation2 + $0x298] sm:$0xff] %vm851, %v1206
      %1997 = vst.msk [vmem:[#allocation2 + $0x2b0] sm:$0xff] %vm851, %v1538
      %1998 = vst.msk [vmem:[#allocation2 + $0x2c8] sm:$0xff] %vm851, %v1540
      %1999 = vst.msk [vmem:[#allocation2 + $0x2e0] sm:$0xff] %vm851, %v1934
      %2000 = vst.msk [vmem:[#allocation2 + $0x2f8] sm:$0xff] %vm851, %v1936
      %v2001 = vld [vmem:[#allocation2] sm:$0xff]
      %v2002 = vld [vmem:[#allocation2 + $0x8] sm:$0xff]
      %v2003 = vld [vmem:[#allocation2 + $0x10] sm:$0xff]
      %v2004 = vld [vmem:[#allocation2 + $0x18] sm:$0xff]
      %v2005 = vld [vmem:[#allocation2 + $0x20] sm:$0xff]
      %v2006 = vld [vmem:[#allocation2 + $0x28] sm:$0xff]
      %v2007 = vld [vmem:[#allocation2 + $0x30] sm:$0xff]
      %v2008 = vld [vmem:[#allocation2 + $0x38] sm:$0xff]
      %v2009 = vld [vmem:[#allocation2 + $0x40] sm:$0xff]
      %v2010 = vld [vmem:[#allocation2 + $0x48] sm:$0xff]
      %v2011 = vld [vmem:[#allocation2 + $0x50] sm:$0xff]
      %v2012 = vld [vmem:[#allocation2 + $0x58] sm:$0xff]
      %v2013 = vld [vmem:[#allocation2 + $0x60] sm:$0xff]
      %v2014 = vld [vmem:[#allocation2 + $0x68] sm:$0xff]
      %v2015 = vld [vmem:[#allocation2 + $0x70] sm:$0xff]
      %v2016 = vld [vmem:[#allocation2 + $0x78] sm:$0xff]
      %v2017 = vld [vmem:[#allocation2 + $0x80] sm:$0xff]
      %v2018 = vld [vmem:[#allocation2 + $0x88] sm:$0xff]
      %v2019 = vld [vmem:[#allocation2 + $0x90] sm:$0xff]
      %v2020 = vld [vmem:[#allocation2 + $0x98] sm:$0xff]
      %v2021 = vld [vmem:[#allocation2 + $0xa0] sm:$0xff]
      %v2022 = vld [vmem:[#allocation2 + $0xa8] sm:$0xff]
      %v2023 = vld [vmem:[#allocation2 + $0xb0] sm:$0xff]
      %v2024 = vld [vmem:[#allocation2 + $0xb8] sm:$0xff]
      %v2025 = vld [vmem:[#allocation2 + $0xc0] sm:$0xff]
      %v2026 = vld [vmem:[#allocation2 + $0xc8] sm:$0xff]
      %v2027 = vld [vmem:[#allocation2 + $0xd0] sm:$0xff]
      %v2028 = vld [vmem:[#allocation2 + $0xd8] sm:$0xff]
      %v2029 = vld [vmem:[#allocation2 + $0xe0] sm:$0xff]
      %v2030 = vld [vmem:[#allocation2 + $0xe8] sm:$0xff]
      %v2031 = vld [vmem:[#allocation2 + $0xf0] sm:$0xff]
      %v2032 = vld [vmem:[#allocation2 + $0xf8] sm:$0xff]
      %v2033 = vld [vmem:[#allocation2 + $0x100] sm:$0xff]
      %v2034 = vld [vmem:[#allocation2 + $0x108] sm:$0xff]
      %v2035 = vld [vmem:[#allocation2 + $0x110] sm:$0xff]
      %v2036 = vld [vmem:[#allocation2 + $0x118] sm:$0xff]
      %v2037 = vld [vmem:[#allocation2 + $0x120] sm:$0xff]
      %v2038 = vld [vmem:[#allocation2 + $0x128] sm:$0xff]
      %v2039 = vld [vmem:[#allocation2 + $0x130] sm:$0xff]
      %v2040 = vld [vmem:[#allocation2 + $0x138] sm:$0xff]
      %v2041 = vld [vmem:[#allocation2 + $0x140] sm:$0xff]
      %v2042 = vld [vmem:[#allocation2 + $0x148] sm:$0xff]
      %v2043 = vld [vmem:[#allocation2 + $0x150] sm:$0xff]
      %v2044 = vld [vmem:[#allocation2 + $0x158] sm:$0xff]
      %v2045 = vld [vmem:[#allocation2 + $0x160] sm:$0xff]
      %v2046 = vld [vmem:[#allocation2 + $0x168] sm:$0xff]
      %v2047 = vld [vmem:[#allocation2 + $0x170] sm:$0xff]
      %v2048 = vld [vmem:[#allocation2 + $0x178] sm:$0xff]
      %v2049 = vld [vmem:[#allocation2 + $0x180] sm:$0xff]
      %v2050 = vld [vmem:[#allocation2 + $0x188] sm:$0xff]
      %v2051 = vld [vmem:[#allocation2 + $0x190] sm:$0xff]
      %v2052 = vld [vmem:[#allocation2 + $0x198] sm:$0xff]
      %v2053 = vld [vmem:[#allocation2 + $0x1a0] sm:$0xff]
      %v2054 = vld [vmem:[#allocation2 + $0x1a8] sm:$0xff]
      %v2055 = vld [vmem:[#allocation2 + $0x1b0] sm:$0xff]
      %v2056 = vld [vmem:[#allocation2 + $0x1b8] sm:$0xff]
      %v2057 = vld [vmem:[#allocation2 + $0x1c0] sm:$0xff]
      %v2058 = vld [vmem:[#allocation2 + $0x1c8] sm:$0xff]
      %v2059 = vld [vmem:[#allocation2 + $0x1d0] sm:$0xff]
      %v2060 = vld [vmem:[#allocation2 + $0x1d8] sm:$0xff]
      %v2061 = vld [vmem:[#allocation2 + $0x1e0] sm:$0xff]
      %v2062 = vld [vmem:[#allocation2 + $0x1e8] sm:$0xff]
      %v2063 = vld [vmem:[#allocation2 + $0x1f0] sm:$0xff]
      %v2064 = vld [vmem:[#allocation2 + $0x1f8] sm:$0xff]
      %v2065 = vld [vmem:[#allocation2 + $0x200] sm:$0xff]
      %v2066 = vld [vmem:[#allocation2 + $0x208] sm:$0xff]
      %v2067 = vld [vmem:[#allocation2 + $0x210] sm:$0xff]
      %v2068 = vld [vmem:[#allocation2 + $0x218] sm:$0xff]
      %v2069 = vld [vmem:[#allocation2 + $0x220] sm:$0xff]
      %v2070 = vld [vmem:[#allocation2 + $0x228] sm:$0xff]
      %v2071 = vld [vmem:[#allocation2 + $0x230] sm:$0xff]
      %v2072 = vld [vmem:[#allocation2 + $0x238] sm:$0xff]
      %v2073 = vld [vmem:[#allocation2 + $0x240] sm:$0xff]
      %v2074 = vld [vmem:[#allocation2 + $0x248] sm:$0xff]
      %v2075 = vld [vmem:[#allocation2 + $0x250] sm:$0xff]
      %v2076 = vld [vmem:[#allocation2 + $0x258] sm:$0xff]
      %v2077 = vld [vmem:[#allocation2 + $0x260] sm:$0xff]
      %v2078 = vld [vmem:[#allocation2 + $0x268] sm:$0xff]
      %v2079 = vld [vmem:[#allocation2 + $0x270] sm:$0xff]
      %v2080 = vld [vmem:[#allocation2 + $0x278] sm:$0xff]
      %v2081 = vld [vmem:[#allocation2 + $0x280] sm:$0xff]
      %v2082 = vld [vmem:[#allocation2 + $0x288] sm:$0xff]
      %v2083 = vld [vmem:[#allocation2 + $0x290] sm:$0xff]
      %v2084 = vld [vmem:[#allocation2 + $0x298] sm:$0xff]
      %v2085 = vld [vmem:[#allocation2 + $0x2a0] sm:$0xff]
      %v2086 = vld [vmem:[#allocation2 + $0x2a8] sm:$0xff]
      %v2087 = vld [vmem:[#allocation2 + $0x2b0] sm:$0xff]
      %v2088 = vld [vmem:[#allocation2 + $0x2b8] sm:$0xff]
      %v2089 = vld [vmem:[#allocation2 + $0x2c0] sm:$0xff]
      %v2090 = vld [vmem:[#allocation2 + $0x2c8] sm:$0xff]
      %v2091 = vld [vmem:[#allocation2 + $0x2d0] sm:$0xff]
      %v2092 = vld [vmem:[#allocation2 + $0x2d8] sm:$0xff]
      %v2093 = vld [vmem:[#allocation2 + $0x2e0] sm:$0xff]
      %v2094 = vld [vmem:[#allocation2 + $0x2e8] sm:$0xff]
      %v2095 = vld [vmem:[#allocation2 + $0x2f0] sm:$0xff]
      %v2096 = vld [vmem:[#allocation2 + $0x2f8] sm:$0xff]
      %v2097 = vpack.c.bf16 %v2004, %v2001
      %v2098 = vpack.c.bf16 %v2005, %v2002
      %v2099 = vpack.c.bf16 %v2006, %v2003
      %v2100 = vpack.c.bf16 %v2010, %v2007
      %v2101 = vpack.c.bf16 %v2011, %v2008
      %v2102 = vpack.c.bf16 %v2012, %v2009
      %v2103 = vpack.c.bf16 %v2016, %v2013
      %v2104 = vpack.c.bf16 %v2017, %v2014
      %v2105 = vpack.c.bf16 %v2018, %v2015
      %v2106 = vpack.c.bf16 %v2022, %v2019
      %v2107 = vpack.c.bf16 %v2023, %v2020
      %v2108 = vpack.c.bf16 %v2024, %v2021
      %v2109 = vpack.c.bf16 %v2028, %v2025
      %v2110 = vpack.c.bf16 %v2029, %v2026
      %v2111 = vpack.c.bf16 %v2030, %v2027
      %v2112 = vpack.c.bf16 %v2034, %v2031
      %v2113 = vpack.c.bf16 %v2035, %v2032
      %v2114 = vpack.c.bf16 %v2036, %v2033
      %v2115 = vpack.c.bf16 %v2040, %v2037
      %v2116 = vpack.c.bf16 %v2041, %v2038
      %v2117 = vpack.c.bf16 %v2042, %v2039
      %v2118 = vpack.c.bf16 %v2046, %v2043
      %v2119 = vpack.c.bf16 %v2047, %v2044
      %v2120 = vpack.c.bf16 %v2048, %v2045
      %v2121 = vpack.c.bf16 %v2052, %v2049
      %v2122 = vpack.c.bf16 %v2053, %v2050
      %v2123 = vpack.c.bf16 %v2054, %v2051
      %v2124 = vpack.c.bf16 %v2058, %v2055
      %v2125 = vpack.c.bf16 %v2059, %v2056
      %v2126 = vpack.c.bf16 %v2060, %v2057
      %v2127 = vpack.c.bf16 %v2064, %v2061
      %v2128 = vpack.c.bf16 %v2065, %v2062
      %v2129 = vpack.c.bf16 %v2066, %v2063
      %v2130 = vpack.c.bf16 %v2070, %v2067
      %v2131 = vpack.c.bf16 %v2071, %v2068
      %v2132 = vpack.c.bf16 %v2072, %v2069
      %v2133 = vpack.c.bf16 %v2076, %v2073
      %v2134 = vpack.c.bf16 %v2077, %v2074
      %v2135 = vpack.c.bf16 %v2078, %v2075
      %v2136 = vpack.c.bf16 %v2082, %v2079
      %v2137 = vpack.c.bf16 %v2083, %v2080
      %v2138 = vpack.c.bf16 %v2084, %v2081
      %v2139 = vpack.c.bf16 %v2088, %v2085
      %v2140 = vpack.c.bf16 %v2089, %v2086
      %v2141 = vpack.c.bf16 %v2090, %v2087
      %v2142 = vpack.c.bf16 %v2094, %v2091
      %v2143 = vpack.c.bf16 %v2095, %v2092
      %v2144 = vpack.c.bf16 %v2096, %v2093
      %v2145 = vld [vmem:[%s4] sm:$0xf]
      %v2146 = vld [vmem:[%s4 + $0x4] sm:$0xf]
      %v2147 = vld [vmem:[%s4 + $0x8] sm:$0xf]
      %v2148 = vld [vmem:[%s4 + $0xc] sm:$0xf]
      %v2149 = vld [vmem:[%s4 + $0x10] sm:$0xf]
      %v2150 = vld [vmem:[%s4 + $0x14] sm:$0xf]
      %v2151 = vld [vmem:[%s4 + $0x18] sm:$0xf]
      %v2152 = vld [vmem:[%s4 + $0x1c] sm:$0xf]
      %v2153 = vld [vmem:[%s4 + $0x20] sm:$0xf]
      %v2154 = vld [vmem:[%s4 + $0x24] sm:$0xf]
      %v2155 = vld [vmem:[%s4 + $0x28] sm:$0xf]
      %v2156 = vld [vmem:[%s4 + $0x2c] sm:$0xf]
      %v2157 = vld [vmem:[%s4 + $0x30] sm:$0xf]
      %v2158 = vld [vmem:[%s4 + $0x34] sm:$0xf]
      %v2159 = vld [vmem:[%s4 + $0x38] sm:$0xf]
      %v2160 = vld [vmem:[%s4 + $0x3c] sm:$0xf]
      %v2161 = vld [vmem:[%s4 + $0x40] sm:$0xf]
      %v2162 = vld [vmem:[%s4 + $0x44] sm:$0xf]
      %v2163 = vld [vmem:[%s4 + $0x48] sm:$0xf]
      %v2164 = vld [vmem:[%s4 + $0x4c] sm:$0xf]
      %v2165 = vld [vmem:[%s4 + $0x50] sm:$0xf]
      %v2166 = vld [vmem:[%s4 + $0x54] sm:$0xf]
      %v2167 = vld [vmem:[%s4 + $0x58] sm:$0xf]
      %v2168 = vld [vmem:[%s4 + $0x5c] sm:$0xf]
      %v2169 = vld [vmem:[%s4 + $0x60] sm:$0xf]
      %v2170 = vld [vmem:[%s4 + $0x64] sm:$0xf]
      %v2171 = vld [vmem:[%s4 + $0x68] sm:$0xf]
      %v2172 = vld [vmem:[%s4 + $0x6c] sm:$0xf]
      %v2173 = vld [vmem:[%s4 + $0x70] sm:$0xf]
      %v2174 = vld [vmem:[%s4 + $0x74] sm:$0xf]
      %v2175 = vld [vmem:[%s4 + $0x78] sm:$0xf]
      %v2176 = vld [vmem:[%s4 + $0x7c] sm:$0xf]
      %v2177 = vld [vmem:[%s4 + $0x80] sm:$0xf]
      %v2178 = vld [vmem:[%s4 + $0x84] sm:$0xf]
      %v2179 = vld [vmem:[%s4 + $0x88] sm:$0xf]
      %v2180 = vld [vmem:[%s4 + $0x8c] sm:$0xf]
      %v2181 = vld [vmem:[%s5] sm:$0x1]
      %v2183 = vlaneseq
      %v2184 = vshrl.u32 %v2183, 7
      %v2185 = vsub.s32 0, %v2184
      %v2186 = vrot.slane %v2181, %v2185
      %v2224 = vunpack.c.l.b16 %v2145
      %v2225 = vunpack.c.l.b16 %v2146
      %v2226 = vunpack.c.l.b16 %v2147
      %v2227 = vunpack.c.l.b16 %v2148
      %v2228 = vunpack.c.l.b16 %v2149
      %v2229 = vunpack.c.l.b16 %v2150
      %v2230 = vunpack.c.l.b16 %v2151
      %v2231 = vunpack.c.l.b16 %v2152
      %v2232 = vunpack.c.l.b16 %v2153
      %v2233 = vunpack.c.l.b16 %v2154
      %v2234 = vunpack.c.l.b16 %v2155
      %v2235 = vunpack.c.l.b16 %v2156
      %v2236 = vunpack.c.l.b16 %v2157
      %v2237 = vunpack.c.l.b16 %v2158
      %v2238 = vunpack.c.l.b16 %v2159
      %v2239 = vunpack.c.l.b16 %v2160
      %v2240 = vunpack.c.l.b16 %v2161
      %v2241 = vunpack.c.l.b16 %v2162
      %v2242 = vunpack.c.l.b16 %v2163
      %v2243 = vunpack.c.l.b16 %v2164
      %v2244 = vunpack.c.l.b16 %v2165
      %v2245 = vunpack.c.l.b16 %v2166
      %v2246 = vunpack.c.l.b16 %v2167
      %v2247 = vunpack.c.l.b16 %v2168
      %v2248 = vunpack.c.l.b16 %v2169
      %v2249 = vunpack.c.l.b16 %v2170
      %v2250 = vunpack.c.l.b16 %v2171
      %v2251 = vunpack.c.l.b16 %v2172
      %v2252 = vunpack.c.l.b16 %v2173
      %v2253 = vunpack.c.l.b16 %v2174
      %v2254 = vunpack.c.l.b16 %v2175
      %v2255 = vunpack.c.l.b16 %v2176
      %v2256 = vunpack.c.l.b16 %v2177
      %v2257 = vunpack.c.l.b16 %v2178
      %v2258 = vunpack.c.l.b16 %v2179
      %v2259 = vunpack.c.l.b16 %v2180
      %v2260 = vpack.c.b16 %v2225, %v2224
      %v2261 = vpack.c.b16 %v2227, %v2226
      %v2262 = vpack.c.b16 %v2229, %v2228
      %v2263 = vpack.c.b16 %v2231, %v2230
      %v2264 = vpack.c.b16 %v2233, %v2232
      %v2265 = vpack.c.b16 %v2235, %v2234
      %v2266 = vpack.c.b16 %v2237, %v2236
      %v2267 = vpack.c.b16 %v2239, %v2238
      %v2268 = vpack.c.b16 %v2241, %v2240
      %v2269 = vpack.c.b16 %v2243, %v2242
      %v2270 = vpack.c.b16 %v2245, %v2244
      %v2271 = vpack.c.b16 %v2247, %v2246
      %v2272 = vpack.c.b16 %v2249, %v2248
      %v2273 = vpack.c.b16 %v2251, %v2250
      %v2274 = vpack.c.b16 %v2253, %v2252
      %v2275 = vpack.c.b16 %v2255, %v2254
      %v2276 = vpack.c.b16 %v2257, %v2256
      %v2277 = vpack.c.b16 %v2259, %v2258
      %v2297 = vsel %vm851, %v2099, 0
      %v2300 = vsel %vm851, %v2102, 0
      %v2303 = vsel %vm851, %v2105, 0
      %v2306 = vsel %vm851, %v2108, 0
      %v2309 = vsel %vm851, %v2111, 0
      %v2312 = vsel %vm851, %v2114, 0
      %v2315 = vsel %vm851, %v2117, 0
      %v2318 = vsel %vm851, %v2120, 0
      %v2321 = vsel %vm851, %v2123, 0
      %v2324 = vsel %vm851, %v2126, 0
      %v2327 = vsel %vm851, %v2129, 0
      %v2330 = vsel %vm851, %v2132, 0
      %v2333 = vsel %vm851, %v2135, 0
      %v2336 = vsel %vm851, %v2138, 0
      %v2339 = vsel %vm851, %v2141, 0
      %v2342 = vsel %vm851, %v2144, 0
      %2344 = vmatprep.subr.bf16.mxu0 0
      %2345 = vmatpush1.bf16.msra.mxu0 %v2267
      %2346 = vmatprep.subr.bf16.mxu0 0
      %2347 = vmatpush1.bf16.msra.mxu0 %v2266
      %2348 = vmatprep.subr.bf16.mxu0 0
      %2349 = vmatpush1.bf16.msra.mxu0 %v2265
      %2350 = vmatprep.subr.bf16.mxu0 0
      %2351 = vmatpush1.bf16.msra.mxu0 %v2264
      %2352 = vmatprep.subr.bf16.mxu0 0
      %2353 = vmatpush1.bf16.msra.mxu0 %v2263
      %2354 = vmatprep.subr.bf16.mxu0 0
      %2355 = vmatpush1.bf16.msra.mxu0 %v2262
      %2356 = vmatprep.subr.bf16.mxu0 0
      %2357 = vmatpush1.bf16.msra.mxu0 %v2261
      %2358 = vmatprep.subr.bf16.mxu0 0
      %2359 = vmatpush1.bf16.msra.mxu0 %v2260
      %2360 = vmatprep.subr.bf16.mxu0 0
      %2361 = vmatpush2.bf16.msra.mxu0 %v2275
      %2362 = vmatprep.subr.bf16.mxu0 0
      %2363 = vmatpush2.bf16.msra.mxu0 %v2274
      %2364 = vmatprep.subr.bf16.mxu0 0
      %2365 = vmatpush2.bf16.msra.mxu0 %v2273
      %2366 = vmatprep.subr.bf16.mxu0 0
      %2367 = vmatpush2.bf16.msra.mxu0 %v2272
      %2368 = vmatprep.subr.bf16.mxu0 0
      %2369 = vmatpush2.bf16.msra.mxu0 %v2271
      %2370 = vmatprep.subr.bf16.mxu0 0
      %2371 = vmatpush2.bf16.msra.mxu0 %v2270
      %2372 = vmatprep.subr.bf16.mxu0 0
      %2373 = vmatpush2.bf16.msra.mxu0 %v2269
      %2374 = vmatprep.subr.bf16.mxu0 0
      %2375 = vmatpush2.bf16.msra.mxu0 %v2268
      %2376 = vmatprep.mubr.bf16.mxu0 %v2098
      %2377 = vmatmul.mubr.bf16.gmra.mxu0 %v2097
      %v2378 = vpop.f32.mrf.mxu0
      %v2379 = vadd.f32 %v2186, %v2378
      %v2380 = vpop.f32.mrf.mxu0
      %v2381 = vpop.f32.mrf.mxu0
      %v2382 = vadd.f32 %v2186, %v2381
      %v2383 = vpop.f32.mrf.mxu0
      %2384 = vmatprep.mubr.bf16.mxu0 %v2101
      %2385 = vmatmul.mubr.bf16.gmra.mxu0 %v2100
      %v2386 = vpop.f32.mrf.mxu0
      %v2387 = vadd.f32 %v2186, %v2386
      %v2388 = vpop.f32.mrf.mxu0
      %v2389 = vpop.f32.mrf.mxu0
      %v2390 = vadd.f32 %v2186, %v2389
      %v2391 = vpop.f32.mrf.mxu0
      %2392 = vmatprep.mubr.bf16.mxu0 %v2104
      %2393 = vmatmul.mubr.bf16.gmra.mxu0 %v2103
      %v2394 = vpop.f32.mrf.mxu0
      %v2395 = vadd.f32 %v2186, %v2394
      %v2396 = vpop.f32.mrf.mxu0
      %v2397 = vpop.f32.mrf.mxu0
      %v2398 = vadd.f32 %v2186, %v2397
      %v2399 = vpop.f32.mrf.mxu0
      %2400 = vmatprep.mubr.bf16.mxu0 %v2107
      %2401 = vmatmul.mubr.bf16.gmra.mxu0 %v2106
      %v2402 = vpop.f32.mrf.mxu0
      %v2403 = vadd.f32 %v2186, %v2402
      %v2404 = vpop.f32.mrf.mxu0
      %v2405 = vpop.f32.mrf.mxu0
      %v2406 = vadd.f32 %v2186, %v2405
      %v2407 = vpop.f32.mrf.mxu0
      %2408 = vmatprep.mubr.bf16.mxu0 %v2110
      %2409 = vmatmul.mubr.bf16.gmra.mxu0 %v2109
      %v2410 = vpop.f32.mrf.mxu0
      %v2411 = vadd.f32 %v2186, %v2410
      %v2412 = vpop.f32.mrf.mxu0
      %v2413 = vpop.f32.mrf.mxu0
      %v2414 = vadd.f32 %v2186, %v2413
      %v2415 = vpop.f32.mrf.mxu0
      %2416 = vmatprep.mubr.bf16.mxu0 %v2113
      %2417 = vmatmul.mubr.bf16.gmra.mxu0 %v2112
      %v2418 = vpop.f32.mrf.mxu0
      %v2419 = vadd.f32 %v2186, %v2418
      %v2420 = vpop.f32.mrf.mxu0
      %v2421 = vpop.f32.mrf.mxu0
      %v2422 = vadd.f32 %v2186, %v2421
      %v2423 = vpop.f32.mrf.mxu0
      %2424 = vmatprep.mubr.bf16.mxu0 %v2116
      %2425 = vmatmul.mubr.bf16.gmra.mxu0 %v2115
      %v2426 = vpop.f32.mrf.mxu0
      %v2427 = vadd.f32 %v2186, %v2426
      %v2428 = vpop.f32.mrf.mxu0
      %v2429 = vpop.f32.mrf.mxu0
      %v2430 = vadd.f32 %v2186, %v2429
      %v2431 = vpop.f32.mrf.mxu0
      %2432 = vmatprep.mubr.bf16.mxu0 %v2119
      %2433 = vmatmul.mubr.bf16.gmra.mxu0 %v2118
      %v2434 = vpop.f32.mrf.mxu0
      %v2435 = vadd.f32 %v2186, %v2434
      %v2436 = vpop.f32.mrf.mxu0
      %v2437 = vpop.f32.mrf.mxu0
      %v2438 = vadd.f32 %v2186, %v2437
      %v2439 = vpop.f32.mrf.mxu0
      %2440 = vmatprep.mubr.bf16.mxu0 %v2122
      %2441 = vmatmul.mubr.bf16.gmra.mxu0 %v2121
      %v2442 = vpop.f32.mrf.mxu0
      %v2443 = vadd.f32 %v2186, %v2442
      %v2444 = vpop.f32.mrf.mxu0
      %v2445 = vpop.f32.mrf.mxu0
      %v2446 = vadd.f32 %v2186, %v2445
      %v2447 = vpop.f32.mrf.mxu0
      %2448 = vmatprep.mubr.bf16.mxu0 %v2125
      %2449 = vmatmul.mubr.bf16.gmra.mxu0 %v2124
      %v2450 = vpop.f32.mrf.mxu0
      %v2451 = vadd.f32 %v2186, %v2450
      %v2452 = vpop.f32.mrf.mxu0
      %v2453 = vpop.f32.mrf.mxu0
      %v2454 = vadd.f32 %v2186, %v2453
      %v2455 = vpop.f32.mrf.mxu0
      %2456 = vmatprep.mubr.bf16.mxu0 %v2128
      %2457 = vmatmul.mubr.bf16.gmra.mxu0 %v2127
      %v2458 = vpop.f32.mrf.mxu0
      %v2459 = vadd.f32 %v2186, %v2458
      %v2460 = vpop.f32.mrf.mxu0
      %v2461 = vpop.f32.mrf.mxu0
      %v2462 = vadd.f32 %v2186, %v2461
      %v2463 = vpop.f32.mrf.mxu0
      %2464 = vmatprep.mubr.bf16.mxu0 %v2131
      %2465 = vmatmul.mubr.bf16.gmra.mxu0 %v2130
      %v2466 = vpop.f32.mrf.mxu0
      %v2467 = vadd.f32 %v2186, %v2466
      %v2468 = vpop.f32.mrf.mxu0
      %v2469 = vpop.f32.mrf.mxu0
      %v2470 = vadd.f32 %v2186, %v2469
      %v2471 = vpop.f32.mrf.mxu0
      %2472 = vmatprep.mubr.bf16.mxu0 %v2134
      %2473 = vmatmul.mubr.bf16.gmra.mxu0 %v2133
      %v2474 = vpop.f32.mrf.mxu0
      %v2475 = vadd.f32 %v2186, %v2474
      %v2476 = vpop.f32.mrf.mxu0
      %v2477 = vpop.f32.mrf.mxu0
      %v2478 = vadd.f32 %v2186, %v2477
      %v2479 = vpop.f32.mrf.mxu0
      %2480 = vmatprep.mubr.bf16.mxu0 %v2137
      %2481 = vmatmul.mubr.bf16.gmra.mxu0 %v2136
      %v2482 = vpop.f32.mrf.mxu0
      %v2483 = vadd.f32 %v2186, %v2482
      %v2484 = vpop.f32.mrf.mxu0
      %v2485 = vpop.f32.mrf.mxu0
      %v2486 = vadd.f32 %v2186, %v2485
      %v2487 = vpop.f32.mrf.mxu0
      %2488 = vmatprep.mubr.bf16.mxu0 %v2140
      %2489 = vmatmul.mubr.bf16.gmra.mxu0 %v2139
      %v2490 = vpop.f32.mrf.mxu0
      %v2491 = vadd.f32 %v2186, %v2490
      %v2492 = vpop.f32.mrf.mxu0
      %v2493 = vpop.f32.mrf.mxu0
      %v2494 = vadd.f32 %v2186, %v2493
      %v2495 = vpop.f32.mrf.mxu0
      %2496 = vmatprep.mubr.bf16.mxu0 %v2143
      %2497 = vmatmul.mubr.bf16.gmra.mxu0 %v2142
      %v2498 = vpop.f32.mrf.mxu0
      %v2499 = vadd.f32 %v2186, %v2498
      %v2500 = vpop.f32.mrf.mxu0
      %v2501 = vpop.f32.mrf.mxu0
      %v2502 = vadd.f32 %v2186, %v2501
      %v2503 = vpop.f32.mrf.mxu0
      %2504 = vdwg.mxu0
      %2505 = vmatprep.subr.bf16.mxu0 0
      %2506 = vmatpush1.bf16.msra.mxu0 0
      %2507 = vmatprep.subr.bf16.mxu0 0
      %2508 = vmatpush1.bf16.msra.mxu0 0
      %2509 = vmatprep.subr.bf16.mxu0 0
      %2510 = vmatpush1.bf16.msra.mxu0 0
      %2511 = vmatprep.subr.bf16.mxu0 0
      %2512 = vmatpush1.bf16.msra.mxu0 0
      %2513 = vmatprep.subr.bf16.mxu0 0
      %2514 = vmatpush1.bf16.msra.mxu0 0
      %2515 = vmatprep.subr.bf16.mxu0 0
      %2516 = vmatpush1.bf16.msra.mxu0 0
      %2517 = vmatprep.subr.bf16.mxu0 0
      %2518 = vmatpush1.bf16.msra.mxu0 %v2277
      %2519 = vmatprep.subr.bf16.mxu0 0
      %2520 = vmatpush1.bf16.msra.mxu0 %v2276
      %2521 = vmatprep.subr.bf16.mxu0 0
      %2522 = vmatpush2.bf16.msra.mxu0 0
      %2523 = vmatprep.subr.bf16.mxu0 0
      %2524 = vmatpush2.bf16.msra.mxu0 0
      %2525 = vmatprep.subr.bf16.mxu0 0
      %2526 = vmatpush2.bf16.msra.mxu0 0
      %2527 = vmatprep.subr.bf16.mxu0 0
      %2528 = vmatpush2.bf16.msra.mxu0 0
      %2529 = vmatprep.subr.bf16.mxu0 0
      %2530 = vmatpush2.bf16.msra.mxu0 0
      %2531 = vmatprep.subr.bf16.mxu0 0
      %2532 = vmatpush2.bf16.msra.mxu0 0
      %2533 = vmatprep.subr.bf16.mxu0 0
      %2534 = vmatpush2.bf16.msra.mxu0 0
      %2535 = vmatprep.subr.bf16.mxu0 0
      %2536 = vmatpush2.bf16.msra.mxu0 0
      %2537 = vmatprep.mubr.bf16.mxu0 0
      %2538 = vmatmul.mubr.bf16.gmra.mxu0 %v2297
      %v2539 = vpop.f32.mrf.mxu0
      %v2540 = vadd.f32 %v2379, %v2539
      %v2541 = vpop.f32.mrf.mxu0
      %v2542 = vpop.f32.mrf.mxu0
      %v2543 = vadd.f32 %v2382, %v2542
      %v2544 = vpop.f32.mrf.mxu0
      %2545 = vmatprep.mubr.bf16.mxu0 0
      %2546 = vmatmul.mubr.bf16.gmra.mxu0 %v2300
      %v2547 = vpop.f32.mrf.mxu0
      %v2548 = vadd.f32 %v2387, %v2547
      %v2549 = vpop.f32.mrf.mxu0
      %v2550 = vpop.f32.mrf.mxu0
      %v2551 = vadd.f32 %v2390, %v2550
      %v2552 = vpop.f32.mrf.mxu0
      %2553 = vmatprep.mubr.bf16.mxu0 0
      %2554 = vmatmul.mubr.bf16.gmra.mxu0 %v2303
      %v2555 = vpop.f32.mrf.mxu0
      %v2556 = vadd.f32 %v2395, %v2555
      %v2557 = vpop.f32.mrf.mxu0
      %v2558 = vpop.f32.mrf.mxu0
      %v2559 = vadd.f32 %v2398, %v2558
      %v2560 = vpop.f32.mrf.mxu0
      %2561 = vmatprep.mubr.bf16.mxu0 0
      %2562 = vmatmul.mubr.bf16.gmra.mxu0 %v2306
      %v2563 = vpop.f32.mrf.mxu0
      %v2564 = vadd.f32 %v2403, %v2563
      %v2565 = vpop.f32.mrf.mxu0
      %v2566 = vpop.f32.mrf.mxu0
      %v2567 = vadd.f32 %v2406, %v2566
      %v2568 = vpop.f32.mrf.mxu0
      %2569 = vmatprep.mubr.bf16.mxu0 0
      %2570 = vmatmul.mubr.bf16.gmra.mxu0 %v2309
      %v2571 = vpop.f32.mrf.mxu0
      %v2572 = vadd.f32 %v2411, %v2571
      %v2573 = vpop.f32.mrf.mxu0
      %v2574 = vpop.f32.mrf.mxu0
      %v2575 = vadd.f32 %v2414, %v2574
      %v2576 = vpop.f32.mrf.mxu0
      %2577 = vmatprep.mubr.bf16.mxu0 0
      %2578 = vmatmul.mubr.bf16.gmra.mxu0 %v2312
      %v2579 = vpop.f32.mrf.mxu0
      %v2580 = vadd.f32 %v2419, %v2579
      %v2581 = vpop.f32.mrf.mxu0
      %v2582 = vpop.f32.mrf.mxu0
      %v2583 = vadd.f32 %v2422, %v2582
      %v2584 = vpop.f32.mrf.mxu0
      %2585 = vmatprep.mubr.bf16.mxu0 0
      %2586 = vmatmul.mubr.bf16.gmra.mxu0 %v2315
      %v2587 = vpop.f32.mrf.mxu0
      %v2588 = vadd.f32 %v2427, %v2587
      %v2589 = vpop.f32.mrf.mxu0
      %v2590 = vpop.f32.mrf.mxu0
      %v2591 = vadd.f32 %v2430, %v2590
      %v2592 = vpop.f32.mrf.mxu0
      %2593 = vmatprep.mubr.bf16.mxu0 0
      %2594 = vmatmul.mubr.bf16.gmra.mxu0 %v2318
      %v2595 = vpop.f32.mrf.mxu0
      %v2596 = vadd.f32 %v2435, %v2595
      %v2597 = vpop.f32.mrf.mxu0
      %v2598 = vpop.f32.mrf.mxu0
      %v2599 = vadd.f32 %v2438, %v2598
      %v2600 = vpop.f32.mrf.mxu0
      %2601 = vmatprep.mubr.bf16.mxu0 0
      %2602 = vmatmul.mubr.bf16.gmra.mxu0 %v2321
      %v2603 = vpop.f32.mrf.mxu0
      %v2604 = vadd.f32 %v2443, %v2603
      %v2605 = vpop.f32.mrf.mxu0
      %v2606 = vpop.f32.mrf.mxu0
      %v2607 = vadd.f32 %v2446, %v2606
      %v2608 = vpop.f32.mrf.mxu0
      %2609 = vmatprep.mubr.bf16.mxu0 0
      %2610 = vmatmul.mubr.bf16.gmra.mxu0 %v2324
      %v2611 = vpop.f32.mrf.mxu0
      %v2612 = vadd.f32 %v2451, %v2611
      %v2613 = vpop.f32.mrf.mxu0
      %v2614 = vpop.f32.mrf.mxu0
      %v2615 = vadd.f32 %v2454, %v2614
      %v2616 = vpop.f32.mrf.mxu0
      %2617 = vmatprep.mubr.bf16.mxu0 0
      %2618 = vmatmul.mubr.bf16.gmra.mxu0 %v2327
      %v2619 = vpop.f32.mrf.mxu0
      %v2620 = vadd.f32 %v2459, %v2619
      %v2621 = vpop.f32.mrf.mxu0
      %v2622 = vpop.f32.mrf.mxu0
      %v2623 = vadd.f32 %v2462, %v2622
      %v2624 = vpop.f32.mrf.mxu0
      %2625 = vmatprep.mubr.bf16.mxu0 0
      %2626 = vmatmul.mubr.bf16.gmra.mxu0 %v2330
      %v2627 = vpop.f32.mrf.mxu0
      %v2628 = vadd.f32 %v2467, %v2627
      %v2629 = vpop.f32.mrf.mxu0
      %v2630 = vpop.f32.mrf.mxu0
      %v2631 = vadd.f32 %v2470, %v2630
      %v2632 = vpop.f32.mrf.mxu0
      %2633 = vmatprep.mubr.bf16.mxu0 0
      %2634 = vmatmul.mubr.bf16.gmra.mxu0 %v2333
      %v2635 = vpop.f32.mrf.mxu0
      %v2636 = vadd.f32 %v2475, %v2635
      %v2637 = vpop.f32.mrf.mxu0
      %v2638 = vpop.f32.mrf.mxu0
      %v2639 = vadd.f32 %v2478, %v2638
      %v2640 = vpop.f32.mrf.mxu0
      %2641 = vmatprep.mubr.bf16.mxu0 0
      %2642 = vmatmul.mubr.bf16.gmra.mxu0 %v2336
      %v2643 = vpop.f32.mrf.mxu0
      %v2644 = vadd.f32 %v2483, %v2643
      %v2645 = vpop.f32.mrf.mxu0
      %v2646 = vpop.f32.mrf.mxu0
      %v2647 = vadd.f32 %v2486, %v2646
      %v2648 = vpop.f32.mrf.mxu0
      %2649 = vmatprep.mubr.bf16.mxu0 0
      %2650 = vmatmul.mubr.bf16.gmra.mxu0 %v2339
      %v2651 = vpop.f32.mrf.mxu0
      %v2652 = vadd.f32 %v2491, %v2651
      %v2653 = vpop.f32.mrf.mxu0
      %v2654 = vpop.f32.mrf.mxu0
      %v2655 = vadd.f32 %v2494, %v2654
      %v2656 = vpop.f32.mrf.mxu0
      %2657 = vmatprep.mubr.bf16.mxu0 0
      %2658 = vmatmul.mubr.bf16.gmra.mxu0 %v2342
      %v2659 = vpop.f32.mrf.mxu0
      %v2660 = vadd.f32 %v2499, %v2659
      %v2661 = vpop.f32.mrf.mxu0
      %v2662 = vpop.f32.mrf.mxu0
      %v2663 = vadd.f32 %v2502, %v2662
      %v2664 = vpop.f32.mrf.mxu0
      %2665 = vdwg.mxu0
      %v2666 = vsub.f32 0.0, %v2540
      %v2667 = vsub.f32 0.0, %v2543
      %v2668 = vsub.f32 0.0, %v2548
      %v2669 = vsub.f32 0.0, %v2551
      %v2670 = vsub.f32 0.0, %v2556
      %v2671 = vsub.f32 0.0, %v2559
      %v2672 = vsub.f32 0.0, %v2564
      %v2673 = vsub.f32 0.0, %v2567
      %v2674 = vsub.f32 0.0, %v2572
      %v2675 = vsub.f32 0.0, %v2575
      %v2676 = vsub.f32 0.0, %v2580
      %v2677 = vsub.f32 0.0, %v2583
      %v2678 = vsub.f32 0.0, %v2588
      %v2679 = vsub.f32 0.0, %v2591
      %v2680 = vsub.f32 0.0, %v2596
      %v2681 = vsub.f32 0.0, %v2599
      %v2682 = vsub.f32 0.0, %v2604
      %v2683 = vsub.f32 0.0, %v2607
      %v2684 = vsub.f32 0.0, %v2612
      %v2685 = vsub.f32 0.0, %v2615
      %v2686 = vsub.f32 0.0, %v2620
      %v2687 = vsub.f32 0.0, %v2623
      %v2688 = vsub.f32 0.0, %v2628
      %v2689 = vsub.f32 0.0, %v2631
      %v2690 = vsub.f32 0.0, %v2636
      %v2691 = vsub.f32 0.0, %v2639
      %v2692 = vsub.f32 0.0, %v2644
      %v2693 = vsub.f32 0.0, %v2647
      %v2694 = vsub.f32 0.0, %v2652
      %v2695 = vsub.f32 0.0, %v2655
      %v2696 = vsub.f32 0.0, %v2660
      %v2697 = vsub.f32 0.0, %v2663
      %v2698 = vmul.f32 %v2666, 1.442695
      %v2699 = vpow.pop %v2698
      %v2700 = vmul.f32 %v2667, 1.442695
      %v2701 = vpow.pop %v2700
      %v2702 = vmul.f32 %v2668, 1.442695
      %v2703 = vpow.pop %v2702
      %v2704 = vmul.f32 %v2669, 1.442695
      %v2705 = vpow.pop %v2704
      %v2706 = vmul.f32 %v2670, 1.442695
      %v2707 = vpow.pop %v2706
      %v2708 = vmul.f32 %v2671, 1.442695
      %v2709 = vpow.pop %v2708
      %v2710 = vmul.f32 %v2672, 1.442695
      %v2711 = vpow.pop %v2710
      %v2712 = vmul.f32 %v2673, 1.442695
      %v2713 = vpow.pop %v2712
      %v2714 = vmul.f32 %v2674, 1.442695
      %v2715 = vpow.pop %v2714
      %v2716 = vmul.f32 %v2675, 1.442695
      %v2717 = vpow.pop %v2716
      %v2718 = vmul.f32 %v2676, 1.442695
      %v2719 = vpow.pop %v2718
      %v2720 = vmul.f32 %v2677, 1.442695
      %v2721 = vpow.pop %v2720
      %v2722 = vmul.f32 %v2678, 1.442695
      %v2723 = vpow.pop %v2722
      %v2724 = vmul.f32 %v2679, 1.442695
      %v2725 = vpow.pop %v2724
      %v2726 = vmul.f32 %v2680, 1.442695
      %v2727 = vpow.pop %v2726
      %v2728 = vmul.f32 %v2681, 1.442695
      %v2729 = vpow.pop %v2728
      %v2730 = vmul.f32 %v2682, 1.442695
      %v2731 = vpow.pop %v2730
      %v2732 = vmul.f32 %v2683, 1.442695
      %v2733 = vpow.pop %v2732
      %v2734 = vmul.f32 %v2684, 1.442695
      %v2735 = vpow.pop %v2734
      %v2736 = vmul.f32 %v2685, 1.442695
      %v2737 = vpow.pop %v2736
      %v2738 = vmul.f32 %v2686, 1.442695
      %v2739 = vpow.pop %v2738
      %v2740 = vmul.f32 %v2687, 1.442695
      %v2741 = vpow.pop %v2740
      %v2742 = vmul.f32 %v2688, 1.442695
      %v2743 = vpow.pop %v2742
      %v2744 = vmul.f32 %v2689, 1.442695
      %v2745 = vpow.pop %v2744
      %v2746 = vmul.f32 %v2690, 1.442695
      %v2747 = vpow.pop %v2746
      %v2748 = vmul.f32 %v2691, 1.442695
      %v2749 = vpow.pop %v2748
      %v2750 = vmul.f32 %v2692, 1.442695
      %v2751 = vpow.pop %v2750
      %v2752 = vmul.f32 %v2693, 1.442695
      %v2753 = vpow.pop %v2752
      %v2754 = vmul.f32 %v2694, 1.442695
      %v2755 = vpow.pop %v2754
      %v2756 = vmul.f32 %v2695, 1.442695
      %v2757 = vpow.pop %v2756
      %v2758 = vmul.f32 %v2696, 1.442695
      %v2759 = vpow.pop %v2758
      %v2760 = vmul.f32 %v2697, 1.442695
      %v2761 = vpow.pop %v2760
      %v2762 = vadd.f32 %v2699, 1.0
      %v2763 = vadd.f32 %v2701, 1.0
      %v2764 = vadd.f32 %v2703, 1.0
      %v2765 = vadd.f32 %v2705, 1.0
      %v2766 = vadd.f32 %v2707, 1.0
      %v2767 = vadd.f32 %v2709, 1.0
      %v2768 = vadd.f32 %v2711, 1.0
      %v2769 = vadd.f32 %v2713, 1.0
      %v2770 = vadd.f32 %v2715, 1.0
      %v2771 = vadd.f32 %v2717, 1.0
      %v2772 = vadd.f32 %v2719, 1.0
      %v2773 = vadd.f32 %v2721, 1.0
      %v2774 = vadd.f32 %v2723, 1.0
      %v2775 = vadd.f32 %v2725, 1.0
      %v2776 = vadd.f32 %v2727, 1.0
      %v2777 = vadd.f32 %v2729, 1.0
      %v2778 = vadd.f32 %v2731, 1.0
      %v2779 = vadd.f32 %v2733, 1.0
      %v2780 = vadd.f32 %v2735, 1.0
      %v2781 = vadd.f32 %v2737, 1.0
      %v2782 = vadd.f32 %v2739, 1.0
      %v2783 = vadd.f32 %v2741, 1.0
      %v2784 = vadd.f32 %v2743, 1.0
      %v2785 = vadd.f32 %v2745, 1.0
      %v2786 = vadd.f32 %v2747, 1.0
      %v2787 = vadd.f32 %v2749, 1.0
      %v2788 = vadd.f32 %v2751, 1.0
      %v2789 = vadd.f32 %v2753, 1.0
      %v2790 = vadd.f32 %v2755, 1.0
      %v2791 = vadd.f32 %v2757, 1.0
      %v2792 = vadd.f32 %v2759, 1.0
      %v2793 = vadd.f32 %v2761, 1.0
      %v2794 = vrcp.pop %v2762
      %v2795 = vrcp.pop %v2763
      %v2796 = vrcp.pop %v2764
      %v2797 = vrcp.pop %v2765
      %v2798 = vrcp.pop %v2766
      %v2799 = vrcp.pop %v2767
      %v2800 = vrcp.pop %v2768
      %v2801 = vrcp.pop %v2769
      %v2802 = vrcp.pop %v2770
      %v2803 = vrcp.pop %v2771
      %v2804 = vrcp.pop %v2772
      %v2805 = vrcp.pop %v2773
      %v2806 = vrcp.pop %v2774
      %v2807 = vrcp.pop %v2775
      %v2808 = vrcp.pop %v2776
      %v2809 = vrcp.pop %v2777
      %v2810 = vrcp.pop %v2778
      %v2811 = vrcp.pop %v2779
      %v2812 = vrcp.pop %v2780
      %v2813 = vrcp.pop %v2781
      %v2814 = vrcp.pop %v2782
      %v2815 = vrcp.pop %v2783
      %v2816 = vrcp.pop %v2784
      %v2817 = vrcp.pop %v2785
      %v2818 = vrcp.pop %v2786
      %v2819 = vrcp.pop %v2787
      %v2820 = vrcp.pop %v2788
      %v2821 = vrcp.pop %v2789
      %v2822 = vrcp.pop %v2790
      %v2823 = vrcp.pop %v2791
      %v2824 = vrcp.pop %v2792
      %v2825 = vrcp.pop %v2793
      %v2826 = vld [vmem:[%s567] sm:$0xff]
      %v2827 = vld [vmem:[%s567 + $0x8] sm:$0xff]
      %v2828 = vld [vmem:[%s567 + $0x10] sm:$0xff]
      %v2829 = vld [vmem:[%s567 + $0x18] sm:$0xff]
      %v2830 = vld [vmem:[%s567 + $0x20] sm:$0xff]
      %v2831 = vld [vmem:[%s567 + $0x28] sm:$0xff]
      %v2832 = vld [vmem:[%s567 + $0x30] sm:$0xff]
      %v2833 = vld [vmem:[%s567 + $0x38] sm:$0xff]
      %v2834 = vld [vmem:[%s567 + $0x40] sm:$0xff]
      %v2835 = vld [vmem:[%s567 + $0x48] sm:$0xff]
      %v2836 = vld [vmem:[%s567 + $0x50] sm:$0xff]
      %v2837 = vld [vmem:[%s567 + $0x58] sm:$0xff]
      %v2838 = vld [vmem:[%s567 + $0x60] sm:$0xff]
      %v2839 = vld [vmem:[%s567 + $0x68] sm:$0xff]
      %v2840 = vld [vmem:[%s567 + $0x70] sm:$0xff]
      %v2841 = vld [vmem:[%s567 + $0x78] sm:$0xff]
      %v2842 = vld [vmem:[%s567 + $0x80] sm:$0xff]
      %v2843 = vld [vmem:[%s567 + $0x88] sm:$0xff]
      %v2844 = vld [vmem:[%s567 + $0x90] sm:$0xff]
      %v2845 = vld [vmem:[%s567 + $0x98] sm:$0xff]
      %v2846 = vld [vmem:[%s567 + $0xa0] sm:$0xff]
      %v2847 = vld [vmem:[%s567 + $0xa8] sm:$0xff]
      %v2848 = vld [vmem:[%s567 + $0xb0] sm:$0xff]
      %v2849 = vld [vmem:[%s567 + $0xb8] sm:$0xff]
      %v2850 = vld [vmem:[%s567 + $0xc0] sm:$0xff]
      %v2851 = vld [vmem:[%s567 + $0xc8] sm:$0xff]
      %v2852 = vld [vmem:[%s567 + $0xd0] sm:$0xff]
      %v2853 = vld [vmem:[%s567 + $0xd8] sm:$0xff]
      %v2854 = vld [vmem:[%s567 + $0xe0] sm:$0xff]
      %v2855 = vld [vmem:[%s567 + $0xe8] sm:$0xff]
      %v2856 = vld [vmem:[%s567 + $0xf0] sm:$0xff]
      %v2857 = vld [vmem:[%s567 + $0xf8] sm:$0xff]
      %v2858 = vmul.f32 %v2794, %v2826
      %v2859 = vmul.f32 %v2795, %v2827
      %v2860 = vmul.f32 %v2796, %v2828
      %v2861 = vmul.f32 %v2797, %v2829
      %v2862 = vmul.f32 %v2798, %v2830
      %v2863 = vmul.f32 %v2799, %v2831
      %v2864 = vmul.f32 %v2800, %v2832
      %v2865 = vmul.f32 %v2801, %v2833
      %v2866 = vmul.f32 %v2802, %v2834
      %v2867 = vmul.f32 %v2803, %v2835
      %v2868 = vmul.f32 %v2804, %v2836
      %v2869 = vmul.f32 %v2805, %v2837
      %v2870 = vmul.f32 %v2806, %v2838
      %v2871 = vmul.f32 %v2807, %v2839
      %v2872 = vmul.f32 %v2808, %v2840
      %v2873 = vmul.f32 %v2809, %v2841
      %v2874 = vmul.f32 %v2810, %v2842
      %v2875 = vmul.f32 %v2811, %v2843
      %v2876 = vmul.f32 %v2812, %v2844
      %v2877 = vmul.f32 %v2813, %v2845
      %v2878 = vmul.f32 %v2814, %v2846
      %v2879 = vmul.f32 %v2815, %v2847
      %v2880 = vmul.f32 %v2816, %v2848
      %v2881 = vmul.f32 %v2817, %v2849
      %v2882 = vmul.f32 %v2818, %v2850
      %v2883 = vmul.f32 %v2819, %v2851
      %v2884 = vmul.f32 %v2820, %v2852
      %v2885 = vmul.f32 %v2821, %v2853
      %v2886 = vmul.f32 %v2822, %v2854
      %v2887 = vmul.f32 %v2823, %v2855
      %v2888 = vmul.f32 %v2824, %v2856
      %v2889 = vmul.f32 %v2825, %v2857
      %v2890 = vpack.c.bf16 %v2859, %v2858
      %v2891 = vpack.c.bf16 %v2861, %v2860
      %v2892 = vpack.c.bf16 %v2863, %v2862
      %v2893 = vpack.c.bf16 %v2865, %v2864
      %v2894 = vpack.c.bf16 %v2867, %v2866
      %v2895 = vpack.c.bf16 %v2869, %v2868
      %v2896 = vpack.c.bf16 %v2871, %v2870
      %v2897 = vpack.c.bf16 %v2873, %v2872
      %v2898 = vpack.c.bf16 %v2875, %v2874
      %v2899 = vpack.c.bf16 %v2877, %v2876
      %v2900 = vpack.c.bf16 %v2879, %v2878
      %v2901 = vpack.c.bf16 %v2881, %v2880
      %v2902 = vpack.c.bf16 %v2883, %v2882
      %v2903 = vpack.c.bf16 %v2885, %v2884
      %v2904 = vpack.c.bf16 %v2887, %v2886
      %v2905 = vpack.c.bf16 %v2889, %v2888
      %v2906 = vld [vmem:[%s6] sm:$0xf]
      %v2907 = vld [vmem:[%s6 + $0x4] sm:$0xf]
      %v2908 = vld [vmem:[%s6 + $0x8] sm:$0xf]
      %v2909 = vld [vmem:[%s6 + $0xc] sm:$0xf]
      %v2910 = vld [vmem:[%s7] sm:$0x1]
      %v2912 = vlaneseq
      %v2913 = vshrl.u32 %v2912, 7
      %v2914 = vsub.s32 0, %v2913
      %v2915 = vrot.slane %v2910, %v2914
      %v2921 = vunpack.c.l.b16 %v2906
      %v2922 = vunpack.c.l.b16 %v2907
      %v2923 = vunpack.c.l.b16 %v2908
      %v2924 = vunpack.c.l.b16 %v2909
      %v2925 = vpack.c.b16 %v2922, %v2921
      %v2926 = vpack.c.b16 %v2924, %v2923
      %v2930 = vsel %vm851, %v2890, 0
      %v2933 = vsel %vm851, %v2891, 0
      %v2936 = vsel %vm851, %v2892, 0
      %v2939 = vsel %vm851, %v2893, 0
      %v2942 = vsel %vm851, %v2894, 0
      %v2945 = vsel %vm851, %v2895, 0
      %v2948 = vsel %vm851, %v2896, 0
      %v2951 = vsel %vm851, %v2897, 0
      %v2954 = vsel %vm851, %v2898, 0
      %v2957 = vsel %vm851, %v2899, 0
      %v2960 = vsel %vm851, %v2900, 0
      %v2963 = vsel %vm851, %v2901, 0
      %v2966 = vsel %vm851, %v2902, 0
      %v2969 = vsel %vm851, %v2903, 0
      %v2972 = vsel %vm851, %v2904, 0
      %v2975 = vsel %vm851, %v2905, 0
      %2977 = vmatprep.subr.bf16.mxu0 0
      %2978 = vmatpush1.bf16.msra.mxu0 0
      %2979 = vmatprep.subr.bf16.mxu0 0
      %2980 = vmatpush1.bf16.msra.mxu0 0
      %2981 = vmatprep.subr.bf16.mxu0 0
      %2982 = vmatpush1.bf16.msra.mxu0 0
      %2983 = vmatprep.subr.bf16.mxu0 0
      %2984 = vmatpush1.bf16.msra.mxu0 0
      %2985 = vmatprep.subr.bf16.mxu0 0
      %2986 = vmatpush1.bf16.msra.mxu0 0
      %2987 = vmatprep.subr.bf16.mxu0 0
      %2988 = vmatpush1.bf16.msra.mxu0 0
      %2989 = vmatprep.subr.bf16.mxu0 0
      %2990 = vmatpush1.bf16.msra.mxu0 %v2926
      %2991 = vmatprep.subr.bf16.mxu0 0
      %2992 = vmatpush1.bf16.msra.mxu0 %v2925
      %2993 = vmatprep.subr.bf16.mxu0 0
      %2994 = vmatpush2.bf16.msra.mxu0 0
      %2995 = vmatprep.subr.bf16.mxu0 0
      %2996 = vmatpush2.bf16.msra.mxu0 0
      %2997 = vmatprep.subr.bf16.mxu0 0
      %2998 = vmatpush2.bf16.msra.mxu0 0
      %2999 = vmatprep.subr.bf16.mxu0 0
      %3000 = vmatpush2.bf16.msra.mxu0 0
      %3001 = vmatprep.subr.bf16.mxu0 0
      %3002 = vmatpush2.bf16.msra.mxu0 0
      %3003 = vmatprep.subr.bf16.mxu0 0
      %3004 = vmatpush2.bf16.msra.mxu0 0
      %3005 = vmatprep.subr.bf16.mxu0 0
      %3006 = vmatpush2.bf16.msra.mxu0 0
      %3007 = vmatprep.subr.bf16.mxu0 0
      %3008 = vmatpush2.bf16.msra.mxu0 0
      %3009 = vmatprep.mubr.bf16.mxu0 0
      %3010 = vmatmul.mubr.bf16.gmra.mxu0 %v2930
      %v3011 = vpop.f32.mrf.mxu0
      %v3012 = vadd.f32 %v2915, %v3011
      %v3013 = vpop.f32.mrf.mxu0
      %v3014 = vpop.f32.mrf.mxu0
      %v3015 = vadd.f32 %v2915, %v3014
      %v3016 = vpop.f32.mrf.mxu0
      %3017 = vmatprep.mubr.bf16.mxu0 0
      %3018 = vmatmul.mubr.bf16.gmra.mxu0 %v2933
      %v3019 = vpop.f32.mrf.mxu0
      %v3020 = vadd.f32 %v2915, %v3019
      %v3021 = vpop.f32.mrf.mxu0
      %v3022 = vpop.f32.mrf.mxu0
      %v3023 = vadd.f32 %v2915, %v3022
      %v3024 = vpop.f32.mrf.mxu0
      %3025 = vmatprep.mubr.bf16.mxu0 0
      %3026 = vmatmul.mubr.bf16.gmra.mxu0 %v2936
      %v3027 = vpop.f32.mrf.mxu0
      %v3028 = vadd.f32 %v2915, %v3027
      %v3029 = vpop.f32.mrf.mxu0
      %v3030 = vpop.f32.mrf.mxu0
      %v3031 = vadd.f32 %v2915, %v3030
      %v3032 = vpop.f32.mrf.mxu0
      %3033 = vmatprep.mubr.bf16.mxu0 0
      %3034 = vmatmul.mubr.bf16.gmra.mxu0 %v2939
      %v3035 = vpop.f32.mrf.mxu0
      %v3036 = vadd.f32 %v2915, %v3035
      %v3037 = vpop.f32.mrf.mxu0
      %v3038 = vpop.f32.mrf.mxu0
      %v3039 = vadd.f32 %v2915, %v3038
      %v3040 = vpop.f32.mrf.mxu0
      %3041 = vmatprep.mubr.bf16.mxu0 0
      %3042 = vmatmul.mubr.bf16.gmra.mxu0 %v2942
      %v3043 = vpop.f32.mrf.mxu0
      %v3044 = vadd.f32 %v2915, %v3043
      %v3045 = vpop.f32.mrf.mxu0
      %v3046 = vpop.f32.mrf.mxu0
      %v3047 = vadd.f32 %v2915, %v3046
      %v3048 = vpop.f32.mrf.mxu0
      %3049 = vmatprep.mubr.bf16.mxu0 0
      %3050 = vmatmul.mubr.bf16.gmra.mxu0 %v2945
      %v3051 = vpop.f32.mrf.mxu0
      %v3052 = vadd.f32 %v2915, %v3051
      %v3053 = vpop.f32.mrf.mxu0
      %v3054 = vpop.f32.mrf.mxu0
      %v3055 = vadd.f32 %v2915, %v3054
      %v3056 = vpop.f32.mrf.mxu0
      %3057 = vmatprep.mubr.bf16.mxu0 0
      %3058 = vmatmul.mubr.bf16.gmra.mxu0 %v2948
      %v3059 = vpop.f32.mrf.mxu0
      %v3060 = vadd.f32 %v2915, %v3059
      %v3061 = vpop.f32.mrf.mxu0
      %v3062 = vpop.f32.mrf.mxu0
      %v3063 = vadd.f32 %v2915, %v3062
      %v3064 = vpop.f32.mrf.mxu0
      %3065 = vmatprep.mubr.bf16.mxu0 0
      %3066 = vmatmul.mubr.bf16.gmra.mxu0 %v2951
      %v3067 = vpop.f32.mrf.mxu0
      %v3068 = vadd.f32 %v2915, %v3067
      %v3069 = vpop.f32.mrf.mxu0
      %v3070 = vpop.f32.mrf.mxu0
      %v3071 = vadd.f32 %v2915, %v3070
      %v3072 = vpop.f32.mrf.mxu0
      %3073 = vmatprep.mubr.bf16.mxu0 0
      %3074 = vmatmul.mubr.bf16.gmra.mxu0 %v2954
      %v3075 = vpop.f32.mrf.mxu0
      %v3076 = vadd.f32 %v2915, %v3075
      %v3077 = vpop.f32.mrf.mxu0
      %v3078 = vpop.f32.mrf.mxu0
      %v3079 = vadd.f32 %v2915, %v3078
      %v3080 = vpop.f32.mrf.mxu0
      %3081 = vmatprep.mubr.bf16.mxu0 0
      %3082 = vmatmul.mubr.bf16.gmra.mxu0 %v2957
      %v3083 = vpop.f32.mrf.mxu0
      %v3084 = vadd.f32 %v2915, %v3083
      %v3085 = vpop.f32.mrf.mxu0
      %v3086 = vpop.f32.mrf.mxu0
      %v3087 = vadd.f32 %v2915, %v3086
      %v3088 = vpop.f32.mrf.mxu0
      %3089 = vmatprep.mubr.bf16.mxu0 0
      %3090 = vmatmul.mubr.bf16.gmra.mxu0 %v2960
      %v3091 = vpop.f32.mrf.mxu0
      %v3092 = vadd.f32 %v2915, %v3091
      %v3093 = vpop.f32.mrf.mxu0
      %v3094 = vpop.f32.mrf.mxu0
      %v3095 = vadd.f32 %v2915, %v3094
      %v3096 = vpop.f32.mrf.mxu0
      %3097 = vmatprep.mubr.bf16.mxu0 0
      %3098 = vmatmul.mubr.bf16.gmra.mxu0 %v2963
      %v3099 = vpop.f32.mrf.mxu0
      %v3100 = vadd.f32 %v2915, %v3099
      %v3101 = vpop.f32.mrf.mxu0
      %v3102 = vpop.f32.mrf.mxu0
      %v3103 = vadd.f32 %v2915, %v3102
      %v3104 = vpop.f32.mrf.mxu0
      %3105 = vmatprep.mubr.bf16.mxu0 0
      %3106 = vmatmul.mubr.bf16.gmra.mxu0 %v2966
      %v3107 = vpop.f32.mrf.mxu0
      %v3108 = vadd.f32 %v2915, %v3107
      %v3109 = vpop.f32.mrf.mxu0
      %v3110 = vpop.f32.mrf.mxu0
      %v3111 = vadd.f32 %v2915, %v3110
      %v3112 = vpop.f32.mrf.mxu0
      %3113 = vmatprep.mubr.bf16.mxu0 0
      %3114 = vmatmul.mubr.bf16.gmra.mxu0 %v2969
      %v3115 = vpop.f32.mrf.mxu0
      %v3116 = vadd.f32 %v2915, %v3115
      %v3117 = vpop.f32.mrf.mxu0
      %v3118 = vpop.f32.mrf.mxu0
      %v3119 = vadd.f32 %v2915, %v3118
      %v3120 = vpop.f32.mrf.mxu0
      %3121 = vmatprep.mubr.bf16.mxu0 0
      %3122 = vmatmul.mubr.bf16.gmra.mxu0 %v2972
      %v3123 = vpop.f32.mrf.mxu0
      %v3124 = vadd.f32 %v2915, %v3123
      %v3125 = vpop.f32.mrf.mxu0
      %v3126 = vpop.f32.mrf.mxu0
      %v3127 = vadd.f32 %v2915, %v3126
      %v3128 = vpop.f32.mrf.mxu0
      %3129 = vmatprep.mubr.bf16.mxu0 0
      %3130 = vmatmul.mubr.bf16.gmra.mxu0 %v2975
      %v3131 = vpop.f32.mrf.mxu0
      %v3132 = vadd.f32 %v2915, %v3131
      %v3133 = vpop.f32.mrf.mxu0
      %v3134 = vpop.f32.mrf.mxu0
      %v3135 = vadd.f32 %v2915, %v3134
      %v3136 = vpop.f32.mrf.mxu0
      %3137 = vdwg.mxu0
      %vm3138 = vcmask 130048
      %3139 = vst.msk [vmem:[%s574] sm:$0xff] %vm3138, %v3012
      %3140 = vst.msk [vmem:[%s574 + $0x8] sm:$0xff] %vm3138, %v3015
      %3141 = vst.msk [vmem:[%s574 + $0x10] sm:$0xff] %vm3138, %v3020
      %3142 = vst.msk [vmem:[%s574 + $0x18] sm:$0xff] %vm3138, %v3023
      %3143 = vst.msk [vmem:[%s574 + $0x20] sm:$0xff] %vm3138, %v3028
      %3144 = vst.msk [vmem:[%s574 + $0x28] sm:$0xff] %vm3138, %v3031
      %3145 = vst.msk [vmem:[%s574 + $0x30] sm:$0xff] %vm3138, %v3036
      %3146 = vst.msk [vmem:[%s574 + $0x38] sm:$0xff] %vm3138, %v3039
      %3147 = vst.msk [vmem:[%s574 + $0x40] sm:$0xff] %vm3138, %v3044
      %3148 = vst.msk [vmem:[%s574 + $0x48] sm:$0xff] %vm3138, %v3047
      %3149 = vst.msk [vmem:[%s574 + $0x50] sm:$0xff] %vm3138, %v3052
      %3150 = vst.msk [vmem:[%s574 + $0x58] sm:$0xff] %vm3138, %v3055
      %3151 = vst.msk [vmem:[%s574 + $0x60] sm:$0xff] %vm3138, %v3060
      %3152 = vst.msk [vmem:[%s574 + $0x68] sm:$0xff] %vm3138, %v3063
      %3153 = vst.msk [vmem:[%s574 + $0x70] sm:$0xff] %vm3138, %v3068
      %3154 = vst.msk [vmem:[%s574 + $0x78] sm:$0xff] %vm3138, %v3071
      %3155 = vst.msk [vmem:[%s574 + $0x80] sm:$0xff] %vm3138, %v3076
      %3156 = vst.msk [vmem:[%s574 + $0x88] sm:$0xff] %vm3138, %v3079
      %3157 = vst.msk [vmem:[%s574 + $0x90] sm:$0xff] %vm3138, %v3084
      %3158 = vst.msk [vmem:[%s574 + $0x98] sm:$0xff] %vm3138, %v3087
      %3159 = vst.msk [vmem:[%s574 + $0xa0] sm:$0xff] %vm3138, %v3092
      %3160 = vst.msk [vmem:[%s574 + $0xa8] sm:$0xff] %vm3138, %v3095
      %3161 = vst.msk [vmem:[%s574 + $0xb0] sm:$0xff] %vm3138, %v3100
      %3162 = vst.msk [vmem:[%s574 + $0xb8] sm:$0xff] %vm3138, %v3103
      %3163 = vst.msk [vmem:[%s574 + $0xc0] sm:$0xff] %vm3138, %v3108
      %3164 = vst.msk [vmem:[%s574 + $0xc8] sm:$0xff] %vm3138, %v3111
      %3165 = vst.msk [vmem:[%s574 + $0xd0] sm:$0xff] %vm3138, %v3116
      %3166 = vst.msk [vmem:[%s574 + $0xd8] sm:$0xff] %vm3138, %v3119
      %3167 = vst.msk [vmem:[%s574 + $0xe0] sm:$0xff] %vm3138, %v3124
      %3168 = vst.msk [vmem:[%s574 + $0xe8] sm:$0xff] %vm3138, %v3127
      %3169 = vst.msk [vmem:[%s574 + $0xf0] sm:$0xff] %vm3138, %v3132
      %3170 = vst.msk [vmem:[%s574 + $0xf8] sm:$0xff] %vm3138, %v3135
      %v3171 = vsel %vm3138, %v3012, 0.0
      %v3172 = vsel %vm3138, %v3015, 0.0
      %v3173 = vadd.f32 %v3171, %v3172
      %v3174 = vsel %vm3138, %v3020, 0.0
      %v3175 = vadd.f32 %v3173, %v3174
      %v3176 = vsel %vm3138, %v3023, 0.0
      %v3177 = vadd.f32 %v3175, %v3176
      %v3178 = vsel %vm3138, %v3028, 0.0
      %v3179 = vadd.f32 %v3177, %v3178
      %v3180 = vsel %vm3138, %v3031, 0.0
      %v3181 = vadd.f32 %v3179, %v3180
      %v3182 = vsel %vm3138, %v3036, 0.0
      %v3183 = vadd.f32 %v3181, %v3182
      %v3184 = vsel %vm3138, %v3039, 0.0
      %v3185 = vadd.f32 %v3183, %v3184
      %v3186 = vsel %vm3138, %v3044, 0.0
      %v3187 = vadd.f32 %v3185, %v3186
      %v3188 = vsel %vm3138, %v3047, 0.0
      %v3189 = vadd.f32 %v3187, %v3188
      %v3190 = vsel %vm3138, %v3052, 0.0
      %v3191 = vadd.f32 %v3189, %v3190
      %v3192 = vsel %vm3138, %v3055, 0.0
      %v3193 = vadd.f32 %v3191, %v3192
      %v3194 = vsel %vm3138, %v3060, 0.0
      %v3195 = vadd.f32 %v3193, %v3194
      %v3196 = vsel %vm3138, %v3063, 0.0
      %v3197 = vadd.f32 %v3195, %v3196
      %v3198 = vsel %vm3138, %v3068, 0.0
      %v3199 = vadd.f32 %v3197, %v3198
      %v3200 = vsel %vm3138, %v3071, 0.0
      %v3201 = vadd.f32 %v3199, %v3200
      %v3202 = vsel %vm3138, %v3076, 0.0
      %v3203 = vadd.f32 %v3201, %v3202
      %v3204 = vsel %vm3138, %v3079, 0.0
      %v3205 = vadd.f32 %v3203, %v3204
      %v3206 = vsel %vm3138, %v3084, 0.0
      %v3207 = vadd.f32 %v3205, %v3206
      %v3208 = vsel %vm3138, %v3087, 0.0
      %v3209 = vadd.f32 %v3207, %v3208
      %v3210 = vsel %vm3138, %v3092, 0.0
      %v3211 = vadd.f32 %v3209, %v3210
      %v3212 = vsel %vm3138, %v3095, 0.0
      %v3213 = vadd.f32 %v3211, %v3212
      %v3214 = vsel %vm3138, %v3100, 0.0
      %v3215 = vadd.f32 %v3213, %v3214
      %v3216 = vsel %vm3138, %v3103, 0.0
      %v3217 = vadd.f32 %v3215, %v3216
      %v3218 = vsel %vm3138, %v3108, 0.0
      %v3219 = vadd.f32 %v3217, %v3218
      %v3220 = vsel %vm3138, %v3111, 0.0
      %v3221 = vadd.f32 %v3219, %v3220
      %v3222 = vsel %vm3138, %v3116, 0.0
      %v3223 = vadd.f32 %v3221, %v3222
      %v3224 = vsel %vm3138, %v3119, 0.0
      %v3225 = vadd.f32 %v3223, %v3224
      %v3226 = vsel %vm3138, %v3124, 0.0
      %v3227 = vadd.f32 %v3225, %v3226
      %v3228 = vsel %vm3138, %v3127, 0.0
      %v3229 = vadd.f32 %v3227, %v3228
      %v3230 = vsel %vm3138, %v3132, 0.0
      %v3231 = vadd.f32 %v3229, %v3230
      %v3232 = vsel %vm3138, %v3135, 0.0
      %v3233 = vadd.f32 %v3231, %v3232
      %v3234 = vrot.slane %v3233, 4
      %v3235 = vadd.f32 %v3233, %v3234
      %v3236 = vrot.slane %v3235, 2
      %v3237 = vadd.f32 %v3235, %v3236
      %v3238 = vrot.slane %v3237, 1
      %v3239 = vadd.f32 %v3237, %v3238
      %vm3240 = vcmask 122880
      %3241 = vst.msk [vmem:[%s580] sm:$0x1] %vm3240, %v3239
      %v3242 = vmul.f32 %v3012, %v3012
      %v3243 = vmul.f32 %v3015, %v3015
      %v3244 = vmul.f32 %v3020, %v3020
      %v3245 = vmul.f32 %v3023, %v3023
      %v3246 = vmul.f32 %v3028, %v3028
      %v3247 = vmul.f32 %v3031, %v3031
      %v3248 = vmul.f32 %v3036, %v3036
      %v3249 = vmul.f32 %v3039, %v3039
      %v3250 = vmul.f32 %v3044, %v3044
      %v3251 = vmul.f32 %v3047, %v3047
      %v3252 = vmul.f32 %v3052, %v3052
      %v3253 = vmul.f32 %v3055, %v3055
      %v3254 = vmul.f32 %v3060, %v3060
      %v3255 = vmul.f32 %v3063, %v3063
      %v3256 = vmul.f32 %v3068, %v3068
      %v3257 = vmul.f32 %v3071, %v3071
      %v3258 = vmul.f32 %v3076, %v3076
      %v3259 = vmul.f32 %v3079, %v3079
      %v3260 = vmul.f32 %v3084, %v3084
      %v3261 = vmul.f32 %v3087, %v3087
      %v3262 = vmul.f32 %v3092, %v3092
      %v3263 = vmul.f32 %v3095, %v3095
      %v3264 = vmul.f32 %v3100, %v3100
      %v3265 = vmul.f32 %v3103, %v3103
      %v3266 = vmul.f32 %v3108, %v3108
      %v3267 = vmul.f32 %v3111, %v3111
      %v3268 = vmul.f32 %v3116, %v3116
      %v3269 = vmul.f32 %v3119, %v3119
      %v3270 = vmul.f32 %v3124, %v3124
      %v3271 = vmul.f32 %v3127, %v3127
      %v3272 = vmul.f32 %v3132, %v3132
      %v3273 = vmul.f32 %v3135, %v3135
      %v3274 = vsel %vm3138, %v3242, 0.0
      %v3275 = vsel %vm3138, %v3243, 0.0
      %v3276 = vadd.f32 %v3274, %v3275
      %v3277 = vsel %vm3138, %v3244, 0.0
      %v3278 = vadd.f32 %v3276, %v3277
      %v3279 = vsel %vm3138, %v3245, 0.0
      %v3280 = vadd.f32 %v3278, %v3279
      %v3281 = vsel %vm3138, %v3246, 0.0
      %v3282 = vadd.f32 %v3280, %v3281
      %v3283 = vsel %vm3138, %v3247, 0.0
      %v3284 = vadd.f32 %v3282, %v3283
      %v3285 = vsel %vm3138, %v3248, 0.0
      %v3286 = vadd.f32 %v3284, %v3285
      %v3287 = vsel %vm3138, %v3249, 0.0
      %v3288 = vadd.f32 %v3286, %v3287
      %v3289 = vsel %vm3138, %v3250, 0.0
      %v3290 = vadd.f32 %v3288, %v3289
      %v3291 = vsel %vm3138, %v3251, 0.0
      %v3292 = vadd.f32 %v3290, %v3291
      %v3293 = vsel %vm3138, %v3252, 0.0
      %v3294 = vadd.f32 %v3292, %v3293
      %v3295 = vsel %vm3138, %v3253, 0.0
      %v3296 = vadd.f32 %v3294, %v3295
      %v3297 = vsel %vm3138, %v3254, 0.0
      %v3298 = vadd.f32 %v3296, %v3297
      %v3299 = vsel %vm3138, %v3255, 0.0
      %v3300 = vadd.f32 %v3298, %v3299
      %v3301 = vsel %vm3138, %v3256, 0.0
      %v3302 = vadd.f32 %v3300, %v3301
      %v3303 = vsel %vm3138, %v3257, 0.0
      %v3304 = vadd.f32 %v3302, %v3303
      %v3305 = vsel %vm3138, %v3258, 0.0
      %v3306 = vadd.f32 %v3304, %v3305
      %v3307 = vsel %vm3138, %v3259, 0.0
      %v3308 = vadd.f32 %v3306, %v3307
      %v3309 = vsel %vm3138, %v3260, 0.0
      %v3310 = vadd.f32 %v3308, %v3309
      %v3311 = vsel %vm3138, %v3261, 0.0
      %v3312 = vadd.f32 %v3310, %v3311
      %v3313 = vsel %vm3138, %v3262, 0.0
      %v3314 = vadd.f32 %v3312, %v3313
      %v3315 = vsel %vm3138, %v3263, 0.0
      %v3316 = vadd.f32 %v3314, %v3315
      %v3317 = vsel %vm3138, %v3264, 0.0
      %v3318 = vadd.f32 %v3316, %v3317
      %v3319 = vsel %vm3138, %v3265, 0.0
      %v3320 = vadd.f32 %v3318, %v3319
      %v3321 = vsel %vm3138, %v3266, 0.0
      %v3322 = vadd.f32 %v3320, %v3321
      %v3323 = vsel %vm3138, %v3267, 0.0
      %v3324 = vadd.f32 %v3322, %v3323
      %v3325 = vsel %vm3138, %v3268, 0.0
      %v3326 = vadd.f32 %v3324, %v3325
      %v3327 = vsel %vm3138, %v3269, 0.0
      %v3328 = vadd.f32 %v3326, %v3327
      %v3329 = vsel %vm3138, %v3270, 0.0
      %v3330 = vadd.f32 %v3328, %v3329
      %v3331 = vsel %vm3138, %v3271, 0.0
      %v3332 = vadd.f32 %v3330, %v3331
      %v3333 = vsel %vm3138, %v3272, 0.0
      %v3334 = vadd.f32 %v3332, %v3333
      %v3335 = vsel %vm3138, %v3273, 0.0
      %v3336 = vadd.f32 %v3334, %v3335
      %v3337 = vrot.slane %v3336, 4
      %v3338 = vadd.f32 %v3336, %v3337
      %v3339 = vrot.slane %v3338, 2
      %v3340 = vadd.f32 %v3338, %v3339
      %v3341 = vrot.slane %v3340, 1
      %v3342 = vadd.f32 %v3340, %v3341
      %3343 = vst.msk [vmem:[%s585] sm:$0x1] %vm3240, %v3342
      %s3344 = sadd.s32 %s26, %s27
      %s3345 = smul.u32 32, %s3344
      %p3346 = scmp.lt.s32.totalorder %s3345, 63
      %s3347 = scalar_select %p3346, %s3345, 63
      %s3348 = smul.addr %s3347, 8
      %s3349 = scalar_lea.vmem %s8, %s3348
      %s3350 = sadd.s32 %s26, %s27
      %p3351 = scmp.lt.s32.totalorder %s3350, 1
      %s3352 = scalar_select %p3351, %s3350, 1
      %s3353 = scalar_lea.vmem %s9, %s3352
      %s3354 = sadd.s32 %s26, %s27
      %p3355 = scmp.lt.s32.totalorder %s3354, 1
      %s3356 = scalar_select %p3355, %s3354, 1
      %s3357 = scalar_lea.vmem %s10, %s3356
      // Predicated region
      $region53: #{attention_gate_forward.6} parent=51 // pred_check
        %p3358 = pneg %p266
      $region54: #{attention_gate_forward.6} parent=51 // pred_check_branch
        %3360 = sbr.rel (%p3358) target = $region56
      $region55: #{attention_gate_forward.6} parent=51 // pred_region
        %s3361 = sadd.s32 %s26, %s27
        %s3362 = smul.u32 32, %s3361
      $region56: #{attention_gate_forward.6} parent=51 // pred_fallthru
        _
      // Predicated region
      $region57: #{attention_gate_forward.6} parent=51 // pred_check
        %p3363 = pneg %p294
      $region58: #{attention_gate_forward.6} parent=51 // pred_check_branch
        %3365 = sbr.rel (%p3363) target = $region60
      $region59: #{attention_gate_forward.6} parent=51 // pred_region
        %s3366 = sadd.s32 %s26, %s27
      $region60: #{attention_gate_forward.6} parent=51 // pred_fallthru
        _
      // Predicated region
      $region61: #{attention_gate_forward.6} parent=51 // pred_check
        %p3367 = pneg %p322
      $region62: #{attention_gate_forward.6} parent=51 // pred_check_branch
        %3369 = sbr.rel (%p3367) target = $region64
      $region63: #{attention_gate_forward.6} parent=51 // pred_region
        %s3370 = sadd.s32 %s26, %s27
      $region64: #{attention_gate_forward.6} parent=51 // pred_fallthru
        _
    $region52: #{attention_gate_forward.6} parent=5 // pred_fallthru
      _
    %p3371 = scmp.le.s32.totalorder 2, %s17
    // Predicated region
    $region65: #{attention_gate_forward.6} parent=5 // pred_check
      %p3372 = pneg %p3371
    $region66: #{attention_gate_forward.6} parent=5 // pred_check_branch
      %3374 = sbr.rel (%p3372) target = $region68
    $region67: #{attention_gate_forward.6} parent=5 // pred_region
      %s3375 = ssub.s32 %s17, 2
      // Predicated region
      $region69: #{attention_gate_forward.6} parent=67 // pred_check
        %p3376 = pneg %p272
      $region70: #{attention_gate_forward.6} parent=67 // pred_check_branch
        %3378 = sbr.rel (%p3376) target = $region72
      $region71: #{attention_gate_forward.6} parent=67 // pred_region
        %s3379 = sadd.s32 %s28, %s29
        %s3380 = smul.u32 32, %s3379
        %p3381 = scmp.lt.s32.totalorder %s3380, 63
        %s3382 = scalar_select %p3381, %s3380, 63
        %s3383 = smul.addr %s3382, 8
        %s3384 = scalar_lea.vmem %s8, %s3383
      $region72: #{attention_gate_forward.6} parent=67 // pred_fallthru
        _
      // Predicated region
      $region73: #{attention_gate_forward.6} parent=67 // pred_check
        %p3385 = pneg %p300
      $region74: #{attention_gate_forward.6} parent=67 // pred_check_branch
        %3387 = sbr.rel (%p3385) target = $region76
      $region75: #{attention_gate_forward.6} parent=67 // pred_region
        %s3388 = sadd.s32 %s28, %s29
        %p3389 = scmp.lt.s32.totalorder %s3388, 1
        %s3390 = scalar_select %p3389, %s3388, 1
        %s3391 = scalar_lea.vmem %s9, %s3390
      $region76: #{attention_gate_forward.6} parent=67 // pred_fallthru
        _
      // Predicated region
      $region77: #{attention_gate_forward.6} parent=67 // pred_check
        %p3392 = pneg %p328
      $region78: #{attention_gate_forward.6} parent=67 // pred_check_branch
        %3394 = sbr.rel (%p3392) target = $region80
      $region79: #{attention_gate_forward.6} parent=67 // pred_region
        %s3395 = sadd.s32 %s28, %s29
        %p3396 = scmp.lt.s32.totalorder %s3395, 1
        %s3397 = scalar_select %p3396, %s3395, 1
        %s3398 = scalar_lea.vmem %s10, %s3397
      $region80: #{attention_gate_forward.6} parent=67 // pred_fallthru
        _
    $region68: #{attention_gate_forward.6} parent=5 // pred_fallthru
      _
  $region6: #{attention_gate_forward.6} parent=0 // loop_footer
    %s21 = sadd.s32 1, %s17
  $region7: #{attention_gate_forward.6} parent=0 // loop_footer_branch
    %16 = sbr.rel target = $region3
  $region8: #{attention_gate_forward.6} parent=0 // loop_exit
    _

// kernel: attention_gate_forward.5
$region0: #{attention_gate_forward.5}
  #allocation0 [shape = 'u32[]', space=smem, size = 0x4, offset = 0x4, fixed_abs, tag = 'smem constant byte address 0x4 - core index']
  #allocation1 [shape = 'u32[144,128]{1,0:T(1,128)}', space=vmem, size = 0x12000, scoped, tag = 'internal scratch']
  #allocation2 [shape = 'f32[16,16,288]{2,1,0:T(8,128)}', space=vmem, size = 0x60000, scoped, tag = 'scratch operand']
  %s0 = inlined_call_operand.vmem [shape: f32[2,16,16,32], index: 0, kind: input, shape index: {}, may-alias: {0,1,2}]
  %s1 = inlined_call_operand.vmem [shape: f32[2,16,16,32], index: 1, kind: input, shape index: {}, may-alias: {0,1,2}]
  %s2 = inlined_call_operand.vmem [shape: f32[2,16,16,32], index: 2, kind: input, shape index: {}, may-alias: {0,1,2}]
  %s3 = inlined_call_operand.vmem [shape: f32[2,8,8,32], index: 3, kind: input, shape index: {}]
  %s4 = inlined_call_operand.vmem [shape: bf16[288,32], index: 4, kind: input, shape index: {}]
  %s5 = inlined_call_operand.vmem [shape: f32[1,32], index: 5, kind: input, shape index: {}]
  %s6 = inlined_call_operand.vmem [shape: f32[2,16,16,32], index: 6, kind: output, shape index: {}]
  %s7 = sld [smem:[#allocation0]]
  $region57: #{attention_gate_forward.5} parent=0
    _
  %s9 = ssub.s32 1, %s7
  %s10 = scalar_select 0, %s9, %s7
  loop: start=0, step=1, limit=4
  $region2: #{attention_gate_forward.5} parent=0 // loop_pre_header
    _
  $region3: #{attention_gate_forward.5} parent=0 // loop_header
    %s12 = sphi 0, %s16
    %p13 = scmp.ge.s32.totalorder %s12, 4
    %s19 = sphi 0, %s31
    %s20 = sphi 0, %s27
    %s21 = sphi 0, %s19
    %s22 = sphi 0, %s20
    %s23 = sphi 0, %s21
    %s24 = sphi 0, %s22
    %s36 = sphi 0, %s38
    %s39 = sphi 0, %s36
    %s40 = sphi 0, %s39
    %s56 = sphi 0, %s40
    %s72 = sphi 0, %s74
    %s75 = sphi 0, %s72
    %s76 = sphi 0, %s75
    %s92 = sphi 0, %s76
    %s108 = sphi 0, %s110
    %s111 = sphi 0, %s108
    %s112 = sphi 0, %s111
    %s128 = sphi 0, %s112
    %s136 = sphi 0, %s138
    %s139 = sphi 0, %s136
    %s140 = sphi 0, %s139
    %s156 = sphi 0, %s140
    %s160 = sphi 0, %s160
    %s162 = sphi 0, %s160
    %s163 = sphi 0, %s162
    %s177 = sphi 0, %s163
    %s181 = sphi 0, %s181
    %s183 = sphi 0, %s181
    %s184 = sphi 0, %s183
    %s198 = sphi 0, %s184
    %s206 = sphi 0, %s208
    %s209 = sphi 0, %s206
    %s210 = sphi 0, %s209
    %s226 = sphi 0, %s210
  $region4: #{attention_gate_forward.5} parent=0 // loop_header_branch
    %15 = sbr.rel (%p13) target = $region8
  $region5: #{attention_gate_forward.5} parent=0 // loop_body
    %s17 = ssub.s32 %s12, 1
    %s18 = ssub.s32 %s12, 2
    %s25 = sadd.s32 1, %s20
    %p26 = scmp.ge.s32.totalorder %s25, 1
    %s27 = scalar_select %p26, 0, %s25
    %s28 = sadd.s32 1, %s19
    %s29 = scalar_select %p26, %s28, %s19
    %p30 = scmp.ge.s32.totalorder %s29, 2
    %s31 = scalar_select %p30, 0, %s29
    %s32 = ssub.s32 %s19, %s31
    %s33 = ssub.s32 %s20, %s27
    %s34 = sor.u32 %s32, %s33
    %p35 = scmp.eq.s32.totalorder %s34, 0
    %s37 = sadd.s32 %s36, 1
    %s38 = scalar_select %p35, %s36, %s37
    %p41 = pneg %p35
    %p42 = scmp.eq.s32.totalorder %s12, 1
    %p43 = por %p41, %p42
    %p44 = scmp.ne.s32.totalorder %s36, %s39
    %p45 = scmp.eq.s32.totalorder %s12, 0
    %p46 = por %p44, %p45
    %p47 = scmp.ne.s32.totalorder %s36, %s39
    %p48 = scmp.eq.s32.totalorder %s17, 1
    %p49 = por %p47, %p48
    %p50 = scmp.ne.s32.totalorder %s39, %s40
    %p51 = scmp.eq.s32.totalorder %s17, 0
    %p52 = por %p50, %p51
    %p53 = scmp.ne.s32.totalorder %s39, %s40
    %p54 = scmp.eq.s32.totalorder %s18, 1
    %p55 = por %p53, %p54
    %p57 = scmp.ne.s32.totalorder %s40, %s56
    %p58 = scmp.eq.s32.totalorder %s18, 0
    %p59 = por %p57, %p58
    %s60 = smul.u32 %s20, 16
    %s61 = ssub.s32 %s60, 1
    %p62 = scmp.gt.s32.totalorder %s61, 0
    %s63 = scalar_select %p62, %s61, 0
    %s64 = smul.u32 %s27, 16
    %s65 = ssub.s32 %s64, 1
    %p66 = scmp.gt.s32.totalorder %s65, 0
    %s67 = scalar_select %p66, %s65, 0
    %s68 = ssub.s32 %s19, %s31
    %s69 = ssub.s32 %s63, %s67
    %s70 = sor.u32 %s68, %s69
    %p71 = scmp.eq.s32.totalorder %s70, 0
    %s73 = sadd.s32 %s72, 1
    %s74 = scalar_select %p71, %s72, %s73
    %p77 = pneg %p71
    %p78 = scmp.eq.s32.totalorder %s12, 1
    %p79 = por %p77, %p78
    %p80 = scmp.ne.s32.totalorder %s72, %s75
    %p81 = scmp.eq.s32.totalorder %s12, 0
    %p82 = por %p80, %p81
    %p83 = scmp.ne.s32.totalorder %s72, %s75
    %p84 = scmp.eq.s32.totalorder %s17, 1
    %p85 = por %p83, %p84
    %p86 = scmp.ne.s32.totalorder %s75, %s76
    %p87 = scmp.eq.s32.totalorder %s17, 0
    %p88 = por %p86, %p87
    %p89 = scmp.ne.s32.totalorder %s75, %s76
    %p90 = scmp.eq.s32.totalorder %s18, 1
    %p91 = por %p89, %p90
    %p93 = scmp.ne.s32.totalorder %s76, %s92
    %p94 = scmp.eq.s32.totalorder %s18, 0
    %p95 = por %p93, %p94
    %s96 = smul.u32 %s20, 16
    %s97 = sadd.s32 %s96, 16
    %p98 = scmp.lt.s32.totalorder %s97, 15
    %s99 = scalar_select %p98, %s97, 15
    %s100 = smul.u32 %s27, 16
    %s101 = sadd.s32 %s100, 16
    %p102 = scmp.lt.s32.totalorder %s101, 15
    %s103 = scalar_select %p102, %s101, 15
    %s104 = ssub.s32 %s19, %s31
    %s105 = ssub.s32 %s99, %s103
    %s106 = sor.u32 %s104, %s105
    %p107 = scmp.eq.s32.totalorder %s106, 0
    %s109 = sadd.s32 %s108, 1
    %s110 = scalar_select %p107, %s108, %s109
    %p113 = pneg %p107
    %p114 = scmp.eq.s32.totalorder %s12, 1
    %p115 = por %p113, %p114
    %p116 = scmp.ne.s32.totalorder %s108, %s111
    %p117 = scmp.eq.s32.totalorder %s12, 0
    %p118 = por %p116, %p117
    %p119 = scmp.ne.s32.totalorder %s108, %s111
    %p120 = scmp.eq.s32.totalorder %s17, 1
    %p121 = por %p119, %p120
    %p122 = scmp.ne.s32.totalorder %s111, %s112
    %p123 = scmp.eq.s32.totalorder %s17, 0
    %p124 = por %p122, %p123
    %p125 = scmp.ne.s32.totalorder %s111, %s112
    %p126 = scmp.eq.s32.totalorder %s18, 1
    %p127 = por %p125, %p126
    %p129 = scmp.ne.s32.totalorder %s112, %s128
    %p130 = scmp.eq.s32.totalorder %s18, 0
    %p131 = por %p129, %p130
    %s132 = ssub.s32 %s19, %s31
    %s133 = ssub.s32 %s20, %s27
    %s134 = sor.u32 %s132, %s133
    %p135 = scmp.eq.s32.totalorder %s134, 0
    %s137 = sadd.s32 %s136, 1
    %s138 = scalar_select %p135, %s136, %s137
    %p141 = pneg %p135
    %p142 = scmp.eq.s32.totalorder %s12, 1
    %p143 = por %p141, %p142
    %p144 = scmp.ne.s32.totalorder %s136, %s139
    %p145 = scmp.eq.s32.totalorder %s12, 0
    %p146 = por %p144, %p145
    %p147 = scmp.ne.s32.totalorder %s136, %s139
    %p148 = scmp.eq.s32.totalorder %s17, 1
    %p149 = por %p147, %p148
    %p150 = scmp.ne.s32.totalorder %s139, %s140
    %p151 = scmp.eq.s32.totalorder %s17, 0
    %p152 = por %p150, %p151
    %p153 = scmp.ne.s32.totalorder %s139, %s140
    %p154 = scmp.eq.s32.totalorder %s18, 1
    %p155 = por %p153, %p154
    %p157 = scmp.ne.s32.totalorder %s140, %s156
    %p158 = scmp.eq.s32.totalorder %s18, 0
    %p159 = por %p157, %p158
    %s161 = sadd.s32 %s160, 1
    %p164 = scmp.eq.s32.totalorder %s12, 1
    %p165 = scmp.ne.s32.totalorder %s160, %s162
    %p166 = scmp.eq.s32.totalorder %s12, 0
    %p167 = por %p165, %p166
    %p168 = scmp.ne.s32.totalorder %s160, %s162
    %p169 = scmp.eq.s32.totalorder %s17, 1
    %p170 = por %p168, %p169
    %p171 = scmp.ne.s32.totalorder %s162, %s163
    %p172 = scmp.eq.s32.totalorder %s17, 0
    %p173 = por %p171, %p172
    %p174 = scmp.ne.s32.totalorder %s162, %s163
    %p175 = scmp.eq.s32.totalorder %s18, 1
    %p176 = por %p174, %p175
    %p178 = scmp.ne.s32.totalorder %s163, %s177
    %p179 = scmp.eq.s32.totalorder %s18, 0
    %p180 = por %p178, %p179
    %s182 = sadd.s32 %s181, 1
    %p185 = scmp.eq.s32.totalorder %s12, 1
    %p186 = scmp.ne.s32.totalorder %s181, %s183
    %p187 = scmp.eq.s32.totalorder %s12, 0
    %p188 = por %p186, %p187
    %p189 = scmp.ne.s32.totalorder %s181, %s183
    %p190 = scmp.eq.s32.totalorder %s17, 1
    %p191 = por %p189, %p190
    %p192 = scmp.ne.s32.totalorder %s183, %s184
    %p193 = scmp.eq.s32.totalorder %s17, 0
    %p194 = por %p192, %p193
    %p195 = scmp.ne.s32.totalorder %s183, %s184
    %p196 = scmp.eq.s32.totalorder %s18, 1
    %p197 = por %p195, %p196
    %p199 = scmp.ne.s32.totalorder %s184, %s198
    %p200 = scmp.eq.s32.totalorder %s18, 0
    %p201 = por %p199, %p200
    %s202 = ssub.s32 %s19, %s31
    %s203 = ssub.s32 %s20, %s27
    %s204 = sor.u32 %s202, %s203
    %p205 = scmp.eq.s32.totalorder %s204, 0
    %s207 = sadd.s32 %s206, 1
    %s208 = scalar_select %p205, %s206, %s207
    %p211 = pneg %p205
    %p212 = scmp.eq.s32.totalorder %s12, 1
    %p213 = por %p211, %p212
    %p214 = scmp.ne.s32.totalorder %s206, %s209
    %p215 = scmp.eq.s32.totalorder %s12, 0
    %p216 = por %p214, %p215
    %p217 = scmp.ne.s32.totalorder %s206, %s209
    %p218 = scmp.eq.s32.totalorder %s17, 1
    %p219 = por %p217, %p218
    %p220 = scmp.ne.s32.totalorder %s209, %s210
    %p221 = scmp.eq.s32.totalorder %s17, 0
    %p222 = por %p220, %p221
    %p223 = scmp.ne.s32.totalorder %s209, %s210
    %p224 = scmp.eq.s32.totalorder %s18, 1
    %p225 = por %p223, %p224
    %p227 = scmp.ne.s32.totalorder %s210, %s226
    %p228 = scmp.eq.s32.totalorder %s18, 0
    %p229 = por %p227, %p228
    %p230 = scmp.le.s32.totalorder 1, %s12
    %p231 = scmp.lt.s32.totalorder %s12, 3
    %p232 = pnand %p230, %p231
    %p233 = pneg %p232
    // Predicated region
    $region9: #{attention_gate_forward.5} parent=5 // pred_check
      _
    $region10: #{attention_gate_forward.5} parent=5 // pred_check_branch
      %235 = sbr.rel (%p232) target = $region12
    $region11: #{attention_gate_forward.5} parent=5 // pred_region
      %s236 = ssub.s32 %s12, 1
      // Predicated region
      $region13: #{attention_gate_forward.5} parent=11 // pred_check
        %p237 = pneg %p173
      $region14: #{attention_gate_forward.5} parent=11 // pred_check_branch
        %239 = sbr.rel (%p237) target = $region16
      $region15: #{attention_gate_forward.5} parent=11 // pred_region
        _
      $region16: #{attention_gate_forward.5} parent=11 // pred_fallthru
        _
      // Predicated region
      $region17: #{attention_gate_forward.5} parent=11 // pred_check
        %p240 = pneg %p194
      $region18: #{attention_gate_forward.5} parent=11 // pred_check_branch
        %242 = sbr.rel (%p240) target = $region20
      $region19: #{attention_gate_forward.5} parent=11 // pred_region
        _
      $region20: #{attention_gate_forward.5} parent=11 // pred_fallthru
        _
    $region12: #{attention_gate_forward.5} parent=5 // pred_fallthru
      _
    %p243 = scmp.lt.s32.totalorder %s12, 2
    // Predicated region
    $region21: #{attention_gate_forward.5} parent=5 // pred_check
      %p244 = pneg %p243
    $region22: #{attention_gate_forward.5} parent=5 // pred_check_branch
      %246 = sbr.rel (%p244) target = $region24
    $region23: #{attention_gate_forward.5} parent=5 // pred_region
      // Predicated region
      $region25: #{attention_gate_forward.5} parent=23 // pred_check
        %p247 = pneg %p46
      $region26: #{attention_gate_forward.5} parent=23 // pred_check_branch
        %249 = sbr.rel (%p247) target = $region28
      $region27: #{attention_gate_forward.5} parent=23 // pred_region
        %s250 = smul.u32 16, %s20
        %p251 = scmp.lt.s32.totalorder %s19, 1
        %s252 = scalar_select %p251, %s19, 1
        %p253 = scmp.lt.s32.totalorder %s250, 15
        %s254 = scalar_select %p253, %s250, 15
        %s255 = smul.addr %s254, 2
        %s256 = smul.addr %s252, 32
        %s257 = sadd.s32 %s255, %s256
        %s258 = smul.addr %s257, 8
        %s259 = scalar_lea.vmem %s0, %s258
        %s260 = smul.u32 16, %s20
      $region28: #{attention_gate_forward.5} parent=23 // pred_fallthru
        _
      // Predicated region
      $region29: #{attention_gate_forward.5} parent=23 // pred_check
        %p261 = pneg %p82
      $region30: #{attention_gate_forward.5} parent=23 // pred_check_branch
        %263 = sbr.rel (%p261) target = $region32
      $region31: #{attention_gate_forward.5} parent=23 // pred_region
        %s264 = smul.u32 %s20, 16
        %s265 = ssub.s32 %s264, 1
        %p266 = scmp.gt.s32.totalorder %s265, 0
        %s267 = scalar_select %p266, %s265, 0
        %p268 = scmp.lt.s32.totalorder %s19, 1
        %s269 = scalar_select %p268, %s19, 1
        %p270 = scmp.lt.s32.totalorder %s267, 15
        %s271 = scalar_select %p270, %s267, 15
        %s272 = smul.addr %s271, 2
        %s273 = smul.addr %s269, 32
        %s274 = sadd.s32 %s272, %s273
        %s275 = smul.addr %s274, 8
        %s276 = scalar_lea.vmem %s1, %s275
        %s277 = smul.u32 %s20, 16
        %s278 = ssub.s32 %s277, 1
        %p279 = scmp.gt.s32.totalorder %s278, 0
        %s280 = scalar_select %p279, %s278, 0
      $region32: #{attention_gate_forward.5} parent=23 // pred_fallthru
        _
      // Predicated region
      $region33: #{attention_gate_forward.5} parent=23 // pred_check
        %p281 = pneg %p118
      $region34: #{attention_gate_forward.5} parent=23 // pred_check_branch
        %283 = sbr.rel (%p281) target = $region36
      $region35: #{attention_gate_forward.5} parent=23 // pred_region
        %s284 = smul.u32 %s20, 16
        %s285 = sadd.s32 %s284, 16
        %p286 = scmp.lt.s32.totalorder %s285, 15
        %s287 = scalar_select %p286, %s285, 15
        %p288 = scmp.lt.s32.totalorder %s19, 1
        %s289 = scalar_select %p288, %s19, 1
        %p290 = scmp.lt.s32.totalorder %s287, 15
        %s291 = scalar_select %p290, %s287, 15
        %s292 = smul.addr %s291, 2
        %s293 = smul.addr %s289, 32
        %s294 = sadd.s32 %s292, %s293
        %s295 = smul.addr %s294, 8
        %s296 = scalar_lea.vmem %s2, %s295
        %s297 = smul.u32 %s20, 16
        %s298 = sadd.s32 %s297, 16
        %p299 = scmp.lt.s32.totalorder %s298, 15
        %s300 = scalar_select %p299, %s298, 15
      $region36: #{attention_gate_forward.5} parent=23 // pred_fallthru
        _
      // Predicated region
      $region37: #{attention_gate_forward.5} parent=23 // pred_check
        %p301 = pneg %p146
      $region38: #{attention_gate_forward.5} parent=23 // pred_check_branch
        %303 = sbr.rel (%p301) target = $region40
      $region39: #{attention_gate_forward.5} parent=23 // pred_region
        %s304 = smul.u32 8, %s20
        %p305 = scmp.lt.s32.totalorder %s19, 1
        %s306 = scalar_select %p305, %s19, 1
        %p307 = scmp.lt.s32.totalorder %s304, 7
        %s308 = scalar_select %p307, %s304, 7
        %s309 = smul.addr %s306, 8
        %s310 = sadd.s32 %s308, %s309
        %s311 = smul.addr %s310, 8
        %s312 = scalar_lea.vmem %s3, %s311
        %s313 = smul.u32 8, %s20
      $region40: #{attention_gate_forward.5} parent=23 // pred_fallthru
        _
    $region24: #{attention_gate_forward.5} parent=5 // pred_fallthru
      _
    %p314 = scmp.le.s32.totalorder 1, %s12
    %p315 = scmp.lt.s32.totalorder %s12, 3
    %p316 = pnand %p314, %p315
    %p317 = pneg %p316
    // Predicated region
    $region41: #{attention_gate_forward.5} parent=5 // pred_check
      _
    $region42: #{attention_gate_forward.5} parent=5 // pred_check_branch
      %319 = sbr.rel (%p316) target = $region44
    $region43: #{attention_gate_forward.5} parent=5 // pred_region
      %s320 = ssub.s32 %s12, 1
      %s321 = smul.u32 16, %s22
      %p322 = scmp.lt.s32.totalorder %s21, 1
      %s323 = scalar_select %p322, %s21, 1
      %p324 = scmp.lt.s32.totalorder %s321, 15
      %s325 = scalar_select %p324, %s321, 15
      %s326 = smul.addr %s325, 2
      %s327 = smul.addr %s323, 32
      %s328 = sadd.s32 %s326, %s327
      %s329 = smul.addr %s328, 8
      %s330 = scalar_lea.vmem %s0, %s329
      %p331 = pneg %p52
      %p332 = pneg %p49
      %s333 = smul.u32 %s22, 16
      %s334 = ssub.s32 %s333, 1
      %p335 = scmp.gt.s32.totalorder %s334, 0
      %s336 = scalar_select %p335, %s334, 0
      %p337 = scmp.lt.s32.totalorder %s21, 1
      %s338 = scalar_select %p337, %s21, 1
      %p339 = scmp.lt.s32.totalorder %s336, 15
      %s340 = scalar_select %p339, %s336, 15
      %s341 = smul.addr %s340, 2
      %s342 = smul.addr %s338, 32
      %s343 = sadd.s32 %s341, %s342
      %s344 = smul.addr %s343, 8
      %s345 = scalar_lea.vmem %s1, %s344
      %p346 = pneg %p88
      %p347 = pneg %p85
      %s348 = smul.u32 %s22, 16
      %s349 = sadd.s32 %s348, 16
      %p350 = scmp.lt.s32.totalorder %s349, 15
      %s351 = scalar_select %p350, %s349, 15
      %p352 = scmp.lt.s32.totalorder %s21, 1
      %s353 = scalar_select %p352, %s21, 1
      %p354 = scmp.lt.s32.totalorder %s351, 15
      %s355 = scalar_select %p354, %s351, 15
      %s356 = smul.addr %s355, 2
      %s357 = smul.addr %s353, 32
      %s358 = sadd.s32 %s356, %s357
      %s359 = smul.addr %s358, 8
      %s360 = scalar_lea.vmem %s2, %s359
      %p361 = pneg %p124
      %p362 = pneg %p121
      %s363 = smul.u32 8, %s22
      %p364 = scmp.lt.s32.totalorder %s21, 1
      %s365 = scalar_select %p364, %s21, 1
      %p366 = scmp.lt.s32.totalorder %s363, 7
      %s367 = scalar_select %p366, %s363, 7
      %s368 = smul.addr %s365, 8
      %s369 = sadd.s32 %s367, %s368
      %s370 = smul.addr %s369, 8
      %s371 = scalar_lea.vmem %s3, %s370
      %p372 = pneg %p152
      %p373 = pneg %p149
      %p374 = pneg %p173
      %p375 = pneg %p170
      %p376 = pneg %p194
      %p377 = pneg %p191
      %p378 = pneg %p222
      %p379 = pneg %p219
      %s380 = smul.u32 16, %s22
      %p381 = scmp.lt.s32.totalorder %s21, 1
      %s382 = scalar_select %p381, %s21, 1
      %p383 = scmp.lt.s32.totalorder %s380, 15
      %s384 = scalar_select %p383, %s380, 15
      %s385 = smul.addr %s384, 2
      %s386 = smul.addr %s382, 32
      %s387 = sadd.s32 %s385, %s386
      %s388 = smul.addr %s387, 8
      %s389 = scalar_lea.vmem %s6, %s388
      %s390 = smul.u32 16, %s22
      %p391 = scmp.lt.s32.totalorder %s21, 1
      %s392 = scalar_select %p391, %s21, 1
      %p393 = scmp.lt.s32.totalorder %s390, 15
      %s394 = scalar_select %p393, %s390, 15
      %s395 = smul.addr %s394, 2
      %s396 = smul.addr %s392, 32
      %s397 = sadd.s32 %s395, %s396
      %s398 = smul.addr %s397, 8
      %s399 = scalar_lea.vmem %s0, %s398
      %s400 = smul.u32 16, %s22
      %s401 = smul.u32 %s22, 16
      %s402 = ssub.s32 %s401, 1
      %p403 = scmp.gt.s32.totalorder %s402, 0
      %s404 = scalar_select %p403, %s402, 0
      %p405 = scmp.lt.s32.totalorder %s21, 1
      %s406 = scalar_select %p405, %s21, 1
      %p407 = scmp.lt.s32.totalorder %s404, 15
      %s408 = scalar_select %p407, %s404, 15
      %s409 = smul.addr %s408, 2
      %s410 = smul.addr %s406, 32
      %s411 = sadd.s32 %s409, %s410
      %s412 = smul.addr %s411, 8
      %s413 = scalar_lea.vmem %s1, %s412
      %s414 = smul.u32 %s22, 16
      %s415 = ssub.s32 %s414, 1
      %p416 = scmp.gt.s32.totalorder %s415, 0
      %s417 = scalar_select %p416, %s415, 0
      %s418 = smul.u32 %s22, 16
      %s419 = sadd.s32 %s418, 16
      %p420 = scmp.lt.s32.totalorder %s419, 15
      %s421 = scalar_select %p420, %s419, 15
      %p422 = scmp.lt.s32.totalorder %s21, 1
      %s423 = scalar_select %p422, %s21, 1
      %p424 = scmp.lt.s32.totalorder %s421, 15
      %s425 = scalar_select %p424, %s421, 15
      %s426 = smul.addr %s425, 2
      %s427 = smul.addr %s423, 32
      %s428 = sadd.s32 %s426, %s427
      %s429 = smul.addr %s428, 8
      %s430 = scalar_lea.vmem %s2, %s429
      %s431 = smul.u32 %s22, 16
      %s432 = sadd.s32 %s431, 16
      %p433 = scmp.lt.s32.totalorder %s432, 15
      %s434 = scalar_select %p433, %s432, 15
      %s435 = smul.u32 8, %s22
      %p436 = scmp.lt.s32.totalorder %s21, 1
      %s437 = scalar_select %p436, %s21, 1
      %p438 = scmp.lt.s32.totalorder %s435, 7
      %s439 = scalar_select %p438, %s435, 7
      %s440 = smul.addr %s437, 8
      %s441 = sadd.s32 %s439, %s440
      %s442 = smul.addr %s441, 8
      %s443 = scalar_lea.vmem %s3, %s442
      %s444 = smul.u32 8, %s22
      %s445 = smul.u32 16, %s22
      %p446 = scmp.lt.s32.totalorder %s21, 1
      %s447 = scalar_select %p446, %s21, 1
      %p448 = scmp.lt.s32.totalorder %s445, 15
      %s449 = scalar_select %p448, %s445, 15
      %s450 = smul.addr %s449, 2
      %s451 = smul.addr %s447, 32
      %s452 = sadd.s32 %s450, %s451
      %s453 = smul.addr %s452, 8
      %s454 = scalar_lea.vmem %s6, %s453
      %s455 = smul.u32 16, %s22
      %v457 = vld [vmem:[%s413] sm:$0xff]
      %v458 = vld [vmem:[%s413 + $0x8] sm:$0xff]
      %v459 = vld [vmem:[%s399] sm:$0xff]
      %v460 = vld [vmem:[%s399 + $0x8] sm:$0xff]
      %v461 = vld [vmem:[%s399 + $0x10] sm:$0xff]
      %v462 = vld [vmem:[%s399 + $0x18] sm:$0xff]
      %v463 = vld [vmem:[%s399 + $0x20] sm:$0xff]
      %v464 = vld [vmem:[%s399 + $0x28] sm:$0xff]
      %v465 = vld [vmem:[%s399 + $0x30] sm:$0xff]
      %v466 = vld [vmem:[%s399 + $0x38] sm:$0xff]
      %v467 = vld [vmem:[%s399 + $0x40] sm:$0xff]
      %v468 = vld [vmem:[%s399 + $0x48] sm:$0xff]
      %v469 = vld [vmem:[%s399 + $0x50] sm:$0xff]
      %v470 = vld [vmem:[%s399 + $0x58] sm:$0xff]
      %v471 = vld [vmem:[%s399 + $0x60] sm:$0xff]
      %v472 = vld [vmem:[%s399 + $0x68] sm:$0xff]
      %v473 = vld [vmem:[%s399 + $0x70] sm:$0xff]
      %v474 = vld [vmem:[%s399 + $0x78] sm:$0xff]
      %v475 = vld [vmem:[%s399 + $0x80] sm:$0xff]
      %v476 = vld [vmem:[%s399 + $0x88] sm:$0xff]
      %v477 = vld [vmem:[%s399 + $0x90] sm:$0xff]
      %v478 = vld [vmem:[%s399 + $0x98] sm:$0xff]
      %v479 = vld [vmem:[%s399 + $0xa0] sm:$0xff]
      %v480 = vld [vmem:[%s399 + $0xa8] sm:$0xff]
      %v481 = vld [vmem:[%s399 + $0xb0] sm:$0xff]
      %v482 = vld [vmem:[%s399 + $0xb8] sm:$0xff]
      %v483 = vld [vmem:[%s399 + $0xc0] sm:$0xff]
      %v484 = vld [vmem:[%s399 + $0xc8] sm:$0xff]
      %v485 = vld [vmem:[%s399 + $0xd0] sm:$0xff]
      %v486 = vld [vmem:[%s399 + $0xd8] sm:$0xff]
      %v487 = vld [vmem:[%s399 + $0xe0] sm:$0xff]
      %v488 = vld [vmem:[%s399 + $0xe8] sm:$0xff]
      %v489 = vld [vmem:[%s399 + $0xf0] sm:$0xff]
      %v490 = vld [vmem:[%s399 + $0xf8] sm:$0xff]
      %v491 = vld [vmem:[%s430] sm:$0xff]
      %v492 = vld [vmem:[%s430 + $0x8] sm:$0xff]
      %p493 = scmp.gt.s32.totalorder %s22, 0
      %s494 = scalar_select %p493, 1, 0
      %v495 = vstv %s494
      %vm496 = vcmp.eq.s32.totalorder %v495, 1
      %p497 = scmp.lt.s32.totalorder %s22, 0
      %s498 = scalar_select %p497, 1, 0
      %v499 = vstv %s498
      %vm500 = vcmp.eq.s32.totalorder %v499, 1
      %v501 = vsel %vm496, 1, 0
      %v502 = vsel %vm500, 1, 0
      %vm503 = vcmp.eq.s32.totalorder %v501, 1
      %vm504 = vcmp.eq.s32.totalorder %v502, 1
      %v505 = vsel %vm503, %v457, 0.0
      %v506 = vsel %vm503, %v458, 0.0
      %v507 = vsel 1, %v459, 0.0
      %v508 = vsel 1, %v460, 0.0
      %v509 = vsel 1, %v461, 0.0
      %v510 = vsel 1, %v462, 0.0
      %v511 = vsel 1, %v463, 0.0
      %v512 = vsel 1, %v464, 0.0
      %v513 = vsel 1, %v465, 0.0
      %v514 = vsel 1, %v466, 0.0
      %v515 = vsel 1, %v467, 0.0
      %v516 = vsel 1, %v468, 0.0
      %v517 = vsel 1, %v469, 0.0
      %v518 = vsel 1, %v470, 0.0
      %v519 = vsel 1, %v471, 0.0
      %v520 = vsel 1, %v472, 0.0
      %v521 = vsel 1, %v473, 0.0
      %v522 = vsel 1, %v474, 0.0
      %v523 = vsel 1, %v475, 0.0
      %v524 = vsel 1, %v476, 0.0
      %v525 = vsel 1, %v477, 0.0
      %v526 = vsel 1, %v478, 0.0
      %v527 = vsel 1, %v479, 0.0
      %v528 = vsel 1, %v480, 0.0
      %v529 = vsel 1, %v481, 0.0
      %v530 = vsel 1, %v482, 0.0
      %v531 = vsel 1, %v483, 0.0
      %v532 = vsel 1, %v484, 0.0
      %v533 = vsel 1, %v485, 0.0
      %v534 = vsel 1, %v486, 0.0
      %v535 = vsel 1, %v487, 0.0
      %v536 = vsel 1, %v488, 0.0
      %v537 = vsel 1, %v489, 0.0
      %v538 = vsel 1, %v490, 0.0
      %v539 = vsel %vm504, %v491, 0.0
      %v540 = vsel %vm504, %v492, 0.0
      %vm577 = vcmask 1040384
      %v578 = vrot.slane %v505, 7
      %v579 = vrot.slane %v506, 7
      %v580 = vsel %vm577, %v578, %v579
      %v581 = vrot.slane %v507, 7
      %v582 = vrot.slane %v508, 7
      %v583 = vsel %vm577, %v581, %v582
      %v584 = vrot.slane %v509, 7
      %v585 = vrot.slane %v510, 7
      %v586 = vsel %vm577, %v584, %v585
      %v587 = vrot.slane %v511, 7
      %v588 = vrot.slane %v512, 7
      %v589 = vsel %vm577, %v587, %v588
      %v590 = vrot.slane %v513, 7
      %v591 = vrot.slane %v514, 7
      %v592 = vsel %vm577, %v590, %v591
      %v593 = vrot.slane %v515, 7
      %v594 = vrot.slane %v516, 7
      %v595 = vsel %vm577, %v593, %v594
      %v596 = vrot.slane %v517, 7
      %v597 = vrot.slane %v518, 7
      %v598 = vsel %vm577, %v596, %v597
      %v599 = vrot.slane %v519, 7
      %v600 = vrot.slane %v520, 7
      %v601 = vsel %vm577, %v599, %v600
      %v602 = vrot.slane %v521, 7
      %v603 = vrot.slane %v522, 7
      %v604 = vsel %vm577, %v602, %v603
      %v605 = vrot.slane %v523, 7
      %v606 = vrot.slane %v524, 7
      %v607 = vsel %vm577, %v605, %v606
      %v608 = vrot.slane %v525, 7
      %v609 = vrot.slane %v526, 7
      %v610 = vsel %vm577, %v608, %v609
      %v611 = vrot.slane %v527, 7
      %v612 = vrot.slane %v528, 7
      %v613 = vsel %vm577, %v611, %v612
      %v614 = vrot.slane %v529, 7
      %v615 = vrot.slane %v530, 7
      %v616 = vsel %vm577, %v614, %v615
      %v617 = vrot.slane %v531, 7
      %v618 = vrot.slane %v532, 7
      %v619 = vsel %vm577, %v617, %v618
      %v620 = vrot.slane %v533, 7
      %v621 = vrot.slane %v534, 7
      %v622 = vsel %vm577, %v620, %v621
      %v623 = vrot.slane %v535, 7
      %v624 = vrot.slane %v536, 7
      %v625 = vsel %vm577, %v623, %v624
      %v626 = vrot.slane %v537, 7
      %v627 = vrot.slane %v538, 7
      %v628 = vsel %vm577, %v626, %v627
      %v629 = vrot.slane %v539, 7
      %v630 = vrot.slane %v540, 7
      %v631 = vsel %vm577, %v629, %v630
      %v684 = vsel %vm577, 0.0, %v578
      %v685 = vsel %vm577, 0.0, %v581
      %v686 = vsel %vm577, 0.0, %v584
      %v687 = vsel %vm577, 0.0, %v587
      %v688 = vsel %vm577, 0.0, %v590
      %v689 = vsel %vm577, 0.0, %v593
      %v690 = vsel %vm577, 0.0, %v596
      %v691 = vsel %vm577, 0.0, %v599
      %v692 = vsel %vm577, 0.0, %v602
      %v693 = vsel %vm577, 0.0, %v605
      %v694 = vsel %vm577, 0.0, %v608
      %v695 = vsel %vm577, 0.0, %v611
      %v696 = vsel %vm577, 0.0, %v614
      %v697 = vsel %vm577, 0.0, %v617
      %v698 = vsel %vm577, 0.0, %v620
      %v699 = vsel %vm577, 0.0, %v623
      %v700 = vsel %vm577, 0.0, %v626
      %v701 = vsel %vm577, 0.0, %v629
      %v702 = vsel %vm577, %v579, 0.0
      %v703 = vsel %vm577, %v582, 0.0
      %v704 = vsel %vm577, %v585, 0.0
      %v705 = vsel %vm577, %v588, 0.0
      %v706 = vsel %vm577, %v591, 0.0
      %v707 = vsel %vm577, %v594, 0.0
      %v708 = vsel %vm577, %v597, 0.0
      %v709 = vsel %vm577, %v600, 0.0
      %v710 = vsel %vm577, %v603, 0.0
      %v711 = vsel %vm577, %v606, 0.0
      %v712 = vsel %vm577, %v609, 0.0
      %v713 = vsel %vm577, %v612, 0.0
      %v714 = vsel %vm577, %v615, 0.0
      %v715 = vsel %vm577, %v618, 0.0
      %v716 = vsel %vm577, %v621, 0.0
      %v717 = vsel %vm577, %v624, 0.0
      %v718 = vsel %vm577, %v627, 0.0
      %v719 = vsel %vm577, %v630, 0.0
      %vm720 = vcmask 261120
      %721 = vst.msk [vmem:[#allocation2] sm:$0xff] %vm720, %v684
      %722 = vst.msk [vmem:[#allocation2 + $0x18] sm:$0xff] %vm720, %v580
      %723 = vst.msk [vmem:[#allocation2 + $0x30] sm:$0xff] %vm720, %v685
      %724 = vst.msk [vmem:[#allocation2 + $0x48] sm:$0xff] %vm720, %v583
      %725 = vst.msk [vmem:[#allocation2 + $0x60] sm:$0xff] %vm720, %v686
      %726 = vst.msk [vmem:[#allocation2 + $0x78] sm:$0xff] %vm720, %v586
      %727 = vst.msk [vmem:[#allocation2 + $0x90] sm:$0xff] %vm720, %v687
      %728 = vst.msk [vmem:[#allocation2 + $0xa8] sm:$0xff] %vm720, %v589
      %729 = vst.msk [vmem:[#allocation2 + $0xc0] sm:$0xff] %vm720, %v688
      %730 = vst.msk [vmem:[#allocation2 + $0xd8] sm:$0xff] %vm720, %v592
      %731 = vst.msk [vmem:[#allocation2 + $0xf0] sm:$0xff] %vm720, %v689
      %732 = vst.msk [vmem:[#allocation2 + $0x108] sm:$0xff] %vm720, %v595
      %733 = vst.msk [vmem:[#allocation2 + $0x120] sm:$0xff] %vm720, %v690
      %734 = vst.msk [vmem:[#allocation2 + $0x138] sm:$0xff] %vm720, %v598
      %735 = vst.msk [vmem:[#allocation2 + $0x150] sm:$0xff] %vm720, %v691
      %736 = vst.msk [vmem:[#allocation2 + $0x168] sm:$0xff] %vm720, %v601
      %737 = vst.msk [vmem:[#allocation2 + $0x180] sm:$0xff] %vm720, %v692
      %738 = vst.msk [vmem:[#allocation2 + $0x198] sm:$0xff] %vm720, %v604
      %739 = vst.msk [vmem:[#allocation2 + $0x1b0] sm:$0xff] %vm720, %v693
      %740 = vst.msk [vmem:[#allocation2 + $0x1c8] sm:$0xff] %vm720, %v607
      %741 = vst.msk [vmem:[#allocation2 + $0x1e0] sm:$0xff] %vm720, %v694
      %742 = vst.msk [vmem:[#allocation2 + $0x1f8] sm:$0xff] %vm720, %v610
      %743 = vst.msk [vmem:[#allocation2 + $0x210] sm:$0xff] %vm720, %v695
      %744 = vst.msk [vmem:[#allocation2 + $0x228] sm:$0xff] %vm720, %v613
      %745 = vst.msk [vmem:[#allocation2 + $0x240] sm:$0xff] %vm720, %v696
      %746 = vst.msk [vmem:[#allocation2 + $0x258] sm:$0xff] %vm720, %v616
      %747 = vst.msk [vmem:[#allocation2 + $0x270] sm:$0xff] %vm720, %v697
      %748 = vst.msk [vmem:[#allocation2 + $0x288] sm:$0xff] %vm720, %v619
      %749 = vst.msk [vmem:[#allocation2 + $0x2a0] sm:$0xff] %vm720, %v698
      %750 = vst.msk [vmem:[#allocation2 + $0x2b8] sm:$0xff] %vm720, %v622
      %751 = vst.msk [vmem:[#allocation2 + $0x2d0] sm:$0xff] %vm720, %v699
      %752 = vst.msk [vmem:[#allocation2 + $0x2e8] sm:$0xff] %vm720, %v625
      %vm785 = vcmask 1046528
      %v786 = vrot.slane %v684, 1
      %v787 = vrot.slane %v580, 1
      %v788 = vsel %vm785, %v786, %v787
      %v789 = vrot.slane %v702, 1
      %v790 = vsel %vm785, %v787, %v789
      %v791 = vrot.slane %v685, 1
      %v792 = vrot.slane %v583, 1
      %v793 = vsel %vm785, %v791, %v792
      %v794 = vrot.slane %v703, 1
      %v795 = vsel %vm785, %v792, %v794
      %v796 = vrot.slane %v686, 1
      %v797 = vrot.slane %v586, 1
      %v798 = vsel %vm785, %v796, %v797
      %v799 = vrot.slane %v704, 1
      %v800 = vsel %vm785, %v797, %v799
      %v801 = vrot.slane %v687, 1
      %v802 = vrot.slane %v589, 1
      %v803 = vsel %vm785, %v801, %v802
      %v804 = vrot.slane %v705, 1
      %v805 = vsel %vm785, %v802, %v804
      %v806 = vrot.slane %v688, 1
      %v807 = vrot.slane %v592, 1
      %v808 = vsel %vm785, %v806, %v807
      %v809 = vrot.slane %v706, 1
      %v810 = vsel %vm785, %v807, %v809
      %v811 = vrot.slane %v689, 1
      %v812 = vrot.slane %v595, 1
      %v813 = vsel %vm785, %v811, %v812
      %v814 = vrot.slane %v707, 1
      %v815 = vsel %vm785, %v812, %v814
      %v816 = vrot.slane %v690, 1
      %v817 = vrot.slane %v598, 1
      %v818 = vsel %vm785, %v816, %v817
      %v819 = vrot.slane %v708, 1
      %v820 = vsel %vm785, %v817, %v819
      %v821 = vrot.slane %v691, 1
      %v822 = vrot.slane %v601, 1
      %v823 = vsel %vm785, %v821, %v822
      %v824 = vrot.slane %v709, 1
      %v825 = vsel %vm785, %v822, %v824
      %v826 = vrot.slane %v692, 1
      %v827 = vrot.slane %v604, 1
      %v828 = vsel %vm785, %v826, %v827
      %v829 = vrot.slane %v710, 1
      %v830 = vsel %vm785, %v827, %v829
      %v831 = vrot.slane %v693, 1
      %v832 = vrot.slane %v607, 1
      %v833 = vsel %vm785, %v831, %v832
      %v834 = vrot.slane %v711, 1
      %v835 = vsel %vm785, %v832, %v834
      %v836 = vrot.slane %v694, 1
      %v837 = vrot.slane %v610, 1
      %v838 = vsel %vm785, %v836, %v837
      %v839 = vrot.slane %v712, 1
      %v840 = vsel %vm785, %v837, %v839
      %v841 = vrot.slane %v695, 1
      %v842 = vrot.slane %v613, 1
      %v843 = vsel %vm785, %v841, %v842
      %v844 = vrot.slane %v713, 1
      %v845 = vsel %vm785, %v842, %v844
      %v846 = vrot.slane %v696, 1
      %v847 = vrot.slane %v616, 1
      %v848 = vsel %vm785, %v846, %v847
      %v849 = vrot.slane %v714, 1
      %v850 = vsel %vm785, %v847, %v849
      %v851 = vrot.slane %v697, 1
      %v852 = vrot.slane %v619, 1
      %v853 = vsel %vm785, %v851, %v852
      %v854 = vrot.slane %v715, 1
      %v855 = vsel %vm785, %v852, %v854
      %v856 = vrot.slane %v698, 1
      %v857 = vrot.slane %v622, 1
      %v858 = vsel %vm785, %v856, %v857
      %v859 = vrot.slane %v716, 1
      %v860 = vsel %vm785, %v857, %v859
      %v861 = vrot.slane %v699, 1
      %v862 = vrot.slane %v625, 1
      %v863 = vsel %vm785, %v861, %v862
      %v864 = vrot.slane %v717, 1
      %v865 = vsel %vm785, %v862, %v864
      %866 = vrot.lane.b32.xlu0 %v788, 32
      %v867 = vpop.permute.xlu0 %866
      %868 = vrot.lane.b32.xlu0 %v790, 32
      %v869 = vpop.permute.xlu0 %868
      %870 = vrot.lane.b32.xlu0 %v793, 32
      %v871 = vpop.permute.xlu0 %870
      %872 = vrot.lane.b32.xlu0 %v795, 32
      %v873 = vpop.permute.xlu0 %872
      %874 = vrot.lane.b32.xlu0 %v798, 32
      %v875 = vpop.permute.xlu0 %874
      %876 = vrot.lane.b32.xlu0 %v800, 32
      %v877 = vpop.permute.xlu0 %876
      %878 = vrot.lane.b32.xlu0 %v803, 32
      %v879 = vpop.permute.xlu0 %878
      %880 = vrot.lane.b32.xlu0 %v805, 32
      %v881 = vpop.permute.xlu0 %880
      %882 = vrot.lane.b32.xlu0 %v808, 32
      %v883 = vpop.permute.xlu0 %882
      %884 = vrot.lane.b32.xlu0 %v810, 32
      %v885 = vpop.permute.xlu0 %884
      %886 = vrot.lane.b32.xlu0 %v813, 32
      %v887 = vpop.permute.xlu0 %886
      %888 = vrot.lane.b32.xlu0 %v815, 32
      %v889 = vpop.permute.xlu0 %888
      %890 = vrot.lane.b32.xlu0 %v818, 32
      %v891 = vpop.permute.xlu0 %890
      %892 = vrot.lane.b32.xlu0 %v820, 32
      %v893 = vpop.permute.xlu0 %892
      %894 = vrot.lane.b32.xlu0 %v823, 32
      %v895 = vpop.permute.xlu0 %894
      %896 = vrot.lane.b32.xlu0 %v825, 32
      %v897 = vpop.permute.xlu0 %896
      %898 = vrot.lane.b32.xlu0 %v828, 32
      %v899 = vpop.permute.xlu0 %898
      %900 = vrot.lane.b32.xlu0 %v830, 32
      %v901 = vpop.permute.xlu0 %900
      %902 = vrot.lane.b32.xlu0 %v833, 32
      %v903 = vpop.permute.xlu0 %902
      %904 = vrot.lane.b32.xlu0 %v835, 32
      %v905 = vpop.permute.xlu0 %904
      %906 = vrot.lane.b32.xlu0 %v838, 32
      %v907 = vpop.permute.xlu0 %906
      %908 = vrot.lane.b32.xlu0 %v840, 32
      %v909 = vpop.permute.xlu0 %908
      %910 = vrot.lane.b32.xlu0 %v843, 32
      %v911 = vpop.permute.xlu0 %910
      %912 = vrot.lane.b32.xlu0 %v845, 32
      %v913 = vpop.permute.xlu0 %912
      %914 = vrot.lane.b32.xlu0 %v848, 32
      %v915 = vpop.permute.xlu0 %914
      %916 = vrot.lane.b32.xlu0 %v850, 32
      %v917 = vpop.permute.xlu0 %916
      %918 = vrot.lane.b32.xlu0 %v853, 32
      %v919 = vpop.permute.xlu0 %918
      %920 = vrot.lane.b32.xlu0 %v855, 32
      %v921 = vpop.permute.xlu0 %920
      %922 = vrot.lane.b32.xlu0 %v858, 32
      %v923 = vpop.permute.xlu0 %922
      %924 = vrot.lane.b32.xlu0 %v860, 32
      %v925 = vpop.permute.xlu0 %924
      %926 = vrot.lane.b32.xlu0 %v863, 32
      %v927 = vpop.permute.xlu0 %926
      %928 = vrot.lane.b32.xlu0 %v865, 32
      %v929 = vpop.permute.xlu0 %928
      %vm962 = vcmask 523520
      %963 = vst.msk [vmem:[#allocation2] sm:$0xff] %vm962, %v867
      %964 = vst.msk [vmem:[#allocation2 + $0x18] sm:$0xff] %vm962, %v869
      %965 = vst.msk [vmem:[#allocation2 + $0x30] sm:$0xff] %vm962, %v871
      %966 = vst.msk [vmem:[#allocation2 + $0x48] sm:$0xff] %vm962, %v873
      %967 = vst.msk [vmem:[#allocation2 + $0x60] sm:$0xff] %vm962, %v875
      %968 = vst.msk [vmem:[#allocation2 + $0x78] sm:$0xff] %vm962, %v877
      %969 = vst.msk [vmem:[#allocation2 + $0x90] sm:$0xff] %vm962, %v879
      %970 = vst.msk [vmem:[#allocation2 + $0xa8] sm:$0xff] %vm962, %v881
      %971 = vst.msk [vmem:[#allocation2 + $0xc0] sm:$0xff] %vm962, %v883
      %972 = vst.msk [vmem:[#allocation2 + $0xd8] sm:$0xff] %vm962, %v885
      %973 = vst.msk [vmem:[#allocation2 + $0xf0] sm:$0xff] %vm962, %v887
      %974 = vst.msk [vmem:[#allocation2 + $0x108] sm:$0xff] %vm962, %v889
      %975 = vst.msk [vmem:[#allocation2 + $0x120] sm:$0xff] %vm962, %v891
      %976 = vst.msk [vmem:[#allocation2 + $0x138] sm:$0xff] %vm962, %v893
      %977 = vst.msk [vmem:[#allocation2 + $0x150] sm:$0xff] %vm962, %v895
      %978 = vst.msk [vmem:[#allocation2 + $0x168] sm:$0xff] %vm962, %v897
      %979 = vst.msk [vmem:[#allocation2 + $0x180] sm:$0xff] %vm962, %v899
      %980 = vst.msk [vmem:[#allocation2 + $0x198] sm:$0xff] %vm962, %v901
      %981 = vst.msk [vmem:[#allocation2 + $0x1b0] sm:$0xff] %vm962, %v903
      %982 = vst.msk [vmem:[#allocation2 + $0x1c8] sm:$0xff] %vm962, %v905
      %983 = vst.msk [vmem:[#allocation2 + $0x1e0] sm:$0xff] %vm962, %v907
      %984 = vst.msk [vmem:[#allocation2 + $0x1f8] sm:$0xff] %vm962, %v909
      %985 = vst.msk [vmem:[#allocation2 + $0x210] sm:$0xff] %vm962, %v911
      %986 = vst.msk [vmem:[#allocation2 + $0x228] sm:$0xff] %vm962, %v913
      %987 = vst.msk [vmem:[#allocation2 + $0x240] sm:$0xff] %vm962, %v915
      %988 = vst.msk [vmem:[#allocation2 + $0x258] sm:$0xff] %vm962, %v917
      %989 = vst.msk [vmem:[#allocation2 + $0x270] sm:$0xff] %vm962, %v919
      %990 = vst.msk [vmem:[#allocation2 + $0x288] sm:$0xff] %vm962, %v921
      %991 = vst.msk [vmem:[#allocation2 + $0x2a0] sm:$0xff] %vm962, %v923
      %992 = vst.msk [vmem:[#allocation2 + $0x2b8] sm:$0xff] %vm962, %v925
      %993 = vst.msk [vmem:[#allocation2 + $0x2d0] sm:$0xff] %vm962, %v927
      %994 = vst.msk [vmem:[#allocation2 + $0x2e8] sm:$0xff] %vm962, %v929
      %vm995 = vcmask 1045504
      %v996 = vrot.slane %v684, 2
      %v997 = vrot.slane %v580, 2
      %v998 = vsel %vm995, %v996, %v997
      %v999 = vrot.slane %v702, 2
      %v1000 = vsel %vm995, %v997, %v999
      %v1001 = vrot.slane %v685, 2
      %v1002 = vrot.slane %v583, 2
      %v1003 = vsel %vm995, %v1001, %v1002
      %v1004 = vrot.slane %v703, 2
      %v1005 = vsel %vm995, %v1002, %v1004
      %v1006 = vrot.slane %v686, 2
      %v1007 = vrot.slane %v586, 2
      %v1008 = vsel %vm995, %v1006, %v1007
      %v1009 = vrot.slane %v704, 2
      %v1010 = vsel %vm995, %v1007, %v1009
      %v1011 = vrot.slane %v687, 2
      %v1012 = vrot.slane %v589, 2
      %v1013 = vsel %vm995, %v1011, %v1012
      %v1014 = vrot.slane %v705, 2
      %v1015 = vsel %vm995, %v1012, %v1014
      %v1016 = vrot.slane %v688, 2
      %v1017 = vrot.slane %v592, 2
      %v1018 = vsel %vm995, %v1016, %v1017
      %v1019 = vrot.slane %v706, 2
      %v1020 = vsel %vm995, %v1017, %v1019
      %v1021 = vrot.slane %v689, 2
      %v1022 = vrot.slane %v595, 2
      %v1023 = vsel %vm995, %v1021, %v1022
      %v1024 = vrot.slane %v707, 2
      %v1025 = vsel %vm995, %v1022, %v1024
      %v1026 = vrot.slane %v690, 2
      %v1027 = vrot.slane %v598, 2
      %v1028 = vsel %vm995, %v1026, %v1027
      %v1029 = vrot.slane %v708, 2
      %v1030 = vsel %vm995, %v1027, %v1029
      %v1031 = vrot.slane %v691, 2
      %v1032 = vrot.slane %v601, 2
      %v1033 = vsel %vm995, %v1031, %v1032
      %v1034 = vrot.slane %v709, 2
      %v1035 = vsel %vm995, %v1032, %v1034
      %v1036 = vrot.slane %v692, 2
      %v1037 = vrot.slane %v604, 2
      %v1038 = vsel %vm995, %v1036, %v1037
      %v1039 = vrot.slane %v710, 2
      %v1040 = vsel %vm995, %v1037, %v1039
      %v1041 = vrot.slane %v693, 2
      %v1042 = vrot.slane %v607, 2
      %v1043 = vsel %vm995, %v1041, %v1042
      %v1044 = vrot.slane %v711, 2
      %v1045 = vsel %vm995, %v1042, %v1044
      %v1046 = vrot.slane %v694, 2
      %v1047 = vrot.slane %v610, 2
      %v1048 = vsel %vm995, %v1046, %v1047
      %v1049 = vrot.slane %v712, 2
      %v1050 = vsel %vm995, %v1047, %v1049
      %v1051 = vrot.slane %v695, 2
      %v1052 = vrot.slane %v613, 2
      %v1053 = vsel %vm995, %v1051, %v1052
      %v1054 = vrot.slane %v713, 2
      %v1055 = vsel %vm995, %v1052, %v1054
      %v1056 = vrot.slane %v696, 2
      %v1057 = vrot.slane %v616, 2
      %v1058 = vsel %vm995, %v1056, %v1057
      %v1059 = vrot.slane %v714, 2
      %v1060 = vsel %vm995, %v1057, %v1059
      %v1061 = vrot.slane %v697, 2
      %v1062 = vrot.slane %v619, 2
      %v1063 = vsel %vm995, %v1061, %v1062
      %v1064 = vrot.slane %v715, 2
      %v1065 = vsel %vm995, %v1062, %v1064
      %v1066 = vrot.slane %v698, 2
      %v1067 = vrot.slane %v622, 2
      %v1068 = vsel %vm995, %v1066, %v1067
      %v1069 = vrot.slane %v716, 2
      %v1070 = vsel %vm995, %v1067, %v1069
      %v1071 = vrot.slane %v699, 2
      %v1072 = vrot.slane %v625, 2
      %v1073 = vsel %vm995, %v1071, %v1072
      %v1074 = vrot.slane %v717, 2
      %v1075 = vsel %vm995, %v1072, %v1074
      %1076 = vrot.lane.b32.xlu0 %v998, 64
      %v1077 = vpop.permute.xlu0 %1076
      %1078 = vrot.lane.b32.xlu0 %v1000, 64
      %v1079 = vpop.permute.xlu0 %1078
      %1080 = vrot.lane.b32.xlu0 %v1003, 64
      %v1081 = vpop.permute.xlu0 %1080
      %1082 = vrot.lane.b32.xlu0 %v1005, 64
      %v1083 = vpop.permute.xlu0 %1082
      %1084 = vrot.lane.b32.xlu0 %v1008, 64
      %v1085 = vpop.permute.xlu0 %1084
      %1086 = vrot.lane.b32.xlu0 %v1010, 64
      %v1087 = vpop.permute.xlu0 %1086
      %1088 = vrot.lane.b32.xlu0 %v1013, 64
      %v1089 = vpop.permute.xlu0 %1088
      %1090 = vrot.lane.b32.xlu0 %v1015, 64
      %v1091 = vpop.permute.xlu0 %1090
      %1092 = vrot.lane.b32.xlu0 %v1018, 64
      %v1093 = vpop.permute.xlu0 %1092
      %1094 = vrot.lane.b32.xlu0 %v1020, 64
      %v1095 = vpop.permute.xlu0 %1094
      %1096 = vrot.lane.b32.xlu0 %v1023, 64
      %v1097 = vpop.permute.xlu0 %1096
      %1098 = vrot.lane.b32.xlu0 %v1025, 64
      %v1099 = vpop.permute.xlu0 %1098
      %1100 = vrot.lane.b32.xlu0 %v1028, 64
      %v1101 = vpop.permute.xlu0 %1100
      %1102 = vrot.lane.b32.xlu0 %v1030, 64
      %v1103 = vpop.permute.xlu0 %1102
      %1104 = vrot.lane.b32.xlu0 %v1033, 64
      %v1105 = vpop.permute.xlu0 %1104
      %1106 = vrot.lane.b32.xlu0 %v1035, 64
      %v1107 = vpop.permute.xlu0 %1106
      %1108 = vrot.lane.b32.xlu0 %v1038, 64
      %v1109 = vpop.permute.xlu0 %1108
      %1110 = vrot.lane.b32.xlu0 %v1040, 64
      %v1111 = vpop.permute.xlu0 %1110
      %1112 = vrot.lane.b32.xlu0 %v1043, 64
      %v1113 = vpop.permute.xlu0 %1112
      %1114 = vrot.lane.b32.xlu0 %v1045, 64
      %v1115 = vpop.permute.xlu0 %1114
      %1116 = vrot.lane.b32.xlu0 %v1048, 64
      %v1117 = vpop.permute.xlu0 %1116
      %1118 = vrot.lane.b32.xlu0 %v1050, 64
      %v1119 = vpop.permute.xlu0 %1118
      %1120 = vrot.lane.b32.xlu0 %v1053, 64
      %v1121 = vpop.permute.xlu0 %1120
      %1122 = vrot.lane.b32.xlu0 %v1055, 64
      %v1123 = vpop.permute.xlu0 %1122
      %1124 = vrot.lane.b32.xlu0 %v1058, 64
      %v1125 = vpop.permute.xlu0 %1124
      %1126 = vrot.lane.b32.xlu0 %v1060, 64
      %v1127 = vpop.permute.xlu0 %1126
      %1128 = vrot.lane.b32.xlu0 %v1063, 64
      %v1129 = vpop.permute.xlu0 %1128
      %1130 = vrot.lane.b32.xlu0 %v1065, 64
      %v1131 = vpop.permute.xlu0 %1130
      %1132 = vrot.lane.b32.xlu0 %v1068, 64
      %v1133 = vpop.permute.xlu0 %1132
      %1134 = vrot.lane.b32.xlu0 %v1070, 64
      %v1135 = vpop.permute.xlu0 %1134
      %1136 = vrot.lane.b32.xlu0 %v1073, 64
      %v1137 = vpop.permute.xlu0 %1136
      %1138 = vrot.lane.b32.xlu0 %v1075, 64
      %v1139 = vpop.permute.xlu0 %1138
      %vm1172 = vcmask 785920
      %1173 = vst.msk [vmem:[#allocation2] sm:$0xff] %vm1172, %v1077
      %1174 = vst.msk [vmem:[#allocation2 + $0x18] sm:$0xff] %vm1172, %v1079
      %1175 = vst.msk [vmem:[#allocation2 + $0x30] sm:$0xff] %vm1172, %v1081
      %1176 = vst.msk [vmem:[#allocation2 + $0x48] sm:$0xff] %vm1172, %v1083
      %1177 = vst.msk [vmem:[#allocation2 + $0x60] sm:$0xff] %vm1172, %v1085
      %1178 = vst.msk [vmem:[#allocation2 + $0x78] sm:$0xff] %vm1172, %v1087
      %1179 = vst.msk [vmem:[#allocation2 + $0x90] sm:$0xff] %vm1172, %v1089
      %1180 = vst.msk [vmem:[#allocation2 + $0xa8] sm:$0xff] %vm1172, %v1091
      %1181 = vst.msk [vmem:[#allocation2 + $0xc0] sm:$0xff] %vm1172, %v1093
      %1182 = vst.msk [vmem:[#allocation2 + $0xd8] sm:$0xff] %vm1172, %v1095
      %1183 = vst.msk [vmem:[#allocation2 + $0xf0] sm:$0xff] %vm1172, %v1097
      %1184 = vst.msk [vmem:[#allocation2 + $0x108] sm:$0xff] %vm1172, %v1099
      %1185 = vst.msk [vmem:[#allocation2 + $0x120] sm:$0xff] %vm1172, %v1101
      %1186 = vst.msk [vmem:[#allocation2 + $0x138] sm:$0xff] %vm1172, %v1103
      %1187 = vst.msk [vmem:[#allocation2 + $0x150] sm:$0xff] %vm1172, %v1105
      %1188 = vst.msk [vmem:[#allocation2 + $0x168] sm:$0xff] %vm1172, %v1107
      %1189 = vst.msk [vmem:[#allocation2 + $0x180] sm:$0xff] %vm1172, %v1109
      %1190 = vst.msk [vmem:[#allocation2 + $0x198] sm:$0xff] %vm1172, %v1111
      %1191 = vst.msk [vmem:[#allocation2 + $0x1b0] sm:$0xff] %vm1172, %v1113
      %1192 = vst.msk [vmem:[#allocation2 + $0x1c8] sm:$0xff] %vm1172, %v1115
      %1193 = vst.msk [vmem:[#allocation2 + $0x1e0] sm:$0xff] %vm1172, %v1117
      %1194 = vst.msk [vmem:[#allocation2 + $0x1f8] sm:$0xff] %vm1172, %v1119
      %1195 = vst.msk [vmem:[#allocation2 + $0x210] sm:$0xff] %vm1172, %v1121
      %1196 = vst.msk [vmem:[#allocation2 + $0x228] sm:$0xff] %vm1172, %v1123
      %1197 = vst.msk [vmem:[#allocation2 + $0x240] sm:$0xff] %vm1172, %v1125
      %1198 = vst.msk [vmem:[#allocation2 + $0x258] sm:$0xff] %vm1172, %v1127
      %1199 = vst.msk [vmem:[#allocation2 + $0x270] sm:$0xff] %vm1172, %v1129
      %1200 = vst.msk [vmem:[#allocation2 + $0x288] sm:$0xff] %vm1172, %v1131
      %1201 = vst.msk [vmem:[#allocation2 + $0x2a0] sm:$0xff] %vm1172, %v1133
      %1202 = vst.msk [vmem:[#allocation2 + $0x2b8] sm:$0xff] %vm1172, %v1135
      %1203 = vst.msk [vmem:[#allocation2 + $0x2d0] sm:$0xff] %vm1172, %v1137
      %1204 = vst.msk [vmem:[#allocation2 + $0x2e8] sm:$0xff] %vm1172, %v1139
      %1206 = vrot.lane.b32.xlu0 %v685, 96
      %v1207 = vpop.permute.xlu0 %1206
      %1208 = vrot.lane.b32.xlu0 %v583, 96
      %v1209 = vpop.permute.xlu0 %1208
      %1210 = vrot.lane.b32.xlu0 %v686, 96
      %v1211 = vpop.permute.xlu0 %1210
      %1212 = vrot.lane.b32.xlu0 %v586, 96
      %v1213 = vpop.permute.xlu0 %1212
      %1214 = vrot.lane.b32.xlu0 %v687, 96
      %v1215 = vpop.permute.xlu0 %1214
      %1216 = vrot.lane.b32.xlu0 %v589, 96
      %v1217 = vpop.permute.xlu0 %1216
      %1218 = vrot.lane.b32.xlu0 %v688, 96
      %v1219 = vpop.permute.xlu0 %1218
      %1220 = vrot.lane.b32.xlu0 %v592, 96
      %v1221 = vpop.permute.xlu0 %1220
      %1222 = vrot.lane.b32.xlu0 %v689, 96
      %v1223 = vpop.permute.xlu0 %1222
      %1224 = vrot.lane.b32.xlu0 %v595, 96
      %v1225 = vpop.permute.xlu0 %1224
      %1226 = vrot.lane.b32.xlu0 %v690, 96
      %v1227 = vpop.permute.xlu0 %1226
      %1228 = vrot.lane.b32.xlu0 %v598, 96
      %v1229 = vpop.permute.xlu0 %1228
      %1230 = vrot.lane.b32.xlu0 %v691, 96
      %v1231 = vpop.permute.xlu0 %1230
      %1232 = vrot.lane.b32.xlu0 %v601, 96
      %v1233 = vpop.permute.xlu0 %1232
      %1234 = vrot.lane.b32.xlu0 %v692, 96
      %v1235 = vpop.permute.xlu0 %1234
      %1236 = vrot.lane.b32.xlu0 %v604, 96
      %v1237 = vpop.permute.xlu0 %1236
      %1238 = vrot.lane.b32.xlu0 %v693, 96
      %v1239 = vpop.permute.xlu0 %1238
      %1240 = vrot.lane.b32.xlu0 %v607, 96
      %v1241 = vpop.permute.xlu0 %1240
      %1242 = vrot.lane.b32.xlu0 %v694, 96
      %v1243 = vpop.permute.xlu0 %1242
      %1244 = vrot.lane.b32.xlu0 %v610, 96
      %v1245 = vpop.permute.xlu0 %1244
      %1246 = vrot.lane.b32.xlu0 %v695, 96
      %v1247 = vpop.permute.xlu0 %1246
      %1248 = vrot.lane.b32.xlu0 %v613, 96
      %v1249 = vpop.permute.xlu0 %1248
      %1250 = vrot.lane.b32.xlu0 %v696, 96
      %v1251 = vpop.permute.xlu0 %1250
      %1252 = vrot.lane.b32.xlu0 %v616, 96
      %v1253 = vpop.permute.xlu0 %1252
      %1254 = vrot.lane.b32.xlu0 %v697, 96
      %v1255 = vpop.permute.xlu0 %1254
      %1256 = vrot.lane.b32.xlu0 %v619, 96
      %v1257 = vpop.permute.xlu0 %1256
      %1258 = vrot.lane.b32.xlu0 %v698, 96
      %v1259 = vpop.permute.xlu0 %1258
      %1260 = vrot.lane.b32.xlu0 %v622, 96
      %v1261 = vpop.permute.xlu0 %1260
      %1262 = vrot.lane.b32.xlu0 %v699, 96
      %v1263 = vpop.permute.xlu0 %1262
      %1264 = vrot.lane.b32.xlu0 %v625, 96
      %v1265 = vpop.permute.xlu0 %1264
      %1266 = vrot.lane.b32.xlu0 %v700, 96
      %v1267 = vpop.permute.xlu0 %1266
      %1268 = vrot.lane.b32.xlu0 %v628, 96
      %v1269 = vpop.permute.xlu0 %1268
      %vm1302 = vcmask 1048320
      %1303 = vst.msk [vmem:[#allocation2] sm:$0xff] %vm1302, %v1207
      %1304 = vst.msk [vmem:[#allocation2 + $0x18] sm:$0xff] %vm1302, %v1209
      %1305 = vst.msk [vmem:[#allocation2 + $0x30] sm:$0xff] %vm1302, %v1211
      %1306 = vst.msk [vmem:[#allocation2 + $0x48] sm:$0xff] %vm1302, %v1213
      %1307 = vst.msk [vmem:[#allocation2 + $0x60] sm:$0xff] %vm1302, %v1215
      %1308 = vst.msk [vmem:[#allocation2 + $0x78] sm:$0xff] %vm1302, %v1217
      %1309 = vst.msk [vmem:[#allocation2 + $0x90] sm:$0xff] %vm1302, %v1219
      %1310 = vst.msk [vmem:[#allocation2 + $0xa8] sm:$0xff] %vm1302, %v1221
      %1311 = vst.msk [vmem:[#allocation2 + $0xc0] sm:$0xff] %vm1302, %v1223
      %1312 = vst.msk [vmem:[#allocation2 + $0xd8] sm:$0xff] %vm1302, %v1225
      %1313 = vst.msk [vmem:[#allocation2 + $0xf0] sm:$0xff] %vm1302, %v1227
      %1314 = vst.msk [vmem:[#allocation2 + $0x108] sm:$0xff] %vm1302, %v1229
      %1315 = vst.msk [vmem:[#allocation2 + $0x120] sm:$0xff] %vm1302, %v1231
      %1316 = vst.msk [vmem:[#allocation2 + $0x138] sm:$0xff] %vm1302, %v1233
      %1317 = vst.msk [vmem:[#allocation2 + $0x150] sm:$0xff] %vm1302, %v1235
      %1318 = vst.msk [vmem:[#allocation2 + $0x168] sm:$0xff] %vm1302, %v1237
      %1319 = vst.msk [vmem:[#allocation2 + $0x180] sm:$0xff] %vm1302, %v1239
      %1320 = vst.msk [vmem:[#allocation2 + $0x198] sm:$0xff] %vm1302, %v1241
      %1321 = vst.msk [vmem:[#allocation2 + $0x1b0] sm:$0xff] %vm1302, %v1243
      %1322 = vst.msk [vmem:[#allocation2 + $0x1c8] sm:$0xff] %vm1302, %v1245
      %1323 = vst.msk [vmem:[#allocation2 + $0x1e0] sm:$0xff] %vm1302, %v1247
      %1324 = vst.msk [vmem:[#allocation2 + $0x1f8] sm:$0xff] %vm1302, %v1249
      %1325 = vst.msk [vmem:[#allocation2 + $0x210] sm:$0xff] %vm1302, %v1251
      %1326 = vst.msk [vmem:[#allocation2 + $0x228] sm:$0xff] %vm1302, %v1253
      %1327 = vst.msk [vmem:[#allocation2 + $0x240] sm:$0xff] %vm1302, %v1255
      %1328 = vst.msk [vmem:[#allocation2 + $0x258] sm:$0xff] %vm1302, %v1257
      %1329 = vst.msk [vmem:[#allocation2 + $0x270] sm:$0xff] %vm1302, %v1259
      %1330 = vst.msk [vmem:[#allocation2 + $0x288] sm:$0xff] %vm1302, %v1261
      %1331 = vst.msk [vmem:[#allocation2 + $0x2a0] sm:$0xff] %vm1302, %v1263
      %1332 = vst.msk [vmem:[#allocation2 + $0x2b8] sm:$0xff] %vm1302, %v1265
      %1333 = vst.msk [vmem:[#allocation2 + $0x2d0] sm:$0xff] %vm1302, %v1267
      %1334 = vst.msk [vmem:[#allocation2 + $0x2e8] sm:$0xff] %vm1302, %v1269
      %v1336 = vrot.slane %v700, 1
      %v1337 = vrot.slane %v628, 1
      %v1338 = vsel %vm785, %v1336, %v1337
      %v1339 = vrot.slane %v718, 1
      %v1340 = vsel %vm785, %v1337, %v1339
      %1373 = vst.msk [vmem:[#allocation2 + $0x8] sm:$0xff] %vm720, %v793
      %1374 = vst.msk [vmem:[#allocation2 + $0x20] sm:$0xff] %vm720, %v795
      %1375 = vst.msk [vmem:[#allocation2 + $0x38] sm:$0xff] %vm720, %v798
      %1376 = vst.msk [vmem:[#allocation2 + $0x50] sm:$0xff] %vm720, %v800
      %1377 = vst.msk [vmem:[#allocation2 + $0x68] sm:$0xff] %vm720, %v803
      %1378 = vst.msk [vmem:[#allocation2 + $0x80] sm:$0xff] %vm720, %v805
      %1379 = vst.msk [vmem:[#allocation2 + $0x98] sm:$0xff] %vm720, %v808
      %1380 = vst.msk [vmem:[#allocation2 + $0xb0] sm:$0xff] %vm720, %v810
      %1381 = vst.msk [vmem:[#allocation2 + $0xc8] sm:$0xff] %vm720, %v813
      %1382 = vst.msk [vmem:[#allocation2 + $0xe0] sm:$0xff] %vm720, %v815
      %1383 = vst.msk [vmem:[#allocation2 + $0xf8] sm:$0xff] %vm720, %v818
      %1384 = vst.msk [vmem:[#allocation2 + $0x110] sm:$0xff] %vm720, %v820
      %1385 = vst.msk [vmem:[#allocation2 + $0x128] sm:$0xff] %vm720, %v823
      %1386 = vst.msk [vmem:[#allocation2 + $0x140] sm:$0xff] %vm720, %v825
      %1387 = vst.msk [vmem:[#allocation2 + $0x158] sm:$0xff] %vm720, %v828
      %1388 = vst.msk [vmem:[#allocation2 + $0x170] sm:$0xff] %vm720, %v830
      %1389 = vst.msk [vmem:[#allocation2 + $0x188] sm:$0xff] %vm720, %v833
      %1390 = vst.msk [vmem:[#allocation2 + $0x1a0] sm:$0xff] %vm720, %v835
      %1391 = vst.msk [vmem:[#allocation2 + $0x1b8] sm:$0xff] %vm720, %v838
      %1392 = vst.msk [vmem:[#allocation2 + $0x1d0] sm:$0xff] %vm720, %v840
      %1393 = vst.msk [vmem:[#allocation2 + $0x1e8] sm:$0xff] %vm720, %v843
      %1394 = vst.msk [vmem:[#allocation2 + $0x200] sm:$0xff] %vm720, %v845
      %1395 = vst.msk [vmem:[#allocation2 + $0x218] sm:$0xff] %vm720, %v848
      %1396 = vst.msk [vmem:[#allocation2 + $0x230] sm:$0xff] %vm720, %v850
      %1397 = vst.msk [vmem:[#allocation2 + $0x248] sm:$0xff] %vm720, %v853
      %1398 = vst.msk [vmem:[#allocation2 + $0x260] sm:$0xff] %vm720, %v855
      %1399 = vst.msk [vmem:[#allocation2 + $0x278] sm:$0xff] %vm720, %v858
      %1400 = vst.msk [vmem:[#allocation2 + $0x290] sm:$0xff] %vm720, %v860
      %1401 = vst.msk [vmem:[#allocation2 + $0x2a8] sm:$0xff] %vm720, %v863
      %1402 = vst.msk [vmem:[#allocation2 + $0x2c0] sm:$0xff] %vm720, %v865
      %1403 = vst.msk [vmem:[#allocation2 + $0x2d8] sm:$0xff] %vm720, %v1338
      %1404 = vst.msk [vmem:[#allocation2 + $0x2f0] sm:$0xff] %vm720, %v1340
      %v1405 = vrot.slane %v700, 2
      %v1406 = vrot.slane %v628, 2
      %v1407 = vsel %vm995, %v1405, %v1406
      %v1408 = vrot.slane %v718, 2
      %v1409 = vsel %vm995, %v1406, %v1408
      %1410 = vrot.lane.b32.xlu0 %v1003, 32
      %v1411 = vpop.permute.xlu0 %1410
      %1412 = vrot.lane.b32.xlu0 %v1005, 32
      %v1413 = vpop.permute.xlu0 %1412
      %1414 = vrot.lane.b32.xlu0 %v1008, 32
      %v1415 = vpop.permute.xlu0 %1414
      %1416 = vrot.lane.b32.xlu0 %v1010, 32
      %v1417 = vpop.permute.xlu0 %1416
      %1418 = vrot.lane.b32.xlu0 %v1013, 32
      %v1419 = vpop.permute.xlu0 %1418
      %1420 = vrot.lane.b32.xlu0 %v1015, 32
      %v1421 = vpop.permute.xlu0 %1420
      %1422 = vrot.lane.b32.xlu0 %v1018, 32
      %v1423 = vpop.permute.xlu0 %1422
      %1424 = vrot.lane.b32.xlu0 %v1020, 32
      %v1425 = vpop.permute.xlu0 %1424
      %1426 = vrot.lane.b32.xlu0 %v1023, 32
      %v1427 = vpop.permute.xlu0 %1426
      %1428 = vrot.lane.b32.xlu0 %v1025, 32
      %v1429 = vpop.permute.xlu0 %1428
      %1430 = vrot.lane.b32.xlu0 %v1028, 32
      %v1431 = vpop.permute.xlu0 %1430
      %1432 = vrot.lane.b32.xlu0 %v1030, 32
      %v1433 = vpop.permute.xlu0 %1432
      %1434 = vrot.lane.b32.xlu0 %v1033, 32
      %v1435 = vpop.permute.xlu0 %1434
      %1436 = vrot.lane.b32.xlu0 %v1035, 32
      %v1437 = vpop.permute.xlu0 %1436
      %1438 = vrot.lane.b32.xlu0 %v1038, 32
      %v1439 = vpop.permute.xlu0 %1438
      %1440 = vrot.lane.b32.xlu0 %v1040, 32
      %v1441 = vpop.permute.xlu0 %1440
      %1442 = vrot.lane.b32.xlu0 %v1043, 32
      %v1443 = vpop.permute.xlu0 %1442
      %1444 = vrot.lane.b32.xlu0 %v1045, 32
      %v1445 = vpop.permute.xlu0 %1444
      %1446 = vrot.lane.b32.xlu0 %v1048, 32
      %v1447 = vpop.permute.xlu0 %1446
      %1448 = vrot.lane.b32.xlu0 %v1050, 32
      %v1449 = vpop.permute.xlu0 %1448
      %1450 = vrot.lane.b32.xlu0 %v1053, 32
      %v1451 = vpop.permute.xlu0 %1450
      %1452 = vrot.lane.b32.xlu0 %v1055, 32
      %v1453 = vpop.permute.xlu0 %1452
      %1454 = vrot.lane.b32.xlu0 %v1058, 32
      %v1455 = vpop.permute.xlu0 %1454
      %1456 = vrot.lane.b32.xlu0 %v1060, 32
      %v1457 = vpop.permute.xlu0 %1456
      %1458 = vrot.lane.b32.xlu0 %v1063, 32
      %v1459 = vpop.permute.xlu0 %1458
      %1460 = vrot.lane.b32.xlu0 %v1065, 32
      %v1461 = vpop.permute.xlu0 %1460
      %1462 = vrot.lane.b32.xlu0 %v1068, 32
      %v1463 = vpop.permute.xlu0 %1462
      %1464 = vrot.lane.b32.xlu0 %v1070, 32
      %v1465 = vpop.permute.xlu0 %1464
      %1466 = vrot.lane.b32.xlu0 %v1073, 32
      %v1467 = vpop.permute.xlu0 %1466
      %1468 = vrot.lane.b32.xlu0 %v1075, 32
      %v1469 = vpop.permute.xlu0 %1468
      %1470 = vrot.lane.b32.xlu0 %v1407, 32
      %v1471 = vpop.permute.xlu0 %1470
      %1472 = vrot.lane.b32.xlu0 %v1409, 32
      %v1473 = vpop.permute.xlu0 %1472
      %1506 = vst.msk [vmem:[#allocation2 + $0x8] sm:$0xff] %vm962, %v1411
      %1507 = vst.msk [vmem:[#allocation2 + $0x20] sm:$0xff] %vm962, %v1413
      %1508 = vst.msk [vmem:[#allocation2 + $0x38] sm:$0xff] %vm962, %v1415
      %1509 = vst.msk [vmem:[#allocation2 + $0x50] sm:$0xff] %vm962, %v1417
      %1510 = vst.msk [vmem:[#allocation2 + $0x68] sm:$0xff] %vm962, %v1419
      %1511 = vst.msk [vmem:[#allocation2 + $0x80] sm:$0xff] %vm962, %v1421
      %1512 = vst.msk [vmem:[#allocation2 + $0x98] sm:$0xff] %vm962, %v1423
      %1513 = vst.msk [vmem:[#allocation2 + $0xb0] sm:$0xff] %vm962, %v1425
      %1514 = vst.msk [vmem:[#allocation2 + $0xc8] sm:$0xff] %vm962, %v1427
      %1515 = vst.msk [vmem:[#allocation2 + $0xe0] sm:$0xff] %vm962, %v1429
      %1516 = vst.msk [vmem:[#allocation2 + $0xf8] sm:$0xff] %vm962, %v1431
      %1517 = vst.msk [vmem:[#allocation2 + $0x110] sm:$0xff] %vm962, %v1433
      %1518 = vst.msk [vmem:[#allocation2 + $0x128] sm:$0xff] %vm962, %v1435
      %1519 = vst.msk [vmem:[#allocation2 + $0x140] sm:$0xff] %vm962, %v1437
      %1520 = vst.msk [vmem:[#allocation2 + $0x158] sm:$0xff] %vm962, %v1439
      %1521 = vst.msk [vmem:[#allocation2 + $0x170] sm:$0xff] %vm962, %v1441
      %1522 = vst.msk [vmem:[#allocation2 + $0x188] sm:$0xff] %vm962, %v1443
      %1523 = vst.msk [vmem:[#allocation2 + $0x1a0] sm:$0xff] %vm962, %v1445
      %1524 = vst.msk [vmem:[#allocation2 + $0x1b8] sm:$0xff] %vm962, %v1447
      %1525 = vst.msk [vmem:[#allocation2 + $0x1d0] sm:$0xff] %vm962, %v1449
      %1526 = vst.msk [vmem:[#allocation2 + $0x1e8] sm:$0xff] %vm962, %v1451
      %1527 = vst.msk [vmem:[#allocation2 + $0x200] sm:$0xff] %vm962, %v1453
      %1528 = vst.msk [vmem:[#allocation2 + $0x218] sm:$0xff] %vm962, %v1455
      %1529 = vst.msk [vmem:[#allocation2 + $0x230] sm:$0xff] %vm962, %v1457
      %1530 = vst.msk [vmem:[#allocation2 + $0x248] sm:$0xff] %vm962, %v1459
      %1531 = vst.msk [vmem:[#allocation2 + $0x260] sm:$0xff] %vm962, %v1461
      %1532 = vst.msk [vmem:[#allocation2 + $0x278] sm:$0xff] %vm962, %v1463
      %1533 = vst.msk [vmem:[#allocation2 + $0x290] sm:$0xff] %vm962, %v1465
      %1534 = vst.msk [vmem:[#allocation2 + $0x2a8] sm:$0xff] %vm962, %v1467
      %1535 = vst.msk [vmem:[#allocation2 + $0x2c0] sm:$0xff] %vm962, %v1469
      %1536 = vst.msk [vmem:[#allocation2 + $0x2d8] sm:$0xff] %vm962, %v1471
      %1537 = vst.msk [vmem:[#allocation2 + $0x2f0] sm:$0xff] %vm962, %v1473
      %1539 = vrot.lane.b32.xlu0 %v686, 64
      %v1540 = vpop.permute.xlu0 %1539
      %1541 = vrot.lane.b32.xlu0 %v586, 64
      %v1542 = vpop.permute.xlu0 %1541
      %1543 = vrot.lane.b32.xlu0 %v687, 64
      %v1544 = vpop.permute.xlu0 %1543
      %1545 = vrot.lane.b32.xlu0 %v589, 64
      %v1546 = vpop.permute.xlu0 %1545
      %1547 = vrot.lane.b32.xlu0 %v688, 64
      %v1548 = vpop.permute.xlu0 %1547
      %1549 = vrot.lane.b32.xlu0 %v592, 64
      %v1550 = vpop.permute.xlu0 %1549
      %1551 = vrot.lane.b32.xlu0 %v689, 64
      %v1552 = vpop.permute.xlu0 %1551
      %1553 = vrot.lane.b32.xlu0 %v595, 64
      %v1554 = vpop.permute.xlu0 %1553
      %1555 = vrot.lane.b32.xlu0 %v690, 64
      %v1556 = vpop.permute.xlu0 %1555
      %1557 = vrot.lane.b32.xlu0 %v598, 64
      %v1558 = vpop.permute.xlu0 %1557
      %1559 = vrot.lane.b32.xlu0 %v691, 64
      %v1560 = vpop.permute.xlu0 %1559
      %1561 = vrot.lane.b32.xlu0 %v601, 64
      %v1562 = vpop.permute.xlu0 %1561
      %1563 = vrot.lane.b32.xlu0 %v692, 64
      %v1564 = vpop.permute.xlu0 %1563
      %1565 = vrot.lane.b32.xlu0 %v604, 64
      %v1566 = vpop.permute.xlu0 %1565
      %1567 = vrot.lane.b32.xlu0 %v693, 64
      %v1568 = vpop.permute.xlu0 %1567
      %1569 = vrot.lane.b32.xlu0 %v607, 64
      %v1570 = vpop.permute.xlu0 %1569
      %1571 = vrot.lane.b32.xlu0 %v694, 64
      %v1572 = vpop.permute.xlu0 %1571
      %1573 = vrot.lane.b32.xlu0 %v610, 64
      %v1574 = vpop.permute.xlu0 %1573
      %1575 = vrot.lane.b32.xlu0 %v695, 64
      %v1576 = vpop.permute.xlu0 %1575
      %1577 = vrot.lane.b32.xlu0 %v613, 64
      %v1578 = vpop.permute.xlu0 %1577
      %1579 = vrot.lane.b32.xlu0 %v696, 64
      %v1580 = vpop.permute.xlu0 %1579
      %1581 = vrot.lane.b32.xlu0 %v616, 64
      %v1582 = vpop.permute.xlu0 %1581
      %1583 = vrot.lane.b32.xlu0 %v697, 64
      %v1584 = vpop.permute.xlu0 %1583
      %1585 = vrot.lane.b32.xlu0 %v619, 64
      %v1586 = vpop.permute.xlu0 %1585
      %1587 = vrot.lane.b32.xlu0 %v698, 64
      %v1588 = vpop.permute.xlu0 %1587
      %1589 = vrot.lane.b32.xlu0 %v622, 64
      %v1590 = vpop.permute.xlu0 %1589
      %1591 = vrot.lane.b32.xlu0 %v699, 64
      %v1592 = vpop.permute.xlu0 %1591
      %1593 = vrot.lane.b32.xlu0 %v625, 64
      %v1594 = vpop.permute.xlu0 %1593
      %1595 = vrot.lane.b32.xlu0 %v700, 64
      %v1596 = vpop.permute.xlu0 %1595
      %1597 = vrot.lane.b32.xlu0 %v628, 64
      %v1598 = vpop.permute.xlu0 %1597
      %1599 = vrot.lane.b32.xlu0 %v701, 64
      %v1600 = vpop.permute.xlu0 %1599
      %1601 = vrot.lane.b32.xlu0 %v631, 64
      %v1602 = vpop.permute.xlu0 %1601
      %1635 = vst.msk [vmem:[#allocation2 + $0x8] sm:$0xff] %vm1172, %v1540
      %1636 = vst.msk [vmem:[#allocation2 + $0x20] sm:$0xff] %vm1172, %v1542
      %1637 = vst.msk [vmem:[#allocation2 + $0x38] sm:$0xff] %vm1172, %v1544
      %1638 = vst.msk [vmem:[#allocation2 + $0x50] sm:$0xff] %vm1172, %v1546
      %1639 = vst.msk [vmem:[#allocation2 + $0x68] sm:$0xff] %vm1172, %v1548
      %1640 = vst.msk [vmem:[#allocation2 + $0x80] sm:$0xff] %vm1172, %v1550
      %1641 = vst.msk [vmem:[#allocation2 + $0x98] sm:$0xff] %vm1172, %v1552
      %1642 = vst.msk [vmem:[#allocation2 + $0xb0] sm:$0xff] %vm1172, %v1554
      %1643 = vst.msk [vmem:[#allocation2 + $0xc8] sm:$0xff] %vm1172, %v1556
      %1644 = vst.msk [vmem:[#allocation2 + $0xe0] sm:$0xff] %vm1172, %v1558
      %1645 = vst.msk [vmem:[#allocation2 + $0xf8] sm:$0xff] %vm1172, %v1560
      %1646 = vst.msk [vmem:[#allocation2 + $0x110] sm:$0xff] %vm1172, %v1562
      %1647 = vst.msk [vmem:[#allocation2 + $0x128] sm:$0xff] %vm1172, %v1564
      %1648 = vst.msk [vmem:[#allocation2 + $0x140] sm:$0xff] %vm1172, %v1566
      %1649 = vst.msk [vmem:[#allocation2 + $0x158] sm:$0xff] %vm1172, %v1568
      %1650 = vst.msk [vmem:[#allocation2 + $0x170] sm:$0xff] %vm1172, %v1570
      %1651 = vst.msk [vmem:[#allocation2 + $0x188] sm:$0xff] %vm1172, %v1572
      %1652 = vst.msk [vmem:[#allocation2 + $0x1a0] sm:$0xff] %vm1172, %v1574
      %1653 = vst.msk [vmem:[#allocation2 + $0x1b8] sm:$0xff] %vm1172, %v1576
      %1654 = vst.msk [vmem:[#allocation2 + $0x1d0] sm:$0xff] %vm1172, %v1578
      %1655 = vst.msk [vmem:[#allocation2 + $0x1e8] sm:$0xff] %vm1172, %v1580
      %1656 = vst.msk [vmem:[#allocation2 + $0x200] sm:$0xff] %vm1172, %v1582
      %1657 = vst.msk [vmem:[#allocation2 + $0x218] sm:$0xff] %vm1172, %v1584
      %1658 = vst.msk [vmem:[#allocation2 + $0x230] sm:$0xff] %vm1172, %v1586
      %1659 = vst.msk [vmem:[#allocation2 + $0x248] sm:$0xff] %vm1172, %v1588
      %1660 = vst.msk [vmem:[#allocation2 + $0x260] sm:$0xff] %vm1172, %v1590
      %1661 = vst.msk [vmem:[#allocation2 + $0x278] sm:$0xff] %vm1172, %v1592
      %1662 = vst.msk [vmem:[#allocation2 + $0x290] sm:$0xff] %vm1172, %v1594
      %1663 = vst.msk [vmem:[#allocation2 + $0x2a8] sm:$0xff] %vm1172, %v1596
      %1664 = vst.msk [vmem:[#allocation2 + $0x2c0] sm:$0xff] %vm1172, %v1598
      %1665 = vst.msk [vmem:[#allocation2 + $0x2d8] sm:$0xff] %vm1172, %v1600
      %1666 = vst.msk [vmem:[#allocation2 + $0x2f0] sm:$0xff] %vm1172, %v1602
      %v1668 = vrot.slane %v701, 1
      %v1669 = vrot.slane %v631, 1
      %v1670 = vsel %vm785, %v1668, %v1669
      %v1671 = vrot.slane %v719, 1
      %v1672 = vsel %vm785, %v1669, %v1671
      %1673 = vrot.lane.b32.xlu0 %v798, 96
      %v1674 = vpop.permute.xlu0 %1673
      %1675 = vrot.lane.b32.xlu0 %v800, 96
      %v1676 = vpop.permute.xlu0 %1675
      %1677 = vrot.lane.b32.xlu0 %v803, 96
      %v1678 = vpop.permute.xlu0 %1677
      %1679 = vrot.lane.b32.xlu0 %v805, 96
      %v1680 = vpop.permute.xlu0 %1679
      %1681 = vrot.lane.b32.xlu0 %v808, 96
      %v1682 = vpop.permute.xlu0 %1681
      %1683 = vrot.lane.b32.xlu0 %v810, 96
      %v1684 = vpop.permute.xlu0 %1683
      %1685 = vrot.lane.b32.xlu0 %v813, 96
      %v1686 = vpop.permute.xlu0 %1685
      %1687 = vrot.lane.b32.xlu0 %v815, 96
      %v1688 = vpop.permute.xlu0 %1687
      %1689 = vrot.lane.b32.xlu0 %v818, 96
      %v1690 = vpop.permute.xlu0 %1689
      %1691 = vrot.lane.b32.xlu0 %v820, 96
      %v1692 = vpop.permute.xlu0 %1691
      %1693 = vrot.lane.b32.xlu0 %v823, 96
      %v1694 = vpop.permute.xlu0 %1693
      %1695 = vrot.lane.b32.xlu0 %v825, 96
      %v1696 = vpop.permute.xlu0 %1695
      %1697 = vrot.lane.b32.xlu0 %v828, 96
      %v1698 = vpop.permute.xlu0 %1697
      %1699 = vrot.lane.b32.xlu0 %v830, 96
      %v1700 = vpop.permute.xlu0 %1699
      %1701 = vrot.lane.b32.xlu0 %v833, 96
      %v1702 = vpop.permute.xlu0 %1701
      %1703 = vrot.lane.b32.xlu0 %v835, 96
      %v1704 = vpop.permute.xlu0 %1703
      %1705 = vrot.lane.b32.xlu0 %v838, 96
      %v1706 = vpop.permute.xlu0 %1705
      %1707 = vrot.lane.b32.xlu0 %v840, 96
      %v1708 = vpop.permute.xlu0 %1707
      %1709 = vrot.lane.b32.xlu0 %v843, 96
      %v1710 = vpop.permute.xlu0 %1709
      %1711 = vrot.lane.b32.xlu0 %v845, 96
      %v1712 = vpop.permute.xlu0 %1711
      %1713 = vrot.lane.b32.xlu0 %v848, 96
      %v1714 = vpop.permute.xlu0 %1713
      %1715 = vrot.lane.b32.xlu0 %v850, 96
      %v1716 = vpop.permute.xlu0 %1715
      %1717 = vrot.lane.b32.xlu0 %v853, 96
      %v1718 = vpop.permute.xlu0 %1717
      %1719 = vrot.lane.b32.xlu0 %v855, 96
      %v1720 = vpop.permute.xlu0 %1719
      %1721 = vrot.lane.b32.xlu0 %v858, 96
      %v1722 = vpop.permute.xlu0 %1721
      %1723 = vrot.lane.b32.xlu0 %v860, 96
      %v1724 = vpop.permute.xlu0 %1723
      %1725 = vrot.lane.b32.xlu0 %v863, 96
      %v1726 = vpop.permute.xlu0 %1725
      %1727 = vrot.lane.b32.xlu0 %v865, 96
      %v1728 = vpop.permute.xlu0 %1727
      %1729 = vrot.lane.b32.xlu0 %v1338, 96
      %v1730 = vpop.permute.xlu0 %1729
      %1731 = vrot.lane.b32.xlu0 %v1340, 96
      %v1732 = vpop.permute.xlu0 %1731
      %1733 = vrot.lane.b32.xlu0 %v1670, 96
      %v1734 = vpop.permute.xlu0 %1733
      %1735 = vrot.lane.b32.xlu0 %v1672, 96
      %v1736 = vpop.permute.xlu0 %1735
      %1769 = vst.msk [vmem:[#allocation2 + $0x8] sm:$0xff] %vm1302, %v1674
      %1770 = vst.msk [vmem:[#allocation2 + $0x20] sm:$0xff] %vm1302, %v1676
      %1771 = vst.msk [vmem:[#allocation2 + $0x38] sm:$0xff] %vm1302, %v1678
      %1772 = vst.msk [vmem:[#allocation2 + $0x50] sm:$0xff] %vm1302, %v1680
      %1773 = vst.msk [vmem:[#allocation2 + $0x68] sm:$0xff] %vm1302, %v1682
      %1774 = vst.msk [vmem:[#allocation2 + $0x80] sm:$0xff] %vm1302, %v1684
      %1775 = vst.msk [vmem:[#allocation2 + $0x98] sm:$0xff] %vm1302, %v1686
      %1776 = vst.msk [vmem:[#allocation2 + $0xb0] sm:$0xff] %vm1302, %v1688
      %1777 = vst.msk [vmem:[#allocation2 + $0xc8] sm:$0xff] %vm1302, %v1690
      %1778 = vst.msk [vmem:[#allocation2 + $0xe0] sm:$0xff] %vm1302, %v1692
      %1779 = vst.msk [vmem:[#allocation2 + $0xf8] sm:$0xff] %vm1302, %v1694
      %1780 = vst.msk [vmem:[#allocation2 + $0x110] sm:$0xff] %vm1302, %v1696
      %1781 = vst.msk [vmem:[#allocation2 + $0x128] sm:$0xff] %vm1302, %v1698
      %1782 = vst.msk [vmem:[#allocation2 + $0x140] sm:$0xff] %vm1302, %v1700
      %1783 = vst.msk [vmem:[#allocation2 + $0x158] sm:$0xff] %vm1302, %v1702
      %1784 = vst.msk [vmem:[#allocation2 + $0x170] sm:$0xff] %vm1302, %v1704
      %1785 = vst.msk [vmem:[#allocation2 + $0x188] sm:$0xff] %vm1302, %v1706
      %1786 = vst.msk [vmem:[#allocation2 + $0x1a0] sm:$0xff] %vm1302, %v1708
      %1787 = vst.msk [vmem:[#allocation2 + $0x1b8] sm:$0xff] %vm1302, %v1710
      %1788 = vst.msk [vmem:[#allocation2 + $0x1d0] sm:$0xff] %vm1302, %v1712
      %1789 = vst.msk [vmem:[#allocation2 + $0x1e8] sm:$0xff] %vm1302, %v1714
      %1790 = vst.msk [vmem:[#allocation2 + $0x200] sm:$0xff] %vm1302, %v1716
      %1791 = vst.msk [vmem:[#allocation2 + $0x218] sm:$0xff] %vm1302, %v1718
      %1792 = vst.msk [vmem:[#allocation2 + $0x230] sm:$0xff] %vm1302, %v1720
      %1793 = vst.msk [vmem:[#allocation2 + $0x248] sm:$0xff] %vm1302, %v1722
      %1794 = vst.msk [vmem:[#allocation2 + $0x260] sm:$0xff] %vm1302, %v1724
      %1795 = vst.msk [vmem:[#allocation2 + $0x278] sm:$0xff] %vm1302, %v1726
      %1796 = vst.msk [vmem:[#allocation2 + $0x290] sm:$0xff] %vm1302, %v1728
      %1797 = vst.msk [vmem:[#allocation2 + $0x2a8] sm:$0xff] %vm1302, %v1730
      %1798 = vst.msk [vmem:[#allocation2 + $0x2c0] sm:$0xff] %vm1302, %v1732
      %1799 = vst.msk [vmem:[#allocation2 + $0x2d8] sm:$0xff] %vm1302, %v1734
      %1800 = vst.msk [vmem:[#allocation2 + $0x2f0] sm:$0xff] %vm1302, %v1736
      %v1801 = vrot.slane %v701, 2
      %v1802 = vrot.slane %v631, 2
      %v1803 = vsel %vm995, %v1801, %v1802
      %v1804 = vrot.slane %v719, 2
      %v1805 = vsel %vm995, %v1802, %v1804
      %1838 = vst.msk [vmem:[#allocation2 + $0x10] sm:$0xff] %vm720, %v1008
      %1839 = vst.msk [vmem:[#allocation2 + $0x28] sm:$0xff] %vm720, %v1010
      %1840 = vst.msk [vmem:[#allocation2 + $0x40] sm:$0xff] %vm720, %v1013
      %1841 = vst.msk [vmem:[#allocation2 + $0x58] sm:$0xff] %vm720, %v1015
      %1842 = vst.msk [vmem:[#allocation2 + $0x70] sm:$0xff] %vm720, %v1018
      %1843 = vst.msk [vmem:[#allocation2 + $0x88] sm:$0xff] %vm720, %v1020
      %1844 = vst.msk [vmem:[#allocation2 + $0xa0] sm:$0xff] %vm720, %v1023
      %1845 = vst.msk [vmem:[#allocation2 + $0xb8] sm:$0xff] %vm720, %v1025
      %1846 = vst.msk [vmem:[#allocation2 + $0xd0] sm:$0xff] %vm720, %v1028
      %1847 = vst.msk [vmem:[#allocation2 + $0xe8] sm:$0xff] %vm720, %v1030
      %1848 = vst.msk [vmem:[#allocation2 + $0x100] sm:$0xff] %vm720, %v1033
      %1849 = vst.msk [vmem:[#allocation2 + $0x118] sm:$0xff] %vm720, %v1035
      %1850 = vst.msk [vmem:[#allocation2 + $0x130] sm:$0xff] %vm720, %v1038
      %1851 = vst.msk [vmem:[#allocation2 + $0x148] sm:$0xff] %vm720, %v1040
      %1852 = vst.msk [vmem:[#allocation2 + $0x160] sm:$0xff] %vm720, %v1043
      %1853 = vst.msk [vmem:[#allocation2 + $0x178] sm:$0xff] %vm720, %v1045
      %1854 = vst.msk [vmem:[#allocation2 + $0x190] sm:$0xff] %vm720, %v1048
      %1855 = vst.msk [vmem:[#allocation2 + $0x1a8] sm:$0xff] %vm720, %v1050
      %1856 = vst.msk [vmem:[#allocation2 + $0x1c0] sm:$0xff] %vm720, %v1053
      %1857 = vst.msk [vmem:[#allocation2 + $0x1d8] sm:$0xff] %vm720, %v1055
      %1858 = vst.msk [vmem:[#allocation2 + $0x1f0] sm:$0xff] %vm720, %v1058
      %1859 = vst.msk [vmem:[#allocation2 + $0x208] sm:$0xff] %vm720, %v1060
      %1860 = vst.msk [vmem:[#allocation2 + $0x220] sm:$0xff] %vm720, %v1063
      %1861 = vst.msk [vmem:[#allocation2 + $0x238] sm:$0xff] %vm720, %v1065
      %1862 = vst.msk [vmem:[#allocation2 + $0x250] sm:$0xff] %vm720, %v1068
      %1863 = vst.msk [vmem:[#allocation2 + $0x268] sm:$0xff] %vm720, %v1070
      %1864 = vst.msk [vmem:[#allocation2 + $0x280] sm:$0xff] %vm720, %v1073
      %1865 = vst.msk [vmem:[#allocation2 + $0x298] sm:$0xff] %vm720, %v1075
      %1866 = vst.msk [vmem:[#allocation2 + $0x2b0] sm:$0xff] %vm720, %v1407
      %1867 = vst.msk [vmem:[#allocation2 + $0x2c8] sm:$0xff] %vm720, %v1409
      %1868 = vst.msk [vmem:[#allocation2 + $0x2e0] sm:$0xff] %vm720, %v1803
      %1869 = vst.msk [vmem:[#allocation2 + $0x2f8] sm:$0xff] %vm720, %v1805
      %v1870 = vld [vmem:[#allocation2] sm:$0xff]
      %v1871 = vld [vmem:[#allocation2 + $0x8] sm:$0xff]
      %v1872 = vld [vmem:[#allocation2 + $0x10] sm:$0xff]
      %v1873 = vld [vmem:[#allocation2 + $0x18] sm:$0xff]
      %v1874 = vld [vmem:[#allocation2 + $0x20] sm:$0xff]
      %v1875 = vld [vmem:[#allocation2 + $0x28] sm:$0xff]
      %v1876 = vld [vmem:[#allocation2 + $0x30] sm:$0xff]
      %v1877 = vld [vmem:[#allocation2 + $0x38] sm:$0xff]
      %v1878 = vld [vmem:[#allocation2 + $0x40] sm:$0xff]
      %v1879 = vld [vmem:[#allocation2 + $0x48] sm:$0xff]
      %v1880 = vld [vmem:[#allocation2 + $0x50] sm:$0xff]
      %v1881 = vld [vmem:[#allocation2 + $0x58] sm:$0xff]
      %v1882 = vld [vmem:[#allocation2 + $0x60] sm:$0xff]
      %v1883 = vld [vmem:[#allocation2 + $0x68] sm:$0xff]
      %v1884 = vld [vmem:[#allocation2 + $0x70] sm:$0xff]
      %v1885 = vld [vmem:[#allocation2 + $0x78] sm:$0xff]
      %v1886 = vld [vmem:[#allocation2 + $0x80] sm:$0xff]
      %v1887 = vld [vmem:[#allocation2 + $0x88] sm:$0xff]
      %v1888 = vld [vmem:[#allocation2 + $0x90] sm:$0xff]
      %v1889 = vld [vmem:[#allocation2 + $0x98] sm:$0xff]
      %v1890 = vld [vmem:[#allocation2 + $0xa0] sm:$0xff]
      %v1891 = vld [vmem:[#allocation2 + $0xa8] sm:$0xff]
      %v1892 = vld [vmem:[#allocation2 + $0xb0] sm:$0xff]
      %v1893 = vld [vmem:[#allocation2 + $0xb8] sm:$0xff]
      %v1894 = vld [vmem:[#allocation2 + $0xc0] sm:$0xff]
      %v1895 = vld [vmem:[#allocation2 + $0xc8] sm:$0xff]
      %v1896 = vld [vmem:[#allocation2 + $0xd0] sm:$0xff]
      %v1897 = vld [vmem:[#allocation2 + $0xd8] sm:$0xff]
      %v1898 = vld [vmem:[#allocation2 + $0xe0] sm:$0xff]
      %v1899 = vld [vmem:[#allocation2 + $0xe8] sm:$0xff]
      %v1900 = vld [vmem:[#allocation2 + $0xf0] sm:$0xff]
      %v1901 = vld [vmem:[#allocation2 + $0xf8] sm:$0xff]
      %v1902 = vld [vmem:[#allocation2 + $0x100] sm:$0xff]
      %v1903 = vld [vmem:[#allocation2 + $0x108] sm:$0xff]
      %v1904 = vld [vmem:[#allocation2 + $0x110] sm:$0xff]
      %v1905 = vld [vmem:[#allocation2 + $0x118] sm:$0xff]
      %v1906 = vld [vmem:[#allocation2 + $0x120] sm:$0xff]
      %v1907 = vld [vmem:[#allocation2 + $0x128] sm:$0xff]
      %v1908 = vld [vmem:[#allocation2 + $0x130] sm:$0xff]
      %v1909 = vld [vmem:[#allocation2 + $0x138] sm:$0xff]
      %v1910 = vld [vmem:[#allocation2 + $0x140] sm:$0xff]
      %v1911 = vld [vmem:[#allocation2 + $0x148] sm:$0xff]
      %v1912 = vld [vmem:[#allocation2 + $0x150] sm:$0xff]
      %v1913 = vld [vmem:[#allocation2 + $0x158] sm:$0xff]
      %v1914 = vld [vmem:[#allocation2 + $0x160] sm:$0xff]
      %v1915 = vld [vmem:[#allocation2 + $0x168] sm:$0xff]
      %v1916 = vld [vmem:[#allocation2 + $0x170] sm:$0xff]
      %v1917 = vld [vmem:[#allocation2 + $0x178] sm:$0xff]
      %v1918 = vld [vmem:[#allocation2 + $0x180] sm:$0xff]
      %v1919 = vld [vmem:[#allocation2 + $0x188] sm:$0xff]
      %v1920 = vld [vmem:[#allocation2 + $0x190] sm:$0xff]
      %v1921 = vld [vmem:[#allocation2 + $0x198] sm:$0xff]
      %v1922 = vld [vmem:[#allocation2 + $0x1a0] sm:$0xff]
      %v1923 = vld [vmem:[#allocation2 + $0x1a8] sm:$0xff]
      %v1924 = vld [vmem:[#allocation2 + $0x1b0] sm:$0xff]
      %v1925 = vld [vmem:[#allocation2 + $0x1b8] sm:$0xff]
      %v1926 = vld [vmem:[#allocation2 + $0x1c0] sm:$0xff]
      %v1927 = vld [vmem:[#allocation2 + $0x1c8] sm:$0xff]
      %v1928 = vld [vmem:[#allocation2 + $0x1d0] sm:$0xff]
      %v1929 = vld [vmem:[#allocation2 + $0x1d8] sm:$0xff]
      %v1930 = vld [vmem:[#allocation2 + $0x1e0] sm:$0xff]
      %v1931 = vld [vmem:[#allocation2 + $0x1e8] sm:$0xff]
      %v1932 = vld [vmem:[#allocation2 + $0x1f0] sm:$0xff]
      %v1933 = vld [vmem:[#allocation2 + $0x1f8] sm:$0xff]
      %v1934 = vld [vmem:[#allocation2 + $0x200] sm:$0xff]
      %v1935 = vld [vmem:[#allocation2 + $0x208] sm:$0xff]
      %v1936 = vld [vmem:[#allocation2 + $0x210] sm:$0xff]
      %v1937 = vld [vmem:[#allocation2 + $0x218] sm:$0xff]
      %v1938 = vld [vmem:[#allocation2 + $0x220] sm:$0xff]
      %v1939 = vld [vmem:[#allocation2 + $0x228] sm:$0xff]
      %v1940 = vld [vmem:[#allocation2 + $0x230] sm:$0xff]
      %v1941 = vld [vmem:[#allocation2 + $0x238] sm:$0xff]
      %v1942 = vld [vmem:[#allocation2 + $0x240] sm:$0xff]
      %v1943 = vld [vmem:[#allocation2 + $0x248] sm:$0xff]
      %v1944 = vld [vmem:[#allocation2 + $0x250] sm:$0xff]
      %v1945 = vld [vmem:[#allocation2 + $0x258] sm:$0xff]
      %v1946 = vld [vmem:[#allocation2 + $0x260] sm:$0xff]
      %v1947 = vld [vmem:[#allocation2 + $0x268] sm:$0xff]
      %v1948 = vld [vmem:[#allocation2 + $0x270] sm:$0xff]
      %v1949 = vld [vmem:[#allocation2 + $0x278] sm:$0xff]
      %v1950 = vld [vmem:[#allocation2 + $0x280] sm:$0xff]
      %v1951 = vld [vmem:[#allocation2 + $0x288] sm:$0xff]
      %v1952 = vld [vmem:[#allocation2 + $0x290] sm:$0xff]
      %v1953 = vld [vmem:[#allocation2 + $0x298] sm:$0xff]
      %v1954 = vld [vmem:[#allocation2 + $0x2a0] sm:$0xff]
      %v1955 = vld [vmem:[#allocation2 + $0x2a8] sm:$0xff]
      %v1956 = vld [vmem:[#allocation2 + $0x2b0] sm:$0xff]
      %v1957 = vld [vmem:[#allocation2 + $0x2b8] sm:$0xff]
      %v1958 = vld [vmem:[#allocation2 + $0x2c0] sm:$0xff]
      %v1959 = vld [vmem:[#allocation2 + $0x2c8] sm:$0xff]
      %v1960 = vld [vmem:[#allocation2 + $0x2d0] sm:$0xff]
      %v1961 = vld [vmem:[#allocation2 + $0x2d8] sm:$0xff]
      %v1962 = vld [vmem:[#allocation2 + $0x2e0] sm:$0xff]
      %v1963 = vld [vmem:[#allocation2 + $0x2e8] sm:$0xff]
      %v1964 = vld [vmem:[#allocation2 + $0x2f0] sm:$0xff]
      %v1965 = vld [vmem:[#allocation2 + $0x2f8] sm:$0xff]
      %v1966 = vpack.c.bf16 %v1873, %v1870
      %v1967 = vpack.c.bf16 %v1874, %v1871
      %v1968 = vpack.c.bf16 %v1875, %v1872
      %v1969 = vpack.c.bf16 %v1879, %v1876
      %v1970 = vpack.c.bf16 %v1880, %v1877
      %v1971 = vpack.c.bf16 %v1881, %v1878
      %v1972 = vpack.c.bf16 %v1885, %v1882
      %v1973 = vpack.c.bf16 %v1886, %v1883
      %v1974 = vpack.c.bf16 %v1887, %v1884
      %v1975 = vpack.c.bf16 %v1891, %v1888
      %v1976 = vpack.c.bf16 %v1892, %v1889
      %v1977 = vpack.c.bf16 %v1893, %v1890
      %v1978 = vpack.c.bf16 %v1897, %v1894
      %v1979 = vpack.c.bf16 %v1898, %v1895
      %v1980 = vpack.c.bf16 %v1899, %v1896
      %v1981 = vpack.c.bf16 %v1903, %v1900
      %v1982 = vpack.c.bf16 %v1904, %v1901
      %v1983 = vpack.c.bf16 %v1905, %v1902
      %v1984 = vpack.c.bf16 %v1909, %v1906
      %v1985 = vpack.c.bf16 %v1910, %v1907
      %v1986 = vpack.c.bf16 %v1911, %v1908
      %v1987 = vpack.c.bf16 %v1915, %v1912
      %v1988 = vpack.c.bf16 %v1916, %v1913
      %v1989 = vpack.c.bf16 %v1917, %v1914
      %v1990 = vpack.c.bf16 %v1921, %v1918
      %v1991 = vpack.c.bf16 %v1922, %v1919
      %v1992 = vpack.c.bf16 %v1923, %v1920
      %v1993 = vpack.c.bf16 %v1927, %v1924
      %v1994 = vpack.c.bf16 %v1928, %v1925
      %v1995 = vpack.c.bf16 %v1929, %v1926
      %v1996 = vpack.c.bf16 %v1933, %v1930
      %v1997 = vpack.c.bf16 %v1934, %v1931
      %v1998 = vpack.c.bf16 %v1935, %v1932
      %v1999 = vpack.c.bf16 %v1939, %v1936
      %v2000 = vpack.c.bf16 %v1940, %v1937
      %v2001 = vpack.c.bf16 %v1941, %v1938
      %v2002 = vpack.c.bf16 %v1945, %v1942
      %v2003 = vpack.c.bf16 %v1946, %v1943
      %v2004 = vpack.c.bf16 %v1947, %v1944
      %v2005 = vpack.c.bf16 %v1951, %v1948
      %v2006 = vpack.c.bf16 %v1952, %v1949
      %v2007 = vpack.c.bf16 %v1953, %v1950
      %v2008 = vpack.c.bf16 %v1957, %v1954
      %v2009 = vpack.c.bf16 %v1958, %v1955
      %v2010 = vpack.c.bf16 %v1959, %v1956
      %v2011 = vpack.c.bf16 %v1963, %v1960
      %v2012 = vpack.c.bf16 %v1964, %v1961
      %v2013 = vpack.c.bf16 %v1965, %v1962
      %v2014 = vld [vmem:[%s4] sm:$0xf]
      %v2015 = vld [vmem:[%s4 + $0x4] sm:$0xf]
      %v2016 = vld [vmem:[%s4 + $0x8] sm:$0xf]
      %v2017 = vld [vmem:[%s4 + $0xc] sm:$0xf]
      %v2018 = vld [vmem:[%s4 + $0x10] sm:$0xf]
      %v2019 = vld [vmem:[%s4 + $0x14] sm:$0xf]
      %v2020 = vld [vmem:[%s4 + $0x18] sm:$0xf]
      %v2021 = vld [vmem:[%s4 + $0x1c] sm:$0xf]
      %v2022 = vld [vmem:[%s4 + $0x20] sm:$0xf]
      %v2023 = vld [vmem:[%s4 + $0x24] sm:$0xf]
      %v2024 = vld [vmem:[%s4 + $0x28] sm:$0xf]
      %v2025 = vld [vmem:[%s4 + $0x2c] sm:$0xf]
      %v2026 = vld [vmem:[%s4 + $0x30] sm:$0xf]
      %v2027 = vld [vmem:[%s4 + $0x34] sm:$0xf]
      %v2028 = vld [vmem:[%s4 + $0x38] sm:$0xf]
      %v2029 = vld [vmem:[%s4 + $0x3c] sm:$0xf]
      %v2030 = vld [vmem:[%s4 + $0x40] sm:$0xf]
      %v2031 = vld [vmem:[%s4 + $0x44] sm:$0xf]
      %v2032 = vld [vmem:[%s4 + $0x48] sm:$0xf]
      %v2033 = vld [vmem:[%s4 + $0x4c] sm:$0xf]
      %v2034 = vld [vmem:[%s4 + $0x50] sm:$0xf]
      %v2035 = vld [vmem:[%s4 + $0x54] sm:$0xf]
      %v2036 = vld [vmem:[%s4 + $0x58] sm:$0xf]
      %v2037 = vld [vmem:[%s4 + $0x5c] sm:$0xf]
      %v2038 = vld [vmem:[%s4 + $0x60] sm:$0xf]
      %v2039 = vld [vmem:[%s4 + $0x64] sm:$0xf]
      %v2040 = vld [vmem:[%s4 + $0x68] sm:$0xf]
      %v2041 = vld [vmem:[%s4 + $0x6c] sm:$0xf]
      %v2042 = vld [vmem:[%s4 + $0x70] sm:$0xf]
      %v2043 = vld [vmem:[%s4 + $0x74] sm:$0xf]
      %v2044 = vld [vmem:[%s4 + $0x78] sm:$0xf]
      %v2045 = vld [vmem:[%s4 + $0x7c] sm:$0xf]
      %v2046 = vld [vmem:[%s4 + $0x80] sm:$0xf]
      %v2047 = vld [vmem:[%s4 + $0x84] sm:$0xf]
      %v2048 = vld [vmem:[%s4 + $0x88] sm:$0xf]
      %v2049 = vld [vmem:[%s4 + $0x8c] sm:$0xf]
      %v2086 = vunpack.c.l.b16 %v2014
      %v2087 = vunpack.c.l.b16 %v2015
      %v2088 = vunpack.c.l.b16 %v2016
      %v2089 = vunpack.c.l.b16 %v2017
      %v2090 = vunpack.c.l.b16 %v2018
      %v2091 = vunpack.c.l.b16 %v2019
      %v2092 = vunpack.c.l.b16 %v2020
      %v2093 = vunpack.c.l.b16 %v2021
      %v2094 = vunpack.c.l.b16 %v2022
      %v2095 = vunpack.c.l.b16 %v2023
      %v2096 = vunpack.c.l.b16 %v2024
      %v2097 = vunpack.c.l.b16 %v2025
      %v2098 = vunpack.c.l.b16 %v2026
      %v2099 = vunpack.c.l.b16 %v2027
      %v2100 = vunpack.c.l.b16 %v2028
      %v2101 = vunpack.c.l.b16 %v2029
      %v2102 = vunpack.c.l.b16 %v2030
      %v2103 = vunpack.c.l.b16 %v2031
      %v2104 = vunpack.c.l.b16 %v2032
      %v2105 = vunpack.c.l.b16 %v2033
      %v2106 = vunpack.c.l.b16 %v2034
      %v2107 = vunpack.c.l.b16 %v2035
      %v2108 = vunpack.c.l.b16 %v2036
      %v2109 = vunpack.c.l.b16 %v2037
      %v2110 = vunpack.c.l.b16 %v2038
      %v2111 = vunpack.c.l.b16 %v2039
      %v2112 = vunpack.c.l.b16 %v2040
      %v2113 = vunpack.c.l.b16 %v2041
      %v2114 = vunpack.c.l.b16 %v2042
      %v2115 = vunpack.c.l.b16 %v2043
      %v2116 = vunpack.c.l.b16 %v2044
      %v2117 = vunpack.c.l.b16 %v2045
      %v2118 = vunpack.c.l.b16 %v2046
      %v2119 = vunpack.c.l.b16 %v2047
      %v2120 = vunpack.c.l.b16 %v2048
      %v2121 = vunpack.c.l.b16 %v2049
      %v2122 = vpack.c.b16 %v2087, %v2086
      %v2123 = vpack.c.b16 %v2089, %v2088
      %v2124 = vpack.c.b16 %v2091, %v2090
      %v2125 = vpack.c.b16 %v2093, %v2092
      %v2126 = vpack.c.b16 %v2095, %v2094
      %v2127 = vpack.c.b16 %v2097, %v2096
      %v2128 = vpack.c.b16 %v2099, %v2098
      %v2129 = vpack.c.b16 %v2101, %v2100
      %v2130 = vpack.c.b16 %v2103, %v2102
      %v2131 = vpack.c.b16 %v2105, %v2104
      %v2132 = vpack.c.b16 %v2107, %v2106
      %v2133 = vpack.c.b16 %v2109, %v2108
      %v2134 = vpack.c.b16 %v2111, %v2110
      %v2135 = vpack.c.b16 %v2113, %v2112
      %v2136 = vpack.c.b16 %v2115, %v2114
      %v2137 = vpack.c.b16 %v2117, %v2116
      %v2138 = vpack.c.b16 %v2119, %v2118
      %v2139 = vpack.c.b16 %v2121, %v2120
      %v2159 = vsel %vm720, %v1968, 0
      %v2162 = vsel %vm720, %v1971, 0
      %v2165 = vsel %vm720, %v1974, 0
      %v2168 = vsel %vm720, %v1977, 0
      %v2171 = vsel %vm720, %v1980, 0
      %v2174 = vsel %vm720, %v1983, 0
      %v2177 = vsel %vm720, %v1986, 0
      %v2180 = vsel %vm720, %v1989, 0
      %v2183 = vsel %vm720, %v1992, 0
      %v2186 = vsel %vm720, %v1995, 0
      %v2189 = vsel %vm720, %v1998, 0
      %v2192 = vsel %vm720, %v2001, 0
      %v2195 = vsel %vm720, %v2004, 0
      %v2198 = vsel %vm720, %v2007, 0
      %v2201 = vsel %vm720, %v2010, 0
      %v2204 = vsel %vm720, %v2013, 0
      %2206 = vmatprep.subr.bf16.mxu0 0
      %2207 = vmatpush1.bf16.msra.mxu0 %v2129
      %2208 = vmatprep.subr.bf16.mxu0 0
      %2209 = vmatpush1.bf16.msra.mxu0 %v2128
      %2210 = vmatprep.subr.bf16.mxu0 0
      %2211 = vmatpush1.bf16.msra.mxu0 %v2127
      %2212 = vmatprep.subr.bf16.mxu0 0
      %2213 = vmatpush1.bf16.msra.mxu0 %v2126
      %2214 = vmatprep.subr.bf16.mxu0 0
      %2215 = vmatpush1.bf16.msra.mxu0 %v2125
      %2216 = vmatprep.subr.bf16.mxu0 0
      %2217 = vmatpush1.bf16.msra.mxu0 %v2124
      %2218 = vmatprep.subr.bf16.mxu0 0
      %2219 = vmatpush1.bf16.msra.mxu0 %v2123
      %2220 = vmatprep.subr.bf16.mxu0 0
      %2221 = vmatpush1.bf16.msra.mxu0 %v2122
      %2222 = vmatprep.subr.bf16.mxu0 0
      %2223 = vmatpush2.bf16.msra.mxu0 %v2137
      %2224 = vmatprep.subr.bf16.mxu0 0
      %2225 = vmatpush2.bf16.msra.mxu0 %v2136
      %2226 = vmatprep.subr.bf16.mxu0 0
      %2227 = vmatpush2.bf16.msra.mxu0 %v2135
      %2228 = vmatprep.subr.bf16.mxu0 0
      %2229 = vmatpush2.bf16.msra.mxu0 %v2134
      %2230 = vmatprep.subr.bf16.mxu0 0
      %2231 = vmatpush2.bf16.msra.mxu0 %v2133
      %2232 = vmatprep.subr.bf16.mxu0 0
      %2233 = vmatpush2.bf16.msra.mxu0 %v2132
      %2234 = vmatprep.subr.bf16.mxu0 0
      %2235 = vmatpush2.bf16.msra.mxu0 %v2131
      %2236 = vmatprep.subr.bf16.mxu0 0
      %2237 = vmatpush2.bf16.msra.mxu0 %v2130
      %2238 = vmatprep.mubr.bf16.mxu0 %v1967
      %2239 = vmatmul.mubr.bf16.gmra.mxu0 %v1966
      %v2240 = vpop.f32.mrf.mxu0
      %v2241 = vadd.f32 0.0, %v2240
      %v2242 = vpop.f32.mrf.mxu0
      %v2243 = vpop.f32.mrf.mxu0
      %v2244 = vadd.f32 0.0, %v2243
      %v2245 = vpop.f32.mrf.mxu0
      %2246 = vmatprep.mubr.bf16.mxu0 %v1970
      %2247 = vmatmul.mubr.bf16.gmra.mxu0 %v1969
      %v2248 = vpop.f32.mrf.mxu0
      %v2249 = vadd.f32 0.0, %v2248
      %v2250 = vpop.f32.mrf.mxu0
      %v2251 = vpop.f32.mrf.mxu0
      %v2252 = vadd.f32 0.0, %v2251
      %v2253 = vpop.f32.mrf.mxu0
      %2254 = vmatprep.mubr.bf16.mxu0 %v1973
      %2255 = vmatmul.mubr.bf16.gmra.mxu0 %v1972
      %v2256 = vpop.f32.mrf.mxu0
      %v2257 = vadd.f32 0.0, %v2256
      %v2258 = vpop.f32.mrf.mxu0
      %v2259 = vpop.f32.mrf.mxu0
      %v2260 = vadd.f32 0.0, %v2259
      %v2261 = vpop.f32.mrf.mxu0
      %2262 = vmatprep.mubr.bf16.mxu0 %v1976
      %2263 = vmatmul.mubr.bf16.gmra.mxu0 %v1975
      %v2264 = vpop.f32.mrf.mxu0
      %v2265 = vadd.f32 0.0, %v2264
      %v2266 = vpop.f32.mrf.mxu0
      %v2267 = vpop.f32.mrf.mxu0
      %v2268 = vadd.f32 0.0, %v2267
      %v2269 = vpop.f32.mrf.mxu0
      %2270 = vmatprep.mubr.bf16.mxu0 %v1979
      %2271 = vmatmul.mubr.bf16.gmra.mxu0 %v1978
      %v2272 = vpop.f32.mrf.mxu0
      %v2273 = vadd.f32 0.0, %v2272
      %v2274 = vpop.f32.mrf.mxu0
      %v2275 = vpop.f32.mrf.mxu0
      %v2276 = vadd.f32 0.0, %v2275
      %v2277 = vpop.f32.mrf.mxu0
      %2278 = vmatprep.mubr.bf16.mxu0 %v1982
      %2279 = vmatmul.mubr.bf16.gmra.mxu0 %v1981
      %v2280 = vpop.f32.mrf.mxu0
      %v2281 = vadd.f32 0.0, %v2280
      %v2282 = vpop.f32.mrf.mxu0
      %v2283 = vpop.f32.mrf.mxu0
      %v2284 = vadd.f32 0.0, %v2283
      %v2285 = vpop.f32.mrf.mxu0
      %2286 = vmatprep.mubr.bf16.mxu0 %v1985
      %2287 = vmatmul.mubr.bf16.gmra.mxu0 %v1984
      %v2288 = vpop.f32.mrf.mxu0
      %v2289 = vadd.f32 0.0, %v2288
      %v2290 = vpop.f32.mrf.mxu0
      %v2291 = vpop.f32.mrf.mxu0
      %v2292 = vadd.f32 0.0, %v2291
      %v2293 = vpop.f32.mrf.mxu0
      %2294 = vmatprep.mubr.bf16.mxu0 %v1988
      %2295 = vmatmul.mubr.bf16.gmra.mxu0 %v1987
      %v2296 = vpop.f32.mrf.mxu0
      %v2297 = vadd.f32 0.0, %v2296
      %v2298 = vpop.f32.mrf.mxu0
      %v2299 = vpop.f32.mrf.mxu0
      %v2300 = vadd.f32 0.0, %v2299
      %v2301 = vpop.f32.mrf.mxu0
      %2302 = vmatprep.mubr.bf16.mxu0 %v1991
      %2303 = vmatmul.mubr.bf16.gmra.mxu0 %v1990
      %v2304 = vpop.f32.mrf.mxu0
      %v2305 = vadd.f32 0.0, %v2304
      %v2306 = vpop.f32.mrf.mxu0
      %v2307 = vpop.f32.mrf.mxu0
      %v2308 = vadd.f32 0.0, %v2307
      %v2309 = vpop.f32.mrf.mxu0
      %2310 = vmatprep.mubr.bf16.mxu0 %v1994
      %2311 = vmatmul.mubr.bf16.gmra.mxu0 %v1993
      %v2312 = vpop.f32.mrf.mxu0
      %v2313 = vadd.f32 0.0, %v2312
      %v2314 = vpop.f32.mrf.mxu0
      %v2315 = vpop.f32.mrf.mxu0
      %v2316 = vadd.f32 0.0, %v2315
      %v2317 = vpop.f32.mrf.mxu0
      %2318 = vmatprep.mubr.bf16.mxu0 %v1997
      %2319 = vmatmul.mubr.bf16.gmra.mxu0 %v1996
      %v2320 = vpop.f32.mrf.mxu0
      %v2321 = vadd.f32 0.0, %v2320
      %v2322 = vpop.f32.mrf.mxu0
      %v2323 = vpop.f32.mrf.mxu0
      %v2324 = vadd.f32 0.0, %v2323
      %v2325 = vpop.f32.mrf.mxu0
      %2326 = vmatprep.mubr.bf16.mxu0 %v2000
      %2327 = vmatmul.mubr.bf16.gmra.mxu0 %v1999
      %v2328 = vpop.f32.mrf.mxu0
      %v2329 = vadd.f32 0.0, %v2328
      %v2330 = vpop.f32.mrf.mxu0
      %v2331 = vpop.f32.mrf.mxu0
      %v2332 = vadd.f32 0.0, %v2331
      %v2333 = vpop.f32.mrf.mxu0
      %2334 = vmatprep.mubr.bf16.mxu0 %v2003
      %2335 = vmatmul.mubr.bf16.gmra.mxu0 %v2002
      %v2336 = vpop.f32.mrf.mxu0
      %v2337 = vadd.f32 0.0, %v2336
      %v2338 = vpop.f32.mrf.mxu0
      %v2339 = vpop.f32.mrf.mxu0
      %v2340 = vadd.f32 0.0, %v2339
      %v2341 = vpop.f32.mrf.mxu0
      %2342 = vmatprep.mubr.bf16.mxu0 %v2006
      %2343 = vmatmul.mubr.bf16.gmra.mxu0 %v2005
      %v2344 = vpop.f32.mrf.mxu0
      %v2345 = vadd.f32 0.0, %v2344
      %v2346 = vpop.f32.mrf.mxu0
      %v2347 = vpop.f32.mrf.mxu0
      %v2348 = vadd.f32 0.0, %v2347
      %v2349 = vpop.f32.mrf.mxu0
      %2350 = vmatprep.mubr.bf16.mxu0 %v2009
      %2351 = vmatmul.mubr.bf16.gmra.mxu0 %v2008
      %v2352 = vpop.f32.mrf.mxu0
      %v2353 = vadd.f32 0.0, %v2352
      %v2354 = vpop.f32.mrf.mxu0
      %v2355 = vpop.f32.mrf.mxu0
      %v2356 = vadd.f32 0.0, %v2355
      %v2357 = vpop.f32.mrf.mxu0
      %2358 = vmatprep.mubr.bf16.mxu0 %v2012
      %2359 = vmatmul.mubr.bf16.gmra.mxu0 %v2011
      %v2360 = vpop.f32.mrf.mxu0
      %v2361 = vadd.f32 0.0, %v2360
      %v2362 = vpop.f32.mrf.mxu0
      %v2363 = vpop.f32.mrf.mxu0
      %v2364 = vadd.f32 0.0, %v2363
      %v2365 = vpop.f32.mrf.mxu0
      %2366 = vdwg.mxu0
      %2367 = vmatprep.subr.bf16.mxu0 0
      %2368 = vmatpush1.bf16.msra.mxu0 0
      %2369 = vmatprep.subr.bf16.mxu0 0
      %2370 = vmatpush1.bf16.msra.mxu0 0
      %2371 = vmatprep.subr.bf16.mxu0 0
      %2372 = vmatpush1.bf16.msra.mxu0 0
      %2373 = vmatprep.subr.bf16.mxu0 0
      %2374 = vmatpush1.bf16.msra.mxu0 0
      %2375 = vmatprep.subr.bf16.mxu0 0
      %2376 = vmatpush1.bf16.msra.mxu0 0
      %2377 = vmatprep.subr.bf16.mxu0 0
      %2378 = vmatpush1.bf16.msra.mxu0 0
      %2379 = vmatprep.subr.bf16.mxu0 0
      %2380 = vmatpush1.bf16.msra.mxu0 %v2139
      %2381 = vmatprep.subr.bf16.mxu0 0
      %2382 = vmatpush1.bf16.msra.mxu0 %v2138
      %2383 = vmatprep.subr.bf16.mxu0 0
      %2384 = vmatpush2.bf16.msra.mxu0 0
      %2385 = vmatprep.subr.bf16.mxu0 0
      %2386 = vmatpush2.bf16.msra.mxu0 0
      %2387 = vmatprep.subr.bf16.mxu0 0
      %2388 = vmatpush2.bf16.msra.mxu0 0
      %2389 = vmatprep.subr.bf16.mxu0 0
      %2390 = vmatpush2.bf16.msra.mxu0 0
      %2391 = vmatprep.subr.bf16.mxu0 0
      %2392 = vmatpush2.bf16.msra.mxu0 0
      %2393 = vmatprep.subr.bf16.mxu0 0
      %2394 = vmatpush2.bf16.msra.mxu0 0
      %2395 = vmatprep.subr.bf16.mxu0 0
      %2396 = vmatpush2.bf16.msra.mxu0 0
      %2397 = vmatprep.subr.bf16.mxu0 0
      %2398 = vmatpush2.bf16.msra.mxu0 0
      %2399 = vmatprep.mubr.bf16.mxu0 0
      %2400 = vmatmul.mubr.bf16.gmra.mxu0 %v2159
      %v2401 = vpop.f32.mrf.mxu0
      %v2402 = vadd.f32 %v2241, %v2401
      %v2403 = vpop.f32.mrf.mxu0
      %v2404 = vpop.f32.mrf.mxu0
      %v2405 = vadd.f32 %v2244, %v2404
      %v2406 = vpop.f32.mrf.mxu0
      %2407 = vmatprep.mubr.bf16.mxu0 0
      %2408 = vmatmul.mubr.bf16.gmra.mxu0 %v2162
      %v2409 = vpop.f32.mrf.mxu0
      %v2410 = vadd.f32 %v2249, %v2409
      %v2411 = vpop.f32.mrf.mxu0
      %v2412 = vpop.f32.mrf.mxu0
      %v2413 = vadd.f32 %v2252, %v2412
      %v2414 = vpop.f32.mrf.mxu0
      %2415 = vmatprep.mubr.bf16.mxu0 0
      %2416 = vmatmul.mubr.bf16.gmra.mxu0 %v2165
      %v2417 = vpop.f32.mrf.mxu0
      %v2418 = vadd.f32 %v2257, %v2417
      %v2419 = vpop.f32.mrf.mxu0
      %v2420 = vpop.f32.mrf.mxu0
      %v2421 = vadd.f32 %v2260, %v2420
      %v2422 = vpop.f32.mrf.mxu0
      %2423 = vmatprep.mubr.bf16.mxu0 0
      %2424 = vmatmul.mubr.bf16.gmra.mxu0 %v2168
      %v2425 = vpop.f32.mrf.mxu0
      %v2426 = vadd.f32 %v2265, %v2425
      %v2427 = vpop.f32.mrf.mxu0
      %v2428 = vpop.f32.mrf.mxu0
      %v2429 = vadd.f32 %v2268, %v2428
      %v2430 = vpop.f32.mrf.mxu0
      %2431 = vmatprep.mubr.bf16.mxu0 0
      %2432 = vmatmul.mubr.bf16.gmra.mxu0 %v2171
      %v2433 = vpop.f32.mrf.mxu0
      %v2434 = vadd.f32 %v2273, %v2433
      %v2435 = vpop.f32.mrf.mxu0
      %v2436 = vpop.f32.mrf.mxu0
      %v2437 = vadd.f32 %v2276, %v2436
      %v2438 = vpop.f32.mrf.mxu0
      %2439 = vmatprep.mubr.bf16.mxu0 0
      %2440 = vmatmul.mubr.bf16.gmra.mxu0 %v2174
      %v2441 = vpop.f32.mrf.mxu0
      %v2442 = vadd.f32 %v2281, %v2441
      %v2443 = vpop.f32.mrf.mxu0
      %v2444 = vpop.f32.mrf.mxu0
      %v2445 = vadd.f32 %v2284, %v2444
      %v2446 = vpop.f32.mrf.mxu0
      %2447 = vmatprep.mubr.bf16.mxu0 0
      %2448 = vmatmul.mubr.bf16.gmra.mxu0 %v2177
      %v2449 = vpop.f32.mrf.mxu0
      %v2450 = vadd.f32 %v2289, %v2449
      %v2451 = vpop.f32.mrf.mxu0
      %v2452 = vpop.f32.mrf.mxu0
      %v2453 = vadd.f32 %v2292, %v2452
      %v2454 = vpop.f32.mrf.mxu0
      %2455 = vmatprep.mubr.bf16.mxu0 0
      %2456 = vmatmul.mubr.bf16.gmra.mxu0 %v2180
      %v2457 = vpop.f32.mrf.mxu0
      %v2458 = vadd.f32 %v2297, %v2457
      %v2459 = vpop.f32.mrf.mxu0
      %v2460 = vpop.f32.mrf.mxu0
      %v2461 = vadd.f32 %v2300, %v2460
      %v2462 = vpop.f32.mrf.mxu0
      %2463 = vmatprep.mubr.bf16.mxu0 0
      %2464 = vmatmul.mubr.bf16.gmra.mxu0 %v2183
      %v2465 = vpop.f32.mrf.mxu0
      %v2466 = vadd.f32 %v2305, %v2465
      %v2467 = vpop.f32.mrf.mxu0
      %v2468 = vpop.f32.mrf.mxu0
      %v2469 = vadd.f32 %v2308, %v2468
      %v2470 = vpop.f32.mrf.mxu0
      %2471 = vmatprep.mubr.bf16.mxu0 0
      %2472 = vmatmul.mubr.bf16.gmra.mxu0 %v2186
      %v2473 = vpop.f32.mrf.mxu0
      %v2474 = vadd.f32 %v2313, %v2473
      %v2475 = vpop.f32.mrf.mxu0
      %v2476 = vpop.f32.mrf.mxu0
      %v2477 = vadd.f32 %v2316, %v2476
      %v2478 = vpop.f32.mrf.mxu0
      %2479 = vmatprep.mubr.bf16.mxu0 0
      %2480 = vmatmul.mubr.bf16.gmra.mxu0 %v2189
      %v2481 = vpop.f32.mrf.mxu0
      %v2482 = vadd.f32 %v2321, %v2481
      %v2483 = vpop.f32.mrf.mxu0
      %v2484 = vpop.f32.mrf.mxu0
      %v2485 = vadd.f32 %v2324, %v2484
      %v2486 = vpop.f32.mrf.mxu0
      %2487 = vmatprep.mubr.bf16.mxu0 0
      %2488 = vmatmul.mubr.bf16.gmra.mxu0 %v2192
      %v2489 = vpop.f32.mrf.mxu0
      %v2490 = vadd.f32 %v2329, %v2489
      %v2491 = vpop.f32.mrf.mxu0
      %v2492 = vpop.f32.mrf.mxu0
      %v2493 = vadd.f32 %v2332, %v2492
      %v2494 = vpop.f32.mrf.mxu0
      %2495 = vmatprep.mubr.bf16.mxu0 0
      %2496 = vmatmul.mubr.bf16.gmra.mxu0 %v2195
      %v2497 = vpop.f32.mrf.mxu0
      %v2498 = vadd.f32 %v2337, %v2497
      %v2499 = vpop.f32.mrf.mxu0
      %v2500 = vpop.f32.mrf.mxu0
      %v2501 = vadd.f32 %v2340, %v2500
      %v2502 = vpop.f32.mrf.mxu0
      %2503 = vmatprep.mubr.bf16.mxu0 0
      %2504 = vmatmul.mubr.bf16.gmra.mxu0 %v2198
      %v2505 = vpop.f32.mrf.mxu0
      %v2506 = vadd.f32 %v2345, %v2505
      %v2507 = vpop.f32.mrf.mxu0
      %v2508 = vpop.f32.mrf.mxu0
      %v2509 = vadd.f32 %v2348, %v2508
      %v2510 = vpop.f32.mrf.mxu0
      %2511 = vmatprep.mubr.bf16.mxu0 0
      %2512 = vmatmul.mubr.bf16.gmra.mxu0 %v2201
      %v2513 = vpop.f32.mrf.mxu0
      %v2514 = vadd.f32 %v2353, %v2513
      %v2515 = vpop.f32.mrf.mxu0
      %v2516 = vpop.f32.mrf.mxu0
      %v2517 = vadd.f32 %v2356, %v2516
      %v2518 = vpop.f32.mrf.mxu0
      %2519 = vmatprep.mubr.bf16.mxu0 0
      %2520 = vmatmul.mubr.bf16.gmra.mxu0 %v2204
      %v2521 = vpop.f32.mrf.mxu0
      %v2522 = vadd.f32 %v2361, %v2521
      %v2523 = vpop.f32.mrf.mxu0
      %v2524 = vpop.f32.mrf.mxu0
      %v2525 = vadd.f32 %v2364, %v2524
      %v2526 = vpop.f32.mrf.mxu0
      %2527 = vdwg.mxu0
      %v2528 = vld [vmem:[%s443] sm:$0xff]
      %v2529 = vld [vmem:[%s443 + $0x8] sm:$0xff]
      %v2530 = vld [vmem:[%s443 + $0x10] sm:$0xff]
      %v2531 = vld [vmem:[%s443 + $0x18] sm:$0xff]
      %v2532 = vld [vmem:[%s443 + $0x20] sm:$0xff]
      %v2533 = vld [vmem:[%s443 + $0x28] sm:$0xff]
      %v2534 = vld [vmem:[%s443 + $0x30] sm:$0xff]
      %v2535 = vld [vmem:[%s443 + $0x38] sm:$0xff]
      %v2544 = vcombine.high %v2528, %v2528
      %v2546 = vunpack.c.l.s4 1966171168
      %v2547 = vunpack.c.0.s8 %v2546
      %v2548 = vlaneseq
      %v2549 = vshrl.u32 %v2548, 7
      %v2550 = vsub.s32 %v2547, %v2549
      %v2551 = vrot.slane %v2528, %v2550
      %v2553 = vunpack.c.l.s4 1966171168
      %v2554 = vunpack.c.0.s8 %v2553
      %v2555 = vlaneseq
      %v2556 = vshrl.u32 %v2555, 7
      %v2557 = vsub.s32 %v2554, %v2556
      %v2558 = vrot.slane %v2544, %v2557
      %v2559 = vcombine.high %v2551, %v2551
      %v2560 = vcombine.high %v2558, %v2558
      %v2562 = vunpack.c.l.s4 1966171168
      %v2563 = vunpack.c.0.s8 %v2562
      %v2564 = vlaneseq
      %v2565 = vshrl.u32 %v2564, 7
      %v2566 = vsub.s32 %v2563, %v2565
      %v2567 = vrot.slane %v2551, %v2566
      %v2569 = vunpack.c.l.s4 1966171168
      %v2570 = vunpack.c.0.s8 %v2569
      %v2571 = vlaneseq
      %v2572 = vshrl.u32 %v2571, 7
      %v2573 = vsub.s32 %v2570, %v2572
      %v2574 = vrot.slane %v2558, %v2573
      %v2576 = vunpack.c.l.s4 1966171168
      %v2577 = vunpack.c.0.s8 %v2576
      %v2578 = vlaneseq
      %v2579 = vshrl.u32 %v2578, 7
      %v2580 = vsub.s32 %v2577, %v2579
      %v2581 = vrot.slane %v2559, %v2580
      %v2583 = vunpack.c.l.s4 1966171168
      %v2584 = vunpack.c.0.s8 %v2583
      %v2585 = vlaneseq
      %v2586 = vshrl.u32 %v2585, 7
      %v2587 = vsub.s32 %v2584, %v2586
      %v2588 = vrot.slane %v2560, %v2587
      %v2589 = vcombine.high %v2567, %v2567
      %v2590 = vcombine.high %v2574, %v2574
      %v2591 = vcombine.high %v2581, %v2581
      %v2592 = vcombine.high %v2588, %v2588
      %v2593 = vcombine.high %v2529, %v2529
      %v2595 = vunpack.c.l.s4 1966171168
      %v2596 = vunpack.c.0.s8 %v2595
      %v2597 = vlaneseq
      %v2598 = vshrl.u32 %v2597, 7
      %v2599 = vsub.s32 %v2596, %v2598
      %v2600 = vrot.slane %v2529, %v2599
      %v2602 = vunpack.c.l.s4 1966171168
      %v2603 = vunpack.c.0.s8 %v2602
      %v2604 = vlaneseq
      %v2605 = vshrl.u32 %v2604, 7
      %v2606 = vsub.s32 %v2603, %v2605
      %v2607 = vrot.slane %v2593, %v2606
      %v2608 = vcombine.high %v2600, %v2600
      %v2609 = vcombine.high %v2607, %v2607
      %v2611 = vunpack.c.l.s4 1966171168
      %v2612 = vunpack.c.0.s8 %v2611
      %v2613 = vlaneseq
      %v2614 = vshrl.u32 %v2613, 7
      %v2615 = vsub.s32 %v2612, %v2614
      %v2616 = vrot.slane %v2600, %v2615
      %v2618 = vunpack.c.l.s4 1966171168
      %v2619 = vunpack.c.0.s8 %v2618
      %v2620 = vlaneseq
      %v2621 = vshrl.u32 %v2620, 7
      %v2622 = vsub.s32 %v2619, %v2621
      %v2623 = vrot.slane %v2607, %v2622
      %v2625 = vunpack.c.l.s4 1966171168
      %v2626 = vunpack.c.0.s8 %v2625
      %v2627 = vlaneseq
      %v2628 = vshrl.u32 %v2627, 7
      %v2629 = vsub.s32 %v2626, %v2628
      %v2630 = vrot.slane %v2608, %v2629
      %v2632 = vunpack.c.l.s4 1966171168
      %v2633 = vunpack.c.0.s8 %v2632
      %v2634 = vlaneseq
      %v2635 = vshrl.u32 %v2634, 7
      %v2636 = vsub.s32 %v2633, %v2635
      %v2637 = vrot.slane %v2609, %v2636
      %v2638 = vcombine.high %v2616, %v2616
      %v2639 = vcombine.high %v2623, %v2623
      %v2640 = vcombine.high %v2630, %v2630
      %v2641 = vcombine.high %v2637, %v2637
      %v2642 = vcombine.high %v2530, %v2530
      %v2644 = vunpack.c.l.s4 1966171168
      %v2645 = vunpack.c.0.s8 %v2644
      %v2646 = vlaneseq
      %v2647 = vshrl.u32 %v2646, 7
      %v2648 = vsub.s32 %v2645, %v2647
      %v2649 = vrot.slane %v2530, %v2648
      %v2651 = vunpack.c.l.s4 1966171168
      %v2652 = vunpack.c.0.s8 %v2651
      %v2653 = vlaneseq
      %v2654 = vshrl.u32 %v2653, 7
      %v2655 = vsub.s32 %v2652, %v2654
      %v2656 = vrot.slane %v2642, %v2655
      %v2657 = vcombine.high %v2649, %v2649
      %v2658 = vcombine.high %v2656, %v2656
      %v2660 = vunpack.c.l.s4 1966171168
      %v2661 = vunpack.c.0.s8 %v2660
      %v2662 = vlaneseq
      %v2663 = vshrl.u32 %v2662, 7
      %v2664 = vsub.s32 %v2661, %v2663
      %v2665 = vrot.slane %v2649, %v2664
      %v2667 = vunpack.c.l.s4 1966171168
      %v2668 = vunpack.c.0.s8 %v2667
      %v2669 = vlaneseq
      %v2670 = vshrl.u32 %v2669, 7
      %v2671 = vsub.s32 %v2668, %v2670
      %v2672 = vrot.slane %v2656, %v2671
      %v2674 = vunpack.c.l.s4 1966171168
      %v2675 = vunpack.c.0.s8 %v2674
      %v2676 = vlaneseq
      %v2677 = vshrl.u32 %v2676, 7
      %v2678 = vsub.s32 %v2675, %v2677
      %v2679 = vrot.slane %v2657, %v2678
      %v2681 = vunpack.c.l.s4 1966171168
      %v2682 = vunpack.c.0.s8 %v2681
      %v2683 = vlaneseq
      %v2684 = vshrl.u32 %v2683, 7
      %v2685 = vsub.s32 %v2682, %v2684
      %v2686 = vrot.slane %v2658, %v2685
      %v2687 = vcombine.high %v2665, %v2665
      %v2688 = vcombine.high %v2672, %v2672
      %v2689 = vcombine.high %v2679, %v2679
      %v2690 = vcombine.high %v2686, %v2686
      %v2691 = vcombine.high %v2531, %v2531
      %v2693 = vunpack.c.l.s4 1966171168
      %v2694 = vunpack.c.0.s8 %v2693
      %v2695 = vlaneseq
      %v2696 = vshrl.u32 %v2695, 7
      %v2697 = vsub.s32 %v2694, %v2696
      %v2698 = vrot.slane %v2531, %v2697
      %v2700 = vunpack.c.l.s4 1966171168
      %v2701 = vunpack.c.0.s8 %v2700
      %v2702 = vlaneseq
      %v2703 = vshrl.u32 %v2702, 7
      %v2704 = vsub.s32 %v2701, %v2703
      %v2705 = vrot.slane %v2691, %v2704
      %v2706 = vcombine.high %v2698, %v2698
      %v2707 = vcombine.high %v2705, %v2705
      %v2709 = vunpack.c.l.s4 1966171168
      %v2710 = vunpack.c.0.s8 %v2709
      %v2711 = vlaneseq
      %v2712 = vshrl.u32 %v2711, 7
      %v2713 = vsub.s32 %v2710, %v2712
      %v2714 = vrot.slane %v2698, %v2713
      %v2716 = vunpack.c.l.s4 1966171168
      %v2717 = vunpack.c.0.s8 %v2716
      %v2718 = vlaneseq
      %v2719 = vshrl.u32 %v2718, 7
      %v2720 = vsub.s32 %v2717, %v2719
      %v2721 = vrot.slane %v2705, %v2720
      %v2723 = vunpack.c.l.s4 1966171168
      %v2724 = vunpack.c.0.s8 %v2723
      %v2725 = vlaneseq
      %v2726 = vshrl.u32 %v2725, 7
      %v2727 = vsub.s32 %v2724, %v2726
      %v2728 = vrot.slane %v2706, %v2727
      %v2730 = vunpack.c.l.s4 1966171168
      %v2731 = vunpack.c.0.s8 %v2730
      %v2732 = vlaneseq
      %v2733 = vshrl.u32 %v2732, 7
      %v2734 = vsub.s32 %v2731, %v2733
      %v2735 = vrot.slane %v2707, %v2734
      %v2736 = vcombine.high %v2714, %v2714
      %v2737 = vcombine.high %v2721, %v2721
      %v2738 = vcombine.high %v2728, %v2728
      %v2739 = vcombine.high %v2735, %v2735
      %v2740 = vcombine.high %v2532, %v2532
      %v2742 = vunpack.c.l.s4 1966171168
      %v2743 = vunpack.c.0.s8 %v2742
      %v2744 = vlaneseq
      %v2745 = vshrl.u32 %v2744, 7
      %v2746 = vsub.s32 %v2743, %v2745
      %v2747 = vrot.slane %v2532, %v2746
      %v2749 = vunpack.c.l.s4 1966171168
      %v2750 = vunpack.c.0.s8 %v2749
      %v2751 = vlaneseq
      %v2752 = vshrl.u32 %v2751, 7
      %v2753 = vsub.s32 %v2750, %v2752
      %v2754 = vrot.slane %v2740, %v2753
      %v2755 = vcombine.high %v2747, %v2747
      %v2756 = vcombine.high %v2754, %v2754
      %v2758 = vunpack.c.l.s4 1966171168
      %v2759 = vunpack.c.0.s8 %v2758
      %v2760 = vlaneseq
      %v2761 = vshrl.u32 %v2760, 7
      %v2762 = vsub.s32 %v2759, %v2761
      %v2763 = vrot.slane %v2747, %v2762
      %v2765 = vunpack.c.l.s4 1966171168
      %v2766 = vunpack.c.0.s8 %v2765
      %v2767 = vlaneseq
      %v2768 = vshrl.u32 %v2767, 7
      %v2769 = vsub.s32 %v2766, %v2768
      %v2770 = vrot.slane %v2754, %v2769
      %v2772 = vunpack.c.l.s4 1966171168
      %v2773 = vunpack.c.0.s8 %v2772
      %v2774 = vlaneseq
      %v2775 = vshrl.u32 %v2774, 7
      %v2776 = vsub.s32 %v2773, %v2775
      %v2777 = vrot.slane %v2755, %v2776
      %v2779 = vunpack.c.l.s4 1966171168
      %v2780 = vunpack.c.0.s8 %v2779
      %v2781 = vlaneseq
      %v2782 = vshrl.u32 %v2781, 7
      %v2783 = vsub.s32 %v2780, %v2782
      %v2784 = vrot.slane %v2756, %v2783
      %v2785 = vcombine.high %v2763, %v2763
      %v2786 = vcombine.high %v2770, %v2770
      %v2787 = vcombine.high %v2777, %v2777
      %v2788 = vcombine.high %v2784, %v2784
      %v2789 = vcombine.high %v2533, %v2533
      %v2791 = vunpack.c.l.s4 1966171168
      %v2792 = vunpack.c.0.s8 %v2791
      %v2793 = vlaneseq
      %v2794 = vshrl.u32 %v2793, 7
      %v2795 = vsub.s32 %v2792, %v2794
      %v2796 = vrot.slane %v2533, %v2795
      %v2798 = vunpack.c.l.s4 1966171168
      %v2799 = vunpack.c.0.s8 %v2798
      %v2800 = vlaneseq
      %v2801 = vshrl.u32 %v2800, 7
      %v2802 = vsub.s32 %v2799, %v2801
      %v2803 = vrot.slane %v2789, %v2802
      %v2804 = vcombine.high %v2796, %v2796
      %v2805 = vcombine.high %v2803, %v2803
      %v2807 = vunpack.c.l.s4 1966171168
      %v2808 = vunpack.c.0.s8 %v2807
      %v2809 = vlaneseq
      %v2810 = vshrl.u32 %v2809, 7
      %v2811 = vsub.s32 %v2808, %v2810
      %v2812 = vrot.slane %v2796, %v2811
      %v2814 = vunpack.c.l.s4 1966171168
      %v2815 = vunpack.c.0.s8 %v2814
      %v2816 = vlaneseq
      %v2817 = vshrl.u32 %v2816, 7
      %v2818 = vsub.s32 %v2815, %v2817
      %v2819 = vrot.slane %v2803, %v2818
      %v2821 = vunpack.c.l.s4 1966171168
      %v2822 = vunpack.c.0.s8 %v2821
      %v2823 = vlaneseq
      %v2824 = vshrl.u32 %v2823, 7
      %v2825 = vsub.s32 %v2822, %v2824
      %v2826 = vrot.slane %v2804, %v2825
      %v2828 = vunpack.c.l.s4 1966171168
      %v2829 = vunpack.c.0.s8 %v2828
      %v2830 = vlaneseq
      %v2831 = vshrl.u32 %v2830, 7
      %v2832 = vsub.s32 %v2829, %v2831
      %v2833 = vrot.slane %v2805, %v2832
      %v2834 = vcombine.high %v2812, %v2812
      %v2835 = vcombine.high %v2819, %v2819
      %v2836 = vcombine.high %v2826, %v2826
      %v2837 = vcombine.high %v2833, %v2833
      %v2838 = vcombine.high %v2534, %v2534
      %v2840 = vunpack.c.l.s4 1966171168
      %v2841 = vunpack.c.0.s8 %v2840
      %v2842 = vlaneseq
      %v2843 = vshrl.u32 %v2842, 7
      %v2844 = vsub.s32 %v2841, %v2843
      %v2845 = vrot.slane %v2534, %v2844
      %v2847 = vunpack.c.l.s4 1966171168
      %v2848 = vunpack.c.0.s8 %v2847
      %v2849 = vlaneseq
      %v2850 = vshrl.u32 %v2849, 7
      %v2851 = vsub.s32 %v2848, %v2850
      %v2852 = vrot.slane %v2838, %v2851
      %v2853 = vcombine.high %v2845, %v2845
      %v2854 = vcombine.high %v2852, %v2852
      %v2856 = vunpack.c.l.s4 1966171168
      %v2857 = vunpack.c.0.s8 %v2856
      %v2858 = vlaneseq
      %v2859 = vshrl.u32 %v2858, 7
      %v2860 = vsub.s32 %v2857, %v2859
      %v2861 = vrot.slane %v2845, %v2860
      %v2863 = vunpack.c.l.s4 1966171168
      %v2864 = vunpack.c.0.s8 %v2863
      %v2865 = vlaneseq
      %v2866 = vshrl.u32 %v2865, 7
      %v2867 = vsub.s32 %v2864, %v2866
      %v2868 = vrot.slane %v2852, %v2867
      %v2870 = vunpack.c.l.s4 1966171168
      %v2871 = vunpack.c.0.s8 %v2870
      %v2872 = vlaneseq
      %v2873 = vshrl.u32 %v2872, 7
      %v2874 = vsub.s32 %v2871, %v2873
      %v2875 = vrot.slane %v2853, %v2874
      %v2877 = vunpack.c.l.s4 1966171168
      %v2878 = vunpack.c.0.s8 %v2877
      %v2879 = vlaneseq
      %v2880 = vshrl.u32 %v2879, 7
      %v2881 = vsub.s32 %v2878, %v2880
      %v2882 = vrot.slane %v2854, %v2881
      %v2883 = vcombine.high %v2861, %v2861
      %v2884 = vcombine.high %v2868, %v2868
      %v2885 = vcombine.high %v2875, %v2875
      %v2886 = vcombine.high %v2882, %v2882
      %v2887 = vcombine.high %v2535, %v2535
      %v2889 = vunpack.c.l.s4 1966171168
      %v2890 = vunpack.c.0.s8 %v2889
      %v2891 = vlaneseq
      %v2892 = vshrl.u32 %v2891, 7
      %v2893 = vsub.s32 %v2890, %v2892
      %v2894 = vrot.slane %v2535, %v2893
      %v2896 = vunpack.c.l.s4 1966171168
      %v2897 = vunpack.c.0.s8 %v2896
      %v2898 = vlaneseq
      %v2899 = vshrl.u32 %v2898, 7
      %v2900 = vsub.s32 %v2897, %v2899
      %v2901 = vrot.slane %v2887, %v2900
      %v2902 = vcombine.high %v2894, %v2894
      %v2903 = vcombine.high %v2901, %v2901
      %v2905 = vunpack.c.l.s4 1966171168
      %v2906 = vunpack.c.0.s8 %v2905
      %v2907 = vlaneseq
      %v2908 = vshrl.u32 %v2907, 7
      %v2909 = vsub.s32 %v2906, %v2908
      %v2910 = vrot.slane %v2894, %v2909
      %v2912 = vunpack.c.l.s4 1966171168
      %v2913 = vunpack.c.0.s8 %v2912
      %v2914 = vlaneseq
      %v2915 = vshrl.u32 %v2914, 7
      %v2916 = vsub.s32 %v2913, %v2915
      %v2917 = vrot.slane %v2901, %v2916
      %v2919 = vunpack.c.l.s4 1966171168
      %v2920 = vunpack.c.0.s8 %v2919
      %v2921 = vlaneseq
      %v2922 = vshrl.u32 %v2921, 7
      %v2923 = vsub.s32 %v2920, %v2922
      %v2924 = vrot.slane %v2902, %v2923
      %v2926 = vunpack.c.l.s4 1966171168
      %v2927 = vunpack.c.0.s8 %v2926
      %v2928 = vlaneseq
      %v2929 = vshrl.u32 %v2928, 7
      %v2930 = vsub.s32 %v2927, %v2929
      %v2931 = vrot.slane %v2903, %v2930
      %v2932 = vcombine.high %v2910, %v2910
      %v2933 = vcombine.high %v2917, %v2917
      %v2934 = vcombine.high %v2924, %v2924
      %v2935 = vcombine.high %v2931, %v2931
      %v2936 = vlaneseq
      %v2937 = vshrl.u32 %v2936, 7
      %v2938 = vsub.s32 0, %v2937
      %v2939 = vrot.slane %v2567, %v2938
      %v2940 = vlaneseq
      %v2941 = vshrl.u32 %v2940, 7
      %v2942 = vsub.s32 0, %v2941
      %v2943 = vrot.slane %v2581, %v2942
      %v2944 = vlaneseq
      %v2945 = vshrl.u32 %v2944, 7
      %v2946 = vsub.s32 0, %v2945
      %v2947 = vrot.slane %v2589, %v2946
      %v2948 = vlaneseq
      %v2949 = vshrl.u32 %v2948, 7
      %v2950 = vsub.s32 0, %v2949
      %v2951 = vrot.slane %v2591, %v2950
      %v2952 = vlaneseq
      %v2953 = vshrl.u32 %v2952, 7
      %v2954 = vsub.s32 0, %v2953
      %v2955 = vrot.slane %v2574, %v2954
      %v2956 = vlaneseq
      %v2957 = vshrl.u32 %v2956, 7
      %v2958 = vsub.s32 0, %v2957
      %v2959 = vrot.slane %v2588, %v2958
      %v2960 = vlaneseq
      %v2961 = vshrl.u32 %v2960, 7
      %v2962 = vsub.s32 0, %v2961
      %v2963 = vrot.slane %v2590, %v2962
      %v2964 = vlaneseq
      %v2965 = vshrl.u32 %v2964, 7
      %v2966 = vsub.s32 0, %v2965
      %v2967 = vrot.slane %v2592, %v2966
      %v2968 = vlaneseq
      %v2969 = vshrl.u32 %v2968, 7
      %v2970 = vsub.s32 0, %v2969
      %v2971 = vrot.slane %v2616, %v2970
      %v2972 = vlaneseq
      %v2973 = vshrl.u32 %v2972, 7
      %v2974 = vsub.s32 0, %v2973
      %v2975 = vrot.slane %v2630, %v2974
      %v2976 = vlaneseq
      %v2977 = vshrl.u32 %v2976, 7
      %v2978 = vsub.s32 0, %v2977
      %v2979 = vrot.slane %v2638, %v2978
      %v2980 = vlaneseq
      %v2981 = vshrl.u32 %v2980, 7
      %v2982 = vsub.s32 0, %v2981
      %v2983 = vrot.slane %v2640, %v2982
      %v2984 = vlaneseq
      %v2985 = vshrl.u32 %v2984, 7
      %v2986 = vsub.s32 0, %v2985
      %v2987 = vrot.slane %v2623, %v2986
      %v2988 = vlaneseq
      %v2989 = vshrl.u32 %v2988, 7
      %v2990 = vsub.s32 0, %v2989
      %v2991 = vrot.slane %v2637, %v2990
      %v2992 = vlaneseq
      %v2993 = vshrl.u32 %v2992, 7
      %v2994 = vsub.s32 0, %v2993
      %v2995 = vrot.slane %v2639, %v2994
      %v2996 = vlaneseq
      %v2997 = vshrl.u32 %v2996, 7
      %v2998 = vsub.s32 0, %v2997
      %v2999 = vrot.slane %v2641, %v2998
      %v3000 = vlaneseq
      %v3001 = vshrl.u32 %v3000, 7
      %v3002 = vsub.s32 0, %v3001
      %v3003 = vrot.slane %v2665, %v3002
      %v3004 = vlaneseq
      %v3005 = vshrl.u32 %v3004, 7
      %v3006 = vsub.s32 0, %v3005
      %v3007 = vrot.slane %v2679, %v3006
      %v3008 = vlaneseq
      %v3009 = vshrl.u32 %v3008, 7
      %v3010 = vsub.s32 0, %v3009
      %v3011 = vrot.slane %v2687, %v3010
      %v3012 = vlaneseq
      %v3013 = vshrl.u32 %v3012, 7
      %v3014 = vsub.s32 0, %v3013
      %v3015 = vrot.slane %v2689, %v3014
      %v3016 = vlaneseq
      %v3017 = vshrl.u32 %v3016, 7
      %v3018 = vsub.s32 0, %v3017
      %v3019 = vrot.slane %v2672, %v3018
      %v3020 = vlaneseq
      %v3021 = vshrl.u32 %v3020, 7
      %v3022 = vsub.s32 0, %v3021
      %v3023 = vrot.slane %v2686, %v3022
      %v3024 = vlaneseq
      %v3025 = vshrl.u32 %v3024, 7
      %v3026 = vsub.s32 0, %v3025
      %v3027 = vrot.slane %v2688, %v3026
      %v3028 = vlaneseq
      %v3029 = vshrl.u32 %v3028, 7
      %v3030 = vsub.s32 0, %v3029
      %v3031 = vrot.slane %v2690, %v3030
      %v3032 = vlaneseq
      %v3033 = vshrl.u32 %v3032, 7
      %v3034 = vsub.s32 0, %v3033
      %v3035 = vrot.slane %v2714, %v3034
      %v3036 = vlaneseq
      %v3037 = vshrl.u32 %v3036, 7
      %v3038 = vsub.s32 0, %v3037
      %v3039 = vrot.slane %v2728, %v3038
      %v3040 = vlaneseq
      %v3041 = vshrl.u32 %v3040, 7
      %v3042 = vsub.s32 0, %v3041
      %v3043 = vrot.slane %v2736, %v3042
      %v3044 = vlaneseq
      %v3045 = vshrl.u32 %v3044, 7
      %v3046 = vsub.s32 0, %v3045
      %v3047 = vrot.slane %v2738, %v3046
      %v3048 = vlaneseq
      %v3049 = vshrl.u32 %v3048, 7
      %v3050 = vsub.s32 0, %v3049
      %v3051 = vrot.slane %v2721, %v3050
      %v3052 = vlaneseq
      %v3053 = vshrl.u32 %v3052, 7
      %v3054 = vsub.s32 0, %v3053
      %v3055 = vrot.slane %v2735, %v3054
      %v3056 = vlaneseq
      %v3057 = vshrl.u32 %v3056, 7
      %v3058 = vsub.s32 0, %v3057
      %v3059 = vrot.slane %v2737, %v3058
      %v3060 = vlaneseq
      %v3061 = vshrl.u32 %v3060, 7
      %v3062 = vsub.s32 0, %v3061
      %v3063 = vrot.slane %v2739, %v3062
      %v3064 = vlaneseq
      %v3065 = vshrl.u32 %v3064, 7
      %v3066 = vsub.s32 0, %v3065
      %v3067 = vrot.slane %v2763, %v3066
      %v3068 = vlaneseq
      %v3069 = vshrl.u32 %v3068, 7
      %v3070 = vsub.s32 0, %v3069
      %v3071 = vrot.slane %v2777, %v3070
      %v3072 = vlaneseq
      %v3073 = vshrl.u32 %v3072, 7
      %v3074 = vsub.s32 0, %v3073
      %v3075 = vrot.slane %v2785, %v3074
      %v3076 = vlaneseq
      %v3077 = vshrl.u32 %v3076, 7
      %v3078 = vsub.s32 0, %v3077
      %v3079 = vrot.slane %v2787, %v3078
      %v3080 = vlaneseq
      %v3081 = vshrl.u32 %v3080, 7
      %v3082 = vsub.s32 0, %v3081
      %v3083 = vrot.slane %v2770, %v3082
      %v3084 = vlaneseq
      %v3085 = vshrl.u32 %v3084, 7
      %v3086 = vsub.s32 0, %v3085
      %v3087 = vrot.slane %v2784, %v3086
      %v3088 = vlaneseq
      %v3089 = vshrl.u32 %v3088, 7
      %v3090 = vsub.s32 0, %v3089
      %v3091 = vrot.slane %v2786, %v3090
      %v3092 = vlaneseq
      %v3093 = vshrl.u32 %v3092, 7
      %v3094 = vsub.s32 0, %v3093
      %v3095 = vrot.slane %v2788, %v3094
      %v3096 = vlaneseq
      %v3097 = vshrl.u32 %v3096, 7
      %v3098 = vsub.s32 0, %v3097
      %v3099 = vrot.slane %v2812, %v3098
      %v3100 = vlaneseq
      %v3101 = vshrl.u32 %v3100, 7
      %v3102 = vsub.s32 0, %v3101
      %v3103 = vrot.slane %v2826, %v3102
      %v3104 = vlaneseq
      %v3105 = vshrl.u32 %v3104, 7
      %v3106 = vsub.s32 0, %v3105
      %v3107 = vrot.slane %v2834, %v3106
      %v3108 = vlaneseq
      %v3109 = vshrl.u32 %v3108, 7
      %v3110 = vsub.s32 0, %v3109
      %v3111 = vrot.slane %v2836, %v3110
      %v3112 = vlaneseq
      %v3113 = vshrl.u32 %v3112, 7
      %v3114 = vsub.s32 0, %v3113
      %v3115 = vrot.slane %v2819, %v3114
      %v3116 = vlaneseq
      %v3117 = vshrl.u32 %v3116, 7
      %v3118 = vsub.s32 0, %v3117
      %v3119 = vrot.slane %v2833, %v3118
      %v3120 = vlaneseq
      %v3121 = vshrl.u32 %v3120, 7
      %v3122 = vsub.s32 0, %v3121
      %v3123 = vrot.slane %v2835, %v3122
      %v3124 = vlaneseq
      %v3125 = vshrl.u32 %v3124, 7
      %v3126 = vsub.s32 0, %v3125
      %v3127 = vrot.slane %v2837, %v3126
      %v3128 = vlaneseq
      %v3129 = vshrl.u32 %v3128, 7
      %v3130 = vsub.s32 0, %v3129
      %v3131 = vrot.slane %v2861, %v3130
      %v3132 = vlaneseq
      %v3133 = vshrl.u32 %v3132, 7
      %v3134 = vsub.s32 0, %v3133
      %v3135 = vrot.slane %v2875, %v3134
      %v3136 = vlaneseq
      %v3137 = vshrl.u32 %v3136, 7
      %v3138 = vsub.s32 0, %v3137
      %v3139 = vrot.slane %v2883, %v3138
      %v3140 = vlaneseq
      %v3141 = vshrl.u32 %v3140, 7
      %v3142 = vsub.s32 0, %v3141
      %v3143 = vrot.slane %v2885, %v3142
      %v3144 = vlaneseq
      %v3145 = vshrl.u32 %v3144, 7
      %v3146 = vsub.s32 0, %v3145
      %v3147 = vrot.slane %v2868, %v3146
      %v3148 = vlaneseq
      %v3149 = vshrl.u32 %v3148, 7
      %v3150 = vsub.s32 0, %v3149
      %v3151 = vrot.slane %v2882, %v3150
      %v3152 = vlaneseq
      %v3153 = vshrl.u32 %v3152, 7
      %v3154 = vsub.s32 0, %v3153
      %v3155 = vrot.slane %v2884, %v3154
      %v3156 = vlaneseq
      %v3157 = vshrl.u32 %v3156, 7
      %v3158 = vsub.s32 0, %v3157
      %v3159 = vrot.slane %v2886, %v3158
      %v3160 = vlaneseq
      %v3161 = vshrl.u32 %v3160, 7
      %v3162 = vsub.s32 0, %v3161
      %v3163 = vrot.slane %v2910, %v3162
      %v3164 = vlaneseq
      %v3165 = vshrl.u32 %v3164, 7
      %v3166 = vsub.s32 0, %v3165
      %v3167 = vrot.slane %v2924, %v3166
      %v3168 = vlaneseq
      %v3169 = vshrl.u32 %v3168, 7
      %v3170 = vsub.s32 0, %v3169
      %v3171 = vrot.slane %v2932, %v3170
      %v3172 = vlaneseq
      %v3173 = vshrl.u32 %v3172, 7
      %v3174 = vsub.s32 0, %v3173
      %v3175 = vrot.slane %v2934, %v3174
      %v3176 = vlaneseq
      %v3177 = vshrl.u32 %v3176, 7
      %v3178 = vsub.s32 0, %v3177
      %v3179 = vrot.slane %v2917, %v3178
      %v3180 = vlaneseq
      %v3181 = vshrl.u32 %v3180, 7
      %v3182 = vsub.s32 0, %v3181
      %v3183 = vrot.slane %v2931, %v3182
      %v3184 = vlaneseq
      %v3185 = vshrl.u32 %v3184, 7
      %v3186 = vsub.s32 0, %v3185
      %v3187 = vrot.slane %v2933, %v3186
      %v3188 = vlaneseq
      %v3189 = vshrl.u32 %v3188, 7
      %v3190 = vsub.s32 0, %v3189
      %v3191 = vrot.slane %v2935, %v3190
      %v3192 = vld [vmem:[%s5] sm:$0x1]
      %v3194 = vlaneseq
      %v3195 = vshrl.u32 %v3194, 7
      %v3196 = vsub.s32 0, %v3195
      %v3197 = vrot.slane %v3192, %v3196
      %v3199 = vadd.f32 %v2402, %v3197
      %v3200 = vadd.f32 %v2405, %v3197
      %v3201 = vadd.f32 %v2410, %v3197
      %v3202 = vadd.f32 %v2413, %v3197
      %v3203 = vadd.f32 %v2418, %v3197
      %v3204 = vadd.f32 %v2421, %v3197
      %v3205 = vadd.f32 %v2426, %v3197
      %v3206 = vadd.f32 %v2429, %v3197
      %v3207 = vadd.f32 %v2434, %v3197
      %v3208 = vadd.f32 %v2437, %v3197
      %v3209 = vadd.f32 %v2442, %v3197
      %v3210 = vadd.f32 %v2445, %v3197
      %v3211 = vadd.f32 %v2450, %v3197
      %v3212 = vadd.f32 %v2453, %v3197
      %v3213 = vadd.f32 %v2458, %v3197
      %v3214 = vadd.f32 %v2461, %v3197
      %v3215 = vadd.f32 %v2466, %v3197
      %v3216 = vadd.f32 %v2469, %v3197
      %v3217 = vadd.f32 %v2474, %v3197
      %v3218 = vadd.f32 %v2477, %v3197
      %v3219 = vadd.f32 %v2482, %v3197
      %v3220 = vadd.f32 %v2485, %v3197
      %v3221 = vadd.f32 %v2490, %v3197
      %v3222 = vadd.f32 %v2493, %v3197
      %v3223 = vadd.f32 %v2498, %v3197
      %v3224 = vadd.f32 %v2501, %v3197
      %v3225 = vadd.f32 %v2506, %v3197
      %v3226 = vadd.f32 %v2509, %v3197
      %v3227 = vadd.f32 %v2514, %v3197
      %v3228 = vadd.f32 %v2517, %v3197
      %v3229 = vadd.f32 %v2522, %v3197
      %v3230 = vadd.f32 %v2525, %v3197
      %v3231 = vcombine.low %v2939, %v2943
      %v3232 = vcombine.low %v2947, %v2951
      %v3234 = vunpack.c.l.s4 1983009808
      %v3235 = vunpack.c.0.s8 %v3234
      %v3236 = vlaneseq
      %v3237 = vshrl.u32 %v3236, 7
      %v3238 = vsub.s32 %v3235, %v3237
      %v3239 = vrot.slane %v3231, %v3238
      %v3241 = vunpack.c.l.s4 1983009808
      %v3242 = vunpack.c.0.s8 %v3241
      %v3243 = vlaneseq
      %v3244 = vshrl.u32 %v3243, 7
      %v3245 = vsub.s32 %v3242, %v3244
      %v3246 = vrot.slane %v3232, %v3245
      %v3247 = vcombine.low %v3239, %v3246
      %v3248 = vcombine.low %v2955, %v2959
      %v3249 = vcombine.low %v2963, %v2967
      %v3251 = vunpack.c.l.s4 1983009808
      %v3252 = vunpack.c.0.s8 %v3251
      %v3253 = vlaneseq
      %v3254 = vshrl.u32 %v3253, 7
      %v3255 = vsub.s32 %v3252, %v3254
      %v3256 = vrot.slane %v3248, %v3255
      %v3258 = vunpack.c.l.s4 1983009808
      %v3259 = vunpack.c.0.s8 %v3258
      %v3260 = vlaneseq
      %v3261 = vshrl.u32 %v3260, 7
      %v3262 = vsub.s32 %v3259, %v3261
      %v3263 = vrot.slane %v3249, %v3262
      %v3264 = vcombine.low %v3256, %v3263
      %v3265 = vcombine.low %v2971, %v2975
      %v3266 = vcombine.low %v2979, %v2983
      %v3268 = vunpack.c.l.s4 1983009808
      %v3269 = vunpack.c.0.s8 %v3268
      %v3270 = vlaneseq
      %v3271 = vshrl.u32 %v3270, 7
      %v3272 = vsub.s32 %v3269, %v3271
      %v3273 = vrot.slane %v3265, %v3272
      %v3275 = vunpack.c.l.s4 1983009808
      %v3276 = vunpack.c.0.s8 %v3275
      %v3277 = vlaneseq
      %v3278 = vshrl.u32 %v3277, 7
      %v3279 = vsub.s32 %v3276, %v3278
      %v3280 = vrot.slane %v3266, %v3279
      %v3281 = vcombine.low %v3273, %v3280
      %v3282 = vcombine.low %v2987, %v2991
      %v3283 = vcombine.low %v2995, %v2999
      %v3285 = vunpack.c.l.s4 1983009808
      %v3286 = vunpack.c.0.s8 %v3285
      %v3287 = vlaneseq
      %v3288 = vshrl.u32 %v3287, 7
      %v3289 = vsub.s32 %v3286, %v3288
      %v3290 = vrot.slane %v3282, %v3289
      %v3292 = vunpack.c.l.s4 1983009808
      %v3293 = vunpack.c.0.s8 %v3292
      %v3294 = vlaneseq
      %v3295 = vshrl.u32 %v3294, 7
      %v3296 = vsub.s32 %v3293, %v3295
      %v3297 = vrot.slane %v3283, %v3296
      %v3298 = vcombine.low %v3290, %v3297
      %v3299 = vcombine.low %v3003, %v3007
      %v3300 = vcombine.low %v3011, %v3015
      %v3302 = vunpack.c.l.s4 1983009808
      %v3303 = vunpack.c.0.s8 %v3302
      %v3304 = vlaneseq
      %v3305 = vshrl.u32 %v3304, 7
      %v3306 = vsub.s32 %v3303, %v3305
      %v3307 = vrot.slane %v3299, %v3306
      %v3309 = vunpack.c.l.s4 1983009808
      %v3310 = vunpack.c.0.s8 %v3309
      %v3311 = vlaneseq
      %v3312 = vshrl.u32 %v3311, 7
      %v3313 = vsub.s32 %v3310, %v3312
      %v3314 = vrot.slane %v3300, %v3313
      %v3315 = vcombine.low %v3307, %v3314
      %v3316 = vcombine.low %v3019, %v3023
      %v3317 = vcombine.low %v3027, %v3031
      %v3319 = vunpack.c.l.s4 1983009808
      %v3320 = vunpack.c.0.s8 %v3319
      %v3321 = vlaneseq
      %v3322 = vshrl.u32 %v3321, 7
      %v3323 = vsub.s32 %v3320, %v3322
      %v3324 = vrot.slane %v3316, %v3323
      %v3326 = vunpack.c.l.s4 1983009808
      %v3327 = vunpack.c.0.s8 %v3326
      %v3328 = vlaneseq
      %v3329 = vshrl.u32 %v3328, 7
      %v3330 = vsub.s32 %v3327, %v3329
      %v3331 = vrot.slane %v3317, %v3330
      %v3332 = vcombine.low %v3324, %v3331
      %v3333 = vcombine.low %v3035, %v3039
      %v3334 = vcombine.low %v3043, %v3047
      %v3336 = vunpack.c.l.s4 1983009808
      %v3337 = vunpack.c.0.s8 %v3336
      %v3338 = vlaneseq
      %v3339 = vshrl.u32 %v3338, 7
      %v3340 = vsub.s32 %v3337, %v3339
      %v3341 = vrot.slane %v3333, %v3340
      %v3343 = vunpack.c.l.s4 1983009808
      %v3344 = vunpack.c.0.s8 %v3343
      %v3345 = vlaneseq
      %v3346 = vshrl.u32 %v3345, 7
      %v3347 = vsub.s32 %v3344, %v3346
      %v3348 = vrot.slane %v3334, %v3347
      %v3349 = vcombine.low %v3341, %v3348
      %v3350 = vcombine.low %v3051, %v3055
      %v3351 = vcombine.low %v3059, %v3063
      %v3353 = vunpack.c.l.s4 1983009808
      %v3354 = vunpack.c.0.s8 %v3353
      %v3355 = vlaneseq
      %v3356 = vshrl.u32 %v3355, 7
      %v3357 = vsub.s32 %v3354, %v3356
      %v3358 = vrot.slane %v3350, %v3357
      %v3360 = vunpack.c.l.s4 1983009808
      %v3361 = vunpack.c.0.s8 %v3360
      %v3362 = vlaneseq
      %v3363 = vshrl.u32 %v3362, 7
      %v3364 = vsub.s32 %v3361, %v3363
      %v3365 = vrot.slane %v3351, %v3364
      %v3366 = vcombine.low %v3358, %v3365
      %v3367 = vcombine.low %v3067, %v3071
      %v3368 = vcombine.low %v3075, %v3079
      %v3370 = vunpack.c.l.s4 1983009808
      %v3371 = vunpack.c.0.s8 %v3370
      %v3372 = vlaneseq
      %v3373 = vshrl.u32 %v3372, 7
      %v3374 = vsub.s32 %v3371, %v3373
      %v3375 = vrot.slane %v3367, %v3374
      %v3377 = vunpack.c.l.s4 1983009808
      %v3378 = vunpack.c.0.s8 %v3377
      %v3379 = vlaneseq
      %v3380 = vshrl.u32 %v3379, 7
      %v3381 = vsub.s32 %v3378, %v3380
      %v3382 = vrot.slane %v3368, %v3381
      %v3383 = vcombine.low %v3375, %v3382
      %v3384 = vcombine.low %v3083, %v3087
      %v3385 = vcombine.low %v3091, %v3095
      %v3387 = vunpack.c.l.s4 1983009808
      %v3388 = vunpack.c.0.s8 %v3387
      %v3389 = vlaneseq
      %v3390 = vshrl.u32 %v3389, 7
      %v3391 = vsub.s32 %v3388, %v3390
      %v3392 = vrot.slane %v3384, %v3391
      %v3394 = vunpack.c.l.s4 1983009808
      %v3395 = vunpack.c.0.s8 %v3394
      %v3396 = vlaneseq
      %v3397 = vshrl.u32 %v3396, 7
      %v3398 = vsub.s32 %v3395, %v3397
      %v3399 = vrot.slane %v3385, %v3398
      %v3400 = vcombine.low %v3392, %v3399
      %v3401 = vcombine.low %v3099, %v3103
      %v3402 = vcombine.low %v3107, %v3111
      %v3404 = vunpack.c.l.s4 1983009808
      %v3405 = vunpack.c.0.s8 %v3404
      %v3406 = vlaneseq
      %v3407 = vshrl.u32 %v3406, 7
      %v3408 = vsub.s32 %v3405, %v3407
      %v3409 = vrot.slane %v3401, %v3408
      %v3411 = vunpack.c.l.s4 1983009808
      %v3412 = vunpack.c.0.s8 %v3411
      %v3413 = vlaneseq
      %v3414 = vshrl.u32 %v3413, 7
      %v3415 = vsub.s32 %v3412, %v3414
      %v3416 = vrot.slane %v3402, %v3415
      %v3417 = vcombine.low %v3409, %v3416
      %v3418 = vcombine.low %v3115, %v3119
      %v3419 = vcombine.low %v3123, %v3127
      %v3421 = vunpack.c.l.s4 1983009808
      %v3422 = vunpack.c.0.s8 %v3421
      %v3423 = vlaneseq
      %v3424 = vshrl.u32 %v3423, 7
      %v3425 = vsub.s32 %v3422, %v3424
      %v3426 = vrot.slane %v3418, %v3425
      %v3428 = vunpack.c.l.s4 1983009808
      %v3429 = vunpack.c.0.s8 %v3428
      %v3430 = vlaneseq
      %v3431 = vshrl.u32 %v3430, 7
      %v3432 = vsub.s32 %v3429, %v3431
      %v3433 = vrot.slane %v3419, %v3432
      %v3434 = vcombine.low %v3426, %v3433
      %v3435 = vcombine.low %v3131, %v3135
      %v3436 = vcombine.low %v3139, %v3143
      %v3438 = vunpack.c.l.s4 1983009808
      %v3439 = vunpack.c.0.s8 %v3438
      %v3440 = vlaneseq
      %v3441 = vshrl.u32 %v3440, 7
      %v3442 = vsub.s32 %v3439, %v3441
      %v3443 = vrot.slane %v3435, %v3442
      %v3445 = vunpack.c.l.s4 1983009808
      %v3446 = vunpack.c.0.s8 %v3445
      %v3447 = vlaneseq
      %v3448 = vshrl.u32 %v3447, 7
      %v3449 = vsub.s32 %v3446, %v3448
      %v3450 = vrot.slane %v3436, %v3449
      %v3451 = vcombine.low %v3443, %v3450
      %v3452 = vcombine.low %v3147, %v3151
      %v3453 = vcombine.low %v3155, %v3159
      %v3455 = vunpack.c.l.s4 1983009808
      %v3456 = vunpack.c.0.s8 %v3455
      %v3457 = vlaneseq
      %v3458 = vshrl.u32 %v3457, 7
      %v3459 = vsub.s32 %v3456, %v3458
      %v3460 = vrot.slane %v3452, %v3459
      %v3462 = vunpack.c.l.s4 1983009808
      %v3463 = vunpack.c.0.s8 %v3462
      %v3464 = vlaneseq
      %v3465 = vshrl.u32 %v3464, 7
      %v3466 = vsub.s32 %v3463, %v3465
      %v3467 = vrot.slane %v3453, %v3466
      %v3468 = vcombine.low %v3460, %v3467
      %v3469 = vcombine.low %v3163, %v3167
      %v3470 = vcombine.low %v3171, %v3175
      %v3472 = vunpack.c.l.s4 1983009808
      %v3473 = vunpack.c.0.s8 %v3472
      %v3474 = vlaneseq
      %v3475 = vshrl.u32 %v3474, 7
      %v3476 = vsub.s32 %v3473, %v3475
      %v3477 = vrot.slane %v3469, %v3476
      %v3479 = vunpack.c.l.s4 1983009808
      %v3480 = vunpack.c.0.s8 %v3479
      %v3481 = vlaneseq
      %v3482 = vshrl.u32 %v3481, 7
      %v3483 = vsub.s32 %v3480, %v3482
      %v3484 = vrot.slane %v3470, %v3483
      %v3485 = vcombine.low %v3477, %v3484
      %v3486 = vcombine.low %v3179, %v3183
      %v3487 = vcombine.low %v3187, %v3191
      %v3489 = vunpack.c.l.s4 1983009808
      %v3490 = vunpack.c.0.s8 %v3489
      %v3491 = vlaneseq
      %v3492 = vshrl.u32 %v3491, 7
      %v3493 = vsub.s32 %v3490, %v3492
      %v3494 = vrot.slane %v3486, %v3493
      %v3496 = vunpack.c.l.s4 1983009808
      %v3497 = vunpack.c.0.s8 %v3496
      %v3498 = vlaneseq
      %v3499 = vshrl.u32 %v3498, 7
      %v3500 = vsub.s32 %v3497, %v3499
      %v3501 = vrot.slane %v3487, %v3500
      %v3502 = vcombine.low %v3494, %v3501
      %v3519 = vadd.f32 %v3199, %v3247
      %v3520 = vadd.f32 %v3200, %v3264
      %v3521 = vadd.f32 %v3201, %v3247
      %v3522 = vadd.f32 %v3202, %v3264
      %v3523 = vadd.f32 %v3203, %v3281
      %v3524 = vadd.f32 %v3204, %v3298
      %v3525 = vadd.f32 %v3205, %v3281
      %v3526 = vadd.f32 %v3206, %v3298
      %v3527 = vadd.f32 %v3207, %v3315
      %v3528 = vadd.f32 %v3208, %v3332
      %v3529 = vadd.f32 %v3209, %v3315
      %v3530 = vadd.f32 %v3210, %v3332
      %v3531 = vadd.f32 %v3211, %v3349
      %v3532 = vadd.f32 %v3212, %v3366
      %v3533 = vadd.f32 %v3213, %v3349
      %v3534 = vadd.f32 %v3214, %v3366
      %v3535 = vadd.f32 %v3215, %v3383
      %v3536 = vadd.f32 %v3216, %v3400
      %v3537 = vadd.f32 %v3217, %v3383
      %v3538 = vadd.f32 %v3218, %v3400
      %v3539 = vadd.f32 %v3219, %v3417
      %v3540 = vadd.f32 %v3220, %v3434
      %v3541 = vadd.f32 %v3221, %v3417
      %v3542 = vadd.f32 %v3222, %v3434
      %v3543 = vadd.f32 %v3223, %v3451
      %v3544 = vadd.f32 %v3224, %v3468
      %v3545 = vadd.f32 %v3225, %v3451
      %v3546 = vadd.f32 %v3226, %v3468
      %v3547 = vadd.f32 %v3227, %v3485
      %v3548 = vadd.f32 %v3228, %v3502
      %v3549 = vadd.f32 %v3229, %v3485
      %v3550 = vadd.f32 %v3230, %v3502
      %v3551 = vmax.f32 %v3519, 0.0
      %v3552 = vmax.f32 %v3520, 0.0
      %v3553 = vmax.f32 %v3521, 0.0
      %v3554 = vmax.f32 %v3522, 0.0
      %v3555 = vmax.f32 %v3523, 0.0
      %v3556 = vmax.f32 %v3524, 0.0
      %v3557 = vmax.f32 %v3525, 0.0
      %v3558 = vmax.f32 %v3526, 0.0
      %v3559 = vmax.f32 %v3527, 0.0
      %v3560 = vmax.f32 %v3528, 0.0
      %v3561 = vmax.f32 %v3529, 0.0
      %v3562 = vmax.f32 %v3530, 0.0
      %v3563 = vmax.f32 %v3531, 0.0
      %v3564 = vmax.f32 %v3532, 0.0
      %v3565 = vmax.f32 %v3533, 0.0
      %v3566 = vmax.f32 %v3534, 0.0
      %v3567 = vmax.f32 %v3535, 0.0
      %v3568 = vmax.f32 %v3536, 0.0
      %v3569 = vmax.f32 %v3537, 0.0
      %v3570 = vmax.f32 %v3538, 0.0
      %v3571 = vmax.f32 %v3539, 0.0
      %v3572 = vmax.f32 %v3540, 0.0
      %v3573 = vmax.f32 %v3541, 0.0
      %v3574 = vmax.f32 %v3542, 0.0
      %v3575 = vmax.f32 %v3543, 0.0
      %v3576 = vmax.f32 %v3544, 0.0
      %v3577 = vmax.f32 %v3545, 0.0
      %v3578 = vmax.f32 %v3546, 0.0
      %v3579 = vmax.f32 %v3547, 0.0
      %v3580 = vmax.f32 %v3548, 0.0
      %v3581 = vmax.f32 %v3549, 0.0
      %v3582 = vmax.f32 %v3550, 0.0
      %3583 = vst.msk [vmem:[%s454] sm:$0xff] %vm720, %v3551
      %3584 = vst.msk [vmem:[%s454 + $0x8] sm:$0xff] %vm720, %v3552
      %3585 = vst.msk [vmem:[%s454 + $0x10] sm:$0xff] %vm720, %v3553
      %3586 = vst.msk [vmem:[%s454 + $0x18] sm:$0xff] %vm720, %v3554
      %3587 = vst.msk [vmem:[%s454 + $0x20] sm:$0xff] %vm720, %v3555
      %3588 = vst.msk [vmem:[%s454 + $0x28] sm:$0xff] %vm720, %v3556
      %3589 = vst.msk [vmem:[%s454 + $0x30] sm:$0xff] %vm720, %v3557
      %3590 = vst.msk [vmem:[%s454 + $0x38] sm:$0xff] %vm720, %v3558
      %3591 = vst.msk [vmem:[%s454 + $0x40] sm:$0xff] %vm720, %v3559
      %3592 = vst.msk [vmem:[%s454 + $0x48] sm:$0xff] %vm720, %v3560
      %3593 = vst.msk [vmem:[%s454 + $0x50] sm:$0xff] %vm720, %v3561
      %3594 = vst.msk [vmem:[%s454 + $0x58] sm:$0xff] %vm720, %v3562
      %3595 = vst.msk [vmem:[%s454 + $0x60] sm:$0xff] %vm720, %v3563
      %3596 = vst.msk [vmem:[%s454 + $0x68] sm:$0xff] %vm720, %v3564
      %3597 = vst.msk [vmem:[%s454 + $0x70] sm:$0xff] %vm720, %v3565
      %3598 = vst.msk [vmem:[%s454 + $0x78] sm:$0xff] %vm720, %v3566
      %3599 = vst.msk [vmem:[%s454 + $0x80] sm:$0xff] %vm720, %v3567
      %3600 = vst.msk [vmem:[%s454 + $0x88] sm:$0xff] %vm720, %v3568
      %3601 = vst.msk [vmem:[%s454 + $0x90] sm:$0xff] %vm720, %v3569
      %3602 = vst.msk [vmem:[%s454 + $0x98] sm:$0xff] %vm720, %v3570
      %3603 = vst.msk [vmem:[%s454 + $0xa0] sm:$0xff] %vm720, %v3571
      %3604 = vst.msk [vmem:[%s454 + $0xa8] sm:$0xff] %vm720, %v3572
      %3605 = vst.msk [vmem:[%s454 + $0xb0] sm:$0xff] %vm720, %v3573
      %3606 = vst.msk [vmem:[%s454 + $0xb8] sm:$0xff] %vm720, %v3574
      %3607 = vst.msk [vmem:[%s454 + $0xc0] sm:$0xff] %vm720, %v3575
      %3608 = vst.msk [vmem:[%s454 + $0xc8] sm:$0xff] %vm720, %v3576
      %3609 = vst.msk [vmem:[%s454 + $0xd0] sm:$0xff] %vm720, %v3577
      %3610 = vst.msk [vmem:[%s454 + $0xd8] sm:$0xff] %vm720, %v3578
      %3611 = vst.msk [vmem:[%s454 + $0xe0] sm:$0xff] %vm720, %v3579
      %3612 = vst.msk [vmem:[%s454 + $0xe8] sm:$0xff] %vm720, %v3580
      %3613 = vst.msk [vmem:[%s454 + $0xf0] sm:$0xff] %vm720, %v3581
      %3614 = vst.msk [vmem:[%s454 + $0xf8] sm:$0xff] %vm720, %v3582
      %s3615 = smul.u32 16, %s22
      %p3616 = scmp.lt.s32.totalorder %s21, 1
      %s3617 = scalar_select %p3616, %s21, 1
      %p3618 = scmp.lt.s32.totalorder %s3615, 15
      %s3619 = scalar_select %p3618, %s3615, 15
      %s3620 = smul.addr %s3619, 2
      %s3621 = smul.addr %s3617, 32
      %s3622 = sadd.s32 %s3620, %s3621
      %s3623 = smul.addr %s3622, 8
      %s3624 = scalar_lea.vmem %s6, %s3623
      // Predicated region
      $region45: #{attention_gate_forward.5} parent=43 // pred_check
        %p3625 = pneg %p219
      $region46: #{attention_gate_forward.5} parent=43 // pred_check_branch
        %3627 = sbr.rel (%p3625) target = $region48
      $region47: #{attention_gate_forward.5} parent=43 // pred_region
        %s3628 = smul.u32 16, %s22
      $region48: #{attention_gate_forward.5} parent=43 // pred_fallthru
        _
    $region44: #{attention_gate_forward.5} parent=5 // pred_fallthru
      _
    %p3629 = scmp.le.s32.totalorder 2, %s12
    // Predicated region
    $region49: #{attention_gate_forward.5} parent=5 // pred_check
      %p3630 = pneg %p3629
    $region50: #{attention_gate_forward.5} parent=5 // pred_check_branch
      %3632 = sbr.rel (%p3630) target = $region52
    $region51: #{attention_gate_forward.5} parent=5 // pred_region
      %s3633 = ssub.s32 %s12, 2
      // Predicated region
      $region53: #{attention_gate_forward.5} parent=51 // pred_check
        %p3634 = pneg %p225
      $region54: #{attention_gate_forward.5} parent=51 // pred_check_branch
        %3636 = sbr.rel (%p3634) target = $region56
      $region55: #{attention_gate_forward.5} parent=51 // pred_region
        %s3637 = smul.u32 16, %s24
        %p3638 = scmp.lt.s32.totalorder %s23, 1
        %s3639 = scalar_select %p3638, %s23, 1
        %p3640 = scmp.lt.s32.totalorder %s3637, 15
        %s3641 = scalar_select %p3640, %s3637, 15
        %s3642 = smul.addr %s3641, 2
        %s3643 = smul.addr %s3639, 32
        %s3644 = sadd.s32 %s3642, %s3643
        %s3645 = smul.addr %s3644, 8
        %s3646 = scalar_lea.vmem %s6, %s3645
      $region56: #{attention_gate_forward.5} parent=51 // pred_fallthru
        _
    $region52: #{attention_gate_forward.5} parent=5 // pred_fallthru
      _
  $region6: #{attention_gate_forward.5} parent=0 // loop_footer
    %s16 = sadd.s32 1, %s12
  $region7: #{attention_gate_forward.5} parent=0 // loop_footer_branch
    %11 = sbr.rel target = $region3
  $region8: #{attention_gate_forward.5} parent=0 // loop_exit
    _

</llo_original>
